<compile_context>
chip_gen: v6e
topology: v6e:2x2x1
jax: 0.10.0
libtpu: 0.0.40
codegen_flags: <defaults>
</compile_context>

<pallas_src>
import functools

import jax
import jax.numpy as jnp
from jax.experimental import pallas as pl
from jax.experimental.pallas import tpu as pltpu


def _round_up(x, m):
    return (x + m - 1) // m * m


_SMALL_M = 128                       # below this, a padded MXU tile wastes >= 75% of rows
_VMEM_TILE_BUDGET = 12 * 2 ** 20     # fits the default scoped-VMEM limit on every TPU gen


@functools.lru_cache(maxsize=1)
def _multi_tensorcore():
    """True only when the chip has >1 TensorCore (v7x); gates the M-split heuristic."""
    try:
        kind = jax.devices()[0].device_kind.lower()
    except Exception:
        return False
    return "v7" in kind


# --------------------------------------------------------------------------
# Pallas kernels: one-shot (whole-K) MXU matmul with fused scale/shift[/residual]/ReLU
# --------------------------------------------------------------------------
def _mm_kernel(x_ref, w_ref, ss_ref, o_ref, *, relu):
    y = jnp.dot(x_ref[...], w_ref[...], preferred_element_type=jnp.float32)
    y = y * ss_ref[0:1, :] + ss_ref[1:2, :]
    if relu:
        y = jnp.maximum(y, 0.0)
    o_ref[...] = y.astype(o_ref.dtype)


def _mm_res_kernel(x_ref, w_ref, ss_ref, r_ref, o_ref, *, relu):
    y = jnp.dot(x_ref[...], w_ref[...], preferred_element_type=jnp.float32)
    y = y * ss_ref[0:1, :] + ss_ref[1:2, :] + r_ref[...].astype(jnp.float32)
    if relu:
        y = jnp.maximum(y, 0.0)
    o_ref[...] = y.astype(o_ref.dtype)


def matmul_scale_shift(x, w, ss, cout, *, relu=False, residual=None,
                       out_dtype=jnp.bfloat16):
    """act((x @ w) * ss[0] + ss[1] [+ residual]) -> (M, cout).

    x: (M, K) (K may already equal the padded Kp).  w: (Kp, Np) bf16, PRE-padded/packed.
    ss: (2, Np) f32 = [scale; shift].  Accumulation and epilogue in f32.
    """
    M, K = x.shape
    Kp, Np = w.shape

    if M < _SMALL_M:
        # Small-M fallback: launch + padding overhead of a 128-row Pallas tile would
        # dominate; a plain bf16 dot still hits the MXU via XLA, same fused epilogue.
        y = jnp.dot(x.astype(jnp.bfloat16), w[:K, :cout],
                    preferred_element_type=jnp.float32)
        y = y * ss[0:1, :cout] + ss[1:2, :cout]
        if residual is not None:
            y = y + residual.astype(jnp.float32)
        if relu:
            y = jnp.maximum(y, 0.0)
        return y.astype(out_dtype)

    x = x.astype(jnp.bfloat16)
    if K < Kp:                       # callers normally hand over already-K-padded patches
        x = jnp.pad(x, ((0, 0), (0, Kp - K)))

    # ---- tile selection: weight fully resident (TN = Np), whole-K activation tile ----
    TN = Np
    TM = 0
    for cand in (512, 256, 128):     # prefer a TM that divides M -> no M padding at all
        if M % cand == 0:
            TM = cand
            break
    if TM == 0:
        TM = min(512, _round_up(M, 128))

    out_isz = jnp.dtype(out_dtype).itemsize

    def est_bytes(tm, tn):
        b = 2 * (tm * Kp + Kp * tn) * 2          # double-buffered bf16 act + weight
        b += 2 * tm * tn * out_isz               # double-buffered output
        b += 2 * 2 * tn * 4                      # fused scale/shift
        if residual is not None:
            b += 2 * tm * tn * 2                 # double-buffered residual stream
        return b

    while est_bytes(TM, TN) > _VMEM_TILE_BUDGET and TM > 128:
        TM //= 2
    while est_bytes(TM, TN) > _VMEM_TILE_BUDGET and TN > 128:
        TN //= 2

    # v7x has 2 TensorCores: if the grid has a single tile, split M so both get work.
    if _multi_tensorcore() and (_round_up(M, TM) // TM) * (Np // TN) == 1 and TM >= 16:
        TM //= 2

    Mp = _round_up(M, TM)
    if Mp > M:
        x = jnp.pad(x, ((0, Mp - M), (0, 0)))

    grid_m, grid_n = Mp // TM, Np // TN
    if grid_n == 1:                  # drop the N grid axis entirely
        grid = (grid_m,)
        x_map, w_map = (lambda i: (i, 0)), (lambda i: (0, 0))
        ss_map, o_map = (lambda i: (0, 0)), (lambda i: (i, 0))
        r_map = lambda i: (i, 0)
        sem = ("parallel",)
    else:
        grid = (grid_m, grid_n)
        x_map, w_map = (lambda i, j: (i, 0)), (lambda i, j: (0, j))
        ss_map, o_map = (lambda i, j: (0, j)), (lambda i, j: (i, j))
        r_map = lambda i, j: (i, j)
        sem = ("parallel", "parallel")

    in_specs = [
        pl.BlockSpec((TM, Kp), x_map),     # whole-K activation tile
        pl.BlockSpec((Kp, TN), w_map),     # weight: constant block index when grid_n==1
        pl.BlockSpec((2, TN), ss_map),     # fused scale/shift
    ]
    args = [x, w, ss]
    bytes_accessed = Mp * Kp * 2 + Kp * Np * 2 + 2 * Np * 4 + Mp * Np * out_isz
    if residual is not None:
        Mr, Nr = residual.shape
        r = residual.astype(jnp.bfloat16)
        if Mp > Mr or Np > Nr:
            r = jnp.pad(r, ((0, Mp - Mr), (0, Np - Nr)))
        in_specs.append(pl.BlockSpec((TM, TN), r_map))
        args.append(r)
        bytes_accessed += Mp * Np * 2
        kernel = functools.partial(_mm_res_kernel, relu=relu)
    else:
        kernel = functools.partial(_mm_kernel, relu=relu)

    out = pl.pallas_call(
        kernel,
        out_shape=jax.ShapeDtypeStruct((Mp, Np), out_dtype),
        grid_spec=pltpu.PrefetchScalarGridSpec(
            num_scalar_prefetch=0,
            grid=grid,
            in_specs=in_specs,
            out_specs=pl.BlockSpec((TM, TN), o_map),
        ),
        compiler_params=pltpu.CompilerParams(
            dimension_semantics=sem,
            vmem_limit_bytes=32 * 2 ** 20),
        cost_estimate=pl.CostEstimate(
            flops=2 * Mp * Kp * Np,
            transcendentals=0,
            bytes_accessed=bytes_accessed),
    )(*args)

    if Mp == M and Np == cout:
        return out
    return out[:M, :cout]            # single fused output slice


# --------------------------------------------------------------------------
# Conv as im2col (bf16, plain-JAX glue, K pre-padded) + Pallas matmul w/ fused epilogue
# --------------------------------------------------------------------------
def conv2d(x, cw, *, ksize, cout, relu=False, stride=1, padding=0, dilation=1,
           residual=None, out_dtype=jnp.bfloat16):
    """x: (N,H,W,Cin) NHWC.  cw: pre-packed dict {'w': (Kp,Np) bf16, 'ss': (2,Np) f32}."""
    N, H, W, Cin = x.shape
    KH = KW = ksize
    Ho = (H + 2 * padding - dilation * (KH - 1) - 1) // stride + 1
    Wo = (W + 2 * padding - dilation * (KW - 1) - 1) // stride + 1
    M = N * Ho * Wo
    K = KH * KW * Cin
    Kp = cw['w'].shape[0]
    x = x.astype(jnp.bfloat16)
    if KH == 1 and stride == 1 and padding == 0:
        patches = x.reshape(M, Cin)
        if M >= _SMALL_M and Kp > Cin:
            # emit the K padding inside the same materialization (no pad round-trip)
            patches = jnp.concatenate(
                [patches, jnp.zeros((M, Kp - Cin), jnp.bfloat16)], axis=-1)
    else:
        xp = jnp.pad(x, ((0, 0), (padding, padding), (padding, padding), (0, 0)))
        cols = []
        for i in range(KH):
            for j in range(KW):
                cols.append(
                    xp[:, i * dilation:i * dilation + stride * (Ho - 1) + 1:stride,
                       j * dilation:j * dilation + stride * (Wo - 1) + 1:stride, :])
        if M >= _SMALL_M and Kp > K:
            cols.append(jnp.zeros((N, Ho, Wo, Kp - K), jnp.bfloat16))
        patches = jnp.concatenate(cols, axis=-1).reshape(M, -1)

    res2 = None if residual is None else residual.reshape(M, cout)
    out = matmul_scale_shift(patches, cw['w'], cw['ss'], cout,
                             relu=relu, residual=res2, out_dtype=out_dtype)
    return out.reshape(N, Ho, Wo, cout)


def maxpool_3x3_s2_p1(x):
    """nn.MaxPool2d(3, stride=2, padding=1), NHWC.  Pairwise max in plain JAX (XLA
    fuses the 9-way max; avoids the 9x HBM stack and sub-128-lane masked stores)."""
    N, H, W, C = x.shape
    Ho = (H + 2 - 3) // 2 + 1
    Wo = (W + 2 - 3) // 2 + 1
    xp = jnp.pad(x, ((0, 0), (1, 1), (1, 1), (0, 0)), constant_values=-jnp.inf)
    out = None
    for i in range(3):
        for j in range(3):
            s = xp[:, i:i + 2 * (Ho - 1) + 1:2, j:j + 2 * (Wo - 1) + 1:2, :]
            out = s if out is None else jnp.maximum(out, s)
    return out


def bilinear_resize(x, out_h, out_w):
    """PyTorch bilinear interpolate, align_corners=False.  x: NHWC."""
    N, H, W, C = x.shape

    def src_idx(out_size, in_size):
        i = jnp.arange(out_size, dtype=jnp.float32)
        s = (i + 0.5) * (in_size / out_size) - 0.5
        s = jnp.maximum(s, 0.0)
        i0 = jnp.minimum(jnp.floor(s).astype(jnp.int32), in_size - 1)
        i1 = jnp.minimum(i0 + 1, in_size - 1)
        frac = s - i0.astype(jnp.float32)
        return i0, i1, frac

    y0, y1, fy = src_idx(out_h, H)
    x0, x1, fx = src_idx(out_w, W)
    fx = fx[None, None, :, None]
    fy = fy[None, :, None, None]
    top = x[:, y0][:, :, x0] * (1.0 - fx) + x[:, y0][:, :, x1] * fx
    bot = x[:, y1][:, :, x0] * (1.0 - fx) + x[:, y1][:, :, x1] * fx
    return top * (1.0 - fy) + bot * fy


# --------------------------------------------------------------------------
# Parameters (deterministic synthetic init, PyTorch layout) + one-time prep
# --------------------------------------------------------------------------
class KeyGen:
    def __init__(self, seed):
        self.key = jax.random.PRNGKey(seed)

    def __call__(self):
        self.key, sub = jax.random.split(self.key)
        return sub


def init_params(num_classes=5):
    kg = KeyGen(0)

    def conv_w(cout, cin, k):
        fan = cin * k * k
        return jax.random.normal(kg(), (cout, cin, k, k), jnp.float32) / jnp.sqrt(fan)

    def bias(c):
        return 0.01 * jax.random.normal(kg(), (c,), jnp.float32)

    def bn(c):
        return dict(gamma=1.0 + 0.1 * jax.random.normal(kg(), (c,), jnp.float32),
                    beta=0.1 * jax.random.normal(kg(), (c,), jnp.float32),
                    mean=jnp.zeros((c,), jnp.float32),
                    var=jnp.ones((c,), jnp.float32))

    def block(cin, cout, downsample):
        p = dict(conv1_w=conv_w(cout, cin, 3), bn1=bn(cout),
                 conv2_w=conv_w(cout, cout, 3), bn2=bn(cout))
        if downsample:
            p['ds_w'] = conv_w(cout, cin, 1)
            p['ds_bn'] = bn(cout)
        return p

    P = {}
    P['conv1_w'] = conv_w(64, 3, 7)
    P['bn1'] = bn(64)
    P['layer1'] = [block(64, 64, False), block(64, 64, False)]
    P['layer2'] = [block(64, 128, True), block(128, 128, False)]
    P['layer3'] = [block(128, 256, True), block(256, 256, False)]
    P['layer4'] = [block(256, 512, True), block(512, 512, False)]
    P['aspp_b0_w'] = conv_w(256, 512, 1); P['aspp_b0_b'] = bias(256)
    P['aspp_b1_w'] = conv_w(256, 512, 3); P['aspp_b1_b'] = bias(256)
    P['aspp_b2_w'] = conv_w(256, 512, 3); P['aspp_b2_b'] = bias(256)
    P['aspp_b3_w'] = conv_w(256, 512, 1); P['aspp_b3_b'] = bias(256)
    P['aspp_fuse_w'] = conv_w(256, 1024, 1); P['aspp_fuse_b'] = bias(256)
    P['aspp_fuse_bn'] = bn(256)
    P['final_w'] = conv_w(num_classes, 256, 1); P['final_b'] = bias(num_classes)
    return P


def bn_fold(bn, bias=None, eps=1e-5):
    scale = bn['gamma'] / jnp.sqrt(bn['var'] + eps)
    b = bias if bias is not None else 0.0
    shift = bn['beta'] + (b - bn['mean']) * scale
    return scale, shift


def _prep_conv(w, scale, shift):
    """PyTorch (Cout,Cin,KH,KW) -> matmul-ready (Kp,Np) bf16 weight + (2,Np) f32 scale/shift."""
    Cout, Cin, KH, KW = w.shape
    K = KH * KW * Cin
    Kp = _round_up(K, 128)
    Np = _round_up(Cout, 128)
    wm = jnp.transpose(w, (2, 3, 1, 0)).reshape(K, Cout)
    wm = jnp.pad(wm, ((0, Kp - K), (0, Np - Cout))).astype(jnp.bfloat16)
    ss = jnp.stack([jnp.pad(scale.astype(jnp.float32), (0, Np - Cout)),
                    jnp.pad(shift.astype(jnp.float32), (0, Np - Cout))])
    return dict(w=wm, ss=ss)


def prepare_params(P):
    """Fold BN into scale/shift and relayout/pad/cast all weights ONCE (outside jit)."""
    def conv_bn(w, bn):
        s, b = bn_fold(bn)
        return _prep_conv(w, s, b)

    def conv_bias(w, bias):
        cout = w.shape[0]
        return _prep_conv(w, jnp.ones((cout,), jnp.float32), bias)

    prep = {}
    prep['stem'] = conv_bn(P['conv1_w'], P['bn1'])
    for layer in ('layer1', 'layer2', 'layer3', 'layer4'):
        blocks = []
        for bp in P[layer]:
            d = dict(conv1=conv_bn(bp['conv1_w'], bp['bn1']),
                     conv2=conv_bn(bp['conv2_w'], bp['bn2']))
            if 'ds_w' in bp:
                d['ds'] = conv_bn(bp['ds_w'], bp['ds_bn'])
            blocks.append(d)
        prep[layer] = blocks
    prep['aspp_b0'] = conv_bias(P['aspp_b0_w'], P['aspp_b0_b'])
    # dilated branches: keep both the full 3x3 weights and the center-tap-only 1x1
    # weights (used when dilation >= feature size: all off-center taps read zero pad).
    prep['aspp_b1'] = dict(full=conv_bias(P['aspp_b1_w'], P['aspp_b1_b']),
                           center=conv_bias(P['aspp_b1_w'][:, :, 1:2, 1:2],
                                            P['aspp_b1_b']))
    prep['aspp_b2'] = dict(full=conv_bias(P['aspp_b2_w'], P['aspp_b2_b']),
                           center=conv_bias(P['aspp_b2_w'][:, :, 1:2, 1:2],
                                            P['aspp_b2_b']))
    # global-average-pool branch: M == batch, keep as a tiny plain-JAX dot
    prep['aspp_b3_w'] = jnp.transpose(P['aspp_b3_w'], (2, 3, 1, 0)).reshape(512, 256)
    prep['aspp_b3_b'] = P['aspp_b3_b']
    sf, bf = bn_fold(P['aspp_fuse_bn'], bias=P['aspp_fuse_b'])
    prep['aspp_fuse'] = _prep_conv(P['aspp_fuse_w'], sf, bf)
    prep['final'] = conv_bias(P['final_w'], P['final_b'])
    return prep


# --------------------------------------------------------------------------
# Forward pass
# --------------------------------------------------------------------------
def basic_block_fwd(x, bp, cout, stride):
    out = conv2d(x, bp['conv1'], ksize=3, cout=cout, relu=True,
                 stride=stride, padding=1)
    if 'ds' in bp:
        identity = conv2d(x, bp['ds'], ksize=1, cout=cout, relu=False,
                          stride=stride, padding=0)
    else:
        identity = x
    # residual add + ReLU fused into the second conv's matmul epilogue
    return conv2d(out, bp['conv2'], ksize=3, cout=cout, relu=True,
                  stride=1, padding=1, residual=identity)


def _aspp_dilated(x, cw, dilation, cout=256):
    h, w = x.shape[1], x.shape[2]
    if dilation >= h and dilation >= w:
        # padding == dilation >= feature size -> every off-center tap reads zero
        # padding; bit-identical to a 1x1 conv with only the center-tap weights.
        return conv2d(x, cw['center'], ksize=1, cout=cout, relu=False)
    return conv2d(x, cw['full'], ksize=3, cout=cout, relu=False,
                  padding=dilation, dilation=dilation)


def deeplabv3_forward(x_nchw, prep, num_classes=5):
    # NCHW (PyTorch) -> NHWC (kernel layout); activations carried in bf16
    x = jnp.transpose(x_nchw, (0, 2, 3, 1)).astype(jnp.bfloat16)

    # ---- ResNet18 backbone (children()[:-2]) ----
    x = conv2d(x, prep['stem'], ksize=7, cout=64, relu=True, stride=2, padding=3)
    x = maxpool_3x3_s2_p1(x)
    couts = dict(layer1=64, layer2=128, layer3=256, layer4=512)
    for layer, stride in zip(('layer1', 'layer2', 'layer3', 'layer4'), (1, 2, 2, 2)):
        blocks = prep[layer]
        x = basic_block_fwd(x, blocks[0], couts[layer], stride)
        x = basic_block_fwd(x, blocks[1], couts[layer], 1)

    # ---- ASPP ----
    N, h, w, _ = x.shape
    b0 = conv2d(x, prep['aspp_b0'], ksize=1, cout=256, relu=False)
    b1 = _aspp_dilated(x, prep['aspp_b1'], dilation=6)
    b2 = _aspp_dilated(x, prep['aspp_b2'], dilation=12)
    pooled = jnp.mean(x.astype(jnp.float32), axis=(1, 2))          # AdaptiveAvgPool2d(1)
    b3 = pooled @ prep['aspp_b3_w'] + prep['aspp_b3_b']            # 1x1 conv, M == batch
    b3 = b3.reshape(N, 1, 1, 256)
    b3 = bilinear_resize(b3, 8, 8)                                 # Upsample(scale_factor=8)
    b3 = bilinear_resize(b3, h, w)                                 # F.interpolate(size=(h,w))
    cat = jnp.concatenate([b0, b1, b2, b3.astype(jnp.bfloat16)], axis=-1)
    aspp_out = conv2d(cat, prep['aspp_fuse'], ksize=1, cout=256, relu=True)

    # ---- final head ----
    logits = conv2d(aspp_out, prep['final'], ksize=1, cout=num_classes,
                    relu=False, out_dtype=jnp.float32)
    out = bilinear_resize(logits, h * 16, w * 16)                  # Upsample(scale_factor=16)

    # NHWC -> NCHW
    return jnp.transpose(out, (0, 3, 1, 2))


if __name__ == "__main__":
    key = jax.random.PRNGKey(0)
    # ResNet18 backbone needs 3-channel input; stride-32 backbone + x16 upsample
    # => 64x64 input gives a 32x32 output, matching the PyTorch module.
    x = jax.random.normal(key, (2, 3, 64, 64), jnp.float32)
    params = init_params(num_classes=5)
    prep = prepare_params(params)          # weight relayout/bf16 cast done once, outside jit

    fwd = jax.jit(deeplabv3_forward)
    out = jax.block_until_ready(fwd(x, prep))
    assert out.shape == (2, 5, 32, 32), out.shape
    assert jnp.isfinite(out).all()
    print("KERNEL_OK")
</pallas_src>

<mosaic_0001>
module attributes {stable_mosaic.version = 11 : i64} {
  func.func @_mm_kernel(%arg0: i32, %arg1: memref<512x256xbf16, #tpu.memory_space<vmem>>, %arg2: memref<256x128xbf16, #tpu.memory_space<vmem>>, %arg3: memref<2x128xf32, #tpu.memory_space<vmem>>, %arg4: memref<512x128xbf16, #tpu.memory_space<vmem>>) attributes {dimension_semantics = [#tpu.dimension_semantics<parallel>], iteration_bounds = array<i64: 4>, scalar_prefetch = 0 : i64, scratch_operands = 0 : i64, tpu.core_type = #tpu.core_type<tc>, window_params = [{transform_indices = @transform_0, window_bounds = array<i64: 512, 256>}, {pipeline_mode = #tpu.pipeline_mode<synchronous>, transform_indices = @transform_1, window_bounds = array<i64: 256, 128>}, {pipeline_mode = #tpu.pipeline_mode<synchronous>, transform_indices = @transform_2, window_bounds = array<i64: 2, 128>}, {transform_indices = @transform_3, window_bounds = array<i64: 512, 128>}]} {
    %c0 = arith.constant 0 : index
    %c0_0 = arith.constant 0 : index
    %0 = vector.load %arg1[%c0, %c0_0] : memref<512x256xbf16, #tpu.memory_space<vmem>>, vector<512x256xbf16>
    %c0_1 = arith.constant 0 : index
    %c0_2 = arith.constant 0 : index
    %1 = vector.load %arg2[%c0_1, %c0_2] : memref<256x128xbf16, #tpu.memory_space<vmem>>, vector<256x128xbf16>
    %cst = arith.constant dense<0.000000e+00> : vector<512x128xf32>
    %2 = tpu.matmul %0, %1, %cst {dimension_numbers = #tpu.dot_dimension_numbers<[1], [0], [0], [1], [0, 0, 1, 1], [], []>} : vector<512x256xbf16>, vector<256x128xbf16>, vector<512x128xf32> -> vector<512x128xf32>
    %c0_3 = arith.constant 0 : index
    %c0_4 = arith.constant 0 : index
    %3 = vector.load %arg3[%c0_3, %c0_4] : memref<2x128xf32, #tpu.memory_space<vmem>>, vector<1x128xf32>
    %4 = vector.broadcast %3 : vector<1x128xf32> to vector<512x128xf32>
    %5 = arith.mulf %2, %4 : vector<512x128xf32>
    %c1 = arith.constant 1 : index
    %c0_5 = arith.constant 0 : index
    %6 = vector.load %arg3[%c1, %c0_5] : memref<2x128xf32, #tpu.memory_space<vmem>>, vector<1x128xf32>
    %7 = vector.broadcast %6 : vector<1x128xf32> to vector<512x128xf32>
    %8 = arith.addf %5, %7 : vector<512x128xf32>
    %cst_6 = arith.constant 0.000000e+00 : f32
    %9 = vector.broadcast %cst_6 : f32 to vector<512x128xf32>
    %10 = arith.maximumf %8, %9 : vector<512x128xf32>
    %11 = arith.truncf %10 : vector<512x128xf32> to vector<512x128xbf16>
    %c0_7 = arith.constant 0 : index
    %c0_8 = arith.constant 0 : index
    %12 = vector.load %arg4[%c0_7, %c0_8] : memref<512x128xbf16, #tpu.memory_space<vmem>>, vector<512x128xbf16>
    tpu.vector_store %arg4[%c0_7, %c0_8], %11 {strides = array<i32>} : memref<512x128xbf16, #tpu.memory_space<vmem>>, vector<512x128xbf16>,
    return
  }
  func.func @transform_0(%arg0: i32) -> (i32, i32) {
    %c0_i32 = arith.constant 0 : i32
    %c0_i32_0 = arith.constant 0 : i32
    return %arg0, %c0_i32 : i32, i32
  }
  func.func @transform_1(%arg0: i32) -> (i32, i32) {
    %c0_i32 = arith.constant 0 : i32
    %c0_i32_0 = arith.constant 0 : i32
    %c0_i32_1 = arith.constant 0 : i32
    return %c0_i32, %c0_i32_0 : i32, i32
  }
  func.func @transform_2(%arg0: i32) -> (i32, i32) {
    %c0_i32 = arith.constant 0 : i32
    %c0_i32_0 = arith.constant 0 : i32
    %c0_i32_1 = arith.constant 0 : i32
    return %c0_i32, %c0_i32_0 : i32, i32
  }
  func.func @transform_3(%arg0: i32) -> (i32, i32) {
    %c0_i32 = arith.constant 0 : i32
    %c0_i32_0 = arith.constant 0 : i32
    return %arg0, %c0_i32 : i32, i32
  }
}

module attributes {stable_mosaic.version = 11 : i64} {
  func.func @_mm_kernel(%arg0: i32, %arg1: memref<512x640xbf16, #tpu.memory_space<vmem>>, %arg2: memref<640x128xbf16, #tpu.memory_space<vmem>>, %arg3: memref<2x128xf32, #tpu.memory_space<vmem>>, %arg4: memref<512x128xbf16, #tpu.memory_space<vmem>>) attributes {dimension_semantics = [#tpu.dimension_semantics<parallel>], iteration_bounds = array<i64: 1>, scalar_prefetch = 0 : i64, scratch_operands = 0 : i64, tpu.core_type = #tpu.core_type<tc>, window_params = [{transform_indices = @transform_0, window_bounds = array<i64: 512, 640>}, {pipeline_mode = #tpu.pipeline_mode<synchronous>, transform_indices = @transform_1, window_bounds = array<i64: 640, 128>}, {pipeline_mode = #tpu.pipeline_mode<synchronous>, transform_indices = @transform_2, window_bounds = array<i64: 2, 128>}, {transform_indices = @transform_3, window_bounds = array<i64: 512, 128>}]} {
    %c0 = arith.constant 0 : index
    %c0_0 = arith.constant 0 : index
    %0 = vector.load %arg1[%c0, %c0_0] : memref<512x640xbf16, #tpu.memory_space<vmem>>, vector<512x640xbf16>
    %c0_1 = arith.constant 0 : index
    %c0_2 = arith.constant 0 : index
    %1 = vector.load %arg2[%c0_1, %c0_2] : memref<640x128xbf16, #tpu.memory_space<vmem>>, vector<640x128xbf16>
    %cst = arith.constant dense<0.000000e+00> : vector<512x128xf32>
    %2 = tpu.matmul %0, %1, %cst {dimension_numbers = #tpu.dot_dimension_numbers<[1], [0], [0], [1], [0, 0, 1, 1], [], []>} : vector<512x640xbf16>, vector<640x128xbf16>, vector<512x128xf32> -> vector<512x128xf32>
    %c0_3 = arith.constant 0 : index
    %c0_4 = arith.constant 0 : index
    %3 = vector.load %arg3[%c0_3, %c0_4] : memref<2x128xf32, #tpu.memory_space<vmem>>, vector<1x128xf32>
    %4 = vector.broadcast %3 : vector<1x128xf32> to vector<512x128xf32>
    %5 = arith.mulf %2, %4 : vector<512x128xf32>
    %c1 = arith.constant 1 : index
    %c0_5 = arith.constant 0 : index
    %6 = vector.load %arg3[%c1, %c0_5] : memref<2x128xf32, #tpu.memory_space<vmem>>, vector<1x128xf32>
    %7 = vector.broadcast %6 : vector<1x128xf32> to vector<512x128xf32>
    %8 = arith.addf %5, %7 : vector<512x128xf32>
    %cst_6 = arith.constant 0.000000e+00 : f32
    %9 = vector.broadcast %cst_6 : f32 to vector<512x128xf32>
    %10 = arith.maximumf %8, %9 : vector<512x128xf32>
    %11 = arith.truncf %10 : vector<512x128xf32> to vector<512x128xbf16>
    %c0_7 = arith.constant 0 : index
    %c0_8 = arith.constant 0 : index
    %12 = vector.load %arg4[%c0_7, %c0_8] : memref<512x128xbf16, #tpu.memory_space<vmem>>, vector<512x128xbf16>
    tpu.vector_store %arg4[%c0_7, %c0_8], %11 {strides = array<i32>} : memref<512x128xbf16, #tpu.memory_space<vmem>>, vector<512x128xbf16>,
    return
  }
  func.func @transform_0(%arg0: i32) -> (i32, i32) {
    %c0_i32 = arith.constant 0 : i32
    %c0_i32_0 = arith.constant 0 : i32
    return %arg0, %c0_i32 : i32, i32
  }
  func.func @transform_1(%arg0: i32) -> (i32, i32) {
    %c0_i32 = arith.constant 0 : i32
    %c0_i32_0 = arith.constant 0 : i32
    %c0_i32_1 = arith.constant 0 : i32
    return %c0_i32, %c0_i32_0 : i32, i32
  }
  func.func @transform_2(%arg0: i32) -> (i32, i32) {
    %c0_i32 = arith.constant 0 : i32
    %c0_i32_0 = arith.constant 0 : i32
    %c0_i32_1 = arith.constant 0 : i32
    return %c0_i32, %c0_i32_0 : i32, i32
  }
  func.func @transform_3(%arg0: i32) -> (i32, i32) {
    %c0_i32 = arith.constant 0 : i32
    %c0_i32_0 = arith.constant 0 : i32
    return %arg0, %c0_i32 : i32, i32
  }
}

module attributes {stable_mosaic.version = 11 : i64} {
  func.func @_mm_res_kernel(%arg0: i32, %arg1: memref<512x640xbf16, #tpu.memory_space<vmem>>, %arg2: memref<640x128xbf16, #tpu.memory_space<vmem>>, %arg3: memref<2x128xf32, #tpu.memory_space<vmem>>, %arg4: memref<512x128xbf16, #tpu.memory_space<vmem>>, %arg5: memref<512x128xbf16, #tpu.memory_space<vmem>>) attributes {dimension_semantics = [#tpu.dimension_semantics<parallel>], iteration_bounds = array<i64: 1>, scalar_prefetch = 0 : i64, scratch_operands = 0 : i64, tpu.core_type = #tpu.core_type<tc>, window_params = [{transform_indices = @transform_0, window_bounds = array<i64: 512, 640>}, {pipeline_mode = #tpu.pipeline_mode<synchronous>, transform_indices = @transform_1, window_bounds = array<i64: 640, 128>}, {pipeline_mode = #tpu.pipeline_mode<synchronous>, transform_indices = @transform_2, window_bounds = array<i64: 2, 128>}, {transform_indices = @transform_3, window_bounds = array<i64: 512, 128>}, {transform_indices = @transform_4, window_bounds = array<i64: 512, 128>}]} {
    %c0 = arith.constant 0 : index
    %c0_0 = arith.constant 0 : index
    %0 = vector.load %arg1[%c0, %c0_0] : memref<512x640xbf16, #tpu.memory_space<vmem>>, vector<512x640xbf16>
    %c0_1 = arith.constant 0 : index
    %c0_2 = arith.constant 0 : index
    %1 = vector.load %arg2[%c0_1, %c0_2] : memref<640x128xbf16, #tpu.memory_space<vmem>>, vector<640x128xbf16>
    %cst = arith.constant dense<0.000000e+00> : vector<512x128xf32>
    %2 = tpu.matmul %0, %1, %cst {dimension_numbers = #tpu.dot_dimension_numbers<[1], [0], [0], [1], [0, 0, 1, 1], [], []>} : vector<512x640xbf16>, vector<640x128xbf16>, vector<512x128xf32> -> vector<512x128xf32>
    %c0_3 = arith.constant 0 : index
    %c0_4 = arith.constant 0 : index
    %3 = vector.load %arg3[%c0_3, %c0_4] : memref<2x128xf32, #tpu.memory_space<vmem>>, vector<1x128xf32>
    %4 = vector.broadcast %3 : vector<1x128xf32> to vector<512x128xf32>
    %5 = arith.mulf %2, %4 : vector<512x128xf32>
    %c1 = arith.constant 1 : index
    %c0_5 = arith.constant 0 : index
    %6 = vector.load %arg3[%c1, %c0_5] : memref<2x128xf32, #tpu.memory_space<vmem>>, vector<1x128xf32>
    %7 = vector.broadcast %6 : vector<1x128xf32> to vector<512x128xf32>
    %8 = arith.addf %5, %7 : vector<512x128xf32>
    %c0_6 = arith.constant 0 : index
    %c0_7 = arith.constant 0 : index
    %9 = vector.load %arg4[%c0_6, %c0_7] : memref<512x128xbf16, #tpu.memory_space<vmem>>, vector<512x128xbf16>
    %10 = arith.extf %9 : vector<512x128xbf16> to vector<512x128xf32>
    %11 = arith.addf %8, %10 : vector<512x128xf32>
    %cst_8 = arith.constant 0.000000e+00 : f32
    %12 = vector.broadcast %cst_8 : f32 to vector<512x128xf32>
    %13 = arith.maximumf %11, %12 : vector<512x128xf32>
    %14 = arith.truncf %13 : vector<512x128xf32> to vector<512x128xbf16>
    %c0_9 = arith.constant 0 : index
    %c0_10 = arith.constant 0 : index
    %15 = vector.load %arg5[%c0_9, %c0_10] : memref<512x128xbf16, #tpu.memory_space<vmem>>, vector<512x128xbf16>
    tpu.vector_store %arg5[%c0_9, %c0_10], %14 {strides = array<i32>} : memref<512x128xbf16, #tpu.memory_space<vmem>>, vector<512x128xbf16>,
    return
  }
  func.func @transform_0(%arg0: i32) -> (i32, i32) {
    %c0_i32 = arith.constant 0 : i32
    %c0_i32_0 = arith.constant 0 : i32
    return %arg0, %c0_i32 : i32, i32
  }
  func.func @transform_1(%arg0: i32) -> (i32, i32) {
    %c0_i32 = arith.constant 0 : i32
    %c0_i32_0 = arith.constant 0 : i32
    %c0_i32_1 = arith.constant 0 : i32
    return %c0_i32, %c0_i32_0 : i32, i32
  }
  func.func @transform_2(%arg0: i32) -> (i32, i32) {
    %c0_i32 = arith.constant 0 : i32
    %c0_i32_0 = arith.constant 0 : i32
    %c0_i32_1 = arith.constant 0 : i32
    return %c0_i32, %c0_i32_0 : i32, i32
  }
  func.func @transform_3(%arg0: i32) -> (i32, i32) {
    %c0_i32 = arith.constant 0 : i32
    %c0_i32_0 = arith.constant 0 : i32
    return %arg0, %c0_i32 : i32, i32
  }
  func.func @transform_4(%arg0: i32) -> (i32, i32) {
    %c0_i32 = arith.constant 0 : i32
    %c0_i32_0 = arith.constant 0 : i32
    return %arg0, %c0_i32 : i32, i32
  }
}

module attributes {stable_mosaic.version = 11 : i64} {
  func.func @_mm_kernel(%arg0: i32, %arg1: memref<128x640xbf16, #tpu.memory_space<vmem>>, %arg2: memref<640x128xbf16, #tpu.memory_space<vmem>>, %arg3: memref<2x128xf32, #tpu.memory_space<vmem>>, %arg4: memref<128x128xbf16, #tpu.memory_space<vmem>>) attributes {dimension_semantics = [#tpu.dimension_semantics<parallel>], iteration_bounds = array<i64: 1>, scalar_prefetch = 0 : i64, scratch_operands = 0 : i64, tpu.core_type = #tpu.core_type<tc>, window_params = [{transform_indices = @transform_0, window_bounds = array<i64: 128, 640>}, {pipeline_mode = #tpu.pipeline_mode<synchronous>, transform_indices = @transform_1, window_bounds = array<i64: 640, 128>}, {pipeline_mode = #tpu.pipeline_mode<synchronous>, transform_indices = @transform_2, window_bounds = array<i64: 2, 128>}, {transform_indices = @transform_3, window_bounds = array<i64: 128, 128>}]} {
    %c0 = arith.constant 0 : index
    %c0_0 = arith.constant 0 : index
    %0 = vector.load %arg1[%c0, %c0_0] : memref<128x640xbf16, #tpu.memory_space<vmem>>, vector<128x640xbf16>
    %c0_1 = arith.constant 0 : index
    %c0_2 = arith.constant 0 : index
    %1 = vector.load %arg2[%c0_1, %c0_2] : memref<640x128xbf16, #tpu.memory_space<vmem>>, vector<640x128xbf16>
    %cst = arith.constant dense<0.000000e+00> : vector<128x128xf32>
    %2 = tpu.matmul %0, %1, %cst {dimension_numbers = #tpu.dot_dimension_numbers<[1], [0], [0], [1], [0, 0, 1, 1], [], []>} : vector<128x640xbf16>, vector<640x128xbf16>, vector<128x128xf32> -> vector<128x128xf32>
    %c0_3 = arith.constant 0 : index
    %c0_4 = arith.constant 0 : index
    %3 = vector.load %arg3[%c0_3, %c0_4] : memref<2x128xf32, #tpu.memory_space<vmem>>, vector<1x128xf32>
    %4 = vector.broadcast %3 : vector<1x128xf32> to vector<128x128xf32>
    %5 = arith.mulf %2, %4 : vector<128x128xf32>
    %c1 = arith.constant 1 : index
    %c0_5 = arith.constant 0 : index
    %6 = vector.load %arg3[%c1, %c0_5] : memref<2x128xf32, #tpu.memory_space<vmem>>, vector<1x128xf32>
    %7 = vector.broadcast %6 : vector<1x128xf32> to vector<128x128xf32>
    %8 = arith.addf %5, %7 : vector<128x128xf32>
    %cst_6 = arith.constant 0.000000e+00 : f32
    %9 = vector.broadcast %cst_6 : f32 to vector<128x128xf32>
    %10 = arith.maximumf %8, %9 : vector<128x128xf32>
    %11 = arith.truncf %10 : vector<128x128xf32> to vector<128x128xbf16>
    %c0_7 = arith.constant 0 : index
    %c0_8 = arith.constant 0 : index
    %12 = vector.load %arg4[%c0_7, %c0_8] : memref<128x128xbf16, #tpu.memory_space<vmem>>, vector<128x128xbf16>
    tpu.vector_store %arg4[%c0_7, %c0_8], %11 {strides = array<i32>} : memref<128x128xbf16, #tpu.memory_space<vmem>>, vector<128x128xbf16>,
    return
  }
  func.func @transform_0(%arg0: i32) -> (i32, i32) {
    %c0_i32 = arith.constant 0 : i32
    %c0_i32_0 = arith.constant 0 : i32
    return %arg0, %c0_i32 : i32, i32
  }
  func.func @transform_1(%arg0: i32) -> (i32, i32) {
    %c0_i32 = arith.constant 0 : i32
    %c0_i32_0 = arith.constant 0 : i32
    %c0_i32_1 = arith.constant 0 : i32
    return %c0_i32, %c0_i32_0 : i32, i32
  }
  func.func @transform_2(%arg0: i32) -> (i32, i32) {
    %c0_i32 = arith.constant 0 : i32
    %c0_i32_0 = arith.constant 0 : i32
    %c0_i32_1 = arith.constant 0 : i32
    return %c0_i32, %c0_i32_0 : i32, i32
  }
  func.func @transform_3(%arg0: i32) -> (i32, i32) {
    %c0_i32 = arith.constant 0 : i32
    %c0_i32_0 = arith.constant 0 : i32
    return %arg0, %c0_i32 : i32, i32
  }
}

module attributes {stable_mosaic.version = 11 : i64} {
  func.func @_mm_res_kernel(%arg0: i32, %arg1: memref<128x1152xbf16, #tpu.memory_space<vmem>>, %arg2: memref<1152x128xbf16, #tpu.memory_space<vmem>>, %arg3: memref<2x128xf32, #tpu.memory_space<vmem>>, %arg4: memref<128x128xbf16, #tpu.memory_space<vmem>>, %arg5: memref<128x128xbf16, #tpu.memory_space<vmem>>) attributes {dimension_semantics = [#tpu.dimension_semantics<parallel>], iteration_bounds = array<i64: 1>, scalar_prefetch = 0 : i64, scratch_operands = 0 : i64, tpu.core_type = #tpu.core_type<tc>, window_params = [{transform_indices = @transform_0, window_bounds = array<i64: 128, 1152>}, {pipeline_mode = #tpu.pipeline_mode<synchronous>, transform_indices = @transform_1, window_bounds = array<i64: 1152, 128>}, {pipeline_mode = #tpu.pipeline_mode<synchronous>, transform_indices = @transform_2, window_bounds = array<i64: 2, 128>}, {transform_indices = @transform_3, window_bounds = array<i64: 128, 128>}, {transform_indices = @transform_4, window_bounds = array<i64: 128, 128>}]} {
    %c0 = arith.constant 0 : index
    %c0_0 = arith.constant 0 : index
    %0 = vector.load %arg1[%c0, %c0_0] : memref<128x1152xbf16, #tpu.memory_space<vmem>>, vector<128x1152xbf16>
    %c0_1 = arith.constant 0 : index
    %c0_2 = arith.constant 0 : index
    %1 = vector.load %arg2[%c0_1, %c0_2] : memref<1152x128xbf16, #tpu.memory_space<vmem>>, vector<1152x128xbf16>
    %cst = arith.constant dense<0.000000e+00> : vector<128x128xf32>
    %2 = tpu.matmul %0, %1, %cst {dimension_numbers = #tpu.dot_dimension_numbers<[1], [0], [0], [1], [0, 0, 1, 1], [], []>} : vector<128x1152xbf16>, vector<1152x128xbf16>, vector<128x128xf32> -> vector<128x128xf32>
    %c0_3 = arith.constant 0 : index
    %c0_4 = arith.constant 0 : index
    %3 = vector.load %arg3[%c0_3, %c0_4] : memref<2x128xf32, #tpu.memory_space<vmem>>, vector<1x128xf32>
    %4 = vector.broadcast %3 : vector<1x128xf32> to vector<128x128xf32>
    %5 = arith.mulf %2, %4 : vector<128x128xf32>
    %c1 = arith.constant 1 : index
    %c0_5 = arith.constant 0 : index
    %6 = vector.load %arg3[%c1, %c0_5] : memref<2x128xf32, #tpu.memory_space<vmem>>, vector<1x128xf32>
    %7 = vector.broadcast %6 : vector<1x128xf32> to vector<128x128xf32>
    %8 = arith.addf %5, %7 : vector<128x128xf32>
    %c0_6 = arith.constant 0 : index
    %c0_7 = arith.constant 0 : index
    %9 = vector.load %arg4[%c0_6, %c0_7] : memref<128x128xbf16, #tpu.memory_space<vmem>>, vector<128x128xbf16>
    %10 = arith.extf %9 : vector<128x128xbf16> to vector<128x128xf32>
    %11 = arith.addf %8, %10 : vector<128x128xf32>
    %cst_8 = arith.constant 0.000000e+00 : f32
    %12 = vector.broadcast %cst_8 : f32 to vector<128x128xf32>
    %13 = arith.maximumf %11, %12 : vector<128x128xf32>
    %14 = arith.truncf %13 : vector<128x128xf32> to vector<128x128xbf16>
    %c0_9 = arith.constant 0 : index
    %c0_10 = arith.constant 0 : index
    %15 = vector.load %arg5[%c0_9, %c0_10] : memref<128x128xbf16, #tpu.memory_space<vmem>>, vector<128x128xbf16>
    tpu.vector_store %arg5[%c0_9, %c0_10], %14 {strides = array<i32>} : memref<128x128xbf16, #tpu.memory_space<vmem>>, vector<128x128xbf16>,
    return
  }
  func.func @transform_0(%arg0: i32) -> (i32, i32) {
    %c0_i32 = arith.constant 0 : i32
    %c0_i32_0 = arith.constant 0 : i32
    return %arg0, %c0_i32 : i32, i32
  }
  func.func @transform_1(%arg0: i32) -> (i32, i32) {
    %c0_i32 = arith.constant 0 : i32
    %c0_i32_0 = arith.constant 0 : i32
    %c0_i32_1 = arith.constant 0 : i32
    return %c0_i32, %c0_i32_0 : i32, i32
  }
  func.func @transform_2(%arg0: i32) -> (i32, i32) {
    %c0_i32 = arith.constant 0 : i32
    %c0_i32_0 = arith.constant 0 : i32
    %c0_i32_1 = arith.constant 0 : i32
    return %c0_i32, %c0_i32_0 : i32, i32
  }
  func.func @transform_3(%arg0: i32) -> (i32, i32) {
    %c0_i32 = arith.constant 0 : i32
    %c0_i32_0 = arith.constant 0 : i32
    return %arg0, %c0_i32 : i32, i32
  }
  func.func @transform_4(%arg0: i32) -> (i32, i32) {
    %c0_i32 = arith.constant 0 : i32
    %c0_i32_0 = arith.constant 0 : i32
    return %arg0, %c0_i32 : i32, i32
  }
}

module attributes {stable_mosaic.version = 11 : i64} {
  func.func @_mm_kernel(%arg0: i32, %arg1: memref<128x1152xbf16, #tpu.memory_space<vmem>>, %arg2: memref<1152x128xbf16, #tpu.memory_space<vmem>>, %arg3: memref<2x128xf32, #tpu.memory_space<vmem>>, %arg4: memref<128x128xbf16, #tpu.memory_space<vmem>>) attributes {dimension_semantics = [#tpu.dimension_semantics<parallel>], iteration_bounds = array<i64: 1>, scalar_prefetch = 0 : i64, scratch_operands = 0 : i64, tpu.core_type = #tpu.core_type<tc>, window_params = [{transform_indices = @transform_0, window_bounds = array<i64: 128, 1152>}, {pipeline_mode = #tpu.pipeline_mode<synchronous>, transform_indices = @transform_1, window_bounds = array<i64: 1152, 128>}, {pipeline_mode = #tpu.pipeline_mode<synchronous>, transform_indices = @transform_2, window_bounds = array<i64: 2, 128>}, {transform_indices = @transform_3, window_bounds = array<i64: 128, 128>}]} {
    %c0 = arith.constant 0 : index
    %c0_0 = arith.constant 0 : index
    %0 = vector.load %arg1[%c0, %c0_0] : memref<128x1152xbf16, #tpu.memory_space<vmem>>, vector<128x1152xbf16>
    %c0_1 = arith.constant 0 : index
    %c0_2 = arith.constant 0 : index
    %1 = vector.load %arg2[%c0_1, %c0_2] : memref<1152x128xbf16, #tpu.memory_space<vmem>>, vector<1152x128xbf16>
    %cst = arith.constant dense<0.000000e+00> : vector<128x128xf32>
    %2 = tpu.matmul %0, %1, %cst {dimension_numbers = #tpu.dot_dimension_numbers<[1], [0], [0], [1], [0, 0, 1, 1], [], []>} : vector<128x1152xbf16>, vector<1152x128xbf16>, vector<128x128xf32> -> vector<128x128xf32>
    %c0_3 = arith.constant 0 : index
    %c0_4 = arith.constant 0 : index
    %3 = vector.load %arg3[%c0_3, %c0_4] : memref<2x128xf32, #tpu.memory_space<vmem>>, vector<1x128xf32>
    %4 = vector.broadcast %3 : vector<1x128xf32> to vector<128x128xf32>
    %5 = arith.mulf %2, %4 : vector<128x128xf32>
    %c1 = arith.constant 1 : index
    %c0_5 = arith.constant 0 : index
    %6 = vector.load %arg3[%c1, %c0_5] : memref<2x128xf32, #tpu.memory_space<vmem>>, vector<1x128xf32>
    %7 = vector.broadcast %6 : vector<1x128xf32> to vector<128x128xf32>
    %8 = arith.addf %5, %7 : vector<128x128xf32>
    %cst_6 = arith.constant 0.000000e+00 : f32
    %9 = vector.broadcast %cst_6 : f32 to vector<128x128xf32>
    %10 = arith.maximumf %8, %9 : vector<128x128xf32>
    %11 = arith.truncf %10 : vector<128x128xf32> to vector<128x128xbf16>
    %c0_7 = arith.constant 0 : index
    %c0_8 = arith.constant 0 : index
    %12 = vector.load %arg4[%c0_7, %c0_8] : memref<128x128xbf16, #tpu.memory_space<vmem>>, vector<128x128xbf16>
    tpu.vector_store %arg4[%c0_7, %c0_8], %11 {strides = array<i32>} : memref<128x128xbf16, #tpu.memory_space<vmem>>, vector<128x128xbf16>,
    return
  }
  func.func @transform_0(%arg0: i32) -> (i32, i32) {
    %c0_i32 = arith.constant 0 : i32
    %c0_i32_0 = arith.constant 0 : i32
    return %arg0, %c0_i32 : i32, i32
  }
  func.func @transform_1(%arg0: i32) -> (i32, i32) {
    %c0_i32 = arith.constant 0 : i32
    %c0_i32_0 = arith.constant 0 : i32
    %c0_i32_1 = arith.constant 0 : i32
    return %c0_i32, %c0_i32_0 : i32, i32
  }
  func.func @transform_2(%arg0: i32) -> (i32, i32) {
    %c0_i32 = arith.constant 0 : i32
    %c0_i32_0 = arith.constant 0 : i32
    %c0_i32_1 = arith.constant 0 : i32
    return %c0_i32, %c0_i32_0 : i32, i32
  }
  func.func @transform_3(%arg0: i32) -> (i32, i32) {
    %c0_i32 = arith.constant 0 : i32
    %c0_i32_0 = arith.constant 0 : i32
    return %arg0, %c0_i32 : i32, i32
  }
}

module attributes {stable_mosaic.version = 11 : i64} {
  func.func @_mm_kernel(%arg0: i32, %arg1: memref<128x128xbf16, #tpu.memory_space<vmem>>, %arg2: memref<128x128xbf16, #tpu.memory_space<vmem>>, %arg3: memref<2x128xf32, #tpu.memory_space<vmem>>, %arg4: memref<128x128xbf16, #tpu.memory_space<vmem>>) attributes {dimension_semantics = [#tpu.dimension_semantics<parallel>], iteration_bounds = array<i64: 1>, scalar_prefetch = 0 : i64, scratch_operands = 0 : i64, tpu.core_type = #tpu.core_type<tc>, window_params = [{transform_indices = @transform_0, window_bounds = array<i64: 128, 128>}, {pipeline_mode = #tpu.pipeline_mode<synchronous>, transform_indices = @transform_1, window_bounds = array<i64: 128, 128>}, {pipeline_mode = #tpu.pipeline_mode<synchronous>, transform_indices = @transform_2, window_bounds = array<i64: 2, 128>}, {transform_indices = @transform_3, window_bounds = array<i64: 128, 128>}]} {
    %c0 = arith.constant 0 : index
    %c0_0 = arith.constant 0 : index
    %0 = vector.load %arg1[%c0, %c0_0] : memref<128x128xbf16, #tpu.memory_space<vmem>>, vector<128x128xbf16>
    %c0_1 = arith.constant 0 : index
    %c0_2 = arith.constant 0 : index
    %1 = vector.load %arg2[%c0_1, %c0_2] : memref<128x128xbf16, #tpu.memory_space<vmem>>, vector<128x128xbf16>
    %cst = arith.constant dense<0.000000e+00> : vector<128x128xf32>
    %2 = tpu.matmul %0, %1, %cst {dimension_numbers = #tpu.dot_dimension_numbers<[1], [0], [0], [1], [0, 0, 1, 1], [], []>} : vector<128x128xbf16>, vector<128x128xbf16>, vector<128x128xf32> -> vector<128x128xf32>
    %c0_3 = arith.constant 0 : index
    %c0_4 = arith.constant 0 : index
    %3 = vector.load %arg3[%c0_3, %c0_4] : memref<2x128xf32, #tpu.memory_space<vmem>>, vector<1x128xf32>
    %4 = vector.broadcast %3 : vector<1x128xf32> to vector<128x128xf32>
    %5 = arith.mulf %2, %4 : vector<128x128xf32>
    %c1 = arith.constant 1 : index
    %c0_5 = arith.constant 0 : index
    %6 = vector.load %arg3[%c1, %c0_5] : memref<2x128xf32, #tpu.memory_space<vmem>>, vector<1x128xf32>
    %7 = vector.broadcast %6 : vector<1x128xf32> to vector<128x128xf32>
    %8 = arith.addf %5, %7 : vector<128x128xf32>
    %9 = arith.truncf %8 : vector<128x128xf32> to vector<128x128xbf16>
    %c0_6 = arith.constant 0 : index
    %c0_7 = arith.constant 0 : index
    %10 = vector.load %arg4[%c0_6, %c0_7] : memref<128x128xbf16, #tpu.memory_space<vmem>>, vector<128x128xbf16>
    tpu.vector_store %arg4[%c0_6, %c0_7], %9 {strides = array<i32>} : memref<128x128xbf16, #tpu.memory_space<vmem>>, vector<128x128xbf16>,
    return
  }
  func.func @transform_0(%arg0: i32) -> (i32, i32) {
    %c0_i32 = arith.constant 0 : i32
    %c0_i32_0 = arith.constant 0 : i32
    return %arg0, %c0_i32 : i32, i32
  }
  func.func @transform_1(%arg0: i32) -> (i32, i32) {
    %c0_i32 = arith.constant 0 : i32
    %c0_i32_0 = arith.constant 0 : i32
    %c0_i32_1 = arith.constant 0 : i32
    return %c0_i32, %c0_i32_0 : i32, i32
  }
  func.func @transform_2(%arg0: i32) -> (i32, i32) {
    %c0_i32 = arith.constant 0 : i32
    %c0_i32_0 = arith.constant 0 : i32
    %c0_i32_1 = arith.constant 0 : i32
    return %c0_i32, %c0_i32_0 : i32, i32
  }
  func.func @transform_3(%arg0: i32) -> (i32, i32) {
    %c0_i32 = arith.constant 0 : i32
    %c0_i32_0 = arith.constant 0 : i32
    return %arg0, %c0_i32 : i32, i32
  }
}

</mosaic_0001>

<llo_original>
// kernel: deeplabv3_forward.10
$region0: #{deeplabv3_forward.10}
  #allocation0 [shape = 'u32[]', space=smem, size = 0x4, offset = 0x4, fixed_abs, tag = 'smem constant byte address 0x4 - core index']
  #allocation1 [shape = 'u32[144,128]{1,0:T(1,128)}', space=vmem, size = 0x12000, scoped, tag = 'internal scratch']
  %s0 = inlined_call_operand.vmem [shape: bf16[2048,256], index: 0, kind: input, shape index: {}]
  %s1 = inlined_call_operand.vmem [shape: bf16[256,128], index: 1, kind: input, shape index: {}]
  %s2 = inlined_call_operand.vmem [shape: f32[2,128], index: 2, kind: input, shape index: {}]
  %s3 = inlined_call_operand.vmem [shape: bf16[2048,128], index: 3, kind: output, shape index: {}]
  %s4 = sld [smem:[#allocation0]]
  $region45: #{deeplabv3_forward.10} parent=0
    _
  %s6 = ssub.s32 1, %s4
  %s7 = scalar_select 0, %s6, %s4
  loop: start=0, step=1, limit=6
  $region2: #{deeplabv3_forward.10} parent=0 // loop_pre_header
    _
  $region3: #{deeplabv3_forward.10} parent=0 // loop_header
    %s9 = sphi 0, %s13
    %p10 = scmp.ge.s32.totalorder %s9, 6
    %s19 = sphi 0, %s21
    %s22 = sphi 0, %s19
    %s23 = sphi 0, %s22
    %s39 = sphi 0, %s23
    %s43 = sphi 0, %s43
    %s45 = sphi 0, %s43
    %s46 = sphi 0, %s45
    %s60 = sphi 0, %s46
    %s64 = sphi 0, %s64
    %s66 = sphi 0, %s64
    %s67 = sphi 0, %s66
    %s81 = sphi 0, %s67
    %s87 = sphi 0, %s89
    %s90 = sphi 0, %s87
    %s91 = sphi 0, %s90
    %s107 = sphi 0, %s91
  $region4: #{deeplabv3_forward.10} parent=0 // loop_header_branch
    %12 = sbr.rel (%p10) target = $region8
  $region5: #{deeplabv3_forward.10} parent=0 // loop_body
    %s14 = ssub.s32 %s9, 1
    %s15 = ssub.s32 %s9, 2
    %s16 = sadd.s32 %s9, 1
    %s17 = ssub.s32 %s9, %s16
    %p18 = scmp.eq.s32.totalorder %s17, 0
    %s20 = sadd.s32 %s19, 1
    %s21 = scalar_select %p18, %s19, %s20
    %p24 = pneg %p18
    %p25 = scmp.eq.s32.totalorder %s9, 3
    %p26 = por %p24, %p25
    %p27 = scmp.ne.s32.totalorder %s19, %s22
    %p28 = scmp.eq.s32.totalorder %s9, 0
    %p29 = por %p27, %p28
    %p30 = scmp.ne.s32.totalorder %s19, %s22
    %p31 = scmp.eq.s32.totalorder %s14, 3
    %p32 = por %p30, %p31
    %p33 = scmp.ne.s32.totalorder %s22, %s23
    %p34 = scmp.eq.s32.totalorder %s14, 0
    %p35 = por %p33, %p34
    %p36 = scmp.ne.s32.totalorder %s22, %s23
    %p37 = scmp.eq.s32.totalorder %s15, 3
    %p38 = por %p36, %p37
    %p40 = scmp.ne.s32.totalorder %s23, %s39
    %p41 = scmp.eq.s32.totalorder %s15, 0
    %p42 = por %p40, %p41
    %s44 = sadd.s32 %s43, 1
    %p47 = scmp.eq.s32.totalorder %s9, 3
    %p48 = scmp.ne.s32.totalorder %s43, %s45
    %p49 = scmp.eq.s32.totalorder %s9, 0
    %p50 = por %p48, %p49
    %p51 = scmp.ne.s32.totalorder %s43, %s45
    %p52 = scmp.eq.s32.totalorder %s14, 3
    %p53 = por %p51, %p52
    %p54 = scmp.ne.s32.totalorder %s45, %s46
    %p55 = scmp.eq.s32.totalorder %s14, 0
    %p56 = por %p54, %p55
    %p57 = scmp.ne.s32.totalorder %s45, %s46
    %p58 = scmp.eq.s32.totalorder %s15, 3
    %p59 = por %p57, %p58
    %p61 = scmp.ne.s32.totalorder %s46, %s60
    %p62 = scmp.eq.s32.totalorder %s15, 0
    %p63 = por %p61, %p62
    %s65 = sadd.s32 %s64, 1
    %p68 = scmp.eq.s32.totalorder %s9, 3
    %p69 = scmp.ne.s32.totalorder %s64, %s66
    %p70 = scmp.eq.s32.totalorder %s9, 0
    %p71 = por %p69, %p70
    %p72 = scmp.ne.s32.totalorder %s64, %s66
    %p73 = scmp.eq.s32.totalorder %s14, 3
    %p74 = por %p72, %p73
    %p75 = scmp.ne.s32.totalorder %s66, %s67
    %p76 = scmp.eq.s32.totalorder %s14, 0
    %p77 = por %p75, %p76
    %p78 = scmp.ne.s32.totalorder %s66, %s67
    %p79 = scmp.eq.s32.totalorder %s15, 3
    %p80 = por %p78, %p79
    %p82 = scmp.ne.s32.totalorder %s67, %s81
    %p83 = scmp.eq.s32.totalorder %s15, 0
    %p84 = por %p82, %p83
    %s85 = ssub.s32 %s9, %s16
    %p86 = scmp.eq.s32.totalorder %s85, 0
    %s88 = sadd.s32 %s87, 1
    %s89 = scalar_select %p86, %s87, %s88
    %p92 = pneg %p86
    %p93 = scmp.eq.s32.totalorder %s9, 3
    %p94 = por %p92, %p93
    %p95 = scmp.ne.s32.totalorder %s87, %s90
    %p96 = scmp.eq.s32.totalorder %s9, 0
    %p97 = por %p95, %p96
    %p98 = scmp.ne.s32.totalorder %s87, %s90
    %p99 = scmp.eq.s32.totalorder %s14, 3
    %p100 = por %p98, %p99
    %p101 = scmp.ne.s32.totalorder %s90, %s91
    %p102 = scmp.eq.s32.totalorder %s14, 0
    %p103 = por %p101, %p102
    %p104 = scmp.ne.s32.totalorder %s90, %s91
    %p105 = scmp.eq.s32.totalorder %s15, 3
    %p106 = por %p104, %p105
    %p108 = scmp.ne.s32.totalorder %s91, %s107
    %p109 = scmp.eq.s32.totalorder %s15, 0
    %p110 = por %p108, %p109
    %p111 = scmp.le.s32.totalorder 1, %s9
    %p112 = scmp.lt.s32.totalorder %s9, 5
    %p113 = pnand %p111, %p112
    %p114 = pneg %p113
    // Predicated region
    $region9: #{deeplabv3_forward.10} parent=5 // pred_check
      _
    $region10: #{deeplabv3_forward.10} parent=5 // pred_check_branch
      %116 = sbr.rel (%p113) target = $region12
    $region11: #{deeplabv3_forward.10} parent=5 // pred_region
      %s117 = ssub.s32 %s9, 1
      // Predicated region
      $region13: #{deeplabv3_forward.10} parent=11 // pred_check
        %p118 = pneg %p56
      $region14: #{deeplabv3_forward.10} parent=11 // pred_check_branch
        %120 = sbr.rel (%p118) target = $region16
      $region15: #{deeplabv3_forward.10} parent=11 // pred_region
        _
      $region16: #{deeplabv3_forward.10} parent=11 // pred_fallthru
        _
      // Predicated region
      $region17: #{deeplabv3_forward.10} parent=11 // pred_check
        %p121 = pneg %p77
      $region18: #{deeplabv3_forward.10} parent=11 // pred_check_branch
        %123 = sbr.rel (%p121) target = $region20
      $region19: #{deeplabv3_forward.10} parent=11 // pred_region
        _
      $region20: #{deeplabv3_forward.10} parent=11 // pred_fallthru
        _
    $region12: #{deeplabv3_forward.10} parent=5 // pred_fallthru
      _
    %p124 = scmp.lt.s32.totalorder %s9, 4
    // Predicated region
    $region21: #{deeplabv3_forward.10} parent=5 // pred_check
      %p125 = pneg %p124
    $region22: #{deeplabv3_forward.10} parent=5 // pred_check_branch
      %127 = sbr.rel (%p125) target = $region24
    $region23: #{deeplabv3_forward.10} parent=5 // pred_region
      // Predicated region
      $region25: #{deeplabv3_forward.10} parent=23 // pred_check
        %p128 = pneg %p29
      $region26: #{deeplabv3_forward.10} parent=23 // pred_check_branch
        %130 = sbr.rel (%p128) target = $region28
      $region27: #{deeplabv3_forward.10} parent=23 // pred_region
        %s131 = smul.u32 64, %s9
        %p132 = scmp.lt.s32.totalorder %s131, 255
        %s133 = scalar_select %p132, %s131, 255
        %s134 = smul.addr %s133, 2
        %s135 = smul.addr %s134, 4
        %s136 = scalar_lea.vmem %s0, %s135
        %s137 = smul.u32 64, %s9
      $region28: #{deeplabv3_forward.10} parent=23 // pred_fallthru
        _
    $region24: #{deeplabv3_forward.10} parent=5 // pred_fallthru
      _
    %p138 = scmp.le.s32.totalorder 1, %s9
    %p139 = scmp.lt.s32.totalorder %s9, 5
    %p140 = pnand %p138, %p139
    %p141 = pneg %p140
    // Predicated region
    $region29: #{deeplabv3_forward.10} parent=5 // pred_check
      _
    $region30: #{deeplabv3_forward.10} parent=5 // pred_check_branch
      %143 = sbr.rel (%p140) target = $region32
    $region31: #{deeplabv3_forward.10} parent=5 // pred_region
      %s144 = ssub.s32 %s9, 1
      %s145 = smul.u32 64, %s14
      %p146 = scmp.lt.s32.totalorder %s145, 255
      %s147 = scalar_select %p146, %s145, 255
      %s148 = smul.addr %s147, 2
      %s149 = smul.addr %s148, 4
      %s150 = scalar_lea.vmem %s0, %s149
      %p151 = pneg %p35
      %p152 = pneg %p32
      %p153 = pneg %p56
      %p154 = pneg %p53
      %p155 = pneg %p77
      %p156 = pneg %p74
      %p157 = pneg %p103
      %p158 = pneg %p100
      %s159 = smul.u32 64, %s14
      %p160 = scmp.lt.s32.totalorder %s159, 255
      %s161 = scalar_select %p160, %s159, 255
      %s162 = smul.addr %s161, 4
      %s163 = scalar_lea.vmem %s3, %s162
      %s164 = smul.u32 64, %s14
      %p165 = scmp.lt.s32.totalorder %s164, 255
      %s166 = scalar_select %p165, %s164, 255
      %s167 = smul.addr %s166, 2
      %s168 = smul.addr %s167, 4
      %s169 = scalar_lea.vmem %s0, %s168
      %s170 = smul.u32 64, %s14
      %s171 = smul.u32 64, %s14
      %p172 = scmp.lt.s32.totalorder %s171, 255
      %s173 = scalar_select %p172, %s171, 255
      %s174 = smul.addr %s173, 4
      %s175 = scalar_lea.vmem %s3, %s174
      %s176 = smul.u32 64, %s14
      %v178 = vld [vmem:[%s169] sm:$0xff]
      %v179 = vld [vmem:[%s169 + $0x8] sm:$0xff]
      %v180 = vld [vmem:[%s169 + $0x10] sm:$0xff]
      %v181 = vld [vmem:[%s169 + $0x18] sm:$0xff]
      %v182 = vld [vmem:[%s169 + $0x20] sm:$0xff]
      %v183 = vld [vmem:[%s169 + $0x28] sm:$0xff]
      %v184 = vld [vmem:[%s169 + $0x30] sm:$0xff]
      %v185 = vld [vmem:[%s169 + $0x38] sm:$0xff]
      %v186 = vld [vmem:[%s169 + $0x40] sm:$0xff]
      %v187 = vld [vmem:[%s169 + $0x48] sm:$0xff]
      %v188 = vld [vmem:[%s169 + $0x50] sm:$0xff]
      %v189 = vld [vmem:[%s169 + $0x58] sm:$0xff]
      %v190 = vld [vmem:[%s169 + $0x60] sm:$0xff]
      %v191 = vld [vmem:[%s169 + $0x68] sm:$0xff]
      %v192 = vld [vmem:[%s169 + $0x70] sm:$0xff]
      %v193 = vld [vmem:[%s169 + $0x78] sm:$0xff]
      %v194 = vld [vmem:[%s169 + $0x80] sm:$0xff]
      %v195 = vld [vmem:[%s169 + $0x88] sm:$0xff]
      %v196 = vld [vmem:[%s169 + $0x90] sm:$0xff]
      %v197 = vld [vmem:[%s169 + $0x98] sm:$0xff]
      %v198 = vld [vmem:[%s169 + $0xa0] sm:$0xff]
      %v199 = vld [vmem:[%s169 + $0xa8] sm:$0xff]
      %v200 = vld [vmem:[%s169 + $0xb0] sm:$0xff]
      %v201 = vld [vmem:[%s169 + $0xb8] sm:$0xff]
      %v202 = vld [vmem:[%s169 + $0xc0] sm:$0xff]
      %v203 = vld [vmem:[%s169 + $0xc8] sm:$0xff]
      %v204 = vld [vmem:[%s169 + $0xd0] sm:$0xff]
      %v205 = vld [vmem:[%s169 + $0xd8] sm:$0xff]
      %v206 = vld [vmem:[%s169 + $0xe0] sm:$0xff]
      %v207 = vld [vmem:[%s169 + $0xe8] sm:$0xff]
      %v208 = vld [vmem:[%s169 + $0xf0] sm:$0xff]
      %v209 = vld [vmem:[%s169 + $0xf8] sm:$0xff]
      %v210 = vld [vmem:[%s169 + $0x100] sm:$0xff]
      %v211 = vld [vmem:[%s169 + $0x108] sm:$0xff]
      %v212 = vld [vmem:[%s169 + $0x110] sm:$0xff]
      %v213 = vld [vmem:[%s169 + $0x118] sm:$0xff]
      %v214 = vld [vmem:[%s169 + $0x120] sm:$0xff]
      %v215 = vld [vmem:[%s169 + $0x128] sm:$0xff]
      %v216 = vld [vmem:[%s169 + $0x130] sm:$0xff]
      %v217 = vld [vmem:[%s169 + $0x138] sm:$0xff]
      %v218 = vld [vmem:[%s169 + $0x140] sm:$0xff]
      %v219 = vld [vmem:[%s169 + $0x148] sm:$0xff]
      %v220 = vld [vmem:[%s169 + $0x150] sm:$0xff]
      %v221 = vld [vmem:[%s169 + $0x158] sm:$0xff]
      %v222 = vld [vmem:[%s169 + $0x160] sm:$0xff]
      %v223 = vld [vmem:[%s169 + $0x168] sm:$0xff]
      %v224 = vld [vmem:[%s169 + $0x170] sm:$0xff]
      %v225 = vld [vmem:[%s169 + $0x178] sm:$0xff]
      %v226 = vld [vmem:[%s169 + $0x180] sm:$0xff]
      %v227 = vld [vmem:[%s169 + $0x188] sm:$0xff]
      %v228 = vld [vmem:[%s169 + $0x190] sm:$0xff]
      %v229 = vld [vmem:[%s169 + $0x198] sm:$0xff]
      %v230 = vld [vmem:[%s169 + $0x1a0] sm:$0xff]
      %v231 = vld [vmem:[%s169 + $0x1a8] sm:$0xff]
      %v232 = vld [vmem:[%s169 + $0x1b0] sm:$0xff]
      %v233 = vld [vmem:[%s169 + $0x1b8] sm:$0xff]
      %v234 = vld [vmem:[%s169 + $0x1c0] sm:$0xff]
      %v235 = vld [vmem:[%s169 + $0x1c8] sm:$0xff]
      %v236 = vld [vmem:[%s169 + $0x1d0] sm:$0xff]
      %v237 = vld [vmem:[%s169 + $0x1d8] sm:$0xff]
      %v238 = vld [vmem:[%s169 + $0x1e0] sm:$0xff]
      %v239 = vld [vmem:[%s169 + $0x1e8] sm:$0xff]
      %v240 = vld [vmem:[%s169 + $0x1f0] sm:$0xff]
      %v241 = vld [vmem:[%s169 + $0x1f8] sm:$0xff]
      %v242 = vld [vmem:[%s1] sm:$0xf]
      %v243 = vld [vmem:[%s1 + $0x4] sm:$0xf]
      %v244 = vld [vmem:[%s1 + $0x8] sm:$0xf]
      %v245 = vld [vmem:[%s1 + $0xc] sm:$0xf]
      %v246 = vld [vmem:[%s1 + $0x10] sm:$0xf]
      %v247 = vld [vmem:[%s1 + $0x14] sm:$0xf]
      %v248 = vld [vmem:[%s1 + $0x18] sm:$0xf]
      %v249 = vld [vmem:[%s1 + $0x1c] sm:$0xf]
      %v250 = vld [vmem:[%s1 + $0x20] sm:$0xf]
      %v251 = vld [vmem:[%s1 + $0x24] sm:$0xf]
      %v252 = vld [vmem:[%s1 + $0x28] sm:$0xf]
      %v253 = vld [vmem:[%s1 + $0x2c] sm:$0xf]
      %v254 = vld [vmem:[%s1 + $0x30] sm:$0xf]
      %v255 = vld [vmem:[%s1 + $0x34] sm:$0xf]
      %v256 = vld [vmem:[%s1 + $0x38] sm:$0xf]
      %v257 = vld [vmem:[%s1 + $0x3c] sm:$0xf]
      %v258 = vld [vmem:[%s1 + $0x40] sm:$0xf]
      %v259 = vld [vmem:[%s1 + $0x44] sm:$0xf]
      %v260 = vld [vmem:[%s1 + $0x48] sm:$0xf]
      %v261 = vld [vmem:[%s1 + $0x4c] sm:$0xf]
      %v262 = vld [vmem:[%s1 + $0x50] sm:$0xf]
      %v263 = vld [vmem:[%s1 + $0x54] sm:$0xf]
      %v264 = vld [vmem:[%s1 + $0x58] sm:$0xf]
      %v265 = vld [vmem:[%s1 + $0x5c] sm:$0xf]
      %v266 = vld [vmem:[%s1 + $0x60] sm:$0xf]
      %v267 = vld [vmem:[%s1 + $0x64] sm:$0xf]
      %v268 = vld [vmem:[%s1 + $0x68] sm:$0xf]
      %v269 = vld [vmem:[%s1 + $0x6c] sm:$0xf]
      %v270 = vld [vmem:[%s1 + $0x70] sm:$0xf]
      %v271 = vld [vmem:[%s1 + $0x74] sm:$0xf]
      %v272 = vld [vmem:[%s1 + $0x78] sm:$0xf]
      %v273 = vld [vmem:[%s1 + $0x7c] sm:$0xf]
      %v338 = vunpack.c.l.b16 %v178
      %v339 = vunpack.c.h.b16 %v178
      %v340 = vunpack.c.l.b16 %v179
      %v341 = vunpack.c.h.b16 %v179
      %v342 = vunpack.c.l.b16 %v180
      %v343 = vunpack.c.h.b16 %v180
      %v344 = vunpack.c.l.b16 %v181
      %v345 = vunpack.c.h.b16 %v181
      %v346 = vunpack.c.l.b16 %v182
      %v347 = vunpack.c.h.b16 %v182
      %v348 = vunpack.c.l.b16 %v183
      %v349 = vunpack.c.h.b16 %v183
      %v350 = vunpack.c.l.b16 %v184
      %v351 = vunpack.c.h.b16 %v184
      %v352 = vunpack.c.l.b16 %v185
      %v353 = vunpack.c.h.b16 %v185
      %v354 = vunpack.c.l.b16 %v186
      %v355 = vunpack.c.h.b16 %v186
      %v356 = vunpack.c.l.b16 %v187
      %v357 = vunpack.c.h.b16 %v187
      %v358 = vunpack.c.l.b16 %v188
      %v359 = vunpack.c.h.b16 %v188
      %v360 = vunpack.c.l.b16 %v189
      %v361 = vunpack.c.h.b16 %v189
      %v362 = vunpack.c.l.b16 %v190
      %v363 = vunpack.c.h.b16 %v190
      %v364 = vunpack.c.l.b16 %v191
      %v365 = vunpack.c.h.b16 %v191
      %v366 = vunpack.c.l.b16 %v192
      %v367 = vunpack.c.h.b16 %v192
      %v368 = vunpack.c.l.b16 %v193
      %v369 = vunpack.c.h.b16 %v193
      %v370 = vunpack.c.l.b16 %v194
      %v371 = vunpack.c.h.b16 %v194
      %v372 = vunpack.c.l.b16 %v195
      %v373 = vunpack.c.h.b16 %v195
      %v374 = vunpack.c.l.b16 %v196
      %v375 = vunpack.c.h.b16 %v196
      %v376 = vunpack.c.l.b16 %v197
      %v377 = vunpack.c.h.b16 %v197
      %v378 = vunpack.c.l.b16 %v198
      %v379 = vunpack.c.h.b16 %v198
      %v380 = vunpack.c.l.b16 %v199
      %v381 = vunpack.c.h.b16 %v199
      %v382 = vunpack.c.l.b16 %v200
      %v383 = vunpack.c.h.b16 %v200
      %v384 = vunpack.c.l.b16 %v201
      %v385 = vunpack.c.h.b16 %v201
      %v386 = vunpack.c.l.b16 %v202
      %v387 = vunpack.c.h.b16 %v202
      %v388 = vunpack.c.l.b16 %v203
      %v389 = vunpack.c.h.b16 %v203
      %v390 = vunpack.c.l.b16 %v204
      %v391 = vunpack.c.h.b16 %v204
      %v392 = vunpack.c.l.b16 %v205
      %v393 = vunpack.c.h.b16 %v205
      %v394 = vunpack.c.l.b16 %v206
      %v395 = vunpack.c.h.b16 %v206
      %v396 = vunpack.c.l.b16 %v207
      %v397 = vunpack.c.h.b16 %v207
      %v398 = vunpack.c.l.b16 %v208
      %v399 = vunpack.c.h.b16 %v208
      %v400 = vunpack.c.l.b16 %v209
      %v401 = vunpack.c.h.b16 %v209
      %v402 = vunpack.c.l.b16 %v210
      %v403 = vunpack.c.h.b16 %v210
      %v404 = vunpack.c.l.b16 %v211
      %v405 = vunpack.c.h.b16 %v211
      %v406 = vunpack.c.l.b16 %v212
      %v407 = vunpack.c.h.b16 %v212
      %v408 = vunpack.c.l.b16 %v213
      %v409 = vunpack.c.h.b16 %v213
      %v410 = vunpack.c.l.b16 %v214
      %v411 = vunpack.c.h.b16 %v214
      %v412 = vunpack.c.l.b16 %v215
      %v413 = vunpack.c.h.b16 %v215
      %v414 = vunpack.c.l.b16 %v216
      %v415 = vunpack.c.h.b16 %v216
      %v416 = vunpack.c.l.b16 %v217
      %v417 = vunpack.c.h.b16 %v217
      %v418 = vunpack.c.l.b16 %v218
      %v419 = vunpack.c.h.b16 %v218
      %v420 = vunpack.c.l.b16 %v219
      %v421 = vunpack.c.h.b16 %v219
      %v422 = vunpack.c.l.b16 %v220
      %v423 = vunpack.c.h.b16 %v220
      %v424 = vunpack.c.l.b16 %v221
      %v425 = vunpack.c.h.b16 %v221
      %v426 = vunpack.c.l.b16 %v222
      %v427 = vunpack.c.h.b16 %v222
      %v428 = vunpack.c.l.b16 %v223
      %v429 = vunpack.c.h.b16 %v223
      %v430 = vunpack.c.l.b16 %v224
      %v431 = vunpack.c.h.b16 %v224
      %v432 = vunpack.c.l.b16 %v225
      %v433 = vunpack.c.h.b16 %v225
      %v434 = vunpack.c.l.b16 %v226
      %v435 = vunpack.c.h.b16 %v226
      %v436 = vunpack.c.l.b16 %v227
      %v437 = vunpack.c.h.b16 %v227
      %v438 = vunpack.c.l.b16 %v228
      %v439 = vunpack.c.h.b16 %v228
      %v440 = vunpack.c.l.b16 %v229
      %v441 = vunpack.c.h.b16 %v229
      %v442 = vunpack.c.l.b16 %v230
      %v443 = vunpack.c.h.b16 %v230
      %v444 = vunpack.c.l.b16 %v231
      %v445 = vunpack.c.h.b16 %v231
      %v446 = vunpack.c.l.b16 %v232
      %v447 = vunpack.c.h.b16 %v232
      %v448 = vunpack.c.l.b16 %v233
      %v449 = vunpack.c.h.b16 %v233
      %v450 = vunpack.c.l.b16 %v234
      %v451 = vunpack.c.h.b16 %v234
      %v452 = vunpack.c.l.b16 %v235
      %v453 = vunpack.c.h.b16 %v235
      %v454 = vunpack.c.l.b16 %v236
      %v455 = vunpack.c.h.b16 %v236
      %v456 = vunpack.c.l.b16 %v237
      %v457 = vunpack.c.h.b16 %v237
      %v458 = vunpack.c.l.b16 %v238
      %v459 = vunpack.c.h.b16 %v238
      %v460 = vunpack.c.l.b16 %v239
      %v461 = vunpack.c.h.b16 %v239
      %v462 = vunpack.c.l.b16 %v240
      %v463 = vunpack.c.h.b16 %v240
      %v464 = vunpack.c.l.b16 %v241
      %v465 = vunpack.c.h.b16 %v241
      %v466 = vpack.c.b16 %v340, %v338
      %v467 = vpack.c.b16 %v341, %v339
      %v468 = vpack.c.b16 %v344, %v342
      %v469 = vpack.c.b16 %v345, %v343
      %v470 = vpack.c.b16 %v348, %v346
      %v471 = vpack.c.b16 %v349, %v347
      %v472 = vpack.c.b16 %v352, %v350
      %v473 = vpack.c.b16 %v353, %v351
      %v474 = vpack.c.b16 %v356, %v354
      %v475 = vpack.c.b16 %v357, %v355
      %v476 = vpack.c.b16 %v360, %v358
      %v477 = vpack.c.b16 %v361, %v359
      %v478 = vpack.c.b16 %v364, %v362
      %v479 = vpack.c.b16 %v365, %v363
      %v480 = vpack.c.b16 %v368, %v366
      %v481 = vpack.c.b16 %v369, %v367
      %v482 = vpack.c.b16 %v372, %v370
      %v483 = vpack.c.b16 %v373, %v371
      %v484 = vpack.c.b16 %v376, %v374
      %v485 = vpack.c.b16 %v377, %v375
      %v486 = vpack.c.b16 %v380, %v378
      %v487 = vpack.c.b16 %v381, %v379
      %v488 = vpack.c.b16 %v384, %v382
      %v489 = vpack.c.b16 %v385, %v383
      %v490 = vpack.c.b16 %v388, %v386
      %v491 = vpack.c.b16 %v389, %v387
      %v492 = vpack.c.b16 %v392, %v390
      %v493 = vpack.c.b16 %v393, %v391
      %v494 = vpack.c.b16 %v396, %v394
      %v495 = vpack.c.b16 %v397, %v395
      %v496 = vpack.c.b16 %v400, %v398
      %v497 = vpack.c.b16 %v401, %v399
      %v498 = vpack.c.b16 %v404, %v402
      %v499 = vpack.c.b16 %v405, %v403
      %v500 = vpack.c.b16 %v408, %v406
      %v501 = vpack.c.b16 %v409, %v407
      %v502 = vpack.c.b16 %v412, %v410
      %v503 = vpack.c.b16 %v413, %v411
      %v504 = vpack.c.b16 %v416, %v414
      %v505 = vpack.c.b16 %v417, %v415
      %v506 = vpack.c.b16 %v420, %v418
      %v507 = vpack.c.b16 %v421, %v419
      %v508 = vpack.c.b16 %v424, %v422
      %v509 = vpack.c.b16 %v425, %v423
      %v510 = vpack.c.b16 %v428, %v426
      %v511 = vpack.c.b16 %v429, %v427
      %v512 = vpack.c.b16 %v432, %v430
      %v513 = vpack.c.b16 %v433, %v431
      %v514 = vpack.c.b16 %v436, %v434
      %v515 = vpack.c.b16 %v437, %v435
      %v516 = vpack.c.b16 %v440, %v438
      %v517 = vpack.c.b16 %v441, %v439
      %v518 = vpack.c.b16 %v444, %v442
      %v519 = vpack.c.b16 %v445, %v443
      %v520 = vpack.c.b16 %v448, %v446
      %v521 = vpack.c.b16 %v449, %v447
      %v522 = vpack.c.b16 %v452, %v450
      %v523 = vpack.c.b16 %v453, %v451
      %v524 = vpack.c.b16 %v456, %v454
      %v525 = vpack.c.b16 %v457, %v455
      %v526 = vpack.c.b16 %v460, %v458
      %v527 = vpack.c.b16 %v461, %v459
      %v528 = vpack.c.b16 %v464, %v462
      %v529 = vpack.c.b16 %v465, %v463
      %v626 = vunpack.c.l.b16 %v242
      %v627 = vunpack.c.l.b16 %v243
      %v628 = vunpack.c.l.b16 %v244
      %v629 = vunpack.c.l.b16 %v245
      %v630 = vunpack.c.l.b16 %v246
      %v631 = vunpack.c.l.b16 %v247
      %v632 = vunpack.c.l.b16 %v248
      %v633 = vunpack.c.l.b16 %v249
      %v634 = vunpack.c.l.b16 %v250
      %v635 = vunpack.c.l.b16 %v251
      %v636 = vunpack.c.l.b16 %v252
      %v637 = vunpack.c.l.b16 %v253
      %v638 = vunpack.c.l.b16 %v254
      %v639 = vunpack.c.l.b16 %v255
      %v640 = vunpack.c.l.b16 %v256
      %v641 = vunpack.c.l.b16 %v257
      %v642 = vunpack.c.l.b16 %v258
      %v643 = vunpack.c.l.b16 %v259
      %v644 = vunpack.c.l.b16 %v260
      %v645 = vunpack.c.l.b16 %v261
      %v646 = vunpack.c.l.b16 %v262
      %v647 = vunpack.c.l.b16 %v263
      %v648 = vunpack.c.l.b16 %v264
      %v649 = vunpack.c.l.b16 %v265
      %v650 = vunpack.c.l.b16 %v266
      %v651 = vunpack.c.l.b16 %v267
      %v652 = vunpack.c.l.b16 %v268
      %v653 = vunpack.c.l.b16 %v269
      %v654 = vunpack.c.l.b16 %v270
      %v655 = vunpack.c.l.b16 %v271
      %v656 = vunpack.c.l.b16 %v272
      %v657 = vunpack.c.l.b16 %v273
      %v658 = vpack.c.b16 %v627, %v626
      %v659 = vpack.c.b16 %v629, %v628
      %v660 = vpack.c.b16 %v631, %v630
      %v661 = vpack.c.b16 %v633, %v632
      %v662 = vpack.c.b16 %v635, %v634
      %v663 = vpack.c.b16 %v637, %v636
      %v664 = vpack.c.b16 %v639, %v638
      %v665 = vpack.c.b16 %v641, %v640
      %v666 = vpack.c.b16 %v643, %v642
      %v667 = vpack.c.b16 %v645, %v644
      %v668 = vpack.c.b16 %v647, %v646
      %v669 = vpack.c.b16 %v649, %v648
      %v670 = vpack.c.b16 %v651, %v650
      %v671 = vpack.c.b16 %v653, %v652
      %v672 = vpack.c.b16 %v655, %v654
      %v673 = vpack.c.b16 %v657, %v656
      %690 = vmatprep.subr.bf16.mxu0 0
      %691 = vmatpush1.bf16.msra.mxu0 %v665
      %692 = vmatprep.subr.bf16.mxu0 0
      %693 = vmatpush1.bf16.msra.mxu0 %v664
      %694 = vmatprep.subr.bf16.mxu0 0
      %695 = vmatpush1.bf16.msra.mxu0 %v663
      %696 = vmatprep.subr.bf16.mxu0 0
      %697 = vmatpush1.bf16.msra.mxu0 %v662
      %698 = vmatprep.subr.bf16.mxu0 0
      %699 = vmatpush1.bf16.msra.mxu0 %v661
      %700 = vmatprep.subr.bf16.mxu0 0
      %701 = vmatpush1.bf16.msra.mxu0 %v660
      %702 = vmatprep.subr.bf16.mxu0 0
      %703 = vmatpush1.bf16.msra.mxu0 %v659
      %704 = vmatprep.subr.bf16.mxu0 0
      %705 = vmatpush1.bf16.msra.mxu0 %v658
      %706 = vmatprep.subr.bf16.mxu0 0
      %707 = vmatpush2.bf16.msra.mxu0 %v673
      %708 = vmatprep.subr.bf16.mxu0 0
      %709 = vmatpush2.bf16.msra.mxu0 %v672
      %710 = vmatprep.subr.bf16.mxu0 0
      %711 = vmatpush2.bf16.msra.mxu0 %v671
      %712 = vmatprep.subr.bf16.mxu0 0
      %713 = vmatpush2.bf16.msra.mxu0 %v670
      %714 = vmatprep.subr.bf16.mxu0 0
      %715 = vmatpush2.bf16.msra.mxu0 %v669
      %716 = vmatprep.subr.bf16.mxu0 0
      %717 = vmatpush2.bf16.msra.mxu0 %v668
      %718 = vmatprep.subr.bf16.mxu0 0
      %719 = vmatpush2.bf16.msra.mxu0 %v667
      %720 = vmatprep.subr.bf16.mxu0 0
      %721 = vmatpush2.bf16.msra.mxu0 %v666
      %722 = vmatprep.mubr.bf16.mxu0 %v467
      %723 = vmatmul.mubr.bf16.gmra.mxu0 %v466
      %v724 = vpop.f32.mrf.mxu0
      %v725 = vadd.f32 0.0, %v724
      %v726 = vpop.f32.mrf.mxu0
      %v727 = vpop.f32.mrf.mxu0
      %v728 = vadd.f32 0.0, %v727
      %v729 = vpop.f32.mrf.mxu0
      %730 = vmatprep.mubr.bf16.mxu0 %v469
      %731 = vmatmul.mubr.bf16.gmra.mxu0 %v468
      %v732 = vpop.f32.mrf.mxu0
      %v733 = vadd.f32 0.0, %v732
      %v734 = vpop.f32.mrf.mxu0
      %v735 = vpop.f32.mrf.mxu0
      %v736 = vadd.f32 0.0, %v735
      %v737 = vpop.f32.mrf.mxu0
      %738 = vmatprep.mubr.bf16.mxu0 %v471
      %739 = vmatmul.mubr.bf16.gmra.mxu0 %v470
      %v740 = vpop.f32.mrf.mxu0
      %v741 = vadd.f32 0.0, %v740
      %v742 = vpop.f32.mrf.mxu0
      %v743 = vpop.f32.mrf.mxu0
      %v744 = vadd.f32 0.0, %v743
      %v745 = vpop.f32.mrf.mxu0
      %746 = vmatprep.mubr.bf16.mxu0 %v473
      %747 = vmatmul.mubr.bf16.gmra.mxu0 %v472
      %v748 = vpop.f32.mrf.mxu0
      %v749 = vadd.f32 0.0, %v748
      %v750 = vpop.f32.mrf.mxu0
      %v751 = vpop.f32.mrf.mxu0
      %v752 = vadd.f32 0.0, %v751
      %v753 = vpop.f32.mrf.mxu0
      %754 = vmatprep.mubr.bf16.mxu0 %v475
      %755 = vmatmul.mubr.bf16.gmra.mxu0 %v474
      %v756 = vpop.f32.mrf.mxu0
      %v757 = vadd.f32 0.0, %v756
      %v758 = vpop.f32.mrf.mxu0
      %v759 = vpop.f32.mrf.mxu0
      %v760 = vadd.f32 0.0, %v759
      %v761 = vpop.f32.mrf.mxu0
      %762 = vmatprep.mubr.bf16.mxu0 %v477
      %763 = vmatmul.mubr.bf16.gmra.mxu0 %v476
      %v764 = vpop.f32.mrf.mxu0
      %v765 = vadd.f32 0.0, %v764
      %v766 = vpop.f32.mrf.mxu0
      %v767 = vpop.f32.mrf.mxu0
      %v768 = vadd.f32 0.0, %v767
      %v769 = vpop.f32.mrf.mxu0
      %770 = vmatprep.mubr.bf16.mxu0 %v479
      %771 = vmatmul.mubr.bf16.gmra.mxu0 %v478
      %v772 = vpop.f32.mrf.mxu0
      %v773 = vadd.f32 0.0, %v772
      %v774 = vpop.f32.mrf.mxu0
      %v775 = vpop.f32.mrf.mxu0
      %v776 = vadd.f32 0.0, %v775
      %v777 = vpop.f32.mrf.mxu0
      %778 = vmatprep.mubr.bf16.mxu0 %v481
      %779 = vmatmul.mubr.bf16.gmra.mxu0 %v480
      %v780 = vpop.f32.mrf.mxu0
      %v781 = vadd.f32 0.0, %v780
      %v782 = vpop.f32.mrf.mxu0
      %v783 = vpop.f32.mrf.mxu0
      %v784 = vadd.f32 0.0, %v783
      %v785 = vpop.f32.mrf.mxu0
      %786 = vmatprep.mubr.bf16.mxu0 %v483
      %787 = vmatmul.mubr.bf16.gmra.mxu0 %v482
      %v788 = vpop.f32.mrf.mxu0
      %v789 = vadd.f32 0.0, %v788
      %v790 = vpop.f32.mrf.mxu0
      %v791 = vpop.f32.mrf.mxu0
      %v792 = vadd.f32 0.0, %v791
      %v793 = vpop.f32.mrf.mxu0
      %794 = vmatprep.mubr.bf16.mxu0 %v485
      %795 = vmatmul.mubr.bf16.gmra.mxu0 %v484
      %v796 = vpop.f32.mrf.mxu0
      %v797 = vadd.f32 0.0, %v796
      %v798 = vpop.f32.mrf.mxu0
      %v799 = vpop.f32.mrf.mxu0
      %v800 = vadd.f32 0.0, %v799
      %v801 = vpop.f32.mrf.mxu0
      %802 = vmatprep.mubr.bf16.mxu0 %v487
      %803 = vmatmul.mubr.bf16.gmra.mxu0 %v486
      %v804 = vpop.f32.mrf.mxu0
      %v805 = vadd.f32 0.0, %v804
      %v806 = vpop.f32.mrf.mxu0
      %v807 = vpop.f32.mrf.mxu0
      %v808 = vadd.f32 0.0, %v807
      %v809 = vpop.f32.mrf.mxu0
      %810 = vmatprep.mubr.bf16.mxu0 %v489
      %811 = vmatmul.mubr.bf16.gmra.mxu0 %v488
      %v812 = vpop.f32.mrf.mxu0
      %v813 = vadd.f32 0.0, %v812
      %v814 = vpop.f32.mrf.mxu0
      %v815 = vpop.f32.mrf.mxu0
      %v816 = vadd.f32 0.0, %v815
      %v817 = vpop.f32.mrf.mxu0
      %818 = vmatprep.mubr.bf16.mxu0 %v491
      %819 = vmatmul.mubr.bf16.gmra.mxu0 %v490
      %v820 = vpop.f32.mrf.mxu0
      %v821 = vadd.f32 0.0, %v820
      %v822 = vpop.f32.mrf.mxu0
      %v823 = vpop.f32.mrf.mxu0
      %v824 = vadd.f32 0.0, %v823
      %v825 = vpop.f32.mrf.mxu0
      %826 = vmatprep.mubr.bf16.mxu0 %v493
      %827 = vmatmul.mubr.bf16.gmra.mxu0 %v492
      %v828 = vpop.f32.mrf.mxu0
      %v829 = vadd.f32 0.0, %v828
      %v830 = vpop.f32.mrf.mxu0
      %v831 = vpop.f32.mrf.mxu0
      %v832 = vadd.f32 0.0, %v831
      %v833 = vpop.f32.mrf.mxu0
      %834 = vmatprep.mubr.bf16.mxu0 %v495
      %835 = vmatmul.mubr.bf16.gmra.mxu0 %v494
      %v836 = vpop.f32.mrf.mxu0
      %v837 = vadd.f32 0.0, %v836
      %v838 = vpop.f32.mrf.mxu0
      %v839 = vpop.f32.mrf.mxu0
      %v840 = vadd.f32 0.0, %v839
      %v841 = vpop.f32.mrf.mxu0
      %842 = vmatprep.mubr.bf16.mxu0 %v497
      %843 = vmatmul.mubr.bf16.gmra.mxu0 %v496
      %v844 = vpop.f32.mrf.mxu0
      %v845 = vadd.f32 0.0, %v844
      %v846 = vpop.f32.mrf.mxu0
      %v847 = vpop.f32.mrf.mxu0
      %v848 = vadd.f32 0.0, %v847
      %v849 = vpop.f32.mrf.mxu0
      %850 = vmatprep.mubr.bf16.mxu0 %v499
      %851 = vmatmul.mubr.bf16.gmra.mxu0 %v498
      %v852 = vpop.f32.mrf.mxu0
      %v853 = vadd.f32 0.0, %v852
      %v854 = vpop.f32.mrf.mxu0
      %v855 = vpop.f32.mrf.mxu0
      %v856 = vadd.f32 0.0, %v855
      %v857 = vpop.f32.mrf.mxu0
      %858 = vmatprep.mubr.bf16.mxu0 %v501
      %859 = vmatmul.mubr.bf16.gmra.mxu0 %v500
      %v860 = vpop.f32.mrf.mxu0
      %v861 = vadd.f32 0.0, %v860
      %v862 = vpop.f32.mrf.mxu0
      %v863 = vpop.f32.mrf.mxu0
      %v864 = vadd.f32 0.0, %v863
      %v865 = vpop.f32.mrf.mxu0
      %866 = vmatprep.mubr.bf16.mxu0 %v503
      %867 = vmatmul.mubr.bf16.gmra.mxu0 %v502
      %v868 = vpop.f32.mrf.mxu0
      %v869 = vadd.f32 0.0, %v868
      %v870 = vpop.f32.mrf.mxu0
      %v871 = vpop.f32.mrf.mxu0
      %v872 = vadd.f32 0.0, %v871
      %v873 = vpop.f32.mrf.mxu0
      %874 = vmatprep.mubr.bf16.mxu0 %v505
      %875 = vmatmul.mubr.bf16.gmra.mxu0 %v504
      %v876 = vpop.f32.mrf.mxu0
      %v877 = vadd.f32 0.0, %v876
      %v878 = vpop.f32.mrf.mxu0
      %v879 = vpop.f32.mrf.mxu0
      %v880 = vadd.f32 0.0, %v879
      %v881 = vpop.f32.mrf.mxu0
      %882 = vmatprep.mubr.bf16.mxu0 %v507
      %883 = vmatmul.mubr.bf16.gmra.mxu0 %v506
      %v884 = vpop.f32.mrf.mxu0
      %v885 = vadd.f32 0.0, %v884
      %v886 = vpop.f32.mrf.mxu0
      %v887 = vpop.f32.mrf.mxu0
      %v888 = vadd.f32 0.0, %v887
      %v889 = vpop.f32.mrf.mxu0
      %890 = vmatprep.mubr.bf16.mxu0 %v509
      %891 = vmatmul.mubr.bf16.gmra.mxu0 %v508
      %v892 = vpop.f32.mrf.mxu0
      %v893 = vadd.f32 0.0, %v892
      %v894 = vpop.f32.mrf.mxu0
      %v895 = vpop.f32.mrf.mxu0
      %v896 = vadd.f32 0.0, %v895
      %v897 = vpop.f32.mrf.mxu0
      %898 = vmatprep.mubr.bf16.mxu0 %v511
      %899 = vmatmul.mubr.bf16.gmra.mxu0 %v510
      %v900 = vpop.f32.mrf.mxu0
      %v901 = vadd.f32 0.0, %v900
      %v902 = vpop.f32.mrf.mxu0
      %v903 = vpop.f32.mrf.mxu0
      %v904 = vadd.f32 0.0, %v903
      %v905 = vpop.f32.mrf.mxu0
      %906 = vmatprep.mubr.bf16.mxu0 %v513
      %907 = vmatmul.mubr.bf16.gmra.mxu0 %v512
      %v908 = vpop.f32.mrf.mxu0
      %v909 = vadd.f32 0.0, %v908
      %v910 = vpop.f32.mrf.mxu0
      %v911 = vpop.f32.mrf.mxu0
      %v912 = vadd.f32 0.0, %v911
      %v913 = vpop.f32.mrf.mxu0
      %914 = vmatprep.mubr.bf16.mxu0 %v515
      %915 = vmatmul.mubr.bf16.gmra.mxu0 %v514
      %v916 = vpop.f32.mrf.mxu0
      %v917 = vadd.f32 0.0, %v916
      %v918 = vpop.f32.mrf.mxu0
      %v919 = vpop.f32.mrf.mxu0
      %v920 = vadd.f32 0.0, %v919
      %v921 = vpop.f32.mrf.mxu0
      %922 = vmatprep.mubr.bf16.mxu0 %v517
      %923 = vmatmul.mubr.bf16.gmra.mxu0 %v516
      %v924 = vpop.f32.mrf.mxu0
      %v925 = vadd.f32 0.0, %v924
      %v926 = vpop.f32.mrf.mxu0
      %v927 = vpop.f32.mrf.mxu0
      %v928 = vadd.f32 0.0, %v927
      %v929 = vpop.f32.mrf.mxu0
      %930 = vmatprep.mubr.bf16.mxu0 %v519
      %931 = vmatmul.mubr.bf16.gmra.mxu0 %v518
      %v932 = vpop.f32.mrf.mxu0
      %v933 = vadd.f32 0.0, %v932
      %v934 = vpop.f32.mrf.mxu0
      %v935 = vpop.f32.mrf.mxu0
      %v936 = vadd.f32 0.0, %v935
      %v937 = vpop.f32.mrf.mxu0
      %938 = vmatprep.mubr.bf16.mxu0 %v521
      %939 = vmatmul.mubr.bf16.gmra.mxu0 %v520
      %v940 = vpop.f32.mrf.mxu0
      %v941 = vadd.f32 0.0, %v940
      %v942 = vpop.f32.mrf.mxu0
      %v943 = vpop.f32.mrf.mxu0
      %v944 = vadd.f32 0.0, %v943
      %v945 = vpop.f32.mrf.mxu0
      %946 = vmatprep.mubr.bf16.mxu0 %v523
      %947 = vmatmul.mubr.bf16.gmra.mxu0 %v522
      %v948 = vpop.f32.mrf.mxu0
      %v949 = vadd.f32 0.0, %v948
      %v950 = vpop.f32.mrf.mxu0
      %v951 = vpop.f32.mrf.mxu0
      %v952 = vadd.f32 0.0, %v951
      %v953 = vpop.f32.mrf.mxu0
      %954 = vmatprep.mubr.bf16.mxu0 %v525
      %955 = vmatmul.mubr.bf16.gmra.mxu0 %v524
      %v956 = vpop.f32.mrf.mxu0
      %v957 = vadd.f32 0.0, %v956
      %v958 = vpop.f32.mrf.mxu0
      %v959 = vpop.f32.mrf.mxu0
      %v960 = vadd.f32 0.0, %v959
      %v961 = vpop.f32.mrf.mxu0
      %962 = vmatprep.mubr.bf16.mxu0 %v527
      %963 = vmatmul.mubr.bf16.gmra.mxu0 %v526
      %v964 = vpop.f32.mrf.mxu0
      %v965 = vadd.f32 0.0, %v964
      %v966 = vpop.f32.mrf.mxu0
      %v967 = vpop.f32.mrf.mxu0
      %v968 = vadd.f32 0.0, %v967
      %v969 = vpop.f32.mrf.mxu0
      %970 = vmatprep.mubr.bf16.mxu0 %v529
      %971 = vmatmul.mubr.bf16.gmra.mxu0 %v528
      %v972 = vpop.f32.mrf.mxu0
      %v973 = vadd.f32 0.0, %v972
      %v974 = vpop.f32.mrf.mxu0
      %v975 = vpop.f32.mrf.mxu0
      %v976 = vadd.f32 0.0, %v975
      %v977 = vpop.f32.mrf.mxu0
      %978 = vdwg.mxu0
      %v979 = vld [vmem:[%s2] sm:$0x1]
      %v980 = vlaneseq
      %v981 = vshrl.u32 %v980, 7
      %v982 = vsub.s32 0, %v981
      %v983 = vrot.slane %v979, %v982
      %v984 = vmul.f32 %v725, %v983
      %v985 = vmul.f32 %v728, %v983
      %v986 = vmul.f32 %v733, %v983
      %v987 = vmul.f32 %v736, %v983
      %v988 = vmul.f32 %v741, %v983
      %v989 = vmul.f32 %v744, %v983
      %v990 = vmul.f32 %v749, %v983
      %v991 = vmul.f32 %v752, %v983
      %v992 = vmul.f32 %v757, %v983
      %v993 = vmul.f32 %v760, %v983
      %v994 = vmul.f32 %v765, %v983
      %v995 = vmul.f32 %v768, %v983
      %v996 = vmul.f32 %v773, %v983
      %v997 = vmul.f32 %v776, %v983
      %v998 = vmul.f32 %v781, %v983
      %v999 = vmul.f32 %v784, %v983
      %v1000 = vmul.f32 %v789, %v983
      %v1001 = vmul.f32 %v792, %v983
      %v1002 = vmul.f32 %v797, %v983
      %v1003 = vmul.f32 %v800, %v983
      %v1004 = vmul.f32 %v805, %v983
      %v1005 = vmul.f32 %v808, %v983
      %v1006 = vmul.f32 %v813, %v983
      %v1007 = vmul.f32 %v816, %v983
      %v1008 = vmul.f32 %v821, %v983
      %v1009 = vmul.f32 %v824, %v983
      %v1010 = vmul.f32 %v829, %v983
      %v1011 = vmul.f32 %v832, %v983
      %v1012 = vmul.f32 %v837, %v983
      %v1013 = vmul.f32 %v840, %v983
      %v1014 = vmul.f32 %v845, %v983
      %v1015 = vmul.f32 %v848, %v983
      %v1016 = vmul.f32 %v853, %v983
      %v1017 = vmul.f32 %v856, %v983
      %v1018 = vmul.f32 %v861, %v983
      %v1019 = vmul.f32 %v864, %v983
      %v1020 = vmul.f32 %v869, %v983
      %v1021 = vmul.f32 %v872, %v983
      %v1022 = vmul.f32 %v877, %v983
      %v1023 = vmul.f32 %v880, %v983
      %v1024 = vmul.f32 %v885, %v983
      %v1025 = vmul.f32 %v888, %v983
      %v1026 = vmul.f32 %v893, %v983
      %v1027 = vmul.f32 %v896, %v983
      %v1028 = vmul.f32 %v901, %v983
      %v1029 = vmul.f32 %v904, %v983
      %v1030 = vmul.f32 %v909, %v983
      %v1031 = vmul.f32 %v912, %v983
      %v1032 = vmul.f32 %v917, %v983
      %v1033 = vmul.f32 %v920, %v983
      %v1034 = vmul.f32 %v925, %v983
      %v1035 = vmul.f32 %v928, %v983
      %v1036 = vmul.f32 %v933, %v983
      %v1037 = vmul.f32 %v936, %v983
      %v1038 = vmul.f32 %v941, %v983
      %v1039 = vmul.f32 %v944, %v983
      %v1040 = vmul.f32 %v949, %v983
      %v1041 = vmul.f32 %v952, %v983
      %v1042 = vmul.f32 %v957, %v983
      %v1043 = vmul.f32 %v960, %v983
      %v1044 = vmul.f32 %v965, %v983
      %v1045 = vmul.f32 %v968, %v983
      %v1046 = vmul.f32 %v973, %v983
      %v1047 = vmul.f32 %v976, %v983
      %v1048 = vld [vmem:[%s2 + $0x1] sm:$0x1]
      %v1049 = vlaneseq
      %v1050 = vshrl.u32 %v1049, 7
      %v1051 = vsub.s32 0, %v1050
      %v1052 = vrot.slane %v1048, %v1051
      %v1053 = vadd.f32 %v984, %v1052
      %v1054 = vadd.f32 %v985, %v1052
      %v1055 = vadd.f32 %v986, %v1052
      %v1056 = vadd.f32 %v987, %v1052
      %v1057 = vadd.f32 %v988, %v1052
      %v1058 = vadd.f32 %v989, %v1052
      %v1059 = vadd.f32 %v990, %v1052
      %v1060 = vadd.f32 %v991, %v1052
      %v1061 = vadd.f32 %v992, %v1052
      %v1062 = vadd.f32 %v993, %v1052
      %v1063 = vadd.f32 %v994, %v1052
      %v1064 = vadd.f32 %v995, %v1052
      %v1065 = vadd.f32 %v996, %v1052
      %v1066 = vadd.f32 %v997, %v1052
      %v1067 = vadd.f32 %v998, %v1052
      %v1068 = vadd.f32 %v999, %v1052
      %v1069 = vadd.f32 %v1000, %v1052
      %v1070 = vadd.f32 %v1001, %v1052
      %v1071 = vadd.f32 %v1002, %v1052
      %v1072 = vadd.f32 %v1003, %v1052
      %v1073 = vadd.f32 %v1004, %v1052
      %v1074 = vadd.f32 %v1005, %v1052
      %v1075 = vadd.f32 %v1006, %v1052
      %v1076 = vadd.f32 %v1007, %v1052
      %v1077 = vadd.f32 %v1008, %v1052
      %v1078 = vadd.f32 %v1009, %v1052
      %v1079 = vadd.f32 %v1010, %v1052
      %v1080 = vadd.f32 %v1011, %v1052
      %v1081 = vadd.f32 %v1012, %v1052
      %v1082 = vadd.f32 %v1013, %v1052
      %v1083 = vadd.f32 %v1014, %v1052
      %v1084 = vadd.f32 %v1015, %v1052
      %v1085 = vadd.f32 %v1016, %v1052
      %v1086 = vadd.f32 %v1017, %v1052
      %v1087 = vadd.f32 %v1018, %v1052
      %v1088 = vadd.f32 %v1019, %v1052
      %v1089 = vadd.f32 %v1020, %v1052
      %v1090 = vadd.f32 %v1021, %v1052
      %v1091 = vadd.f32 %v1022, %v1052
      %v1092 = vadd.f32 %v1023, %v1052
      %v1093 = vadd.f32 %v1024, %v1052
      %v1094 = vadd.f32 %v1025, %v1052
      %v1095 = vadd.f32 %v1026, %v1052
      %v1096 = vadd.f32 %v1027, %v1052
      %v1097 = vadd.f32 %v1028, %v1052
      %v1098 = vadd.f32 %v1029, %v1052
      %v1099 = vadd.f32 %v1030, %v1052
      %v1100 = vadd.f32 %v1031, %v1052
      %v1101 = vadd.f32 %v1032, %v1052
      %v1102 = vadd.f32 %v1033, %v1052
      %v1103 = vadd.f32 %v1034, %v1052
      %v1104 = vadd.f32 %v1035, %v1052
      %v1105 = vadd.f32 %v1036, %v1052
      %v1106 = vadd.f32 %v1037, %v1052
      %v1107 = vadd.f32 %v1038, %v1052
      %v1108 = vadd.f32 %v1039, %v1052
      %v1109 = vadd.f32 %v1040, %v1052
      %v1110 = vadd.f32 %v1041, %v1052
      %v1111 = vadd.f32 %v1042, %v1052
      %v1112 = vadd.f32 %v1043, %v1052
      %v1113 = vadd.f32 %v1044, %v1052
      %v1114 = vadd.f32 %v1045, %v1052
      %v1115 = vadd.f32 %v1046, %v1052
      %v1116 = vadd.f32 %v1047, %v1052
      %v1117 = vmax.f32 %v1053, 0.0
      %v1118 = vmax.f32 %v1054, 0.0
      %v1119 = vmax.f32 %v1055, 0.0
      %v1120 = vmax.f32 %v1056, 0.0
      %v1121 = vmax.f32 %v1057, 0.0
      %v1122 = vmax.f32 %v1058, 0.0
      %v1123 = vmax.f32 %v1059, 0.0
      %v1124 = vmax.f32 %v1060, 0.0
      %v1125 = vmax.f32 %v1061, 0.0
      %v1126 = vmax.f32 %v1062, 0.0
      %v1127 = vmax.f32 %v1063, 0.0
      %v1128 = vmax.f32 %v1064, 0.0
      %v1129 = vmax.f32 %v1065, 0.0
      %v1130 = vmax.f32 %v1066, 0.0
      %v1131 = vmax.f32 %v1067, 0.0
      %v1132 = vmax.f32 %v1068, 0.0
      %v1133 = vmax.f32 %v1069, 0.0
      %v1134 = vmax.f32 %v1070, 0.0
      %v1135 = vmax.f32 %v1071, 0.0
      %v1136 = vmax.f32 %v1072, 0.0
      %v1137 = vmax.f32 %v1073, 0.0
      %v1138 = vmax.f32 %v1074, 0.0
      %v1139 = vmax.f32 %v1075, 0.0
      %v1140 = vmax.f32 %v1076, 0.0
      %v1141 = vmax.f32 %v1077, 0.0
      %v1142 = vmax.f32 %v1078, 0.0
      %v1143 = vmax.f32 %v1079, 0.0
      %v1144 = vmax.f32 %v1080, 0.0
      %v1145 = vmax.f32 %v1081, 0.0
      %v1146 = vmax.f32 %v1082, 0.0
      %v1147 = vmax.f32 %v1083, 0.0
      %v1148 = vmax.f32 %v1084, 0.0
      %v1149 = vmax.f32 %v1085, 0.0
      %v1150 = vmax.f32 %v1086, 0.0
      %v1151 = vmax.f32 %v1087, 0.0
      %v1152 = vmax.f32 %v1088, 0.0
      %v1153 = vmax.f32 %v1089, 0.0
      %v1154 = vmax.f32 %v1090, 0.0
      %v1155 = vmax.f32 %v1091, 0.0
      %v1156 = vmax.f32 %v1092, 0.0
      %v1157 = vmax.f32 %v1093, 0.0
      %v1158 = vmax.f32 %v1094, 0.0
      %v1159 = vmax.f32 %v1095, 0.0
      %v1160 = vmax.f32 %v1096, 0.0
      %v1161 = vmax.f32 %v1097, 0.0
      %v1162 = vmax.f32 %v1098, 0.0
      %v1163 = vmax.f32 %v1099, 0.0
      %v1164 = vmax.f32 %v1100, 0.0
      %v1165 = vmax.f32 %v1101, 0.0
      %v1166 = vmax.f32 %v1102, 0.0
      %v1167 = vmax.f32 %v1103, 0.0
      %v1168 = vmax.f32 %v1104, 0.0
      %v1169 = vmax.f32 %v1105, 0.0
      %v1170 = vmax.f32 %v1106, 0.0
      %v1171 = vmax.f32 %v1107, 0.0
      %v1172 = vmax.f32 %v1108, 0.0
      %v1173 = vmax.f32 %v1109, 0.0
      %v1174 = vmax.f32 %v1110, 0.0
      %v1175 = vmax.f32 %v1111, 0.0
      %v1176 = vmax.f32 %v1112, 0.0
      %v1177 = vmax.f32 %v1113, 0.0
      %v1178 = vmax.f32 %v1114, 0.0
      %v1179 = vmax.f32 %v1115, 0.0
      %v1180 = vmax.f32 %v1116, 0.0
      %v1181 = vpack.c.bf16 %v1118, %v1117
      %v1182 = vpack.c.bf16 %v1120, %v1119
      %v1183 = vpack.c.bf16 %v1122, %v1121
      %v1184 = vpack.c.bf16 %v1124, %v1123
      %v1185 = vpack.c.bf16 %v1126, %v1125
      %v1186 = vpack.c.bf16 %v1128, %v1127
      %v1187 = vpack.c.bf16 %v1130, %v1129
      %v1188 = vpack.c.bf16 %v1132, %v1131
      %v1189 = vpack.c.bf16 %v1134, %v1133
      %v1190 = vpack.c.bf16 %v1136, %v1135
      %v1191 = vpack.c.bf16 %v1138, %v1137
      %v1192 = vpack.c.bf16 %v1140, %v1139
      %v1193 = vpack.c.bf16 %v1142, %v1141
      %v1194 = vpack.c.bf16 %v1144, %v1143
      %v1195 = vpack.c.bf16 %v1146, %v1145
      %v1196 = vpack.c.bf16 %v1148, %v1147
      %v1197 = vpack.c.bf16 %v1150, %v1149
      %v1198 = vpack.c.bf16 %v1152, %v1151
      %v1199 = vpack.c.bf16 %v1154, %v1153
      %v1200 = vpack.c.bf16 %v1156, %v1155
      %v1201 = vpack.c.bf16 %v1158, %v1157
      %v1202 = vpack.c.bf16 %v1160, %v1159
      %v1203 = vpack.c.bf16 %v1162, %v1161
      %v1204 = vpack.c.bf16 %v1164, %v1163
      %v1205 = vpack.c.bf16 %v1166, %v1165
      %v1206 = vpack.c.bf16 %v1168, %v1167
      %v1207 = vpack.c.bf16 %v1170, %v1169
      %v1208 = vpack.c.bf16 %v1172, %v1171
      %v1209 = vpack.c.bf16 %v1174, %v1173
      %v1210 = vpack.c.bf16 %v1176, %v1175
      %v1211 = vpack.c.bf16 %v1178, %v1177
      %v1212 = vpack.c.bf16 %v1180, %v1179
      %v1245 = vunpack.c.l.b16 %v1181
      %v1246 = vunpack.c.h.b16 %v1181
      %v1247 = vunpack.c.l.b16 %v1182
      %v1248 = vunpack.c.h.b16 %v1182
      %v1249 = vunpack.c.l.b16 %v1183
      %v1250 = vunpack.c.h.b16 %v1183
      %v1251 = vunpack.c.l.b16 %v1184
      %v1252 = vunpack.c.h.b16 %v1184
      %v1253 = vunpack.c.l.b16 %v1185
      %v1254 = vunpack.c.h.b16 %v1185
      %v1255 = vunpack.c.l.b16 %v1186
      %v1256 = vunpack.c.h.b16 %v1186
      %v1257 = vunpack.c.l.b16 %v1187
      %v1258 = vunpack.c.h.b16 %v1187
      %v1259 = vunpack.c.l.b16 %v1188
      %v1260 = vunpack.c.h.b16 %v1188
      %v1261 = vunpack.c.l.b16 %v1189
      %v1262 = vunpack.c.h.b16 %v1189
      %v1263 = vunpack.c.l.b16 %v1190
      %v1264 = vunpack.c.h.b16 %v1190
      %v1265 = vunpack.c.l.b16 %v1191
      %v1266 = vunpack.c.h.b16 %v1191
      %v1267 = vunpack.c.l.b16 %v1192
      %v1268 = vunpack.c.h.b16 %v1192
      %v1269 = vunpack.c.l.b16 %v1193
      %v1270 = vunpack.c.h.b16 %v1193
      %v1271 = vunpack.c.l.b16 %v1194
      %v1272 = vunpack.c.h.b16 %v1194
      %v1273 = vunpack.c.l.b16 %v1195
      %v1274 = vunpack.c.h.b16 %v1195
      %v1275 = vunpack.c.l.b16 %v1196
      %v1276 = vunpack.c.h.b16 %v1196
      %v1277 = vunpack.c.l.b16 %v1197
      %v1278 = vunpack.c.h.b16 %v1197
      %v1279 = vunpack.c.l.b16 %v1198
      %v1280 = vunpack.c.h.b16 %v1198
      %v1281 = vunpack.c.l.b16 %v1199
      %v1282 = vunpack.c.h.b16 %v1199
      %v1283 = vunpack.c.l.b16 %v1200
      %v1284 = vunpack.c.h.b16 %v1200
      %v1285 = vunpack.c.l.b16 %v1201
      %v1286 = vunpack.c.h.b16 %v1201
      %v1287 = vunpack.c.l.b16 %v1202
      %v1288 = vunpack.c.h.b16 %v1202
      %v1289 = vunpack.c.l.b16 %v1203
      %v1290 = vunpack.c.h.b16 %v1203
      %v1291 = vunpack.c.l.b16 %v1204
      %v1292 = vunpack.c.h.b16 %v1204
      %v1293 = vunpack.c.l.b16 %v1205
      %v1294 = vunpack.c.h.b16 %v1205
      %v1295 = vunpack.c.l.b16 %v1206
      %v1296 = vunpack.c.h.b16 %v1206
      %v1297 = vunpack.c.l.b16 %v1207
      %v1298 = vunpack.c.h.b16 %v1207
      %v1299 = vunpack.c.l.b16 %v1208
      %v1300 = vunpack.c.h.b16 %v1208
      %v1301 = vunpack.c.l.b16 %v1209
      %v1302 = vunpack.c.h.b16 %v1209
      %v1303 = vunpack.c.l.b16 %v1210
      %v1304 = vunpack.c.h.b16 %v1210
      %v1305 = vunpack.c.l.b16 %v1211
      %v1306 = vunpack.c.h.b16 %v1211
      %v1307 = vunpack.c.l.b16 %v1212
      %v1308 = vunpack.c.h.b16 %v1212
      %v1309 = vpack.c.b16 %v1245, %v1245
      %v1310 = vpack.c.b16 %v1246, %v1246
      %v1311 = vpack.c.b16 %v1247, %v1247
      %v1312 = vpack.c.b16 %v1248, %v1248
      %v1313 = vpack.c.b16 %v1249, %v1249
      %v1314 = vpack.c.b16 %v1250, %v1250
      %v1315 = vpack.c.b16 %v1251, %v1251
      %v1316 = vpack.c.b16 %v1252, %v1252
      %v1317 = vpack.c.b16 %v1253, %v1253
      %v1318 = vpack.c.b16 %v1254, %v1254
      %v1319 = vpack.c.b16 %v1255, %v1255
      %v1320 = vpack.c.b16 %v1256, %v1256
      %v1321 = vpack.c.b16 %v1257, %v1257
      %v1322 = vpack.c.b16 %v1258, %v1258
      %v1323 = vpack.c.b16 %v1259, %v1259
      %v1324 = vpack.c.b16 %v1260, %v1260
      %v1325 = vpack.c.b16 %v1261, %v1261
      %v1326 = vpack.c.b16 %v1262, %v1262
      %v1327 = vpack.c.b16 %v1263, %v1263
      %v1328 = vpack.c.b16 %v1264, %v1264
      %v1329 = vpack.c.b16 %v1265, %v1265
      %v1330 = vpack.c.b16 %v1266, %v1266
      %v1331 = vpack.c.b16 %v1267, %v1267
      %v1332 = vpack.c.b16 %v1268, %v1268
      %v1333 = vpack.c.b16 %v1269, %v1269
      %v1334 = vpack.c.b16 %v1270, %v1270
      %v1335 = vpack.c.b16 %v1271, %v1271
      %v1336 = vpack.c.b16 %v1272, %v1272
      %v1337 = vpack.c.b16 %v1273, %v1273
      %v1338 = vpack.c.b16 %v1274, %v1274
      %v1339 = vpack.c.b16 %v1275, %v1275
      %v1340 = vpack.c.b16 %v1276, %v1276
      %v1341 = vpack.c.b16 %v1277, %v1277
      %v1342 = vpack.c.b16 %v1278, %v1278
      %v1343 = vpack.c.b16 %v1279, %v1279
      %v1344 = vpack.c.b16 %v1280, %v1280
      %v1345 = vpack.c.b16 %v1281, %v1281
      %v1346 = vpack.c.b16 %v1282, %v1282
      %v1347 = vpack.c.b16 %v1283, %v1283
      %v1348 = vpack.c.b16 %v1284, %v1284
      %v1349 = vpack.c.b16 %v1285, %v1285
      %v1350 = vpack.c.b16 %v1286, %v1286
      %v1351 = vpack.c.b16 %v1287, %v1287
      %v1352 = vpack.c.b16 %v1288, %v1288
      %v1353 = vpack.c.b16 %v1289, %v1289
      %v1354 = vpack.c.b16 %v1290, %v1290
      %v1355 = vpack.c.b16 %v1291, %v1291
      %v1356 = vpack.c.b16 %v1292, %v1292
      %v1357 = vpack.c.b16 %v1293, %v1293
      %v1358 = vpack.c.b16 %v1294, %v1294
      %v1359 = vpack.c.b16 %v1295, %v1295
      %v1360 = vpack.c.b16 %v1296, %v1296
      %v1361 = vpack.c.b16 %v1297, %v1297
      %v1362 = vpack.c.b16 %v1298, %v1298
      %v1363 = vpack.c.b16 %v1299, %v1299
      %v1364 = vpack.c.b16 %v1300, %v1300
      %v1365 = vpack.c.b16 %v1301, %v1301
      %v1366 = vpack.c.b16 %v1302, %v1302
      %v1367 = vpack.c.b16 %v1303, %v1303
      %v1368 = vpack.c.b16 %v1304, %v1304
      %v1369 = vpack.c.b16 %v1305, %v1305
      %v1370 = vpack.c.b16 %v1306, %v1306
      %v1371 = vpack.c.b16 %v1307, %v1307
      %v1372 = vpack.c.b16 %v1308, %v1308
      %1437 = vst [vmem:[%s175] sm:$0xf] %v1309
      %1438 = vst [vmem:[%s175 + $0x4] sm:$0xf] %v1310
      %1439 = vst [vmem:[%s175 + $0x8] sm:$0xf] %v1311
      %1440 = vst [vmem:[%s175 + $0xc] sm:$0xf] %v1312
      %1441 = vst [vmem:[%s175 + $0x10] sm:$0xf] %v1313
      %1442 = vst [vmem:[%s175 + $0x14] sm:$0xf] %v1314
      %1443 = vst [vmem:[%s175 + $0x18] sm:$0xf] %v1315
      %1444 = vst [vmem:[%s175 + $0x1c] sm:$0xf] %v1316
      %1445 = vst [vmem:[%s175 + $0x20] sm:$0xf] %v1317
      %1446 = vst [vmem:[%s175 + $0x24] sm:$0xf] %v1318
      %1447 = vst [vmem:[%s175 + $0x28] sm:$0xf] %v1319
      %1448 = vst [vmem:[%s175 + $0x2c] sm:$0xf] %v1320
      %1449 = vst [vmem:[%s175 + $0x30] sm:$0xf] %v1321
      %1450 = vst [vmem:[%s175 + $0x34] sm:$0xf] %v1322
      %1451 = vst [vmem:[%s175 + $0x38] sm:$0xf] %v1323
      %1452 = vst [vmem:[%s175 + $0x3c] sm:$0xf] %v1324
      %1453 = vst [vmem:[%s175 + $0x40] sm:$0xf] %v1325
      %1454 = vst [vmem:[%s175 + $0x44] sm:$0xf] %v1326
      %1455 = vst [vmem:[%s175 + $0x48] sm:$0xf] %v1327
      %1456 = vst [vmem:[%s175 + $0x4c] sm:$0xf] %v1328
      %1457 = vst [vmem:[%s175 + $0x50] sm:$0xf] %v1329
      %1458 = vst [vmem:[%s175 + $0x54] sm:$0xf] %v1330
      %1459 = vst [vmem:[%s175 + $0x58] sm:$0xf] %v1331
      %1460 = vst [vmem:[%s175 + $0x5c] sm:$0xf] %v1332
      %1461 = vst [vmem:[%s175 + $0x60] sm:$0xf] %v1333
      %1462 = vst [vmem:[%s175 + $0x64] sm:$0xf] %v1334
      %1463 = vst [vmem:[%s175 + $0x68] sm:$0xf] %v1335
      %1464 = vst [vmem:[%s175 + $0x6c] sm:$0xf] %v1336
      %1465 = vst [vmem:[%s175 + $0x70] sm:$0xf] %v1337
      %1466 = vst [vmem:[%s175 + $0x74] sm:$0xf] %v1338
      %1467 = vst [vmem:[%s175 + $0x78] sm:$0xf] %v1339
      %1468 = vst [vmem:[%s175 + $0x7c] sm:$0xf] %v1340
      %1469 = vst [vmem:[%s175 + $0x80] sm:$0xf] %v1341
      %1470 = vst [vmem:[%s175 + $0x84] sm:$0xf] %v1342
      %1471 = vst [vmem:[%s175 + $0x88] sm:$0xf] %v1343
      %1472 = vst [vmem:[%s175 + $0x8c] sm:$0xf] %v1344
      %1473 = vst [vmem:[%s175 + $0x90] sm:$0xf] %v1345
      %1474 = vst [vmem:[%s175 + $0x94] sm:$0xf] %v1346
      %1475 = vst [vmem:[%s175 + $0x98] sm:$0xf] %v1347
      %1476 = vst [vmem:[%s175 + $0x9c] sm:$0xf] %v1348
      %1477 = vst [vmem:[%s175 + $0xa0] sm:$0xf] %v1349
      %1478 = vst [vmem:[%s175 + $0xa4] sm:$0xf] %v1350
      %1479 = vst [vmem:[%s175 + $0xa8] sm:$0xf] %v1351
      %1480 = vst [vmem:[%s175 + $0xac] sm:$0xf] %v1352
      %1481 = vst [vmem:[%s175 + $0xb0] sm:$0xf] %v1353
      %1482 = vst [vmem:[%s175 + $0xb4] sm:$0xf] %v1354
      %1483 = vst [vmem:[%s175 + $0xb8] sm:$0xf] %v1355
      %1484 = vst [vmem:[%s175 + $0xbc] sm:$0xf] %v1356
      %1485 = vst [vmem:[%s175 + $0xc0] sm:$0xf] %v1357
      %1486 = vst [vmem:[%s175 + $0xc4] sm:$0xf] %v1358
      %1487 = vst [vmem:[%s175 + $0xc8] sm:$0xf] %v1359
      %1488 = vst [vmem:[%s175 + $0xcc] sm:$0xf] %v1360
      %1489 = vst [vmem:[%s175 + $0xd0] sm:$0xf] %v1361
      %1490 = vst [vmem:[%s175 + $0xd4] sm:$0xf] %v1362
      %1491 = vst [vmem:[%s175 + $0xd8] sm:$0xf] %v1363
      %1492 = vst [vmem:[%s175 + $0xdc] sm:$0xf] %v1364
      %1493 = vst [vmem:[%s175 + $0xe0] sm:$0xf] %v1365
      %1494 = vst [vmem:[%s175 + $0xe4] sm:$0xf] %v1366
      %1495 = vst [vmem:[%s175 + $0xe8] sm:$0xf] %v1367
      %1496 = vst [vmem:[%s175 + $0xec] sm:$0xf] %v1368
      %1497 = vst [vmem:[%s175 + $0xf0] sm:$0xf] %v1369
      %1498 = vst [vmem:[%s175 + $0xf4] sm:$0xf] %v1370
      %1499 = vst [vmem:[%s175 + $0xf8] sm:$0xf] %v1371
      %1500 = vst [vmem:[%s175 + $0xfc] sm:$0xf] %v1372
      %s1501 = smul.u32 64, %s14
      %p1502 = scmp.lt.s32.totalorder %s1501, 255
      %s1503 = scalar_select %p1502, %s1501, 255
      %s1504 = smul.addr %s1503, 4
      %s1505 = scalar_lea.vmem %s3, %s1504
      // Predicated region
      $region33: #{deeplabv3_forward.10} parent=31 // pred_check
        %p1506 = pneg %p100
      $region34: #{deeplabv3_forward.10} parent=31 // pred_check_branch
        %1508 = sbr.rel (%p1506) target = $region36
      $region35: #{deeplabv3_forward.10} parent=31 // pred_region
        %s1509 = smul.u32 64, %s14
      $region36: #{deeplabv3_forward.10} parent=31 // pred_fallthru
        _
    $region32: #{deeplabv3_forward.10} parent=5 // pred_fallthru
      _
    %p1510 = scmp.le.s32.totalorder 2, %s9
    // Predicated region
    $region37: #{deeplabv3_forward.10} parent=5 // pred_check
      %p1511 = pneg %p1510
    $region38: #{deeplabv3_forward.10} parent=5 // pred_check_branch
      %1513 = sbr.rel (%p1511) target = $region40
    $region39: #{deeplabv3_forward.10} parent=5 // pred_region
      %s1514 = ssub.s32 %s9, 2
      // Predicated region
      $region41: #{deeplabv3_forward.10} parent=39 // pred_check
        %p1515 = pneg %p106
      $region42: #{deeplabv3_forward.10} parent=39 // pred_check_branch
        %1517 = sbr.rel (%p1515) target = $region44
      $region43: #{deeplabv3_forward.10} parent=39 // pred_region
        %s1518 = smul.u32 64, %s15
        %p1519 = scmp.lt.s32.totalorder %s1518, 255
        %s1520 = scalar_select %p1519, %s1518, 255
        %s1521 = smul.addr %s1520, 4
        %s1522 = scalar_lea.vmem %s3, %s1521
      $region44: #{deeplabv3_forward.10} parent=39 // pred_fallthru
        _
    $region40: #{deeplabv3_forward.10} parent=5 // pred_fallthru
      _
  $region6: #{deeplabv3_forward.10} parent=0 // loop_footer
    %s13 = sadd.s32 1, %s9
  $region7: #{deeplabv3_forward.10} parent=0 // loop_footer_branch
    %8 = sbr.rel target = $region3
  $region8: #{deeplabv3_forward.10} parent=0 // loop_exit
    _

// kernel: deeplabv3_forward.11
$region0: #{deeplabv3_forward.11}
  #allocation0 [shape = 'u32[]', space=smem, size = 0x4, offset = 0x4, fixed_abs, tag = 'smem constant byte address 0x4 - core index']
  #allocation1 [shape = 'u32[144,128]{1,0:T(1,128)}', space=vmem, size = 0x12000, scoped, tag = 'internal scratch']
  %s0 = inlined_call_operand.vmem [shape: bf16[512,640], index: 0, kind: input, shape index: {}]
  %s1 = inlined_call_operand.vmem [shape: bf16[640,128], index: 1, kind: input, shape index: {}]
  %s2 = inlined_call_operand.vmem [shape: f32[2,128], index: 2, kind: input, shape index: {}]
  %s3 = inlined_call_operand.vmem [shape: bf16[512,128], index: 3, kind: output, shape index: {}]
  %s4 = sld [smem:[#allocation0]]
  $region22: #{deeplabv3_forward.11} parent=0
    _
  %s6 = ssub.s32 1, %s4
  %s7 = scalar_select 0, %s6, %s4
  // Predicated region
  $region2: #{deeplabv3_forward.11} parent=0 // pred_check
    _
  $region3: #{deeplabv3_forward.11} parent=0 // pred_check_branch
    %9 = sbr.rel (0) target = $region5
  $region4: #{deeplabv3_forward.11} parent=0 // pred_region
    _
  $region5: #{deeplabv3_forward.11} parent=0 // pred_fallthru
    _
  // Predicated region
  $region6: #{deeplabv3_forward.11} parent=0 // pred_check
    _
  $region7: #{deeplabv3_forward.11} parent=0 // pred_check_branch
    %11 = sbr.rel (0) target = $region9
  $region8: #{deeplabv3_forward.11} parent=0 // pred_region
    _
  $region9: #{deeplabv3_forward.11} parent=0 // pred_fallthru
    _
  // Predicated region
  $region10: #{deeplabv3_forward.11} parent=0 // pred_check
    _
  $region11: #{deeplabv3_forward.11} parent=0 // pred_check_branch
    %13 = sbr.rel (0) target = $region13
  $region12: #{deeplabv3_forward.11} parent=0 // pred_region
    _
  $region13: #{deeplabv3_forward.11} parent=0 // pred_fallthru
    _
  %v15 = vld [vmem:[%s0] sm:$0xff]
  %v16 = vld [vmem:[%s0 + $0x8] sm:$0xff]
  %v17 = vld [vmem:[%s0 + $0x10] sm:$0xf]
  %v18 = vld [vmem:[%s0 + $0x14] sm:$0xff]
  %v19 = vld [vmem:[%s0 + $0x1c] sm:$0xff]
  %v20 = vld [vmem:[%s0 + $0x24] sm:$0xf]
  %v21 = vld [vmem:[%s0 + $0x28] sm:$0xff]
  %v22 = vld [vmem:[%s0 + $0x30] sm:$0xff]
  %v23 = vld [vmem:[%s0 + $0x38] sm:$0xf]
  %v24 = vld [vmem:[%s0 + $0x3c] sm:$0xff]
  %v25 = vld [vmem:[%s0 + $0x44] sm:$0xff]
  %v26 = vld [vmem:[%s0 + $0x4c] sm:$0xf]
  %v27 = vld [vmem:[%s0 + $0x50] sm:$0xff]
  %v28 = vld [vmem:[%s0 + $0x58] sm:$0xff]
  %v29 = vld [vmem:[%s0 + $0x60] sm:$0xf]
  %v30 = vld [vmem:[%s0 + $0x64] sm:$0xff]
  %v31 = vld [vmem:[%s0 + $0x6c] sm:$0xff]
  %v32 = vld [vmem:[%s0 + $0x74] sm:$0xf]
  %v33 = vld [vmem:[%s0 + $0x78] sm:$0xff]
  %v34 = vld [vmem:[%s0 + $0x80] sm:$0xff]
  %v35 = vld [vmem:[%s0 + $0x88] sm:$0xf]
  %v36 = vld [vmem:[%s0 + $0x8c] sm:$0xff]
  %v37 = vld [vmem:[%s0 + $0x94] sm:$0xff]
  %v38 = vld [vmem:[%s0 + $0x9c] sm:$0xf]
  %v39 = vld [vmem:[%s0 + $0xa0] sm:$0xff]
  %v40 = vld [vmem:[%s0 + $0xa8] sm:$0xff]
  %v41 = vld [vmem:[%s0 + $0xb0] sm:$0xf]
  %v42 = vld [vmem:[%s0 + $0xb4] sm:$0xff]
  %v43 = vld [vmem:[%s0 + $0xbc] sm:$0xff]
  %v44 = vld [vmem:[%s0 + $0xc4] sm:$0xf]
  %v45 = vld [vmem:[%s0 + $0xc8] sm:$0xff]
  %v46 = vld [vmem:[%s0 + $0xd0] sm:$0xff]
  %v47 = vld [vmem:[%s0 + $0xd8] sm:$0xf]
  %v48 = vld [vmem:[%s0 + $0xdc] sm:$0xff]
  %v49 = vld [vmem:[%s0 + $0xe4] sm:$0xff]
  %v50 = vld [vmem:[%s0 + $0xec] sm:$0xf]
  %v51 = vld [vmem:[%s0 + $0xf0] sm:$0xff]
  %v52 = vld [vmem:[%s0 + $0xf8] sm:$0xff]
  %v53 = vld [vmem:[%s0 + $0x100] sm:$0xf]
  %v54 = vld [vmem:[%s0 + $0x104] sm:$0xff]
  %v55 = vld [vmem:[%s0 + $0x10c] sm:$0xff]
  %v56 = vld [vmem:[%s0 + $0x114] sm:$0xf]
  %v57 = vld [vmem:[%s0 + $0x118] sm:$0xff]
  %v58 = vld [vmem:[%s0 + $0x120] sm:$0xff]
  %v59 = vld [vmem:[%s0 + $0x128] sm:$0xf]
  %v60 = vld [vmem:[%s0 + $0x12c] sm:$0xff]
  %v61 = vld [vmem:[%s0 + $0x134] sm:$0xff]
  %v62 = vld [vmem:[%s0 + $0x13c] sm:$0xf]
  %v63 = vld [vmem:[%s0 + $0x140] sm:$0xff]
  %v64 = vld [vmem:[%s0 + $0x148] sm:$0xff]
  %v65 = vld [vmem:[%s0 + $0x150] sm:$0xf]
  %v66 = vld [vmem:[%s0 + $0x154] sm:$0xff]
  %v67 = vld [vmem:[%s0 + $0x15c] sm:$0xff]
  %v68 = vld [vmem:[%s0 + $0x164] sm:$0xf]
  %v69 = vld [vmem:[%s0 + $0x168] sm:$0xff]
  %v70 = vld [vmem:[%s0 + $0x170] sm:$0xff]
  %v71 = vld [vmem:[%s0 + $0x178] sm:$0xf]
  %v72 = vld [vmem:[%s0 + $0x17c] sm:$0xff]
  %v73 = vld [vmem:[%s0 + $0x184] sm:$0xff]
  %v74 = vld [vmem:[%s0 + $0x18c] sm:$0xf]
  %v75 = vld [vmem:[%s0 + $0x190] sm:$0xff]
  %v76 = vld [vmem:[%s0 + $0x198] sm:$0xff]
  %v77 = vld [vmem:[%s0 + $0x1a0] sm:$0xf]
  %v78 = vld [vmem:[%s0 + $0x1a4] sm:$0xff]
  %v79 = vld [vmem:[%s0 + $0x1ac] sm:$0xff]
  %v80 = vld [vmem:[%s0 + $0x1b4] sm:$0xf]
  %v81 = vld [vmem:[%s0 + $0x1b8] sm:$0xff]
  %v82 = vld [vmem:[%s0 + $0x1c0] sm:$0xff]
  %v83 = vld [vmem:[%s0 + $0x1c8] sm:$0xf]
  %v84 = vld [vmem:[%s0 + $0x1cc] sm:$0xff]
  %v85 = vld [vmem:[%s0 + $0x1d4] sm:$0xff]
  %v86 = vld [vmem:[%s0 + $0x1dc] sm:$0xf]
  %v87 = vld [vmem:[%s0 + $0x1e0] sm:$0xff]
  %v88 = vld [vmem:[%s0 + $0x1e8] sm:$0xff]
  %v89 = vld [vmem:[%s0 + $0x1f0] sm:$0xf]
  %v90 = vld [vmem:[%s0 + $0x1f4] sm:$0xff]
  %v91 = vld [vmem:[%s0 + $0x1fc] sm:$0xff]
  %v92 = vld [vmem:[%s0 + $0x204] sm:$0xf]
  %v93 = vld [vmem:[%s0 + $0x208] sm:$0xff]
  %v94 = vld [vmem:[%s0 + $0x210] sm:$0xff]
  %v95 = vld [vmem:[%s0 + $0x218] sm:$0xf]
  %v96 = vld [vmem:[%s0 + $0x21c] sm:$0xff]
  %v97 = vld [vmem:[%s0 + $0x224] sm:$0xff]
  %v98 = vld [vmem:[%s0 + $0x22c] sm:$0xf]
  %v99 = vld [vmem:[%s0 + $0x230] sm:$0xff]
  %v100 = vld [vmem:[%s0 + $0x238] sm:$0xff]
  %v101 = vld [vmem:[%s0 + $0x240] sm:$0xf]
  %v102 = vld [vmem:[%s0 + $0x244] sm:$0xff]
  %v103 = vld [vmem:[%s0 + $0x24c] sm:$0xff]
  %v104 = vld [vmem:[%s0 + $0x254] sm:$0xf]
  %v105 = vld [vmem:[%s0 + $0x258] sm:$0xff]
  %v106 = vld [vmem:[%s0 + $0x260] sm:$0xff]
  %v107 = vld [vmem:[%s0 + $0x268] sm:$0xf]
  %v108 = vld [vmem:[%s0 + $0x26c] sm:$0xff]
  %v109 = vld [vmem:[%s0 + $0x274] sm:$0xff]
  %v110 = vld [vmem:[%s0 + $0x27c] sm:$0xf]
  %v111 = vld [vmem:[%s0 + $0x280] sm:$0xff]
  %v112 = vld [vmem:[%s0 + $0x288] sm:$0xff]
  %v113 = vld [vmem:[%s0 + $0x290] sm:$0xf]
  %v114 = vld [vmem:[%s0 + $0x294] sm:$0xff]
  %v115 = vld [vmem:[%s0 + $0x29c] sm:$0xff]
  %v116 = vld [vmem:[%s0 + $0x2a4] sm:$0xf]
  %v117 = vld [vmem:[%s0 + $0x2a8] sm:$0xff]
  %v118 = vld [vmem:[%s0 + $0x2b0] sm:$0xff]
  %v119 = vld [vmem:[%s0 + $0x2b8] sm:$0xf]
  %v120 = vld [vmem:[%s0 + $0x2bc] sm:$0xff]
  %v121 = vld [vmem:[%s0 + $0x2c4] sm:$0xff]
  %v122 = vld [vmem:[%s0 + $0x2cc] sm:$0xf]
  %v123 = vld [vmem:[%s0 + $0x2d0] sm:$0xff]
  %v124 = vld [vmem:[%s0 + $0x2d8] sm:$0xff]
  %v125 = vld [vmem:[%s0 + $0x2e0] sm:$0xf]
  %v126 = vld [vmem:[%s0 + $0x2e4] sm:$0xff]
  %v127 = vld [vmem:[%s0 + $0x2ec] sm:$0xff]
  %v128 = vld [vmem:[%s0 + $0x2f4] sm:$0xf]
  %v129 = vld [vmem:[%s0 + $0x2f8] sm:$0xff]
  %v130 = vld [vmem:[%s0 + $0x300] sm:$0xff]
  %v131 = vld [vmem:[%s0 + $0x308] sm:$0xf]
  %v132 = vld [vmem:[%s0 + $0x30c] sm:$0xff]
  %v133 = vld [vmem:[%s0 + $0x314] sm:$0xff]
  %v134 = vld [vmem:[%s0 + $0x31c] sm:$0xf]
  %v135 = vld [vmem:[%s0 + $0x320] sm:$0xff]
  %v136 = vld [vmem:[%s0 + $0x328] sm:$0xff]
  %v137 = vld [vmem:[%s0 + $0x330] sm:$0xf]
  %v138 = vld [vmem:[%s0 + $0x334] sm:$0xff]
  %v139 = vld [vmem:[%s0 + $0x33c] sm:$0xff]
  %v140 = vld [vmem:[%s0 + $0x344] sm:$0xf]
  %v141 = vld [vmem:[%s0 + $0x348] sm:$0xff]
  %v142 = vld [vmem:[%s0 + $0x350] sm:$0xff]
  %v143 = vld [vmem:[%s0 + $0x358] sm:$0xf]
  %v144 = vld [vmem:[%s0 + $0x35c] sm:$0xff]
  %v145 = vld [vmem:[%s0 + $0x364] sm:$0xff]
  %v146 = vld [vmem:[%s0 + $0x36c] sm:$0xf]
  %v147 = vld [vmem:[%s0 + $0x370] sm:$0xff]
  %v148 = vld [vmem:[%s0 + $0x378] sm:$0xff]
  %v149 = vld [vmem:[%s0 + $0x380] sm:$0xf]
  %v150 = vld [vmem:[%s0 + $0x384] sm:$0xff]
  %v151 = vld [vmem:[%s0 + $0x38c] sm:$0xff]
  %v152 = vld [vmem:[%s0 + $0x394] sm:$0xf]
  %v153 = vld [vmem:[%s0 + $0x398] sm:$0xff]
  %v154 = vld [vmem:[%s0 + $0x3a0] sm:$0xff]
  %v155 = vld [vmem:[%s0 + $0x3a8] sm:$0xf]
  %v156 = vld [vmem:[%s0 + $0x3ac] sm:$0xff]
  %v157 = vld [vmem:[%s0 + $0x3b4] sm:$0xff]
  %v158 = vld [vmem:[%s0 + $0x3bc] sm:$0xf]
  %v159 = vld [vmem:[%s0 + $0x3c0] sm:$0xff]
  %v160 = vld [vmem:[%s0 + $0x3c8] sm:$0xff]
  %v161 = vld [vmem:[%s0 + $0x3d0] sm:$0xf]
  %v162 = vld [vmem:[%s0 + $0x3d4] sm:$0xff]
  %v163 = vld [vmem:[%s0 + $0x3dc] sm:$0xff]
  %v164 = vld [vmem:[%s0 + $0x3e4] sm:$0xf]
  %v165 = vld [vmem:[%s0 + $0x3e8] sm:$0xff]
  %v166 = vld [vmem:[%s0 + $0x3f0] sm:$0xff]
  %v167 = vld [vmem:[%s0 + $0x3f8] sm:$0xf]
  %v168 = vld [vmem:[%s0 + $0x3fc] sm:$0xff]
  %v169 = vld [vmem:[%s0 + $0x404] sm:$0xff]
  %v170 = vld [vmem:[%s0 + $0x40c] sm:$0xf]
  %v171 = vld [vmem:[%s0 + $0x410] sm:$0xff]
  %v172 = vld [vmem:[%s0 + $0x418] sm:$0xff]
  %v173 = vld [vmem:[%s0 + $0x420] sm:$0xf]
  %v174 = vld [vmem:[%s0 + $0x424] sm:$0xff]
  %v175 = vld [vmem:[%s0 + $0x42c] sm:$0xff]
  %v176 = vld [vmem:[%s0 + $0x434] sm:$0xf]
  %v177 = vld [vmem:[%s0 + $0x438] sm:$0xff]
  %v178 = vld [vmem:[%s0 + $0x440] sm:$0xff]
  %v179 = vld [vmem:[%s0 + $0x448] sm:$0xf]
  %v180 = vld [vmem:[%s0 + $0x44c] sm:$0xff]
  %v181 = vld [vmem:[%s0 + $0x454] sm:$0xff]
  %v182 = vld [vmem:[%s0 + $0x45c] sm:$0xf]
  %v183 = vld [vmem:[%s0 + $0x460] sm:$0xff]
  %v184 = vld [vmem:[%s0 + $0x468] sm:$0xff]
  %v185 = vld [vmem:[%s0 + $0x470] sm:$0xf]
  %v186 = vld [vmem:[%s0 + $0x474] sm:$0xff]
  %v187 = vld [vmem:[%s0 + $0x47c] sm:$0xff]
  %v188 = vld [vmem:[%s0 + $0x484] sm:$0xf]
  %v189 = vld [vmem:[%s0 + $0x488] sm:$0xff]
  %v190 = vld [vmem:[%s0 + $0x490] sm:$0xff]
  %v191 = vld [vmem:[%s0 + $0x498] sm:$0xf]
  %v192 = vld [vmem:[%s0 + $0x49c] sm:$0xff]
  %v193 = vld [vmem:[%s0 + $0x4a4] sm:$0xff]
  %v194 = vld [vmem:[%s0 + $0x4ac] sm:$0xf]
  %v195 = vld [vmem:[%s0 + $0x4b0] sm:$0xff]
  %v196 = vld [vmem:[%s0 + $0x4b8] sm:$0xff]
  %v197 = vld [vmem:[%s0 + $0x4c0] sm:$0xf]
  %v198 = vld [vmem:[%s0 + $0x4c4] sm:$0xff]
  %v199 = vld [vmem:[%s0 + $0x4cc] sm:$0xff]
  %v200 = vld [vmem:[%s0 + $0x4d4] sm:$0xf]
  %v201 = vld [vmem:[%s0 + $0x4d8] sm:$0xff]
  %v202 = vld [vmem:[%s0 + $0x4e0] sm:$0xff]
  %v203 = vld [vmem:[%s0 + $0x4e8] sm:$0xf]
  %v204 = vld [vmem:[%s0 + $0x4ec] sm:$0xff]
  %v205 = vld [vmem:[%s0 + $0x4f4] sm:$0xff]
  %v206 = vld [vmem:[%s0 + $0x4fc] sm:$0xf]
  %v207 = vld [vmem:[%s1] sm:$0xf]
  %v208 = vld [vmem:[%s1 + $0x4] sm:$0xf]
  %v209 = vld [vmem:[%s1 + $0x8] sm:$0xf]
  %v210 = vld [vmem:[%s1 + $0xc] sm:$0xf]
  %v211 = vld [vmem:[%s1 + $0x10] sm:$0xf]
  %v212 = vld [vmem:[%s1 + $0x14] sm:$0xf]
  %v213 = vld [vmem:[%s1 + $0x18] sm:$0xf]
  %v214 = vld [vmem:[%s1 + $0x1c] sm:$0xf]
  %v215 = vld [vmem:[%s1 + $0x20] sm:$0xf]
  %v216 = vld [vmem:[%s1 + $0x24] sm:$0xf]
  %v217 = vld [vmem:[%s1 + $0x28] sm:$0xf]
  %v218 = vld [vmem:[%s1 + $0x2c] sm:$0xf]
  %v219 = vld [vmem:[%s1 + $0x30] sm:$0xf]
  %v220 = vld [vmem:[%s1 + $0x34] sm:$0xf]
  %v221 = vld [vmem:[%s1 + $0x38] sm:$0xf]
  %v222 = vld [vmem:[%s1 + $0x3c] sm:$0xf]
  %v223 = vld [vmem:[%s1 + $0x40] sm:$0xf]
  %v224 = vld [vmem:[%s1 + $0x44] sm:$0xf]
  %v225 = vld [vmem:[%s1 + $0x48] sm:$0xf]
  %v226 = vld [vmem:[%s1 + $0x4c] sm:$0xf]
  %v227 = vld [vmem:[%s1 + $0x50] sm:$0xf]
  %v228 = vld [vmem:[%s1 + $0x54] sm:$0xf]
  %v229 = vld [vmem:[%s1 + $0x58] sm:$0xf]
  %v230 = vld [vmem:[%s1 + $0x5c] sm:$0xf]
  %v231 = vld [vmem:[%s1 + $0x60] sm:$0xf]
  %v232 = vld [vmem:[%s1 + $0x64] sm:$0xf]
  %v233 = vld [vmem:[%s1 + $0x68] sm:$0xf]
  %v234 = vld [vmem:[%s1 + $0x6c] sm:$0xf]
  %v235 = vld [vmem:[%s1 + $0x70] sm:$0xf]
  %v236 = vld [vmem:[%s1 + $0x74] sm:$0xf]
  %v237 = vld [vmem:[%s1 + $0x78] sm:$0xf]
  %v238 = vld [vmem:[%s1 + $0x7c] sm:$0xf]
  %v239 = vld [vmem:[%s1 + $0x80] sm:$0xf]
  %v240 = vld [vmem:[%s1 + $0x84] sm:$0xf]
  %v241 = vld [vmem:[%s1 + $0x88] sm:$0xf]
  %v242 = vld [vmem:[%s1 + $0x8c] sm:$0xf]
  %v243 = vld [vmem:[%s1 + $0x90] sm:$0xf]
  %v244 = vld [vmem:[%s1 + $0x94] sm:$0xf]
  %v245 = vld [vmem:[%s1 + $0x98] sm:$0xf]
  %v246 = vld [vmem:[%s1 + $0x9c] sm:$0xf]
  %v247 = vld [vmem:[%s1 + $0xa0] sm:$0xf]
  %v248 = vld [vmem:[%s1 + $0xa4] sm:$0xf]
  %v249 = vld [vmem:[%s1 + $0xa8] sm:$0xf]
  %v250 = vld [vmem:[%s1 + $0xac] sm:$0xf]
  %v251 = vld [vmem:[%s1 + $0xb0] sm:$0xf]
  %v252 = vld [vmem:[%s1 + $0xb4] sm:$0xf]
  %v253 = vld [vmem:[%s1 + $0xb8] sm:$0xf]
  %v254 = vld [vmem:[%s1 + $0xbc] sm:$0xf]
  %v255 = vld [vmem:[%s1 + $0xc0] sm:$0xf]
  %v256 = vld [vmem:[%s1 + $0xc4] sm:$0xf]
  %v257 = vld [vmem:[%s1 + $0xc8] sm:$0xf]
  %v258 = vld [vmem:[%s1 + $0xcc] sm:$0xf]
  %v259 = vld [vmem:[%s1 + $0xd0] sm:$0xf]
  %v260 = vld [vmem:[%s1 + $0xd4] sm:$0xf]
  %v261 = vld [vmem:[%s1 + $0xd8] sm:$0xf]
  %v262 = vld [vmem:[%s1 + $0xdc] sm:$0xf]
  %v263 = vld [vmem:[%s1 + $0xe0] sm:$0xf]
  %v264 = vld [vmem:[%s1 + $0xe4] sm:$0xf]
  %v265 = vld [vmem:[%s1 + $0xe8] sm:$0xf]
  %v266 = vld [vmem:[%s1 + $0xec] sm:$0xf]
  %v267 = vld [vmem:[%s1 + $0xf0] sm:$0xf]
  %v268 = vld [vmem:[%s1 + $0xf4] sm:$0xf]
  %v269 = vld [vmem:[%s1 + $0xf8] sm:$0xf]
  %v270 = vld [vmem:[%s1 + $0xfc] sm:$0xf]
  %v271 = vld [vmem:[%s1 + $0x100] sm:$0xf]
  %v272 = vld [vmem:[%s1 + $0x104] sm:$0xf]
  %v273 = vld [vmem:[%s1 + $0x108] sm:$0xf]
  %v274 = vld [vmem:[%s1 + $0x10c] sm:$0xf]
  %v275 = vld [vmem:[%s1 + $0x110] sm:$0xf]
  %v276 = vld [vmem:[%s1 + $0x114] sm:$0xf]
  %v277 = vld [vmem:[%s1 + $0x118] sm:$0xf]
  %v278 = vld [vmem:[%s1 + $0x11c] sm:$0xf]
  %v279 = vld [vmem:[%s1 + $0x120] sm:$0xf]
  %v280 = vld [vmem:[%s1 + $0x124] sm:$0xf]
  %v281 = vld [vmem:[%s1 + $0x128] sm:$0xf]
  %v282 = vld [vmem:[%s1 + $0x12c] sm:$0xf]
  %v283 = vld [vmem:[%s1 + $0x130] sm:$0xf]
  %v284 = vld [vmem:[%s1 + $0x134] sm:$0xf]
  %v285 = vld [vmem:[%s1 + $0x138] sm:$0xf]
  %v286 = vld [vmem:[%s1 + $0x13c] sm:$0xf]
  %v479 = vunpack.c.l.b16 %v15
  %v480 = vunpack.c.h.b16 %v15
  %v481 = vunpack.c.l.b16 %v16
  %v482 = vunpack.c.h.b16 %v16
  %v483 = vunpack.c.l.b16 %v17
  %v484 = vunpack.c.l.b16 %v18
  %v485 = vunpack.c.h.b16 %v18
  %v486 = vunpack.c.l.b16 %v19
  %v487 = vunpack.c.h.b16 %v19
  %v488 = vunpack.c.l.b16 %v20
  %v489 = vunpack.c.l.b16 %v21
  %v490 = vunpack.c.h.b16 %v21
  %v491 = vunpack.c.l.b16 %v22
  %v492 = vunpack.c.h.b16 %v22
  %v493 = vunpack.c.l.b16 %v23
  %v494 = vunpack.c.l.b16 %v24
  %v495 = vunpack.c.h.b16 %v24
  %v496 = vunpack.c.l.b16 %v25
  %v497 = vunpack.c.h.b16 %v25
  %v498 = vunpack.c.l.b16 %v26
  %v499 = vunpack.c.l.b16 %v27
  %v500 = vunpack.c.h.b16 %v27
  %v501 = vunpack.c.l.b16 %v28
  %v502 = vunpack.c.h.b16 %v28
  %v503 = vunpack.c.l.b16 %v29
  %v504 = vunpack.c.l.b16 %v30
  %v505 = vunpack.c.h.b16 %v30
  %v506 = vunpack.c.l.b16 %v31
  %v507 = vunpack.c.h.b16 %v31
  %v508 = vunpack.c.l.b16 %v32
  %v509 = vunpack.c.l.b16 %v33
  %v510 = vunpack.c.h.b16 %v33
  %v511 = vunpack.c.l.b16 %v34
  %v512 = vunpack.c.h.b16 %v34
  %v513 = vunpack.c.l.b16 %v35
  %v514 = vunpack.c.l.b16 %v36
  %v515 = vunpack.c.h.b16 %v36
  %v516 = vunpack.c.l.b16 %v37
  %v517 = vunpack.c.h.b16 %v37
  %v518 = vunpack.c.l.b16 %v38
  %v519 = vunpack.c.l.b16 %v39
  %v520 = vunpack.c.h.b16 %v39
  %v521 = vunpack.c.l.b16 %v40
  %v522 = vunpack.c.h.b16 %v40
  %v523 = vunpack.c.l.b16 %v41
  %v524 = vunpack.c.l.b16 %v42
  %v525 = vunpack.c.h.b16 %v42
  %v526 = vunpack.c.l.b16 %v43
  %v527 = vunpack.c.h.b16 %v43
  %v528 = vunpack.c.l.b16 %v44
  %v529 = vunpack.c.l.b16 %v45
  %v530 = vunpack.c.h.b16 %v45
  %v531 = vunpack.c.l.b16 %v46
  %v532 = vunpack.c.h.b16 %v46
  %v533 = vunpack.c.l.b16 %v47
  %v534 = vunpack.c.l.b16 %v48
  %v535 = vunpack.c.h.b16 %v48
  %v536 = vunpack.c.l.b16 %v49
  %v537 = vunpack.c.h.b16 %v49
  %v538 = vunpack.c.l.b16 %v50
  %v539 = vunpack.c.l.b16 %v51
  %v540 = vunpack.c.h.b16 %v51
  %v541 = vunpack.c.l.b16 %v52
  %v542 = vunpack.c.h.b16 %v52
  %v543 = vunpack.c.l.b16 %v53
  %v544 = vunpack.c.l.b16 %v54
  %v545 = vunpack.c.h.b16 %v54
  %v546 = vunpack.c.l.b16 %v55
  %v547 = vunpack.c.h.b16 %v55
  %v548 = vunpack.c.l.b16 %v56
  %v549 = vunpack.c.l.b16 %v57
  %v550 = vunpack.c.h.b16 %v57
  %v551 = vunpack.c.l.b16 %v58
  %v552 = vunpack.c.h.b16 %v58
  %v553 = vunpack.c.l.b16 %v59
  %v554 = vunpack.c.l.b16 %v60
  %v555 = vunpack.c.h.b16 %v60
  %v556 = vunpack.c.l.b16 %v61
  %v557 = vunpack.c.h.b16 %v61
  %v558 = vunpack.c.l.b16 %v62
  %v559 = vunpack.c.l.b16 %v63
  %v560 = vunpack.c.h.b16 %v63
  %v561 = vunpack.c.l.b16 %v64
  %v562 = vunpack.c.h.b16 %v64
  %v563 = vunpack.c.l.b16 %v65
  %v564 = vunpack.c.l.b16 %v66
  %v565 = vunpack.c.h.b16 %v66
  %v566 = vunpack.c.l.b16 %v67
  %v567 = vunpack.c.h.b16 %v67
  %v568 = vunpack.c.l.b16 %v68
  %v569 = vunpack.c.l.b16 %v69
  %v570 = vunpack.c.h.b16 %v69
  %v571 = vunpack.c.l.b16 %v70
  %v572 = vunpack.c.h.b16 %v70
  %v573 = vunpack.c.l.b16 %v71
  %v574 = vunpack.c.l.b16 %v72
  %v575 = vunpack.c.h.b16 %v72
  %v576 = vunpack.c.l.b16 %v73
  %v577 = vunpack.c.h.b16 %v73
  %v578 = vunpack.c.l.b16 %v74
  %v579 = vunpack.c.l.b16 %v75
  %v580 = vunpack.c.h.b16 %v75
  %v581 = vunpack.c.l.b16 %v76
  %v582 = vunpack.c.h.b16 %v76
  %v583 = vunpack.c.l.b16 %v77
  %v584 = vunpack.c.l.b16 %v78
  %v585 = vunpack.c.h.b16 %v78
  %v586 = vunpack.c.l.b16 %v79
  %v587 = vunpack.c.h.b16 %v79
  %v588 = vunpack.c.l.b16 %v80
  %v589 = vunpack.c.l.b16 %v81
  %v590 = vunpack.c.h.b16 %v81
  %v591 = vunpack.c.l.b16 %v82
  %v592 = vunpack.c.h.b16 %v82
  %v593 = vunpack.c.l.b16 %v83
  %v594 = vunpack.c.l.b16 %v84
  %v595 = vunpack.c.h.b16 %v84
  %v596 = vunpack.c.l.b16 %v85
  %v597 = vunpack.c.h.b16 %v85
  %v598 = vunpack.c.l.b16 %v86
  %v599 = vunpack.c.l.b16 %v87
  %v600 = vunpack.c.h.b16 %v87
  %v601 = vunpack.c.l.b16 %v88
  %v602 = vunpack.c.h.b16 %v88
  %v603 = vunpack.c.l.b16 %v89
  %v604 = vunpack.c.l.b16 %v90
  %v605 = vunpack.c.h.b16 %v90
  %v606 = vunpack.c.l.b16 %v91
  %v607 = vunpack.c.h.b16 %v91
  %v608 = vunpack.c.l.b16 %v92
  %v609 = vunpack.c.l.b16 %v93
  %v610 = vunpack.c.h.b16 %v93
  %v611 = vunpack.c.l.b16 %v94
  %v612 = vunpack.c.h.b16 %v94
  %v613 = vunpack.c.l.b16 %v95
  %v614 = vunpack.c.l.b16 %v96
  %v615 = vunpack.c.h.b16 %v96
  %v616 = vunpack.c.l.b16 %v97
  %v617 = vunpack.c.h.b16 %v97
  %v618 = vunpack.c.l.b16 %v98
  %v619 = vunpack.c.l.b16 %v99
  %v620 = vunpack.c.h.b16 %v99
  %v621 = vunpack.c.l.b16 %v100
  %v622 = vunpack.c.h.b16 %v100
  %v623 = vunpack.c.l.b16 %v101
  %v624 = vunpack.c.l.b16 %v102
  %v625 = vunpack.c.h.b16 %v102
  %v626 = vunpack.c.l.b16 %v103
  %v627 = vunpack.c.h.b16 %v103
  %v628 = vunpack.c.l.b16 %v104
  %v629 = vunpack.c.l.b16 %v105
  %v630 = vunpack.c.h.b16 %v105
  %v631 = vunpack.c.l.b16 %v106
  %v632 = vunpack.c.h.b16 %v106
  %v633 = vunpack.c.l.b16 %v107
  %v634 = vunpack.c.l.b16 %v108
  %v635 = vunpack.c.h.b16 %v108
  %v636 = vunpack.c.l.b16 %v109
  %v637 = vunpack.c.h.b16 %v109
  %v638 = vunpack.c.l.b16 %v110
  %v639 = vunpack.c.l.b16 %v111
  %v640 = vunpack.c.h.b16 %v111
  %v641 = vunpack.c.l.b16 %v112
  %v642 = vunpack.c.h.b16 %v112
  %v643 = vunpack.c.l.b16 %v113
  %v644 = vunpack.c.l.b16 %v114
  %v645 = vunpack.c.h.b16 %v114
  %v646 = vunpack.c.l.b16 %v115
  %v647 = vunpack.c.h.b16 %v115
  %v648 = vunpack.c.l.b16 %v116
  %v649 = vunpack.c.l.b16 %v117
  %v650 = vunpack.c.h.b16 %v117
  %v651 = vunpack.c.l.b16 %v118
  %v652 = vunpack.c.h.b16 %v118
  %v653 = vunpack.c.l.b16 %v119
  %v654 = vunpack.c.l.b16 %v120
  %v655 = vunpack.c.h.b16 %v120
  %v656 = vunpack.c.l.b16 %v121
  %v657 = vunpack.c.h.b16 %v121
  %v658 = vunpack.c.l.b16 %v122
  %v659 = vunpack.c.l.b16 %v123
  %v660 = vunpack.c.h.b16 %v123
  %v661 = vunpack.c.l.b16 %v124
  %v662 = vunpack.c.h.b16 %v124
  %v663 = vunpack.c.l.b16 %v125
  %v664 = vunpack.c.l.b16 %v126
  %v665 = vunpack.c.h.b16 %v126
  %v666 = vunpack.c.l.b16 %v127
  %v667 = vunpack.c.h.b16 %v127
  %v668 = vunpack.c.l.b16 %v128
  %v669 = vunpack.c.l.b16 %v129
  %v670 = vunpack.c.h.b16 %v129
  %v671 = vunpack.c.l.b16 %v130
  %v672 = vunpack.c.h.b16 %v130
  %v673 = vunpack.c.l.b16 %v131
  %v674 = vunpack.c.l.b16 %v132
  %v675 = vunpack.c.h.b16 %v132
  %v676 = vunpack.c.l.b16 %v133
  %v677 = vunpack.c.h.b16 %v133
  %v678 = vunpack.c.l.b16 %v134
  %v679 = vunpack.c.l.b16 %v135
  %v680 = vunpack.c.h.b16 %v135
  %v681 = vunpack.c.l.b16 %v136
  %v682 = vunpack.c.h.b16 %v136
  %v683 = vunpack.c.l.b16 %v137
  %v684 = vunpack.c.l.b16 %v138
  %v685 = vunpack.c.h.b16 %v138
  %v686 = vunpack.c.l.b16 %v139
  %v687 = vunpack.c.h.b16 %v139
  %v688 = vunpack.c.l.b16 %v140
  %v689 = vunpack.c.l.b16 %v141
  %v690 = vunpack.c.h.b16 %v141
  %v691 = vunpack.c.l.b16 %v142
  %v692 = vunpack.c.h.b16 %v142
  %v693 = vunpack.c.l.b16 %v143
  %v694 = vunpack.c.l.b16 %v144
  %v695 = vunpack.c.h.b16 %v144
  %v696 = vunpack.c.l.b16 %v145
  %v697 = vunpack.c.h.b16 %v145
  %v698 = vunpack.c.l.b16 %v146
  %v699 = vunpack.c.l.b16 %v147
  %v700 = vunpack.c.h.b16 %v147
  %v701 = vunpack.c.l.b16 %v148
  %v702 = vunpack.c.h.b16 %v148
  %v703 = vunpack.c.l.b16 %v149
  %v704 = vunpack.c.l.b16 %v150
  %v705 = vunpack.c.h.b16 %v150
  %v706 = vunpack.c.l.b16 %v151
  %v707 = vunpack.c.h.b16 %v151
  %v708 = vunpack.c.l.b16 %v152
  %v709 = vunpack.c.l.b16 %v153
  %v710 = vunpack.c.h.b16 %v153
  %v711 = vunpack.c.l.b16 %v154
  %v712 = vunpack.c.h.b16 %v154
  %v713 = vunpack.c.l.b16 %v155
  %v714 = vunpack.c.l.b16 %v156
  %v715 = vunpack.c.h.b16 %v156
  %v716 = vunpack.c.l.b16 %v157
  %v717 = vunpack.c.h.b16 %v157
  %v718 = vunpack.c.l.b16 %v158
  %v719 = vunpack.c.l.b16 %v159
  %v720 = vunpack.c.h.b16 %v159
  %v721 = vunpack.c.l.b16 %v160
  %v722 = vunpack.c.h.b16 %v160
  %v723 = vunpack.c.l.b16 %v161
  %v724 = vunpack.c.l.b16 %v162
  %v725 = vunpack.c.h.b16 %v162
  %v726 = vunpack.c.l.b16 %v163
  %v727 = vunpack.c.h.b16 %v163
  %v728 = vunpack.c.l.b16 %v164
  %v729 = vunpack.c.l.b16 %v165
  %v730 = vunpack.c.h.b16 %v165
  %v731 = vunpack.c.l.b16 %v166
  %v732 = vunpack.c.h.b16 %v166
  %v733 = vunpack.c.l.b16 %v167
  %v734 = vunpack.c.l.b16 %v168
  %v735 = vunpack.c.h.b16 %v168
  %v736 = vunpack.c.l.b16 %v169
  %v737 = vunpack.c.h.b16 %v169
  %v738 = vunpack.c.l.b16 %v170
  %v739 = vunpack.c.l.b16 %v171
  %v740 = vunpack.c.h.b16 %v171
  %v741 = vunpack.c.l.b16 %v172
  %v742 = vunpack.c.h.b16 %v172
  %v743 = vunpack.c.l.b16 %v173
  %v744 = vunpack.c.l.b16 %v174
  %v745 = vunpack.c.h.b16 %v174
  %v746 = vunpack.c.l.b16 %v175
  %v747 = vunpack.c.h.b16 %v175
  %v748 = vunpack.c.l.b16 %v176
  %v749 = vunpack.c.l.b16 %v177
  %v750 = vunpack.c.h.b16 %v177
  %v751 = vunpack.c.l.b16 %v178
  %v752 = vunpack.c.h.b16 %v178
  %v753 = vunpack.c.l.b16 %v179
  %v754 = vunpack.c.l.b16 %v180
  %v755 = vunpack.c.h.b16 %v180
  %v756 = vunpack.c.l.b16 %v181
  %v757 = vunpack.c.h.b16 %v181
  %v758 = vunpack.c.l.b16 %v182
  %v759 = vunpack.c.l.b16 %v183
  %v760 = vunpack.c.h.b16 %v183
  %v761 = vunpack.c.l.b16 %v184
  %v762 = vunpack.c.h.b16 %v184
  %v763 = vunpack.c.l.b16 %v185
  %v764 = vunpack.c.l.b16 %v186
  %v765 = vunpack.c.h.b16 %v186
  %v766 = vunpack.c.l.b16 %v187
  %v767 = vunpack.c.h.b16 %v187
  %v768 = vunpack.c.l.b16 %v188
  %v769 = vunpack.c.l.b16 %v189
  %v770 = vunpack.c.h.b16 %v189
  %v771 = vunpack.c.l.b16 %v190
  %v772 = vunpack.c.h.b16 %v190
  %v773 = vunpack.c.l.b16 %v191
  %v774 = vunpack.c.l.b16 %v192
  %v775 = vunpack.c.h.b16 %v192
  %v776 = vunpack.c.l.b16 %v193
  %v777 = vunpack.c.h.b16 %v193
  %v778 = vunpack.c.l.b16 %v194
  %v779 = vunpack.c.l.b16 %v195
  %v780 = vunpack.c.h.b16 %v195
  %v781 = vunpack.c.l.b16 %v196
  %v782 = vunpack.c.h.b16 %v196
  %v783 = vunpack.c.l.b16 %v197
  %v784 = vunpack.c.l.b16 %v198
  %v785 = vunpack.c.h.b16 %v198
  %v786 = vunpack.c.l.b16 %v199
  %v787 = vunpack.c.h.b16 %v199
  %v788 = vunpack.c.l.b16 %v200
  %v789 = vunpack.c.l.b16 %v201
  %v790 = vunpack.c.h.b16 %v201
  %v791 = vunpack.c.l.b16 %v202
  %v792 = vunpack.c.h.b16 %v202
  %v793 = vunpack.c.l.b16 %v203
  %v794 = vunpack.c.l.b16 %v204
  %v795 = vunpack.c.h.b16 %v204
  %v796 = vunpack.c.l.b16 %v205
  %v797 = vunpack.c.h.b16 %v205
  %v798 = vunpack.c.l.b16 %v206
  %v799 = vpack.c.b16 %v484, %v479
  %v800 = vpack.c.b16 %v485, %v480
  %v801 = vpack.c.b16 %v486, %v481
  %v802 = vpack.c.b16 %v487, %v482
  %v803 = vpack.c.b16 %v488, %v483
  %v804 = vpack.c.b16 %v494, %v489
  %v805 = vpack.c.b16 %v495, %v490
  %v806 = vpack.c.b16 %v496, %v491
  %v807 = vpack.c.b16 %v497, %v492
  %v808 = vpack.c.b16 %v498, %v493
  %v809 = vpack.c.b16 %v504, %v499
  %v810 = vpack.c.b16 %v505, %v500
  %v811 = vpack.c.b16 %v506, %v501
  %v812 = vpack.c.b16 %v507, %v502
  %v813 = vpack.c.b16 %v508, %v503
  %v814 = vpack.c.b16 %v514, %v509
  %v815 = vpack.c.b16 %v515, %v510
  %v816 = vpack.c.b16 %v516, %v511
  %v817 = vpack.c.b16 %v517, %v512
  %v818 = vpack.c.b16 %v518, %v513
  %v819 = vpack.c.b16 %v524, %v519
  %v820 = vpack.c.b16 %v525, %v520
  %v821 = vpack.c.b16 %v526, %v521
  %v822 = vpack.c.b16 %v527, %v522
  %v823 = vpack.c.b16 %v528, %v523
  %v824 = vpack.c.b16 %v534, %v529
  %v825 = vpack.c.b16 %v535, %v530
  %v826 = vpack.c.b16 %v536, %v531
  %v827 = vpack.c.b16 %v537, %v532
  %v828 = vpack.c.b16 %v538, %v533
  %v829 = vpack.c.b16 %v544, %v539
  %v830 = vpack.c.b16 %v545, %v540
  %v831 = vpack.c.b16 %v546, %v541
  %v832 = vpack.c.b16 %v547, %v542
  %v833 = vpack.c.b16 %v548, %v543
  %v834 = vpack.c.b16 %v554, %v549
  %v835 = vpack.c.b16 %v555, %v550
  %v836 = vpack.c.b16 %v556, %v551
  %v837 = vpack.c.b16 %v557, %v552
  %v838 = vpack.c.b16 %v558, %v553
  %v839 = vpack.c.b16 %v564, %v559
  %v840 = vpack.c.b16 %v565, %v560
  %v841 = vpack.c.b16 %v566, %v561
  %v842 = vpack.c.b16 %v567, %v562
  %v843 = vpack.c.b16 %v568, %v563
  %v844 = vpack.c.b16 %v574, %v569
  %v845 = vpack.c.b16 %v575, %v570
  %v846 = vpack.c.b16 %v576, %v571
  %v847 = vpack.c.b16 %v577, %v572
  %v848 = vpack.c.b16 %v578, %v573
  %v849 = vpack.c.b16 %v584, %v579
  %v850 = vpack.c.b16 %v585, %v580
  %v851 = vpack.c.b16 %v586, %v581
  %v852 = vpack.c.b16 %v587, %v582
  %v853 = vpack.c.b16 %v588, %v583
  %v854 = vpack.c.b16 %v594, %v589
  %v855 = vpack.c.b16 %v595, %v590
  %v856 = vpack.c.b16 %v596, %v591
  %v857 = vpack.c.b16 %v597, %v592
  %v858 = vpack.c.b16 %v598, %v593
  %v859 = vpack.c.b16 %v604, %v599
  %v860 = vpack.c.b16 %v605, %v600
  %v861 = vpack.c.b16 %v606, %v601
  %v862 = vpack.c.b16 %v607, %v602
  %v863 = vpack.c.b16 %v608, %v603
  %v864 = vpack.c.b16 %v614, %v609
  %v865 = vpack.c.b16 %v615, %v610
  %v866 = vpack.c.b16 %v616, %v611
  %v867 = vpack.c.b16 %v617, %v612
  %v868 = vpack.c.b16 %v618, %v613
  %v869 = vpack.c.b16 %v624, %v619
  %v870 = vpack.c.b16 %v625, %v620
  %v871 = vpack.c.b16 %v626, %v621
  %v872 = vpack.c.b16 %v627, %v622
  %v873 = vpack.c.b16 %v628, %v623
  %v874 = vpack.c.b16 %v634, %v629
  %v875 = vpack.c.b16 %v635, %v630
  %v876 = vpack.c.b16 %v636, %v631
  %v877 = vpack.c.b16 %v637, %v632
  %v878 = vpack.c.b16 %v638, %v633
  %v879 = vpack.c.b16 %v644, %v639
  %v880 = vpack.c.b16 %v645, %v640
  %v881 = vpack.c.b16 %v646, %v641
  %v882 = vpack.c.b16 %v647, %v642
  %v883 = vpack.c.b16 %v648, %v643
  %v884 = vpack.c.b16 %v654, %v649
  %v885 = vpack.c.b16 %v655, %v650
  %v886 = vpack.c.b16 %v656, %v651
  %v887 = vpack.c.b16 %v657, %v652
  %v888 = vpack.c.b16 %v658, %v653
  %v889 = vpack.c.b16 %v664, %v659
  %v890 = vpack.c.b16 %v665, %v660
  %v891 = vpack.c.b16 %v666, %v661
  %v892 = vpack.c.b16 %v667, %v662
  %v893 = vpack.c.b16 %v668, %v663
  %v894 = vpack.c.b16 %v674, %v669
  %v895 = vpack.c.b16 %v675, %v670
  %v896 = vpack.c.b16 %v676, %v671
  %v897 = vpack.c.b16 %v677, %v672
  %v898 = vpack.c.b16 %v678, %v673
  %v899 = vpack.c.b16 %v684, %v679
  %v900 = vpack.c.b16 %v685, %v680
  %v901 = vpack.c.b16 %v686, %v681
  %v902 = vpack.c.b16 %v687, %v682
  %v903 = vpack.c.b16 %v688, %v683
  %v904 = vpack.c.b16 %v694, %v689
  %v905 = vpack.c.b16 %v695, %v690
  %v906 = vpack.c.b16 %v696, %v691
  %v907 = vpack.c.b16 %v697, %v692
  %v908 = vpack.c.b16 %v698, %v693
  %v909 = vpack.c.b16 %v704, %v699
  %v910 = vpack.c.b16 %v705, %v700
  %v911 = vpack.c.b16 %v706, %v701
  %v912 = vpack.c.b16 %v707, %v702
  %v913 = vpack.c.b16 %v708, %v703
  %v914 = vpack.c.b16 %v714, %v709
  %v915 = vpack.c.b16 %v715, %v710
  %v916 = vpack.c.b16 %v716, %v711
  %v917 = vpack.c.b16 %v717, %v712
  %v918 = vpack.c.b16 %v718, %v713
  %v919 = vpack.c.b16 %v724, %v719
  %v920 = vpack.c.b16 %v725, %v720
  %v921 = vpack.c.b16 %v726, %v721
  %v922 = vpack.c.b16 %v727, %v722
  %v923 = vpack.c.b16 %v728, %v723
  %v924 = vpack.c.b16 %v734, %v729
  %v925 = vpack.c.b16 %v735, %v730
  %v926 = vpack.c.b16 %v736, %v731
  %v927 = vpack.c.b16 %v737, %v732
  %v928 = vpack.c.b16 %v738, %v733
  %v929 = vpack.c.b16 %v744, %v739
  %v930 = vpack.c.b16 %v745, %v740
  %v931 = vpack.c.b16 %v746, %v741
  %v932 = vpack.c.b16 %v747, %v742
  %v933 = vpack.c.b16 %v748, %v743
  %v934 = vpack.c.b16 %v754, %v749
  %v935 = vpack.c.b16 %v755, %v750
  %v936 = vpack.c.b16 %v756, %v751
  %v937 = vpack.c.b16 %v757, %v752
  %v938 = vpack.c.b16 %v758, %v753
  %v939 = vpack.c.b16 %v764, %v759
  %v940 = vpack.c.b16 %v765, %v760
  %v941 = vpack.c.b16 %v766, %v761
  %v942 = vpack.c.b16 %v767, %v762
  %v943 = vpack.c.b16 %v768, %v763
  %v944 = vpack.c.b16 %v774, %v769
  %v945 = vpack.c.b16 %v775, %v770
  %v946 = vpack.c.b16 %v776, %v771
  %v947 = vpack.c.b16 %v777, %v772
  %v948 = vpack.c.b16 %v778, %v773
  %v949 = vpack.c.b16 %v784, %v779
  %v950 = vpack.c.b16 %v785, %v780
  %v951 = vpack.c.b16 %v786, %v781
  %v952 = vpack.c.b16 %v787, %v782
  %v953 = vpack.c.b16 %v788, %v783
  %v954 = vpack.c.b16 %v794, %v789
  %v955 = vpack.c.b16 %v795, %v790
  %v956 = vpack.c.b16 %v796, %v791
  %v957 = vpack.c.b16 %v797, %v792
  %v958 = vpack.c.b16 %v798, %v793
  %v1199 = vunpack.c.l.b16 %v207
  %v1200 = vunpack.c.l.b16 %v208
  %v1201 = vunpack.c.l.b16 %v209
  %v1202 = vunpack.c.l.b16 %v210
  %v1203 = vunpack.c.l.b16 %v211
  %v1204 = vunpack.c.l.b16 %v212
  %v1205 = vunpack.c.l.b16 %v213
  %v1206 = vunpack.c.l.b16 %v214
  %v1207 = vunpack.c.l.b16 %v215
  %v1208 = vunpack.c.l.b16 %v216
  %v1209 = vunpack.c.l.b16 %v217
  %v1210 = vunpack.c.l.b16 %v218
  %v1211 = vunpack.c.l.b16 %v219
  %v1212 = vunpack.c.l.b16 %v220
  %v1213 = vunpack.c.l.b16 %v221
  %v1214 = vunpack.c.l.b16 %v222
  %v1215 = vunpack.c.l.b16 %v223
  %v1216 = vunpack.c.l.b16 %v224
  %v1217 = vunpack.c.l.b16 %v225
  %v1218 = vunpack.c.l.b16 %v226
  %v1219 = vunpack.c.l.b16 %v227
  %v1220 = vunpack.c.l.b16 %v228
  %v1221 = vunpack.c.l.b16 %v229
  %v1222 = vunpack.c.l.b16 %v230
  %v1223 = vunpack.c.l.b16 %v231
  %v1224 = vunpack.c.l.b16 %v232
  %v1225 = vunpack.c.l.b16 %v233
  %v1226 = vunpack.c.l.b16 %v234
  %v1227 = vunpack.c.l.b16 %v235
  %v1228 = vunpack.c.l.b16 %v236
  %v1229 = vunpack.c.l.b16 %v237
  %v1230 = vunpack.c.l.b16 %v238
  %v1231 = vunpack.c.l.b16 %v239
  %v1232 = vunpack.c.l.b16 %v240
  %v1233 = vunpack.c.l.b16 %v241
  %v1234 = vunpack.c.l.b16 %v242
  %v1235 = vunpack.c.l.b16 %v243
  %v1236 = vunpack.c.l.b16 %v244
  %v1237 = vunpack.c.l.b16 %v245
  %v1238 = vunpack.c.l.b16 %v246
  %v1239 = vunpack.c.l.b16 %v247
  %v1240 = vunpack.c.l.b16 %v248
  %v1241 = vunpack.c.l.b16 %v249
  %v1242 = vunpack.c.l.b16 %v250
  %v1243 = vunpack.c.l.b16 %v251
  %v1244 = vunpack.c.l.b16 %v252
  %v1245 = vunpack.c.l.b16 %v253
  %v1246 = vunpack.c.l.b16 %v254
  %v1247 = vunpack.c.l.b16 %v255
  %v1248 = vunpack.c.l.b16 %v256
  %v1249 = vunpack.c.l.b16 %v257
  %v1250 = vunpack.c.l.b16 %v258
  %v1251 = vunpack.c.l.b16 %v259
  %v1252 = vunpack.c.l.b16 %v260
  %v1253 = vunpack.c.l.b16 %v261
  %v1254 = vunpack.c.l.b16 %v262
  %v1255 = vunpack.c.l.b16 %v263
  %v1256 = vunpack.c.l.b16 %v264
  %v1257 = vunpack.c.l.b16 %v265
  %v1258 = vunpack.c.l.b16 %v266
  %v1259 = vunpack.c.l.b16 %v267
  %v1260 = vunpack.c.l.b16 %v268
  %v1261 = vunpack.c.l.b16 %v269
  %v1262 = vunpack.c.l.b16 %v270
  %v1263 = vunpack.c.l.b16 %v271
  %v1264 = vunpack.c.l.b16 %v272
  %v1265 = vunpack.c.l.b16 %v273
  %v1266 = vunpack.c.l.b16 %v274
  %v1267 = vunpack.c.l.b16 %v275
  %v1268 = vunpack.c.l.b16 %v276
  %v1269 = vunpack.c.l.b16 %v277
  %v1270 = vunpack.c.l.b16 %v278
  %v1271 = vunpack.c.l.b16 %v279
  %v1272 = vunpack.c.l.b16 %v280
  %v1273 = vunpack.c.l.b16 %v281
  %v1274 = vunpack.c.l.b16 %v282
  %v1275 = vunpack.c.l.b16 %v283
  %v1276 = vunpack.c.l.b16 %v284
  %v1277 = vunpack.c.l.b16 %v285
  %v1278 = vunpack.c.l.b16 %v286
  %v1279 = vpack.c.b16 %v1200, %v1199
  %v1280 = vpack.c.b16 %v1202, %v1201
  %v1281 = vpack.c.b16 %v1204, %v1203
  %v1282 = vpack.c.b16 %v1206, %v1205
  %v1283 = vpack.c.b16 %v1208, %v1207
  %v1284 = vpack.c.b16 %v1210, %v1209
  %v1285 = vpack.c.b16 %v1212, %v1211
  %v1286 = vpack.c.b16 %v1214, %v1213
  %v1287 = vpack.c.b16 %v1216, %v1215
  %v1288 = vpack.c.b16 %v1218, %v1217
  %v1289 = vpack.c.b16 %v1220, %v1219
  %v1290 = vpack.c.b16 %v1222, %v1221
  %v1291 = vpack.c.b16 %v1224, %v1223
  %v1292 = vpack.c.b16 %v1226, %v1225
  %v1293 = vpack.c.b16 %v1228, %v1227
  %v1294 = vpack.c.b16 %v1230, %v1229
  %v1295 = vpack.c.b16 %v1232, %v1231
  %v1296 = vpack.c.b16 %v1234, %v1233
  %v1297 = vpack.c.b16 %v1236, %v1235
  %v1298 = vpack.c.b16 %v1238, %v1237
  %v1299 = vpack.c.b16 %v1240, %v1239
  %v1300 = vpack.c.b16 %v1242, %v1241
  %v1301 = vpack.c.b16 %v1244, %v1243
  %v1302 = vpack.c.b16 %v1246, %v1245
  %v1303 = vpack.c.b16 %v1248, %v1247
  %v1304 = vpack.c.b16 %v1250, %v1249
  %v1305 = vpack.c.b16 %v1252, %v1251
  %v1306 = vpack.c.b16 %v1254, %v1253
  %v1307 = vpack.c.b16 %v1256, %v1255
  %v1308 = vpack.c.b16 %v1258, %v1257
  %v1309 = vpack.c.b16 %v1260, %v1259
  %v1310 = vpack.c.b16 %v1262, %v1261
  %v1311 = vpack.c.b16 %v1264, %v1263
  %v1312 = vpack.c.b16 %v1266, %v1265
  %v1313 = vpack.c.b16 %v1268, %v1267
  %v1314 = vpack.c.b16 %v1270, %v1269
  %v1315 = vpack.c.b16 %v1272, %v1271
  %v1316 = vpack.c.b16 %v1274, %v1273
  %v1317 = vpack.c.b16 %v1276, %v1275
  %v1318 = vpack.c.b16 %v1278, %v1277
  %1359 = vmatprep.subr.bf16.mxu0 0
  %1360 = vmatpush1.bf16.msra.mxu0 %v1286
  %1361 = vmatprep.subr.bf16.mxu0 0
  %1362 = vmatpush1.bf16.msra.mxu0 %v1285
  %1363 = vmatprep.subr.bf16.mxu0 0
  %1364 = vmatpush1.bf16.msra.mxu0 %v1284
  %1365 = vmatprep.subr.bf16.mxu0 0
  %1366 = vmatpush1.bf16.msra.mxu0 %v1283
  %1367 = vmatprep.subr.bf16.mxu0 0
  %1368 = vmatpush1.bf16.msra.mxu0 %v1282
  %1369 = vmatprep.subr.bf16.mxu0 0
  %1370 = vmatpush1.bf16.msra.mxu0 %v1281
  %1371 = vmatprep.subr.bf16.mxu0 0
  %1372 = vmatpush1.bf16.msra.mxu0 %v1280
  %1373 = vmatprep.subr.bf16.mxu0 0
  %1374 = vmatpush1.bf16.msra.mxu0 %v1279
  %1375 = vmatprep.subr.bf16.mxu0 0
  %1376 = vmatpush2.bf16.msra.mxu0 %v1294
  %1377 = vmatprep.subr.bf16.mxu0 0
  %1378 = vmatpush2.bf16.msra.mxu0 %v1293
  %1379 = vmatprep.subr.bf16.mxu0 0
  %1380 = vmatpush2.bf16.msra.mxu0 %v1292
  %1381 = vmatprep.subr.bf16.mxu0 0
  %1382 = vmatpush2.bf16.msra.mxu0 %v1291
  %1383 = vmatprep.subr.bf16.mxu0 0
  %1384 = vmatpush2.bf16.msra.mxu0 %v1290
  %1385 = vmatprep.subr.bf16.mxu0 0
  %1386 = vmatpush2.bf16.msra.mxu0 %v1289
  %1387 = vmatprep.subr.bf16.mxu0 0
  %1388 = vmatpush2.bf16.msra.mxu0 %v1288
  %1389 = vmatprep.subr.bf16.mxu0 0
  %1390 = vmatpush2.bf16.msra.mxu0 %v1287
  %1391 = vmatprep.mubr.bf16.mxu0 %v800
  %1392 = vmatmul.mubr.bf16.gmra.mxu0 %v799
  %v1393 = vpop.f32.mrf.mxu0
  %v1394 = vadd.f32 0.0, %v1393
  %v1395 = vpop.f32.mrf.mxu0
  %v1396 = vpop.f32.mrf.mxu0
  %v1397 = vadd.f32 0.0, %v1396
  %v1398 = vpop.f32.mrf.mxu0
  %1399 = vmatprep.mubr.bf16.mxu0 %v805
  %1400 = vmatmul.mubr.bf16.gmra.mxu0 %v804
  %v1401 = vpop.f32.mrf.mxu0
  %v1402 = vadd.f32 0.0, %v1401
  %v1403 = vpop.f32.mrf.mxu0
  %v1404 = vpop.f32.mrf.mxu0
  %v1405 = vadd.f32 0.0, %v1404
  %v1406 = vpop.f32.mrf.mxu0
  %1407 = vmatprep.mubr.bf16.mxu0 %v810
  %1408 = vmatmul.mubr.bf16.gmra.mxu0 %v809
  %v1409 = vpop.f32.mrf.mxu0
  %v1410 = vadd.f32 0.0, %v1409
  %v1411 = vpop.f32.mrf.mxu0
  %v1412 = vpop.f32.mrf.mxu0
  %v1413 = vadd.f32 0.0, %v1412
  %v1414 = vpop.f32.mrf.mxu0
  %1415 = vmatprep.mubr.bf16.mxu0 %v815
  %1416 = vmatmul.mubr.bf16.gmra.mxu0 %v814
  %v1417 = vpop.f32.mrf.mxu0
  %v1418 = vadd.f32 0.0, %v1417
  %v1419 = vpop.f32.mrf.mxu0
  %v1420 = vpop.f32.mrf.mxu0
  %v1421 = vadd.f32 0.0, %v1420
  %v1422 = vpop.f32.mrf.mxu0
  %1423 = vmatprep.mubr.bf16.mxu0 %v820
  %1424 = vmatmul.mubr.bf16.gmra.mxu0 %v819
  %v1425 = vpop.f32.mrf.mxu0
  %v1426 = vadd.f32 0.0, %v1425
  %v1427 = vpop.f32.mrf.mxu0
  %v1428 = vpop.f32.mrf.mxu0
  %v1429 = vadd.f32 0.0, %v1428
  %v1430 = vpop.f32.mrf.mxu0
  %1431 = vmatprep.mubr.bf16.mxu0 %v825
  %1432 = vmatmul.mubr.bf16.gmra.mxu0 %v824
  %v1433 = vpop.f32.mrf.mxu0
  %v1434 = vadd.f32 0.0, %v1433
  %v1435 = vpop.f32.mrf.mxu0
  %v1436 = vpop.f32.mrf.mxu0
  %v1437 = vadd.f32 0.0, %v1436
  %v1438 = vpop.f32.mrf.mxu0
  %1439 = vmatprep.mubr.bf16.mxu0 %v830
  %1440 = vmatmul.mubr.bf16.gmra.mxu0 %v829
  %v1441 = vpop.f32.mrf.mxu0
  %v1442 = vadd.f32 0.0, %v1441
  %v1443 = vpop.f32.mrf.mxu0
  %v1444 = vpop.f32.mrf.mxu0
  %v1445 = vadd.f32 0.0, %v1444
  %v1446 = vpop.f32.mrf.mxu0
  %1447 = vmatprep.mubr.bf16.mxu0 %v835
  %1448 = vmatmul.mubr.bf16.gmra.mxu0 %v834
  %v1449 = vpop.f32.mrf.mxu0
  %v1450 = vadd.f32 0.0, %v1449
  %v1451 = vpop.f32.mrf.mxu0
  %v1452 = vpop.f32.mrf.mxu0
  %v1453 = vadd.f32 0.0, %v1452
  %v1454 = vpop.f32.mrf.mxu0
  %1455 = vmatprep.mubr.bf16.mxu0 %v840
  %1456 = vmatmul.mubr.bf16.gmra.mxu0 %v839
  %v1457 = vpop.f32.mrf.mxu0
  %v1458 = vadd.f32 0.0, %v1457
  %v1459 = vpop.f32.mrf.mxu0
  %v1460 = vpop.f32.mrf.mxu0
  %v1461 = vadd.f32 0.0, %v1460
  %v1462 = vpop.f32.mrf.mxu0
  %1463 = vmatprep.mubr.bf16.mxu0 %v845
  %1464 = vmatmul.mubr.bf16.gmra.mxu0 %v844
  %v1465 = vpop.f32.mrf.mxu0
  %v1466 = vadd.f32 0.0, %v1465
  %v1467 = vpop.f32.mrf.mxu0
  %v1468 = vpop.f32.mrf.mxu0
  %v1469 = vadd.f32 0.0, %v1468
  %v1470 = vpop.f32.mrf.mxu0
  %1471 = vmatprep.mubr.bf16.mxu0 %v850
  %1472 = vmatmul.mubr.bf16.gmra.mxu0 %v849
  %v1473 = vpop.f32.mrf.mxu0
  %v1474 = vadd.f32 0.0, %v1473
  %v1475 = vpop.f32.mrf.mxu0
  %v1476 = vpop.f32.mrf.mxu0
  %v1477 = vadd.f32 0.0, %v1476
  %v1478 = vpop.f32.mrf.mxu0
  %1479 = vmatprep.mubr.bf16.mxu0 %v855
  %1480 = vmatmul.mubr.bf16.gmra.mxu0 %v854
  %v1481 = vpop.f32.mrf.mxu0
  %v1482 = vadd.f32 0.0, %v1481
  %v1483 = vpop.f32.mrf.mxu0
  %v1484 = vpop.f32.mrf.mxu0
  %v1485 = vadd.f32 0.0, %v1484
  %v1486 = vpop.f32.mrf.mxu0
  %1487 = vmatprep.mubr.bf16.mxu0 %v860
  %1488 = vmatmul.mubr.bf16.gmra.mxu0 %v859
  %v1489 = vpop.f32.mrf.mxu0
  %v1490 = vadd.f32 0.0, %v1489
  %v1491 = vpop.f32.mrf.mxu0
  %v1492 = vpop.f32.mrf.mxu0
  %v1493 = vadd.f32 0.0, %v1492
  %v1494 = vpop.f32.mrf.mxu0
  %1495 = vmatprep.mubr.bf16.mxu0 %v865
  %1496 = vmatmul.mubr.bf16.gmra.mxu0 %v864
  %v1497 = vpop.f32.mrf.mxu0
  %v1498 = vadd.f32 0.0, %v1497
  %v1499 = vpop.f32.mrf.mxu0
  %v1500 = vpop.f32.mrf.mxu0
  %v1501 = vadd.f32 0.0, %v1500
  %v1502 = vpop.f32.mrf.mxu0
  %1503 = vmatprep.mubr.bf16.mxu0 %v870
  %1504 = vmatmul.mubr.bf16.gmra.mxu0 %v869
  %v1505 = vpop.f32.mrf.mxu0
  %v1506 = vadd.f32 0.0, %v1505
  %v1507 = vpop.f32.mrf.mxu0
  %v1508 = vpop.f32.mrf.mxu0
  %v1509 = vadd.f32 0.0, %v1508
  %v1510 = vpop.f32.mrf.mxu0
  %1511 = vmatprep.mubr.bf16.mxu0 %v875
  %1512 = vmatmul.mubr.bf16.gmra.mxu0 %v874
  %v1513 = vpop.f32.mrf.mxu0
  %v1514 = vadd.f32 0.0, %v1513
  %v1515 = vpop.f32.mrf.mxu0
  %v1516 = vpop.f32.mrf.mxu0
  %v1517 = vadd.f32 0.0, %v1516
  %v1518 = vpop.f32.mrf.mxu0
  %1519 = vmatprep.mubr.bf16.mxu0 %v880
  %1520 = vmatmul.mubr.bf16.gmra.mxu0 %v879
  %v1521 = vpop.f32.mrf.mxu0
  %v1522 = vadd.f32 0.0, %v1521
  %v1523 = vpop.f32.mrf.mxu0
  %v1524 = vpop.f32.mrf.mxu0
  %v1525 = vadd.f32 0.0, %v1524
  %v1526 = vpop.f32.mrf.mxu0
  %1527 = vmatprep.mubr.bf16.mxu0 %v885
  %1528 = vmatmul.mubr.bf16.gmra.mxu0 %v884
  %v1529 = vpop.f32.mrf.mxu0
  %v1530 = vadd.f32 0.0, %v1529
  %v1531 = vpop.f32.mrf.mxu0
  %v1532 = vpop.f32.mrf.mxu0
  %v1533 = vadd.f32 0.0, %v1532
  %v1534 = vpop.f32.mrf.mxu0
  %1535 = vmatprep.mubr.bf16.mxu0 %v890
  %1536 = vmatmul.mubr.bf16.gmra.mxu0 %v889
  %v1537 = vpop.f32.mrf.mxu0
  %v1538 = vadd.f32 0.0, %v1537
  %v1539 = vpop.f32.mrf.mxu0
  %v1540 = vpop.f32.mrf.mxu0
  %v1541 = vadd.f32 0.0, %v1540
  %v1542 = vpop.f32.mrf.mxu0
  %1543 = vmatprep.mubr.bf16.mxu0 %v895
  %1544 = vmatmul.mubr.bf16.gmra.mxu0 %v894
  %v1545 = vpop.f32.mrf.mxu0
  %v1546 = vadd.f32 0.0, %v1545
  %v1547 = vpop.f32.mrf.mxu0
  %v1548 = vpop.f32.mrf.mxu0
  %v1549 = vadd.f32 0.0, %v1548
  %v1550 = vpop.f32.mrf.mxu0
  %1551 = vmatprep.mubr.bf16.mxu0 %v900
  %1552 = vmatmul.mubr.bf16.gmra.mxu0 %v899
  %v1553 = vpop.f32.mrf.mxu0
  %v1554 = vadd.f32 0.0, %v1553
  %v1555 = vpop.f32.mrf.mxu0
  %v1556 = vpop.f32.mrf.mxu0
  %v1557 = vadd.f32 0.0, %v1556
  %v1558 = vpop.f32.mrf.mxu0
  %1559 = vmatprep.mubr.bf16.mxu0 %v905
  %1560 = vmatmul.mubr.bf16.gmra.mxu0 %v904
  %v1561 = vpop.f32.mrf.mxu0
  %v1562 = vadd.f32 0.0, %v1561
  %v1563 = vpop.f32.mrf.mxu0
  %v1564 = vpop.f32.mrf.mxu0
  %v1565 = vadd.f32 0.0, %v1564
  %v1566 = vpop.f32.mrf.mxu0
  %1567 = vmatprep.mubr.bf16.mxu0 %v910
  %1568 = vmatmul.mubr.bf16.gmra.mxu0 %v909
  %v1569 = vpop.f32.mrf.mxu0
  %v1570 = vadd.f32 0.0, %v1569
  %v1571 = vpop.f32.mrf.mxu0
  %v1572 = vpop.f32.mrf.mxu0
  %v1573 = vadd.f32 0.0, %v1572
  %v1574 = vpop.f32.mrf.mxu0
  %1575 = vmatprep.mubr.bf16.mxu0 %v915
  %1576 = vmatmul.mubr.bf16.gmra.mxu0 %v914
  %v1577 = vpop.f32.mrf.mxu0
  %v1578 = vadd.f32 0.0, %v1577
  %v1579 = vpop.f32.mrf.mxu0
  %v1580 = vpop.f32.mrf.mxu0
  %v1581 = vadd.f32 0.0, %v1580
  %v1582 = vpop.f32.mrf.mxu0
  %1583 = vmatprep.mubr.bf16.mxu0 %v920
  %1584 = vmatmul.mubr.bf16.gmra.mxu0 %v919
  %v1585 = vpop.f32.mrf.mxu0
  %v1586 = vadd.f32 0.0, %v1585
  %v1587 = vpop.f32.mrf.mxu0
  %v1588 = vpop.f32.mrf.mxu0
  %v1589 = vadd.f32 0.0, %v1588
  %v1590 = vpop.f32.mrf.mxu0
  %1591 = vmatprep.mubr.bf16.mxu0 %v925
  %1592 = vmatmul.mubr.bf16.gmra.mxu0 %v924
  %v1593 = vpop.f32.mrf.mxu0
  %v1594 = vadd.f32 0.0, %v1593
  %v1595 = vpop.f32.mrf.mxu0
  %v1596 = vpop.f32.mrf.mxu0
  %v1597 = vadd.f32 0.0, %v1596
  %v1598 = vpop.f32.mrf.mxu0
  %1599 = vmatprep.mubr.bf16.mxu0 %v930
  %1600 = vmatmul.mubr.bf16.gmra.mxu0 %v929
  %v1601 = vpop.f32.mrf.mxu0
  %v1602 = vadd.f32 0.0, %v1601
  %v1603 = vpop.f32.mrf.mxu0
  %v1604 = vpop.f32.mrf.mxu0
  %v1605 = vadd.f32 0.0, %v1604
  %v1606 = vpop.f32.mrf.mxu0
  %1607 = vmatprep.mubr.bf16.mxu0 %v935
  %1608 = vmatmul.mubr.bf16.gmra.mxu0 %v934
  %v1609 = vpop.f32.mrf.mxu0
  %v1610 = vadd.f32 0.0, %v1609
  %v1611 = vpop.f32.mrf.mxu0
  %v1612 = vpop.f32.mrf.mxu0
  %v1613 = vadd.f32 0.0, %v1612
  %v1614 = vpop.f32.mrf.mxu0
  %1615 = vmatprep.mubr.bf16.mxu0 %v940
  %1616 = vmatmul.mubr.bf16.gmra.mxu0 %v939
  %v1617 = vpop.f32.mrf.mxu0
  %v1618 = vadd.f32 0.0, %v1617
  %v1619 = vpop.f32.mrf.mxu0
  %v1620 = vpop.f32.mrf.mxu0
  %v1621 = vadd.f32 0.0, %v1620
  %v1622 = vpop.f32.mrf.mxu0
  %1623 = vmatprep.mubr.bf16.mxu0 %v945
  %1624 = vmatmul.mubr.bf16.gmra.mxu0 %v944
  %v1625 = vpop.f32.mrf.mxu0
  %v1626 = vadd.f32 0.0, %v1625
  %v1627 = vpop.f32.mrf.mxu0
  %v1628 = vpop.f32.mrf.mxu0
  %v1629 = vadd.f32 0.0, %v1628
  %v1630 = vpop.f32.mrf.mxu0
  %1631 = vmatprep.mubr.bf16.mxu0 %v950
  %1632 = vmatmul.mubr.bf16.gmra.mxu0 %v949
  %v1633 = vpop.f32.mrf.mxu0
  %v1634 = vadd.f32 0.0, %v1633
  %v1635 = vpop.f32.mrf.mxu0
  %v1636 = vpop.f32.mrf.mxu0
  %v1637 = vadd.f32 0.0, %v1636
  %v1638 = vpop.f32.mrf.mxu0
  %1639 = vmatprep.mubr.bf16.mxu0 %v955
  %1640 = vmatmul.mubr.bf16.gmra.mxu0 %v954
  %v1641 = vpop.f32.mrf.mxu0
  %v1642 = vadd.f32 0.0, %v1641
  %v1643 = vpop.f32.mrf.mxu0
  %v1644 = vpop.f32.mrf.mxu0
  %v1645 = vadd.f32 0.0, %v1644
  %v1646 = vpop.f32.mrf.mxu0
  %1647 = vdwg.mxu0
  %1648 = vmatprep.subr.bf16.mxu0 0
  %1649 = vmatpush1.bf16.msra.mxu0 %v1302
  %1650 = vmatprep.subr.bf16.mxu0 0
  %1651 = vmatpush1.bf16.msra.mxu0 %v1301
  %1652 = vmatprep.subr.bf16.mxu0 0
  %1653 = vmatpush1.bf16.msra.mxu0 %v1300
  %1654 = vmatprep.subr.bf16.mxu0 0
  %1655 = vmatpush1.bf16.msra.mxu0 %v1299
  %1656 = vmatprep.subr.bf16.mxu0 0
  %1657 = vmatpush1.bf16.msra.mxu0 %v1298
  %1658 = vmatprep.subr.bf16.mxu0 0
  %1659 = vmatpush1.bf16.msra.mxu0 %v1297
  %1660 = vmatprep.subr.bf16.mxu0 0
  %1661 = vmatpush1.bf16.msra.mxu0 %v1296
  %1662 = vmatprep.subr.bf16.mxu0 0
  %1663 = vmatpush1.bf16.msra.mxu0 %v1295
  %1664 = vmatprep.subr.bf16.mxu0 0
  %1665 = vmatpush2.bf16.msra.mxu0 %v1310
  %1666 = vmatprep.subr.bf16.mxu0 0
  %1667 = vmatpush2.bf16.msra.mxu0 %v1309
  %1668 = vmatprep.subr.bf16.mxu0 0
  %1669 = vmatpush2.bf16.msra.mxu0 %v1308
  %1670 = vmatprep.subr.bf16.mxu0 0
  %1671 = vmatpush2.bf16.msra.mxu0 %v1307
  %1672 = vmatprep.subr.bf16.mxu0 0
  %1673 = vmatpush2.bf16.msra.mxu0 %v1306
  %1674 = vmatprep.subr.bf16.mxu0 0
  %1675 = vmatpush2.bf16.msra.mxu0 %v1305
  %1676 = vmatprep.subr.bf16.mxu0 0
  %1677 = vmatpush2.bf16.msra.mxu0 %v1304
  %1678 = vmatprep.subr.bf16.mxu0 0
  %1679 = vmatpush2.bf16.msra.mxu0 %v1303
  %1680 = vmatprep.mubr.bf16.mxu0 %v802
  %1681 = vmatmul.mubr.bf16.gmra.mxu0 %v801
  %v1682 = vpop.f32.mrf.mxu0
  %v1683 = vadd.f32 %v1394, %v1682
  %v1684 = vpop.f32.mrf.mxu0
  %v1685 = vpop.f32.mrf.mxu0
  %v1686 = vadd.f32 %v1397, %v1685
  %v1687 = vpop.f32.mrf.mxu0
  %1688 = vmatprep.mubr.bf16.mxu0 %v807
  %1689 = vmatmul.mubr.bf16.gmra.mxu0 %v806
  %v1690 = vpop.f32.mrf.mxu0
  %v1691 = vadd.f32 %v1402, %v1690
  %v1692 = vpop.f32.mrf.mxu0
  %v1693 = vpop.f32.mrf.mxu0
  %v1694 = vadd.f32 %v1405, %v1693
  %v1695 = vpop.f32.mrf.mxu0
  %1696 = vmatprep.mubr.bf16.mxu0 %v812
  %1697 = vmatmul.mubr.bf16.gmra.mxu0 %v811
  %v1698 = vpop.f32.mrf.mxu0
  %v1699 = vadd.f32 %v1410, %v1698
  %v1700 = vpop.f32.mrf.mxu0
  %v1701 = vpop.f32.mrf.mxu0
  %v1702 = vadd.f32 %v1413, %v1701
  %v1703 = vpop.f32.mrf.mxu0
  %1704 = vmatprep.mubr.bf16.mxu0 %v817
  %1705 = vmatmul.mubr.bf16.gmra.mxu0 %v816
  %v1706 = vpop.f32.mrf.mxu0
  %v1707 = vadd.f32 %v1418, %v1706
  %v1708 = vpop.f32.mrf.mxu0
  %v1709 = vpop.f32.mrf.mxu0
  %v1710 = vadd.f32 %v1421, %v1709
  %v1711 = vpop.f32.mrf.mxu0
  %1712 = vmatprep.mubr.bf16.mxu0 %v822
  %1713 = vmatmul.mubr.bf16.gmra.mxu0 %v821
  %v1714 = vpop.f32.mrf.mxu0
  %v1715 = vadd.f32 %v1426, %v1714
  %v1716 = vpop.f32.mrf.mxu0
  %v1717 = vpop.f32.mrf.mxu0
  %v1718 = vadd.f32 %v1429, %v1717
  %v1719 = vpop.f32.mrf.mxu0
  %1720 = vmatprep.mubr.bf16.mxu0 %v827
  %1721 = vmatmul.mubr.bf16.gmra.mxu0 %v826
  %v1722 = vpop.f32.mrf.mxu0
  %v1723 = vadd.f32 %v1434, %v1722
  %v1724 = vpop.f32.mrf.mxu0
  %v1725 = vpop.f32.mrf.mxu0
  %v1726 = vadd.f32 %v1437, %v1725
  %v1727 = vpop.f32.mrf.mxu0
  %1728 = vmatprep.mubr.bf16.mxu0 %v832
  %1729 = vmatmul.mubr.bf16.gmra.mxu0 %v831
  %v1730 = vpop.f32.mrf.mxu0
  %v1731 = vadd.f32 %v1442, %v1730
  %v1732 = vpop.f32.mrf.mxu0
  %v1733 = vpop.f32.mrf.mxu0
  %v1734 = vadd.f32 %v1445, %v1733
  %v1735 = vpop.f32.mrf.mxu0
  %1736 = vmatprep.mubr.bf16.mxu0 %v837
  %1737 = vmatmul.mubr.bf16.gmra.mxu0 %v836
  %v1738 = vpop.f32.mrf.mxu0
  %v1739 = vadd.f32 %v1450, %v1738
  %v1740 = vpop.f32.mrf.mxu0
  %v1741 = vpop.f32.mrf.mxu0
  %v1742 = vadd.f32 %v1453, %v1741
  %v1743 = vpop.f32.mrf.mxu0
  %1744 = vmatprep.mubr.bf16.mxu0 %v842
  %1745 = vmatmul.mubr.bf16.gmra.mxu0 %v841
  %v1746 = vpop.f32.mrf.mxu0
  %v1747 = vadd.f32 %v1458, %v1746
  %v1748 = vpop.f32.mrf.mxu0
  %v1749 = vpop.f32.mrf.mxu0
  %v1750 = vadd.f32 %v1461, %v1749
  %v1751 = vpop.f32.mrf.mxu0
  %1752 = vmatprep.mubr.bf16.mxu0 %v847
  %1753 = vmatmul.mubr.bf16.gmra.mxu0 %v846
  %v1754 = vpop.f32.mrf.mxu0
  %v1755 = vadd.f32 %v1466, %v1754
  %v1756 = vpop.f32.mrf.mxu0
  %v1757 = vpop.f32.mrf.mxu0
  %v1758 = vadd.f32 %v1469, %v1757
  %v1759 = vpop.f32.mrf.mxu0
  %1760 = vmatprep.mubr.bf16.mxu0 %v852
  %1761 = vmatmul.mubr.bf16.gmra.mxu0 %v851
  %v1762 = vpop.f32.mrf.mxu0
  %v1763 = vadd.f32 %v1474, %v1762
  %v1764 = vpop.f32.mrf.mxu0
  %v1765 = vpop.f32.mrf.mxu0
  %v1766 = vadd.f32 %v1477, %v1765
  %v1767 = vpop.f32.mrf.mxu0
  %1768 = vmatprep.mubr.bf16.mxu0 %v857
  %1769 = vmatmul.mubr.bf16.gmra.mxu0 %v856
  %v1770 = vpop.f32.mrf.mxu0
  %v1771 = vadd.f32 %v1482, %v1770
  %v1772 = vpop.f32.mrf.mxu0
  %v1773 = vpop.f32.mrf.mxu0
  %v1774 = vadd.f32 %v1485, %v1773
  %v1775 = vpop.f32.mrf.mxu0
  %1776 = vmatprep.mubr.bf16.mxu0 %v862
  %1777 = vmatmul.mubr.bf16.gmra.mxu0 %v861
  %v1778 = vpop.f32.mrf.mxu0
  %v1779 = vadd.f32 %v1490, %v1778
  %v1780 = vpop.f32.mrf.mxu0
  %v1781 = vpop.f32.mrf.mxu0
  %v1782 = vadd.f32 %v1493, %v1781
  %v1783 = vpop.f32.mrf.mxu0
  %1784 = vmatprep.mubr.bf16.mxu0 %v867
  %1785 = vmatmul.mubr.bf16.gmra.mxu0 %v866
  %v1786 = vpop.f32.mrf.mxu0
  %v1787 = vadd.f32 %v1498, %v1786
  %v1788 = vpop.f32.mrf.mxu0
  %v1789 = vpop.f32.mrf.mxu0
  %v1790 = vadd.f32 %v1501, %v1789
  %v1791 = vpop.f32.mrf.mxu0
  %1792 = vmatprep.mubr.bf16.mxu0 %v872
  %1793 = vmatmul.mubr.bf16.gmra.mxu0 %v871
  %v1794 = vpop.f32.mrf.mxu0
  %v1795 = vadd.f32 %v1506, %v1794
  %v1796 = vpop.f32.mrf.mxu0
  %v1797 = vpop.f32.mrf.mxu0
  %v1798 = vadd.f32 %v1509, %v1797
  %v1799 = vpop.f32.mrf.mxu0
  %1800 = vmatprep.mubr.bf16.mxu0 %v877
  %1801 = vmatmul.mubr.bf16.gmra.mxu0 %v876
  %v1802 = vpop.f32.mrf.mxu0
  %v1803 = vadd.f32 %v1514, %v1802
  %v1804 = vpop.f32.mrf.mxu0
  %v1805 = vpop.f32.mrf.mxu0
  %v1806 = vadd.f32 %v1517, %v1805
  %v1807 = vpop.f32.mrf.mxu0
  %1808 = vmatprep.mubr.bf16.mxu0 %v882
  %1809 = vmatmul.mubr.bf16.gmra.mxu0 %v881
  %v1810 = vpop.f32.mrf.mxu0
  %v1811 = vadd.f32 %v1522, %v1810
  %v1812 = vpop.f32.mrf.mxu0
  %v1813 = vpop.f32.mrf.mxu0
  %v1814 = vadd.f32 %v1525, %v1813
  %v1815 = vpop.f32.mrf.mxu0
  %1816 = vmatprep.mubr.bf16.mxu0 %v887
  %1817 = vmatmul.mubr.bf16.gmra.mxu0 %v886
  %v1818 = vpop.f32.mrf.mxu0
  %v1819 = vadd.f32 %v1530, %v1818
  %v1820 = vpop.f32.mrf.mxu0
  %v1821 = vpop.f32.mrf.mxu0
  %v1822 = vadd.f32 %v1533, %v1821
  %v1823 = vpop.f32.mrf.mxu0
  %1824 = vmatprep.mubr.bf16.mxu0 %v892
  %1825 = vmatmul.mubr.bf16.gmra.mxu0 %v891
  %v1826 = vpop.f32.mrf.mxu0
  %v1827 = vadd.f32 %v1538, %v1826
  %v1828 = vpop.f32.mrf.mxu0
  %v1829 = vpop.f32.mrf.mxu0
  %v1830 = vadd.f32 %v1541, %v1829
  %v1831 = vpop.f32.mrf.mxu0
  %1832 = vmatprep.mubr.bf16.mxu0 %v897
  %1833 = vmatmul.mubr.bf16.gmra.mxu0 %v896
  %v1834 = vpop.f32.mrf.mxu0
  %v1835 = vadd.f32 %v1546, %v1834
  %v1836 = vpop.f32.mrf.mxu0
  %v1837 = vpop.f32.mrf.mxu0
  %v1838 = vadd.f32 %v1549, %v1837
  %v1839 = vpop.f32.mrf.mxu0
  %1840 = vmatprep.mubr.bf16.mxu0 %v902
  %1841 = vmatmul.mubr.bf16.gmra.mxu0 %v901
  %v1842 = vpop.f32.mrf.mxu0
  %v1843 = vadd.f32 %v1554, %v1842
  %v1844 = vpop.f32.mrf.mxu0
  %v1845 = vpop.f32.mrf.mxu0
  %v1846 = vadd.f32 %v1557, %v1845
  %v1847 = vpop.f32.mrf.mxu0
  %1848 = vmatprep.mubr.bf16.mxu0 %v907
  %1849 = vmatmul.mubr.bf16.gmra.mxu0 %v906
  %v1850 = vpop.f32.mrf.mxu0
  %v1851 = vadd.f32 %v1562, %v1850
  %v1852 = vpop.f32.mrf.mxu0
  %v1853 = vpop.f32.mrf.mxu0
  %v1854 = vadd.f32 %v1565, %v1853
  %v1855 = vpop.f32.mrf.mxu0
  %1856 = vmatprep.mubr.bf16.mxu0 %v912
  %1857 = vmatmul.mubr.bf16.gmra.mxu0 %v911
  %v1858 = vpop.f32.mrf.mxu0
  %v1859 = vadd.f32 %v1570, %v1858
  %v1860 = vpop.f32.mrf.mxu0
  %v1861 = vpop.f32.mrf.mxu0
  %v1862 = vadd.f32 %v1573, %v1861
  %v1863 = vpop.f32.mrf.mxu0
  %1864 = vmatprep.mubr.bf16.mxu0 %v917
  %1865 = vmatmul.mubr.bf16.gmra.mxu0 %v916
  %v1866 = vpop.f32.mrf.mxu0
  %v1867 = vadd.f32 %v1578, %v1866
  %v1868 = vpop.f32.mrf.mxu0
  %v1869 = vpop.f32.mrf.mxu0
  %v1870 = vadd.f32 %v1581, %v1869
  %v1871 = vpop.f32.mrf.mxu0
  %1872 = vmatprep.mubr.bf16.mxu0 %v922
  %1873 = vmatmul.mubr.bf16.gmra.mxu0 %v921
  %v1874 = vpop.f32.mrf.mxu0
  %v1875 = vadd.f32 %v1586, %v1874
  %v1876 = vpop.f32.mrf.mxu0
  %v1877 = vpop.f32.mrf.mxu0
  %v1878 = vadd.f32 %v1589, %v1877
  %v1879 = vpop.f32.mrf.mxu0
  %1880 = vmatprep.mubr.bf16.mxu0 %v927
  %1881 = vmatmul.mubr.bf16.gmra.mxu0 %v926
  %v1882 = vpop.f32.mrf.mxu0
  %v1883 = vadd.f32 %v1594, %v1882
  %v1884 = vpop.f32.mrf.mxu0
  %v1885 = vpop.f32.mrf.mxu0
  %v1886 = vadd.f32 %v1597, %v1885
  %v1887 = vpop.f32.mrf.mxu0
  %1888 = vmatprep.mubr.bf16.mxu0 %v932
  %1889 = vmatmul.mubr.bf16.gmra.mxu0 %v931
  %v1890 = vpop.f32.mrf.mxu0
  %v1891 = vadd.f32 %v1602, %v1890
  %v1892 = vpop.f32.mrf.mxu0
  %v1893 = vpop.f32.mrf.mxu0
  %v1894 = vadd.f32 %v1605, %v1893
  %v1895 = vpop.f32.mrf.mxu0
  %1896 = vmatprep.mubr.bf16.mxu0 %v937
  %1897 = vmatmul.mubr.bf16.gmra.mxu0 %v936
  %v1898 = vpop.f32.mrf.mxu0
  %v1899 = vadd.f32 %v1610, %v1898
  %v1900 = vpop.f32.mrf.mxu0
  %v1901 = vpop.f32.mrf.mxu0
  %v1902 = vadd.f32 %v1613, %v1901
  %v1903 = vpop.f32.mrf.mxu0
  %1904 = vmatprep.mubr.bf16.mxu0 %v942
  %1905 = vmatmul.mubr.bf16.gmra.mxu0 %v941
  %v1906 = vpop.f32.mrf.mxu0
  %v1907 = vadd.f32 %v1618, %v1906
  %v1908 = vpop.f32.mrf.mxu0
  %v1909 = vpop.f32.mrf.mxu0
  %v1910 = vadd.f32 %v1621, %v1909
  %v1911 = vpop.f32.mrf.mxu0
  %1912 = vmatprep.mubr.bf16.mxu0 %v947
  %1913 = vmatmul.mubr.bf16.gmra.mxu0 %v946
  %v1914 = vpop.f32.mrf.mxu0
  %v1915 = vadd.f32 %v1626, %v1914
  %v1916 = vpop.f32.mrf.mxu0
  %v1917 = vpop.f32.mrf.mxu0
  %v1918 = vadd.f32 %v1629, %v1917
  %v1919 = vpop.f32.mrf.mxu0
  %1920 = vmatprep.mubr.bf16.mxu0 %v952
  %1921 = vmatmul.mubr.bf16.gmra.mxu0 %v951
  %v1922 = vpop.f32.mrf.mxu0
  %v1923 = vadd.f32 %v1634, %v1922
  %v1924 = vpop.f32.mrf.mxu0
  %v1925 = vpop.f32.mrf.mxu0
  %v1926 = vadd.f32 %v1637, %v1925
  %v1927 = vpop.f32.mrf.mxu0
  %1928 = vmatprep.mubr.bf16.mxu0 %v957
  %1929 = vmatmul.mubr.bf16.gmra.mxu0 %v956
  %v1930 = vpop.f32.mrf.mxu0
  %v1931 = vadd.f32 %v1642, %v1930
  %v1932 = vpop.f32.mrf.mxu0
  %v1933 = vpop.f32.mrf.mxu0
  %v1934 = vadd.f32 %v1645, %v1933
  %v1935 = vpop.f32.mrf.mxu0
  %1936 = vdwg.mxu0
  %1937 = vmatprep.subr.bf16.mxu0 0
  %1938 = vmatpush1.bf16.msra.mxu0 %v1318
  %1939 = vmatprep.subr.bf16.mxu0 0
  %1940 = vmatpush1.bf16.msra.mxu0 %v1317
  %1941 = vmatprep.subr.bf16.mxu0 0
  %1942 = vmatpush1.bf16.msra.mxu0 %v1316
  %1943 = vmatprep.subr.bf16.mxu0 0
  %1944 = vmatpush1.bf16.msra.mxu0 %v1315
  %1945 = vmatprep.subr.bf16.mxu0 0
  %1946 = vmatpush1.bf16.msra.mxu0 %v1314
  %1947 = vmatprep.subr.bf16.mxu0 0
  %1948 = vmatpush1.bf16.msra.mxu0 %v1313
  %1949 = vmatprep.subr.bf16.mxu0 0
  %1950 = vmatpush1.bf16.msra.mxu0 %v1312
  %1951 = vmatprep.subr.bf16.mxu0 0
  %1952 = vmatpush1.bf16.msra.mxu0 %v1311
  %1953 = vmatprep.subr.bf16.mxu0 0
  %1954 = vmatpush2.bf16.msra.mxu0 0
  %1955 = vmatprep.subr.bf16.mxu0 0
  %1956 = vmatpush2.bf16.msra.mxu0 0
  %1957 = vmatprep.subr.bf16.mxu0 0
  %1958 = vmatpush2.bf16.msra.mxu0 0
  %1959 = vmatprep.subr.bf16.mxu0 0
  %1960 = vmatpush2.bf16.msra.mxu0 0
  %1961 = vmatprep.subr.bf16.mxu0 0
  %1962 = vmatpush2.bf16.msra.mxu0 0
  %1963 = vmatprep.subr.bf16.mxu0 0
  %1964 = vmatpush2.bf16.msra.mxu0 0
  %1965 = vmatprep.subr.bf16.mxu0 0
  %1966 = vmatpush2.bf16.msra.mxu0 0
  %1967 = vmatprep.subr.bf16.mxu0 0
  %1968 = vmatpush2.bf16.msra.mxu0 0
  %1969 = vmatprep.mubr.bf16.mxu0 0
  %1970 = vmatmul.mubr.bf16.gmra.mxu0 %v803
  %v1971 = vpop.f32.mrf.mxu0
  %v1972 = vadd.f32 %v1683, %v1971
  %v1973 = vpop.f32.mrf.mxu0
  %v1974 = vpop.f32.mrf.mxu0
  %v1975 = vadd.f32 %v1686, %v1974
  %v1976 = vpop.f32.mrf.mxu0
  %1977 = vmatprep.mubr.bf16.mxu0 0
  %1978 = vmatmul.mubr.bf16.gmra.mxu0 %v808
  %v1979 = vpop.f32.mrf.mxu0
  %v1980 = vadd.f32 %v1691, %v1979
  %v1981 = vpop.f32.mrf.mxu0
  %v1982 = vpop.f32.mrf.mxu0
  %v1983 = vadd.f32 %v1694, %v1982
  %v1984 = vpop.f32.mrf.mxu0
  %1985 = vmatprep.mubr.bf16.mxu0 0
  %1986 = vmatmul.mubr.bf16.gmra.mxu0 %v813
  %v1987 = vpop.f32.mrf.mxu0
  %v1988 = vadd.f32 %v1699, %v1987
  %v1989 = vpop.f32.mrf.mxu0
  %v1990 = vpop.f32.mrf.mxu0
  %v1991 = vadd.f32 %v1702, %v1990
  %v1992 = vpop.f32.mrf.mxu0
  %1993 = vmatprep.mubr.bf16.mxu0 0
  %1994 = vmatmul.mubr.bf16.gmra.mxu0 %v818
  %v1995 = vpop.f32.mrf.mxu0
  %v1996 = vadd.f32 %v1707, %v1995
  %v1997 = vpop.f32.mrf.mxu0
  %v1998 = vpop.f32.mrf.mxu0
  %v1999 = vadd.f32 %v1710, %v1998
  %v2000 = vpop.f32.mrf.mxu0
  %2001 = vmatprep.mubr.bf16.mxu0 0
  %2002 = vmatmul.mubr.bf16.gmra.mxu0 %v823
  %v2003 = vpop.f32.mrf.mxu0
  %v2004 = vadd.f32 %v1715, %v2003
  %v2005 = vpop.f32.mrf.mxu0
  %v2006 = vpop.f32.mrf.mxu0
  %v2007 = vadd.f32 %v1718, %v2006
  %v2008 = vpop.f32.mrf.mxu0
  %2009 = vmatprep.mubr.bf16.mxu0 0
  %2010 = vmatmul.mubr.bf16.gmra.mxu0 %v828
  %v2011 = vpop.f32.mrf.mxu0
  %v2012 = vadd.f32 %v1723, %v2011
  %v2013 = vpop.f32.mrf.mxu0
  %v2014 = vpop.f32.mrf.mxu0
  %v2015 = vadd.f32 %v1726, %v2014
  %v2016 = vpop.f32.mrf.mxu0
  %2017 = vmatprep.mubr.bf16.mxu0 0
  %2018 = vmatmul.mubr.bf16.gmra.mxu0 %v833
  %v2019 = vpop.f32.mrf.mxu0
  %v2020 = vadd.f32 %v1731, %v2019
  %v2021 = vpop.f32.mrf.mxu0
  %v2022 = vpop.f32.mrf.mxu0
  %v2023 = vadd.f32 %v1734, %v2022
  %v2024 = vpop.f32.mrf.mxu0
  %2025 = vmatprep.mubr.bf16.mxu0 0
  %2026 = vmatmul.mubr.bf16.gmra.mxu0 %v838
  %v2027 = vpop.f32.mrf.mxu0
  %v2028 = vadd.f32 %v1739, %v2027
  %v2029 = vpop.f32.mrf.mxu0
  %v2030 = vpop.f32.mrf.mxu0
  %v2031 = vadd.f32 %v1742, %v2030
  %v2032 = vpop.f32.mrf.mxu0
  %2033 = vmatprep.mubr.bf16.mxu0 0
  %2034 = vmatmul.mubr.bf16.gmra.mxu0 %v843
  %v2035 = vpop.f32.mrf.mxu0
  %v2036 = vadd.f32 %v1747, %v2035
  %v2037 = vpop.f32.mrf.mxu0
  %v2038 = vpop.f32.mrf.mxu0
  %v2039 = vadd.f32 %v1750, %v2038
  %v2040 = vpop.f32.mrf.mxu0
  %2041 = vmatprep.mubr.bf16.mxu0 0
  %2042 = vmatmul.mubr.bf16.gmra.mxu0 %v848
  %v2043 = vpop.f32.mrf.mxu0
  %v2044 = vadd.f32 %v1755, %v2043
  %v2045 = vpop.f32.mrf.mxu0
  %v2046 = vpop.f32.mrf.mxu0
  %v2047 = vadd.f32 %v1758, %v2046
  %v2048 = vpop.f32.mrf.mxu0
  %2049 = vmatprep.mubr.bf16.mxu0 0
  %2050 = vmatmul.mubr.bf16.gmra.mxu0 %v853
  %v2051 = vpop.f32.mrf.mxu0
  %v2052 = vadd.f32 %v1763, %v2051
  %v2053 = vpop.f32.mrf.mxu0
  %v2054 = vpop.f32.mrf.mxu0
  %v2055 = vadd.f32 %v1766, %v2054
  %v2056 = vpop.f32.mrf.mxu0
  %2057 = vmatprep.mubr.bf16.mxu0 0
  %2058 = vmatmul.mubr.bf16.gmra.mxu0 %v858
  %v2059 = vpop.f32.mrf.mxu0
  %v2060 = vadd.f32 %v1771, %v2059
  %v2061 = vpop.f32.mrf.mxu0
  %v2062 = vpop.f32.mrf.mxu0
  %v2063 = vadd.f32 %v1774, %v2062
  %v2064 = vpop.f32.mrf.mxu0
  %2065 = vmatprep.mubr.bf16.mxu0 0
  %2066 = vmatmul.mubr.bf16.gmra.mxu0 %v863
  %v2067 = vpop.f32.mrf.mxu0
  %v2068 = vadd.f32 %v1779, %v2067
  %v2069 = vpop.f32.mrf.mxu0
  %v2070 = vpop.f32.mrf.mxu0
  %v2071 = vadd.f32 %v1782, %v2070
  %v2072 = vpop.f32.mrf.mxu0
  %2073 = vmatprep.mubr.bf16.mxu0 0
  %2074 = vmatmul.mubr.bf16.gmra.mxu0 %v868
  %v2075 = vpop.f32.mrf.mxu0
  %v2076 = vadd.f32 %v1787, %v2075
  %v2077 = vpop.f32.mrf.mxu0
  %v2078 = vpop.f32.mrf.mxu0
  %v2079 = vadd.f32 %v1790, %v2078
  %v2080 = vpop.f32.mrf.mxu0
  %2081 = vmatprep.mubr.bf16.mxu0 0
  %2082 = vmatmul.mubr.bf16.gmra.mxu0 %v873
  %v2083 = vpop.f32.mrf.mxu0
  %v2084 = vadd.f32 %v1795, %v2083
  %v2085 = vpop.f32.mrf.mxu0
  %v2086 = vpop.f32.mrf.mxu0
  %v2087 = vadd.f32 %v1798, %v2086
  %v2088 = vpop.f32.mrf.mxu0
  %2089 = vmatprep.mubr.bf16.mxu0 0
  %2090 = vmatmul.mubr.bf16.gmra.mxu0 %v878
  %v2091 = vpop.f32.mrf.mxu0
  %v2092 = vadd.f32 %v1803, %v2091
  %v2093 = vpop.f32.mrf.mxu0
  %v2094 = vpop.f32.mrf.mxu0
  %v2095 = vadd.f32 %v1806, %v2094
  %v2096 = vpop.f32.mrf.mxu0
  %2097 = vmatprep.mubr.bf16.mxu0 0
  %2098 = vmatmul.mubr.bf16.gmra.mxu0 %v883
  %v2099 = vpop.f32.mrf.mxu0
  %v2100 = vadd.f32 %v1811, %v2099
  %v2101 = vpop.f32.mrf.mxu0
  %v2102 = vpop.f32.mrf.mxu0
  %v2103 = vadd.f32 %v1814, %v2102
  %v2104 = vpop.f32.mrf.mxu0
  %2105 = vmatprep.mubr.bf16.mxu0 0
  %2106 = vmatmul.mubr.bf16.gmra.mxu0 %v888
  %v2107 = vpop.f32.mrf.mxu0
  %v2108 = vadd.f32 %v1819, %v2107
  %v2109 = vpop.f32.mrf.mxu0
  %v2110 = vpop.f32.mrf.mxu0
  %v2111 = vadd.f32 %v1822, %v2110
  %v2112 = vpop.f32.mrf.mxu0
  %2113 = vmatprep.mubr.bf16.mxu0 0
  %2114 = vmatmul.mubr.bf16.gmra.mxu0 %v893
  %v2115 = vpop.f32.mrf.mxu0
  %v2116 = vadd.f32 %v1827, %v2115
  %v2117 = vpop.f32.mrf.mxu0
  %v2118 = vpop.f32.mrf.mxu0
  %v2119 = vadd.f32 %v1830, %v2118
  %v2120 = vpop.f32.mrf.mxu0
  %2121 = vmatprep.mubr.bf16.mxu0 0
  %2122 = vmatmul.mubr.bf16.gmra.mxu0 %v898
  %v2123 = vpop.f32.mrf.mxu0
  %v2124 = vadd.f32 %v1835, %v2123
  %v2125 = vpop.f32.mrf.mxu0
  %v2126 = vpop.f32.mrf.mxu0
  %v2127 = vadd.f32 %v1838, %v2126
  %v2128 = vpop.f32.mrf.mxu0
  %2129 = vmatprep.mubr.bf16.mxu0 0
  %2130 = vmatmul.mubr.bf16.gmra.mxu0 %v903
  %v2131 = vpop.f32.mrf.mxu0
  %v2132 = vadd.f32 %v1843, %v2131
  %v2133 = vpop.f32.mrf.mxu0
  %v2134 = vpop.f32.mrf.mxu0
  %v2135 = vadd.f32 %v1846, %v2134
  %v2136 = vpop.f32.mrf.mxu0
  %2137 = vmatprep.mubr.bf16.mxu0 0
  %2138 = vmatmul.mubr.bf16.gmra.mxu0 %v908
  %v2139 = vpop.f32.mrf.mxu0
  %v2140 = vadd.f32 %v1851, %v2139
  %v2141 = vpop.f32.mrf.mxu0
  %v2142 = vpop.f32.mrf.mxu0
  %v2143 = vadd.f32 %v1854, %v2142
  %v2144 = vpop.f32.mrf.mxu0
  %2145 = vmatprep.mubr.bf16.mxu0 0
  %2146 = vmatmul.mubr.bf16.gmra.mxu0 %v913
  %v2147 = vpop.f32.mrf.mxu0
  %v2148 = vadd.f32 %v1859, %v2147
  %v2149 = vpop.f32.mrf.mxu0
  %v2150 = vpop.f32.mrf.mxu0
  %v2151 = vadd.f32 %v1862, %v2150
  %v2152 = vpop.f32.mrf.mxu0
  %2153 = vmatprep.mubr.bf16.mxu0 0
  %2154 = vmatmul.mubr.bf16.gmra.mxu0 %v918
  %v2155 = vpop.f32.mrf.mxu0
  %v2156 = vadd.f32 %v1867, %v2155
  %v2157 = vpop.f32.mrf.mxu0
  %v2158 = vpop.f32.mrf.mxu0
  %v2159 = vadd.f32 %v1870, %v2158
  %v2160 = vpop.f32.mrf.mxu0
  %2161 = vmatprep.mubr.bf16.mxu0 0
  %2162 = vmatmul.mubr.bf16.gmra.mxu0 %v923
  %v2163 = vpop.f32.mrf.mxu0
  %v2164 = vadd.f32 %v1875, %v2163
  %v2165 = vpop.f32.mrf.mxu0
  %v2166 = vpop.f32.mrf.mxu0
  %v2167 = vadd.f32 %v1878, %v2166
  %v2168 = vpop.f32.mrf.mxu0
  %2169 = vmatprep.mubr.bf16.mxu0 0
  %2170 = vmatmul.mubr.bf16.gmra.mxu0 %v928
  %v2171 = vpop.f32.mrf.mxu0
  %v2172 = vadd.f32 %v1883, %v2171
  %v2173 = vpop.f32.mrf.mxu0
  %v2174 = vpop.f32.mrf.mxu0
  %v2175 = vadd.f32 %v1886, %v2174
  %v2176 = vpop.f32.mrf.mxu0
  %2177 = vmatprep.mubr.bf16.mxu0 0
  %2178 = vmatmul.mubr.bf16.gmra.mxu0 %v933
  %v2179 = vpop.f32.mrf.mxu0
  %v2180 = vadd.f32 %v1891, %v2179
  %v2181 = vpop.f32.mrf.mxu0
  %v2182 = vpop.f32.mrf.mxu0
  %v2183 = vadd.f32 %v1894, %v2182
  %v2184 = vpop.f32.mrf.mxu0
  %2185 = vmatprep.mubr.bf16.mxu0 0
  %2186 = vmatmul.mubr.bf16.gmra.mxu0 %v938
  %v2187 = vpop.f32.mrf.mxu0
  %v2188 = vadd.f32 %v1899, %v2187
  %v2189 = vpop.f32.mrf.mxu0
  %v2190 = vpop.f32.mrf.mxu0
  %v2191 = vadd.f32 %v1902, %v2190
  %v2192 = vpop.f32.mrf.mxu0
  %2193 = vmatprep.mubr.bf16.mxu0 0
  %2194 = vmatmul.mubr.bf16.gmra.mxu0 %v943
  %v2195 = vpop.f32.mrf.mxu0
  %v2196 = vadd.f32 %v1907, %v2195
  %v2197 = vpop.f32.mrf.mxu0
  %v2198 = vpop.f32.mrf.mxu0
  %v2199 = vadd.f32 %v1910, %v2198
  %v2200 = vpop.f32.mrf.mxu0
  %2201 = vmatprep.mubr.bf16.mxu0 0
  %2202 = vmatmul.mubr.bf16.gmra.mxu0 %v948
  %v2203 = vpop.f32.mrf.mxu0
  %v2204 = vadd.f32 %v1915, %v2203
  %v2205 = vpop.f32.mrf.mxu0
  %v2206 = vpop.f32.mrf.mxu0
  %v2207 = vadd.f32 %v1918, %v2206
  %v2208 = vpop.f32.mrf.mxu0
  %2209 = vmatprep.mubr.bf16.mxu0 0
  %2210 = vmatmul.mubr.bf16.gmra.mxu0 %v953
  %v2211 = vpop.f32.mrf.mxu0
  %v2212 = vadd.f32 %v1923, %v2211
  %v2213 = vpop.f32.mrf.mxu0
  %v2214 = vpop.f32.mrf.mxu0
  %v2215 = vadd.f32 %v1926, %v2214
  %v2216 = vpop.f32.mrf.mxu0
  %2217 = vmatprep.mubr.bf16.mxu0 0
  %2218 = vmatmul.mubr.bf16.gmra.mxu0 %v958
  %v2219 = vpop.f32.mrf.mxu0
  %v2220 = vadd.f32 %v1931, %v2219
  %v2221 = vpop.f32.mrf.mxu0
  %v2222 = vpop.f32.mrf.mxu0
  %v2223 = vadd.f32 %v1934, %v2222
  %v2224 = vpop.f32.mrf.mxu0
  %2225 = vdwg.mxu0
  %v2226 = vld [vmem:[%s2] sm:$0x1]
  %v2227 = vlaneseq
  %v2228 = vshrl.u32 %v2227, 7
  %v2229 = vsub.s32 0, %v2228
  %v2230 = vrot.slane %v2226, %v2229
  %v2231 = vmul.f32 %v1972, %v2230
  %v2232 = vmul.f32 %v1975, %v2230
  %v2233 = vmul.f32 %v1980, %v2230
  %v2234 = vmul.f32 %v1983, %v2230
  %v2235 = vmul.f32 %v1988, %v2230
  %v2236 = vmul.f32 %v1991, %v2230
  %v2237 = vmul.f32 %v1996, %v2230
  %v2238 = vmul.f32 %v1999, %v2230
  %v2239 = vmul.f32 %v2004, %v2230
  %v2240 = vmul.f32 %v2007, %v2230
  %v2241 = vmul.f32 %v2012, %v2230
  %v2242 = vmul.f32 %v2015, %v2230
  %v2243 = vmul.f32 %v2020, %v2230
  %v2244 = vmul.f32 %v2023, %v2230
  %v2245 = vmul.f32 %v2028, %v2230
  %v2246 = vmul.f32 %v2031, %v2230
  %v2247 = vmul.f32 %v2036, %v2230
  %v2248 = vmul.f32 %v2039, %v2230
  %v2249 = vmul.f32 %v2044, %v2230
  %v2250 = vmul.f32 %v2047, %v2230
  %v2251 = vmul.f32 %v2052, %v2230
  %v2252 = vmul.f32 %v2055, %v2230
  %v2253 = vmul.f32 %v2060, %v2230
  %v2254 = vmul.f32 %v2063, %v2230
  %v2255 = vmul.f32 %v2068, %v2230
  %v2256 = vmul.f32 %v2071, %v2230
  %v2257 = vmul.f32 %v2076, %v2230
  %v2258 = vmul.f32 %v2079, %v2230
  %v2259 = vmul.f32 %v2084, %v2230
  %v2260 = vmul.f32 %v2087, %v2230
  %v2261 = vmul.f32 %v2092, %v2230
  %v2262 = vmul.f32 %v2095, %v2230
  %v2263 = vmul.f32 %v2100, %v2230
  %v2264 = vmul.f32 %v2103, %v2230
  %v2265 = vmul.f32 %v2108, %v2230
  %v2266 = vmul.f32 %v2111, %v2230
  %v2267 = vmul.f32 %v2116, %v2230
  %v2268 = vmul.f32 %v2119, %v2230
  %v2269 = vmul.f32 %v2124, %v2230
  %v2270 = vmul.f32 %v2127, %v2230
  %v2271 = vmul.f32 %v2132, %v2230
  %v2272 = vmul.f32 %v2135, %v2230
  %v2273 = vmul.f32 %v2140, %v2230
  %v2274 = vmul.f32 %v2143, %v2230
  %v2275 = vmul.f32 %v2148, %v2230
  %v2276 = vmul.f32 %v2151, %v2230
  %v2277 = vmul.f32 %v2156, %v2230
  %v2278 = vmul.f32 %v2159, %v2230
  %v2279 = vmul.f32 %v2164, %v2230
  %v2280 = vmul.f32 %v2167, %v2230
  %v2281 = vmul.f32 %v2172, %v2230
  %v2282 = vmul.f32 %v2175, %v2230
  %v2283 = vmul.f32 %v2180, %v2230
  %v2284 = vmul.f32 %v2183, %v2230
  %v2285 = vmul.f32 %v2188, %v2230
  %v2286 = vmul.f32 %v2191, %v2230
  %v2287 = vmul.f32 %v2196, %v2230
  %v2288 = vmul.f32 %v2199, %v2230
  %v2289 = vmul.f32 %v2204, %v2230
  %v2290 = vmul.f32 %v2207, %v2230
  %v2291 = vmul.f32 %v2212, %v2230
  %v2292 = vmul.f32 %v2215, %v2230
  %v2293 = vmul.f32 %v2220, %v2230
  %v2294 = vmul.f32 %v2223, %v2230
  %v2295 = vld [vmem:[%s2 + $0x1] sm:$0x1]
  %v2296 = vlaneseq
  %v2297 = vshrl.u32 %v2296, 7
  %v2298 = vsub.s32 0, %v2297
  %v2299 = vrot.slane %v2295, %v2298
  %v2300 = vadd.f32 %v2231, %v2299
  %v2301 = vadd.f32 %v2232, %v2299
  %v2302 = vadd.f32 %v2233, %v2299
  %v2303 = vadd.f32 %v2234, %v2299
  %v2304 = vadd.f32 %v2235, %v2299
  %v2305 = vadd.f32 %v2236, %v2299
  %v2306 = vadd.f32 %v2237, %v2299
  %v2307 = vadd.f32 %v2238, %v2299
  %v2308 = vadd.f32 %v2239, %v2299
  %v2309 = vadd.f32 %v2240, %v2299
  %v2310 = vadd.f32 %v2241, %v2299
  %v2311 = vadd.f32 %v2242, %v2299
  %v2312 = vadd.f32 %v2243, %v2299
  %v2313 = vadd.f32 %v2244, %v2299
  %v2314 = vadd.f32 %v2245, %v2299
  %v2315 = vadd.f32 %v2246, %v2299
  %v2316 = vadd.f32 %v2247, %v2299
  %v2317 = vadd.f32 %v2248, %v2299
  %v2318 = vadd.f32 %v2249, %v2299
  %v2319 = vadd.f32 %v2250, %v2299
  %v2320 = vadd.f32 %v2251, %v2299
  %v2321 = vadd.f32 %v2252, %v2299
  %v2322 = vadd.f32 %v2253, %v2299
  %v2323 = vadd.f32 %v2254, %v2299
  %v2324 = vadd.f32 %v2255, %v2299
  %v2325 = vadd.f32 %v2256, %v2299
  %v2326 = vadd.f32 %v2257, %v2299
  %v2327 = vadd.f32 %v2258, %v2299
  %v2328 = vadd.f32 %v2259, %v2299
  %v2329 = vadd.f32 %v2260, %v2299
  %v2330 = vadd.f32 %v2261, %v2299
  %v2331 = vadd.f32 %v2262, %v2299
  %v2332 = vadd.f32 %v2263, %v2299
  %v2333 = vadd.f32 %v2264, %v2299
  %v2334 = vadd.f32 %v2265, %v2299
  %v2335 = vadd.f32 %v2266, %v2299
  %v2336 = vadd.f32 %v2267, %v2299
  %v2337 = vadd.f32 %v2268, %v2299
  %v2338 = vadd.f32 %v2269, %v2299
  %v2339 = vadd.f32 %v2270, %v2299
  %v2340 = vadd.f32 %v2271, %v2299
  %v2341 = vadd.f32 %v2272, %v2299
  %v2342 = vadd.f32 %v2273, %v2299
  %v2343 = vadd.f32 %v2274, %v2299
  %v2344 = vadd.f32 %v2275, %v2299
  %v2345 = vadd.f32 %v2276, %v2299
  %v2346 = vadd.f32 %v2277, %v2299
  %v2347 = vadd.f32 %v2278, %v2299
  %v2348 = vadd.f32 %v2279, %v2299
  %v2349 = vadd.f32 %v2280, %v2299
  %v2350 = vadd.f32 %v2281, %v2299
  %v2351 = vadd.f32 %v2282, %v2299
  %v2352 = vadd.f32 %v2283, %v2299
  %v2353 = vadd.f32 %v2284, %v2299
  %v2354 = vadd.f32 %v2285, %v2299
  %v2355 = vadd.f32 %v2286, %v2299
  %v2356 = vadd.f32 %v2287, %v2299
  %v2357 = vadd.f32 %v2288, %v2299
  %v2358 = vadd.f32 %v2289, %v2299
  %v2359 = vadd.f32 %v2290, %v2299
  %v2360 = vadd.f32 %v2291, %v2299
  %v2361 = vadd.f32 %v2292, %v2299
  %v2362 = vadd.f32 %v2293, %v2299
  %v2363 = vadd.f32 %v2294, %v2299
  %v2364 = vmax.f32 %v2300, 0.0
  %v2365 = vmax.f32 %v2301, 0.0
  %v2366 = vmax.f32 %v2302, 0.0
  %v2367 = vmax.f32 %v2303, 0.0
  %v2368 = vmax.f32 %v2304, 0.0
  %v2369 = vmax.f32 %v2305, 0.0
  %v2370 = vmax.f32 %v2306, 0.0
  %v2371 = vmax.f32 %v2307, 0.0
  %v2372 = vmax.f32 %v2308, 0.0
  %v2373 = vmax.f32 %v2309, 0.0
  %v2374 = vmax.f32 %v2310, 0.0
  %v2375 = vmax.f32 %v2311, 0.0
  %v2376 = vmax.f32 %v2312, 0.0
  %v2377 = vmax.f32 %v2313, 0.0
  %v2378 = vmax.f32 %v2314, 0.0
  %v2379 = vmax.f32 %v2315, 0.0
  %v2380 = vmax.f32 %v2316, 0.0
  %v2381 = vmax.f32 %v2317, 0.0
  %v2382 = vmax.f32 %v2318, 0.0
  %v2383 = vmax.f32 %v2319, 0.0
  %v2384 = vmax.f32 %v2320, 0.0
  %v2385 = vmax.f32 %v2321, 0.0
  %v2386 = vmax.f32 %v2322, 0.0
  %v2387 = vmax.f32 %v2323, 0.0
  %v2388 = vmax.f32 %v2324, 0.0
  %v2389 = vmax.f32 %v2325, 0.0
  %v2390 = vmax.f32 %v2326, 0.0
  %v2391 = vmax.f32 %v2327, 0.0
  %v2392 = vmax.f32 %v2328, 0.0
  %v2393 = vmax.f32 %v2329, 0.0
  %v2394 = vmax.f32 %v2330, 0.0
  %v2395 = vmax.f32 %v2331, 0.0
  %v2396 = vmax.f32 %v2332, 0.0
  %v2397 = vmax.f32 %v2333, 0.0
  %v2398 = vmax.f32 %v2334, 0.0
  %v2399 = vmax.f32 %v2335, 0.0
  %v2400 = vmax.f32 %v2336, 0.0
  %v2401 = vmax.f32 %v2337, 0.0
  %v2402 = vmax.f32 %v2338, 0.0
  %v2403 = vmax.f32 %v2339, 0.0
  %v2404 = vmax.f32 %v2340, 0.0
  %v2405 = vmax.f32 %v2341, 0.0
  %v2406 = vmax.f32 %v2342, 0.0
  %v2407 = vmax.f32 %v2343, 0.0
  %v2408 = vmax.f32 %v2344, 0.0
  %v2409 = vmax.f32 %v2345, 0.0
  %v2410 = vmax.f32 %v2346, 0.0
  %v2411 = vmax.f32 %v2347, 0.0
  %v2412 = vmax.f32 %v2348, 0.0
  %v2413 = vmax.f32 %v2349, 0.0
  %v2414 = vmax.f32 %v2350, 0.0
  %v2415 = vmax.f32 %v2351, 0.0
  %v2416 = vmax.f32 %v2352, 0.0
  %v2417 = vmax.f32 %v2353, 0.0
  %v2418 = vmax.f32 %v2354, 0.0
  %v2419 = vmax.f32 %v2355, 0.0
  %v2420 = vmax.f32 %v2356, 0.0
  %v2421 = vmax.f32 %v2357, 0.0
  %v2422 = vmax.f32 %v2358, 0.0
  %v2423 = vmax.f32 %v2359, 0.0
  %v2424 = vmax.f32 %v2360, 0.0
  %v2425 = vmax.f32 %v2361, 0.0
  %v2426 = vmax.f32 %v2362, 0.0
  %v2427 = vmax.f32 %v2363, 0.0
  %v2428 = vpack.c.bf16 %v2365, %v2364
  %v2429 = vpack.c.bf16 %v2367, %v2366
  %v2430 = vpack.c.bf16 %v2369, %v2368
  %v2431 = vpack.c.bf16 %v2371, %v2370
  %v2432 = vpack.c.bf16 %v2373, %v2372
  %v2433 = vpack.c.bf16 %v2375, %v2374
  %v2434 = vpack.c.bf16 %v2377, %v2376
  %v2435 = vpack.c.bf16 %v2379, %v2378
  %v2436 = vpack.c.bf16 %v2381, %v2380
  %v2437 = vpack.c.bf16 %v2383, %v2382
  %v2438 = vpack.c.bf16 %v2385, %v2384
  %v2439 = vpack.c.bf16 %v2387, %v2386
  %v2440 = vpack.c.bf16 %v2389, %v2388
  %v2441 = vpack.c.bf16 %v2391, %v2390
  %v2442 = vpack.c.bf16 %v2393, %v2392
  %v2443 = vpack.c.bf16 %v2395, %v2394
  %v2444 = vpack.c.bf16 %v2397, %v2396
  %v2445 = vpack.c.bf16 %v2399, %v2398
  %v2446 = vpack.c.bf16 %v2401, %v2400
  %v2447 = vpack.c.bf16 %v2403, %v2402
  %v2448 = vpack.c.bf16 %v2405, %v2404
  %v2449 = vpack.c.bf16 %v2407, %v2406
  %v2450 = vpack.c.bf16 %v2409, %v2408
  %v2451 = vpack.c.bf16 %v2411, %v2410
  %v2452 = vpack.c.bf16 %v2413, %v2412
  %v2453 = vpack.c.bf16 %v2415, %v2414
  %v2454 = vpack.c.bf16 %v2417, %v2416
  %v2455 = vpack.c.bf16 %v2419, %v2418
  %v2456 = vpack.c.bf16 %v2421, %v2420
  %v2457 = vpack.c.bf16 %v2423, %v2422
  %v2458 = vpack.c.bf16 %v2425, %v2424
  %v2459 = vpack.c.bf16 %v2427, %v2426
  %v2492 = vunpack.c.l.b16 %v2428
  %v2493 = vunpack.c.h.b16 %v2428
  %v2494 = vunpack.c.l.b16 %v2429
  %v2495 = vunpack.c.h.b16 %v2429
  %v2496 = vunpack.c.l.b16 %v2430
  %v2497 = vunpack.c.h.b16 %v2430
  %v2498 = vunpack.c.l.b16 %v2431
  %v2499 = vunpack.c.h.b16 %v2431
  %v2500 = vunpack.c.l.b16 %v2432
  %v2501 = vunpack.c.h.b16 %v2432
  %v2502 = vunpack.c.l.b16 %v2433
  %v2503 = vunpack.c.h.b16 %v2433
  %v2504 = vunpack.c.l.b16 %v2434
  %v2505 = vunpack.c.h.b16 %v2434
  %v2506 = vunpack.c.l.b16 %v2435
  %v2507 = vunpack.c.h.b16 %v2435
  %v2508 = vunpack.c.l.b16 %v2436
  %v2509 = vunpack.c.h.b16 %v2436
  %v2510 = vunpack.c.l.b16 %v2437
  %v2511 = vunpack.c.h.b16 %v2437
  %v2512 = vunpack.c.l.b16 %v2438
  %v2513 = vunpack.c.h.b16 %v2438
  %v2514 = vunpack.c.l.b16 %v2439
  %v2515 = vunpack.c.h.b16 %v2439
  %v2516 = vunpack.c.l.b16 %v2440
  %v2517 = vunpack.c.h.b16 %v2440
  %v2518 = vunpack.c.l.b16 %v2441
  %v2519 = vunpack.c.h.b16 %v2441
  %v2520 = vunpack.c.l.b16 %v2442
  %v2521 = vunpack.c.h.b16 %v2442
  %v2522 = vunpack.c.l.b16 %v2443
  %v2523 = vunpack.c.h.b16 %v2443
  %v2524 = vunpack.c.l.b16 %v2444
  %v2525 = vunpack.c.h.b16 %v2444
  %v2526 = vunpack.c.l.b16 %v2445
  %v2527 = vunpack.c.h.b16 %v2445
  %v2528 = vunpack.c.l.b16 %v2446
  %v2529 = vunpack.c.h.b16 %v2446
  %v2530 = vunpack.c.l.b16 %v2447
  %v2531 = vunpack.c.h.b16 %v2447
  %v2532 = vunpack.c.l.b16 %v2448
  %v2533 = vunpack.c.h.b16 %v2448
  %v2534 = vunpack.c.l.b16 %v2449
  %v2535 = vunpack.c.h.b16 %v2449
  %v2536 = vunpack.c.l.b16 %v2450
  %v2537 = vunpack.c.h.b16 %v2450
  %v2538 = vunpack.c.l.b16 %v2451
  %v2539 = vunpack.c.h.b16 %v2451
  %v2540 = vunpack.c.l.b16 %v2452
  %v2541 = vunpack.c.h.b16 %v2452
  %v2542 = vunpack.c.l.b16 %v2453
  %v2543 = vunpack.c.h.b16 %v2453
  %v2544 = vunpack.c.l.b16 %v2454
  %v2545 = vunpack.c.h.b16 %v2454
  %v2546 = vunpack.c.l.b16 %v2455
  %v2547 = vunpack.c.h.b16 %v2455
  %v2548 = vunpack.c.l.b16 %v2456
  %v2549 = vunpack.c.h.b16 %v2456
  %v2550 = vunpack.c.l.b16 %v2457
  %v2551 = vunpack.c.h.b16 %v2457
  %v2552 = vunpack.c.l.b16 %v2458
  %v2553 = vunpack.c.h.b16 %v2458
  %v2554 = vunpack.c.l.b16 %v2459
  %v2555 = vunpack.c.h.b16 %v2459
  %v2556 = vpack.c.b16 %v2492, %v2492
  %v2557 = vpack.c.b16 %v2493, %v2493
  %v2558 = vpack.c.b16 %v2494, %v2494
  %v2559 = vpack.c.b16 %v2495, %v2495
  %v2560 = vpack.c.b16 %v2496, %v2496
  %v2561 = vpack.c.b16 %v2497, %v2497
  %v2562 = vpack.c.b16 %v2498, %v2498
  %v2563 = vpack.c.b16 %v2499, %v2499
  %v2564 = vpack.c.b16 %v2500, %v2500
  %v2565 = vpack.c.b16 %v2501, %v2501
  %v2566 = vpack.c.b16 %v2502, %v2502
  %v2567 = vpack.c.b16 %v2503, %v2503
  %v2568 = vpack.c.b16 %v2504, %v2504
  %v2569 = vpack.c.b16 %v2505, %v2505
  %v2570 = vpack.c.b16 %v2506, %v2506
  %v2571 = vpack.c.b16 %v2507, %v2507
  %v2572 = vpack.c.b16 %v2508, %v2508
  %v2573 = vpack.c.b16 %v2509, %v2509
  %v2574 = vpack.c.b16 %v2510, %v2510
  %v2575 = vpack.c.b16 %v2511, %v2511
  %v2576 = vpack.c.b16 %v2512, %v2512
  %v2577 = vpack.c.b16 %v2513, %v2513
  %v2578 = vpack.c.b16 %v2514, %v2514
  %v2579 = vpack.c.b16 %v2515, %v2515
  %v2580 = vpack.c.b16 %v2516, %v2516
  %v2581 = vpack.c.b16 %v2517, %v2517
  %v2582 = vpack.c.b16 %v2518, %v2518
  %v2583 = vpack.c.b16 %v2519, %v2519
  %v2584 = vpack.c.b16 %v2520, %v2520
  %v2585 = vpack.c.b16 %v2521, %v2521
  %v2586 = vpack.c.b16 %v2522, %v2522
  %v2587 = vpack.c.b16 %v2523, %v2523
  %v2588 = vpack.c.b16 %v2524, %v2524
  %v2589 = vpack.c.b16 %v2525, %v2525
  %v2590 = vpack.c.b16 %v2526, %v2526
  %v2591 = vpack.c.b16 %v2527, %v2527
  %v2592 = vpack.c.b16 %v2528, %v2528
  %v2593 = vpack.c.b16 %v2529, %v2529
  %v2594 = vpack.c.b16 %v2530, %v2530
  %v2595 = vpack.c.b16 %v2531, %v2531
  %v2596 = vpack.c.b16 %v2532, %v2532
  %v2597 = vpack.c.b16 %v2533, %v2533
  %v2598 = vpack.c.b16 %v2534, %v2534
  %v2599 = vpack.c.b16 %v2535, %v2535
  %v2600 = vpack.c.b16 %v2536, %v2536
  %v2601 = vpack.c.b16 %v2537, %v2537
  %v2602 = vpack.c.b16 %v2538, %v2538
  %v2603 = vpack.c.b16 %v2539, %v2539
  %v2604 = vpack.c.b16 %v2540, %v2540
  %v2605 = vpack.c.b16 %v2541, %v2541
  %v2606 = vpack.c.b16 %v2542, %v2542
  %v2607 = vpack.c.b16 %v2543, %v2543
  %v2608 = vpack.c.b16 %v2544, %v2544
  %v2609 = vpack.c.b16 %v2545, %v2545
  %v2610 = vpack.c.b16 %v2546, %v2546
  %v2611 = vpack.c.b16 %v2547, %v2547
  %v2612 = vpack.c.b16 %v2548, %v2548
  %v2613 = vpack.c.b16 %v2549, %v2549
  %v2614 = vpack.c.b16 %v2550, %v2550
  %v2615 = vpack.c.b16 %v2551, %v2551
  %v2616 = vpack.c.b16 %v2552, %v2552
  %v2617 = vpack.c.b16 %v2553, %v2553
  %v2618 = vpack.c.b16 %v2554, %v2554
  %v2619 = vpack.c.b16 %v2555, %v2555
  %2684 = vst [vmem:[%s3] sm:$0xf] %v2556
  %2685 = vst [vmem:[%s3 + $0x4] sm:$0xf] %v2557
  %2686 = vst [vmem:[%s3 + $0x8] sm:$0xf] %v2558
  %2687 = vst [vmem:[%s3 + $0xc] sm:$0xf] %v2559
  %2688 = vst [vmem:[%s3 + $0x10] sm:$0xf] %v2560
  %2689 = vst [vmem:[%s3 + $0x14] sm:$0xf] %v2561
  %2690 = vst [vmem:[%s3 + $0x18] sm:$0xf] %v2562
  %2691 = vst [vmem:[%s3 + $0x1c] sm:$0xf] %v2563
  %2692 = vst [vmem:[%s3 + $0x20] sm:$0xf] %v2564
  %2693 = vst [vmem:[%s3 + $0x24] sm:$0xf] %v2565
  %2694 = vst [vmem:[%s3 + $0x28] sm:$0xf] %v2566
  %2695 = vst [vmem:[%s3 + $0x2c] sm:$0xf] %v2567
  %2696 = vst [vmem:[%s3 + $0x30] sm:$0xf] %v2568
  %2697 = vst [vmem:[%s3 + $0x34] sm:$0xf] %v2569
  %2698 = vst [vmem:[%s3 + $0x38] sm:$0xf] %v2570
  %2699 = vst [vmem:[%s3 + $0x3c] sm:$0xf] %v2571
  %2700 = vst [vmem:[%s3 + $0x40] sm:$0xf] %v2572
  %2701 = vst [vmem:[%s3 + $0x44] sm:$0xf] %v2573
  %2702 = vst [vmem:[%s3 + $0x48] sm:$0xf] %v2574
  %2703 = vst [vmem:[%s3 + $0x4c] sm:$0xf] %v2575
  %2704 = vst [vmem:[%s3 + $0x50] sm:$0xf] %v2576
  %2705 = vst [vmem:[%s3 + $0x54] sm:$0xf] %v2577
  %2706 = vst [vmem:[%s3 + $0x58] sm:$0xf] %v2578
  %2707 = vst [vmem:[%s3 + $0x5c] sm:$0xf] %v2579
  %2708 = vst [vmem:[%s3 + $0x60] sm:$0xf] %v2580
  %2709 = vst [vmem:[%s3 + $0x64] sm:$0xf] %v2581
  %2710 = vst [vmem:[%s3 + $0x68] sm:$0xf] %v2582
  %2711 = vst [vmem:[%s3 + $0x6c] sm:$0xf] %v2583
  %2712 = vst [vmem:[%s3 + $0x70] sm:$0xf] %v2584
  %2713 = vst [vmem:[%s3 + $0x74] sm:$0xf] %v2585
  %2714 = vst [vmem:[%s3 + $0x78] sm:$0xf] %v2586
  %2715 = vst [vmem:[%s3 + $0x7c] sm:$0xf] %v2587
  %2716 = vst [vmem:[%s3 + $0x80] sm:$0xf] %v2588
  %2717 = vst [vmem:[%s3 + $0x84] sm:$0xf] %v2589
  %2718 = vst [vmem:[%s3 + $0x88] sm:$0xf] %v2590
  %2719 = vst [vmem:[%s3 + $0x8c] sm:$0xf] %v2591
  %2720 = vst [vmem:[%s3 + $0x90] sm:$0xf] %v2592
  %2721 = vst [vmem:[%s3 + $0x94] sm:$0xf] %v2593
  %2722 = vst [vmem:[%s3 + $0x98] sm:$0xf] %v2594
  %2723 = vst [vmem:[%s3 + $0x9c] sm:$0xf] %v2595
  %2724 = vst [vmem:[%s3 + $0xa0] sm:$0xf] %v2596
  %2725 = vst [vmem:[%s3 + $0xa4] sm:$0xf] %v2597
  %2726 = vst [vmem:[%s3 + $0xa8] sm:$0xf] %v2598
  %2727 = vst [vmem:[%s3 + $0xac] sm:$0xf] %v2599
  %2728 = vst [vmem:[%s3 + $0xb0] sm:$0xf] %v2600
  %2729 = vst [vmem:[%s3 + $0xb4] sm:$0xf] %v2601
  %2730 = vst [vmem:[%s3 + $0xb8] sm:$0xf] %v2602
  %2731 = vst [vmem:[%s3 + $0xbc] sm:$0xf] %v2603
  %2732 = vst [vmem:[%s3 + $0xc0] sm:$0xf] %v2604
  %2733 = vst [vmem:[%s3 + $0xc4] sm:$0xf] %v2605
  %2734 = vst [vmem:[%s3 + $0xc8] sm:$0xf] %v2606
  %2735 = vst [vmem:[%s3 + $0xcc] sm:$0xf] %v2607
  %2736 = vst [vmem:[%s3 + $0xd0] sm:$0xf] %v2608
  %2737 = vst [vmem:[%s3 + $0xd4] sm:$0xf] %v2609
  %2738 = vst [vmem:[%s3 + $0xd8] sm:$0xf] %v2610
  %2739 = vst [vmem:[%s3 + $0xdc] sm:$0xf] %v2611
  %2740 = vst [vmem:[%s3 + $0xe0] sm:$0xf] %v2612
  %2741 = vst [vmem:[%s3 + $0xe4] sm:$0xf] %v2613
  %2742 = vst [vmem:[%s3 + $0xe8] sm:$0xf] %v2614
  %2743 = vst [vmem:[%s3 + $0xec] sm:$0xf] %v2615
  %2744 = vst [vmem:[%s3 + $0xf0] sm:$0xf] %v2616
  %2745 = vst [vmem:[%s3 + $0xf4] sm:$0xf] %v2617
  %2746 = vst [vmem:[%s3 + $0xf8] sm:$0xf] %v2618
  %2747 = vst [vmem:[%s3 + $0xfc] sm:$0xf] %v2619
  // Predicated region
  $region14: #{deeplabv3_forward.11} parent=0 // pred_check
    _
  $region15: #{deeplabv3_forward.11} parent=0 // pred_check_branch
    %2749 = sbr.rel (0) target = $region17
  $region16: #{deeplabv3_forward.11} parent=0 // pred_region
    _
  $region17: #{deeplabv3_forward.11} parent=0 // pred_fallthru
    _
  // Predicated region
  $region18: #{deeplabv3_forward.11} parent=0 // pred_check
    _
  $region19: #{deeplabv3_forward.11} parent=0 // pred_check_branch
    %2751 = sbr.rel (0) target = $region21
  $region20: #{deeplabv3_forward.11} parent=0 // pred_region
    _
  $region21: #{deeplabv3_forward.11} parent=0 // pred_fallthru
    _

// kernel: deeplabv3_forward.15
$region0: #{deeplabv3_forward.15}
  #allocation0 [shape = 'u32[]', space=smem, size = 0x4, offset = 0x4, fixed_abs, tag = 'smem constant byte address 0x4 - core index']
  #allocation1 [shape = 'u32[144,128]{1,0:T(1,128)}', space=vmem, size = 0x12000, scoped, tag = 'internal scratch']
  %s0 = inlined_call_operand.vmem [shape: bf16[128,640], index: 0, kind: input, shape index: {}]
  %s1 = inlined_call_operand.vmem [shape: bf16[640,128], index: 1, kind: input, shape index: {}]
  %s2 = inlined_call_operand.vmem [shape: f32[2,128], index: 2, kind: input, shape index: {}]
  %s3 = inlined_call_operand.vmem [shape: bf16[128,128], index: 3, kind: output, shape index: {}]
  %s4 = sld [smem:[#allocation0]]
  $region22: #{deeplabv3_forward.15} parent=0
    _
  %s6 = ssub.s32 1, %s4
  %s7 = scalar_select 0, %s6, %s4
  // Predicated region
  $region2: #{deeplabv3_forward.15} parent=0 // pred_check
    _
  $region3: #{deeplabv3_forward.15} parent=0 // pred_check_branch
    %9 = sbr.rel (0) target = $region5
  $region4: #{deeplabv3_forward.15} parent=0 // pred_region
    _
  $region5: #{deeplabv3_forward.15} parent=0 // pred_fallthru
    _
  // Predicated region
  $region6: #{deeplabv3_forward.15} parent=0 // pred_check
    _
  $region7: #{deeplabv3_forward.15} parent=0 // pred_check_branch
    %11 = sbr.rel (0) target = $region9
  $region8: #{deeplabv3_forward.15} parent=0 // pred_region
    _
  $region9: #{deeplabv3_forward.15} parent=0 // pred_fallthru
    _
  // Predicated region
  $region10: #{deeplabv3_forward.15} parent=0 // pred_check
    _
  $region11: #{deeplabv3_forward.15} parent=0 // pred_check_branch
    %13 = sbr.rel (0) target = $region13
  $region12: #{deeplabv3_forward.15} parent=0 // pred_region
    _
  $region13: #{deeplabv3_forward.15} parent=0 // pred_fallthru
    _
  %v15 = vld [vmem:[%s0] sm:$0xff]
  %v16 = vld [vmem:[%s0 + $0x8] sm:$0xff]
  %v17 = vld [vmem:[%s0 + $0x10] sm:$0xf]
  %v18 = vld [vmem:[%s0 + $0x14] sm:$0xff]
  %v19 = vld [vmem:[%s0 + $0x1c] sm:$0xff]
  %v20 = vld [vmem:[%s0 + $0x24] sm:$0xf]
  %v21 = vld [vmem:[%s0 + $0x28] sm:$0xff]
  %v22 = vld [vmem:[%s0 + $0x30] sm:$0xff]
  %v23 = vld [vmem:[%s0 + $0x38] sm:$0xf]
  %v24 = vld [vmem:[%s0 + $0x3c] sm:$0xff]
  %v25 = vld [vmem:[%s0 + $0x44] sm:$0xff]
  %v26 = vld [vmem:[%s0 + $0x4c] sm:$0xf]
  %v27 = vld [vmem:[%s0 + $0x50] sm:$0xff]
  %v28 = vld [vmem:[%s0 + $0x58] sm:$0xff]
  %v29 = vld [vmem:[%s0 + $0x60] sm:$0xf]
  %v30 = vld [vmem:[%s0 + $0x64] sm:$0xff]
  %v31 = vld [vmem:[%s0 + $0x6c] sm:$0xff]
  %v32 = vld [vmem:[%s0 + $0x74] sm:$0xf]
  %v33 = vld [vmem:[%s0 + $0x78] sm:$0xff]
  %v34 = vld [vmem:[%s0 + $0x80] sm:$0xff]
  %v35 = vld [vmem:[%s0 + $0x88] sm:$0xf]
  %v36 = vld [vmem:[%s0 + $0x8c] sm:$0xff]
  %v37 = vld [vmem:[%s0 + $0x94] sm:$0xff]
  %v38 = vld [vmem:[%s0 + $0x9c] sm:$0xf]
  %v39 = vld [vmem:[%s0 + $0xa0] sm:$0xff]
  %v40 = vld [vmem:[%s0 + $0xa8] sm:$0xff]
  %v41 = vld [vmem:[%s0 + $0xb0] sm:$0xf]
  %v42 = vld [vmem:[%s0 + $0xb4] sm:$0xff]
  %v43 = vld [vmem:[%s0 + $0xbc] sm:$0xff]
  %v44 = vld [vmem:[%s0 + $0xc4] sm:$0xf]
  %v45 = vld [vmem:[%s0 + $0xc8] sm:$0xff]
  %v46 = vld [vmem:[%s0 + $0xd0] sm:$0xff]
  %v47 = vld [vmem:[%s0 + $0xd8] sm:$0xf]
  %v48 = vld [vmem:[%s0 + $0xdc] sm:$0xff]
  %v49 = vld [vmem:[%s0 + $0xe4] sm:$0xff]
  %v50 = vld [vmem:[%s0 + $0xec] sm:$0xf]
  %v51 = vld [vmem:[%s0 + $0xf0] sm:$0xff]
  %v52 = vld [vmem:[%s0 + $0xf8] sm:$0xff]
  %v53 = vld [vmem:[%s0 + $0x100] sm:$0xf]
  %v54 = vld [vmem:[%s0 + $0x104] sm:$0xff]
  %v55 = vld [vmem:[%s0 + $0x10c] sm:$0xff]
  %v56 = vld [vmem:[%s0 + $0x114] sm:$0xf]
  %v57 = vld [vmem:[%s0 + $0x118] sm:$0xff]
  %v58 = vld [vmem:[%s0 + $0x120] sm:$0xff]
  %v59 = vld [vmem:[%s0 + $0x128] sm:$0xf]
  %v60 = vld [vmem:[%s0 + $0x12c] sm:$0xff]
  %v61 = vld [vmem:[%s0 + $0x134] sm:$0xff]
  %v62 = vld [vmem:[%s0 + $0x13c] sm:$0xf]
  %v63 = vld [vmem:[%s1] sm:$0xf]
  %v64 = vld [vmem:[%s1 + $0x4] sm:$0xf]
  %v65 = vld [vmem:[%s1 + $0x8] sm:$0xf]
  %v66 = vld [vmem:[%s1 + $0xc] sm:$0xf]
  %v67 = vld [vmem:[%s1 + $0x10] sm:$0xf]
  %v68 = vld [vmem:[%s1 + $0x14] sm:$0xf]
  %v69 = vld [vmem:[%s1 + $0x18] sm:$0xf]
  %v70 = vld [vmem:[%s1 + $0x1c] sm:$0xf]
  %v71 = vld [vmem:[%s1 + $0x20] sm:$0xf]
  %v72 = vld [vmem:[%s1 + $0x24] sm:$0xf]
  %v73 = vld [vmem:[%s1 + $0x28] sm:$0xf]
  %v74 = vld [vmem:[%s1 + $0x2c] sm:$0xf]
  %v75 = vld [vmem:[%s1 + $0x30] sm:$0xf]
  %v76 = vld [vmem:[%s1 + $0x34] sm:$0xf]
  %v77 = vld [vmem:[%s1 + $0x38] sm:$0xf]
  %v78 = vld [vmem:[%s1 + $0x3c] sm:$0xf]
  %v79 = vld [vmem:[%s1 + $0x40] sm:$0xf]
  %v80 = vld [vmem:[%s1 + $0x44] sm:$0xf]
  %v81 = vld [vmem:[%s1 + $0x48] sm:$0xf]
  %v82 = vld [vmem:[%s1 + $0x4c] sm:$0xf]
  %v83 = vld [vmem:[%s1 + $0x50] sm:$0xf]
  %v84 = vld [vmem:[%s1 + $0x54] sm:$0xf]
  %v85 = vld [vmem:[%s1 + $0x58] sm:$0xf]
  %v86 = vld [vmem:[%s1 + $0x5c] sm:$0xf]
  %v87 = vld [vmem:[%s1 + $0x60] sm:$0xf]
  %v88 = vld [vmem:[%s1 + $0x64] sm:$0xf]
  %v89 = vld [vmem:[%s1 + $0x68] sm:$0xf]
  %v90 = vld [vmem:[%s1 + $0x6c] sm:$0xf]
  %v91 = vld [vmem:[%s1 + $0x70] sm:$0xf]
  %v92 = vld [vmem:[%s1 + $0x74] sm:$0xf]
  %v93 = vld [vmem:[%s1 + $0x78] sm:$0xf]
  %v94 = vld [vmem:[%s1 + $0x7c] sm:$0xf]
  %v95 = vld [vmem:[%s1 + $0x80] sm:$0xf]
  %v96 = vld [vmem:[%s1 + $0x84] sm:$0xf]
  %v97 = vld [vmem:[%s1 + $0x88] sm:$0xf]
  %v98 = vld [vmem:[%s1 + $0x8c] sm:$0xf]
  %v99 = vld [vmem:[%s1 + $0x90] sm:$0xf]
  %v100 = vld [vmem:[%s1 + $0x94] sm:$0xf]
  %v101 = vld [vmem:[%s1 + $0x98] sm:$0xf]
  %v102 = vld [vmem:[%s1 + $0x9c] sm:$0xf]
  %v103 = vld [vmem:[%s1 + $0xa0] sm:$0xf]
  %v104 = vld [vmem:[%s1 + $0xa4] sm:$0xf]
  %v105 = vld [vmem:[%s1 + $0xa8] sm:$0xf]
  %v106 = vld [vmem:[%s1 + $0xac] sm:$0xf]
  %v107 = vld [vmem:[%s1 + $0xb0] sm:$0xf]
  %v108 = vld [vmem:[%s1 + $0xb4] sm:$0xf]
  %v109 = vld [vmem:[%s1 + $0xb8] sm:$0xf]
  %v110 = vld [vmem:[%s1 + $0xbc] sm:$0xf]
  %v111 = vld [vmem:[%s1 + $0xc0] sm:$0xf]
  %v112 = vld [vmem:[%s1 + $0xc4] sm:$0xf]
  %v113 = vld [vmem:[%s1 + $0xc8] sm:$0xf]
  %v114 = vld [vmem:[%s1 + $0xcc] sm:$0xf]
  %v115 = vld [vmem:[%s1 + $0xd0] sm:$0xf]
  %v116 = vld [vmem:[%s1 + $0xd4] sm:$0xf]
  %v117 = vld [vmem:[%s1 + $0xd8] sm:$0xf]
  %v118 = vld [vmem:[%s1 + $0xdc] sm:$0xf]
  %v119 = vld [vmem:[%s1 + $0xe0] sm:$0xf]
  %v120 = vld [vmem:[%s1 + $0xe4] sm:$0xf]
  %v121 = vld [vmem:[%s1 + $0xe8] sm:$0xf]
  %v122 = vld [vmem:[%s1 + $0xec] sm:$0xf]
  %v123 = vld [vmem:[%s1 + $0xf0] sm:$0xf]
  %v124 = vld [vmem:[%s1 + $0xf4] sm:$0xf]
  %v125 = vld [vmem:[%s1 + $0xf8] sm:$0xf]
  %v126 = vld [vmem:[%s1 + $0xfc] sm:$0xf]
  %v127 = vld [vmem:[%s1 + $0x100] sm:$0xf]
  %v128 = vld [vmem:[%s1 + $0x104] sm:$0xf]
  %v129 = vld [vmem:[%s1 + $0x108] sm:$0xf]
  %v130 = vld [vmem:[%s1 + $0x10c] sm:$0xf]
  %v131 = vld [vmem:[%s1 + $0x110] sm:$0xf]
  %v132 = vld [vmem:[%s1 + $0x114] sm:$0xf]
  %v133 = vld [vmem:[%s1 + $0x118] sm:$0xf]
  %v134 = vld [vmem:[%s1 + $0x11c] sm:$0xf]
  %v135 = vld [vmem:[%s1 + $0x120] sm:$0xf]
  %v136 = vld [vmem:[%s1 + $0x124] sm:$0xf]
  %v137 = vld [vmem:[%s1 + $0x128] sm:$0xf]
  %v138 = vld [vmem:[%s1 + $0x12c] sm:$0xf]
  %v139 = vld [vmem:[%s1 + $0x130] sm:$0xf]
  %v140 = vld [vmem:[%s1 + $0x134] sm:$0xf]
  %v141 = vld [vmem:[%s1 + $0x138] sm:$0xf]
  %v142 = vld [vmem:[%s1 + $0x13c] sm:$0xf]
  %v191 = vunpack.c.l.b16 %v15
  %v192 = vunpack.c.h.b16 %v15
  %v193 = vunpack.c.l.b16 %v16
  %v194 = vunpack.c.h.b16 %v16
  %v195 = vunpack.c.l.b16 %v17
  %v196 = vunpack.c.l.b16 %v18
  %v197 = vunpack.c.h.b16 %v18
  %v198 = vunpack.c.l.b16 %v19
  %v199 = vunpack.c.h.b16 %v19
  %v200 = vunpack.c.l.b16 %v20
  %v201 = vunpack.c.l.b16 %v21
  %v202 = vunpack.c.h.b16 %v21
  %v203 = vunpack.c.l.b16 %v22
  %v204 = vunpack.c.h.b16 %v22
  %v205 = vunpack.c.l.b16 %v23
  %v206 = vunpack.c.l.b16 %v24
  %v207 = vunpack.c.h.b16 %v24
  %v208 = vunpack.c.l.b16 %v25
  %v209 = vunpack.c.h.b16 %v25
  %v210 = vunpack.c.l.b16 %v26
  %v211 = vunpack.c.l.b16 %v27
  %v212 = vunpack.c.h.b16 %v27
  %v213 = vunpack.c.l.b16 %v28
  %v214 = vunpack.c.h.b16 %v28
  %v215 = vunpack.c.l.b16 %v29
  %v216 = vunpack.c.l.b16 %v30
  %v217 = vunpack.c.h.b16 %v30
  %v218 = vunpack.c.l.b16 %v31
  %v219 = vunpack.c.h.b16 %v31
  %v220 = vunpack.c.l.b16 %v32
  %v221 = vunpack.c.l.b16 %v33
  %v222 = vunpack.c.h.b16 %v33
  %v223 = vunpack.c.l.b16 %v34
  %v224 = vunpack.c.h.b16 %v34
  %v225 = vunpack.c.l.b16 %v35
  %v226 = vunpack.c.l.b16 %v36
  %v227 = vunpack.c.h.b16 %v36
  %v228 = vunpack.c.l.b16 %v37
  %v229 = vunpack.c.h.b16 %v37
  %v230 = vunpack.c.l.b16 %v38
  %v231 = vunpack.c.l.b16 %v39
  %v232 = vunpack.c.h.b16 %v39
  %v233 = vunpack.c.l.b16 %v40
  %v234 = vunpack.c.h.b16 %v40
  %v235 = vunpack.c.l.b16 %v41
  %v236 = vunpack.c.l.b16 %v42
  %v237 = vunpack.c.h.b16 %v42
  %v238 = vunpack.c.l.b16 %v43
  %v239 = vunpack.c.h.b16 %v43
  %v240 = vunpack.c.l.b16 %v44
  %v241 = vunpack.c.l.b16 %v45
  %v242 = vunpack.c.h.b16 %v45
  %v243 = vunpack.c.l.b16 %v46
  %v244 = vunpack.c.h.b16 %v46
  %v245 = vunpack.c.l.b16 %v47
  %v246 = vunpack.c.l.b16 %v48
  %v247 = vunpack.c.h.b16 %v48
  %v248 = vunpack.c.l.b16 %v49
  %v249 = vunpack.c.h.b16 %v49
  %v250 = vunpack.c.l.b16 %v50
  %v251 = vunpack.c.l.b16 %v51
  %v252 = vunpack.c.h.b16 %v51
  %v253 = vunpack.c.l.b16 %v52
  %v254 = vunpack.c.h.b16 %v52
  %v255 = vunpack.c.l.b16 %v53
  %v256 = vunpack.c.l.b16 %v54
  %v257 = vunpack.c.h.b16 %v54
  %v258 = vunpack.c.l.b16 %v55
  %v259 = vunpack.c.h.b16 %v55
  %v260 = vunpack.c.l.b16 %v56
  %v261 = vunpack.c.l.b16 %v57
  %v262 = vunpack.c.h.b16 %v57
  %v263 = vunpack.c.l.b16 %v58
  %v264 = vunpack.c.h.b16 %v58
  %v265 = vunpack.c.l.b16 %v59
  %v266 = vunpack.c.l.b16 %v60
  %v267 = vunpack.c.h.b16 %v60
  %v268 = vunpack.c.l.b16 %v61
  %v269 = vunpack.c.h.b16 %v61
  %v270 = vunpack.c.l.b16 %v62
  %v271 = vpack.c.b16 %v196, %v191
  %v272 = vpack.c.b16 %v197, %v192
  %v273 = vpack.c.b16 %v198, %v193
  %v274 = vpack.c.b16 %v199, %v194
  %v275 = vpack.c.b16 %v200, %v195
  %v276 = vpack.c.b16 %v206, %v201
  %v277 = vpack.c.b16 %v207, %v202
  %v278 = vpack.c.b16 %v208, %v203
  %v279 = vpack.c.b16 %v209, %v204
  %v280 = vpack.c.b16 %v210, %v205
  %v281 = vpack.c.b16 %v216, %v211
  %v282 = vpack.c.b16 %v217, %v212
  %v283 = vpack.c.b16 %v218, %v213
  %v284 = vpack.c.b16 %v219, %v214
  %v285 = vpack.c.b16 %v220, %v215
  %v286 = vpack.c.b16 %v226, %v221
  %v287 = vpack.c.b16 %v227, %v222
  %v288 = vpack.c.b16 %v228, %v223
  %v289 = vpack.c.b16 %v229, %v224
  %v290 = vpack.c.b16 %v230, %v225
  %v291 = vpack.c.b16 %v236, %v231
  %v292 = vpack.c.b16 %v237, %v232
  %v293 = vpack.c.b16 %v238, %v233
  %v294 = vpack.c.b16 %v239, %v234
  %v295 = vpack.c.b16 %v240, %v235
  %v296 = vpack.c.b16 %v246, %v241
  %v297 = vpack.c.b16 %v247, %v242
  %v298 = vpack.c.b16 %v248, %v243
  %v299 = vpack.c.b16 %v249, %v244
  %v300 = vpack.c.b16 %v250, %v245
  %v301 = vpack.c.b16 %v256, %v251
  %v302 = vpack.c.b16 %v257, %v252
  %v303 = vpack.c.b16 %v258, %v253
  %v304 = vpack.c.b16 %v259, %v254
  %v305 = vpack.c.b16 %v260, %v255
  %v306 = vpack.c.b16 %v266, %v261
  %v307 = vpack.c.b16 %v267, %v262
  %v308 = vpack.c.b16 %v268, %v263
  %v309 = vpack.c.b16 %v269, %v264
  %v310 = vpack.c.b16 %v270, %v265
  %v431 = vunpack.c.l.b16 %v63
  %v432 = vunpack.c.l.b16 %v64
  %v433 = vunpack.c.l.b16 %v65
  %v434 = vunpack.c.l.b16 %v66
  %v435 = vunpack.c.l.b16 %v67
  %v436 = vunpack.c.l.b16 %v68
  %v437 = vunpack.c.l.b16 %v69
  %v438 = vunpack.c.l.b16 %v70
  %v439 = vunpack.c.l.b16 %v71
  %v440 = vunpack.c.l.b16 %v72
  %v441 = vunpack.c.l.b16 %v73
  %v442 = vunpack.c.l.b16 %v74
  %v443 = vunpack.c.l.b16 %v75
  %v444 = vunpack.c.l.b16 %v76
  %v445 = vunpack.c.l.b16 %v77
  %v446 = vunpack.c.l.b16 %v78
  %v447 = vunpack.c.l.b16 %v79
  %v448 = vunpack.c.l.b16 %v80
  %v449 = vunpack.c.l.b16 %v81
  %v450 = vunpack.c.l.b16 %v82
  %v451 = vunpack.c.l.b16 %v83
  %v452 = vunpack.c.l.b16 %v84
  %v453 = vunpack.c.l.b16 %v85
  %v454 = vunpack.c.l.b16 %v86
  %v455 = vunpack.c.l.b16 %v87
  %v456 = vunpack.c.l.b16 %v88
  %v457 = vunpack.c.l.b16 %v89
  %v458 = vunpack.c.l.b16 %v90
  %v459 = vunpack.c.l.b16 %v91
  %v460 = vunpack.c.l.b16 %v92
  %v461 = vunpack.c.l.b16 %v93
  %v462 = vunpack.c.l.b16 %v94
  %v463 = vunpack.c.l.b16 %v95
  %v464 = vunpack.c.l.b16 %v96
  %v465 = vunpack.c.l.b16 %v97
  %v466 = vunpack.c.l.b16 %v98
  %v467 = vunpack.c.l.b16 %v99
  %v468 = vunpack.c.l.b16 %v100
  %v469 = vunpack.c.l.b16 %v101
  %v470 = vunpack.c.l.b16 %v102
  %v471 = vunpack.c.l.b16 %v103
  %v472 = vunpack.c.l.b16 %v104
  %v473 = vunpack.c.l.b16 %v105
  %v474 = vunpack.c.l.b16 %v106
  %v475 = vunpack.c.l.b16 %v107
  %v476 = vunpack.c.l.b16 %v108
  %v477 = vunpack.c.l.b16 %v109
  %v478 = vunpack.c.l.b16 %v110
  %v479 = vunpack.c.l.b16 %v111
  %v480 = vunpack.c.l.b16 %v112
  %v481 = vunpack.c.l.b16 %v113
  %v482 = vunpack.c.l.b16 %v114
  %v483 = vunpack.c.l.b16 %v115
  %v484 = vunpack.c.l.b16 %v116
  %v485 = vunpack.c.l.b16 %v117
  %v486 = vunpack.c.l.b16 %v118
  %v487 = vunpack.c.l.b16 %v119
  %v488 = vunpack.c.l.b16 %v120
  %v489 = vunpack.c.l.b16 %v121
  %v490 = vunpack.c.l.b16 %v122
  %v491 = vunpack.c.l.b16 %v123
  %v492 = vunpack.c.l.b16 %v124
  %v493 = vunpack.c.l.b16 %v125
  %v494 = vunpack.c.l.b16 %v126
  %v495 = vunpack.c.l.b16 %v127
  %v496 = vunpack.c.l.b16 %v128
  %v497 = vunpack.c.l.b16 %v129
  %v498 = vunpack.c.l.b16 %v130
  %v499 = vunpack.c.l.b16 %v131
  %v500 = vunpack.c.l.b16 %v132
  %v501 = vunpack.c.l.b16 %v133
  %v502 = vunpack.c.l.b16 %v134
  %v503 = vunpack.c.l.b16 %v135
  %v504 = vunpack.c.l.b16 %v136
  %v505 = vunpack.c.l.b16 %v137
  %v506 = vunpack.c.l.b16 %v138
  %v507 = vunpack.c.l.b16 %v139
  %v508 = vunpack.c.l.b16 %v140
  %v509 = vunpack.c.l.b16 %v141
  %v510 = vunpack.c.l.b16 %v142
  %v511 = vpack.c.b16 %v432, %v431
  %v512 = vpack.c.b16 %v434, %v433
  %v513 = vpack.c.b16 %v436, %v435
  %v514 = vpack.c.b16 %v438, %v437
  %v515 = vpack.c.b16 %v440, %v439
  %v516 = vpack.c.b16 %v442, %v441
  %v517 = vpack.c.b16 %v444, %v443
  %v518 = vpack.c.b16 %v446, %v445
  %v519 = vpack.c.b16 %v448, %v447
  %v520 = vpack.c.b16 %v450, %v449
  %v521 = vpack.c.b16 %v452, %v451
  %v522 = vpack.c.b16 %v454, %v453
  %v523 = vpack.c.b16 %v456, %v455
  %v524 = vpack.c.b16 %v458, %v457
  %v525 = vpack.c.b16 %v460, %v459
  %v526 = vpack.c.b16 %v462, %v461
  %v527 = vpack.c.b16 %v464, %v463
  %v528 = vpack.c.b16 %v466, %v465
  %v529 = vpack.c.b16 %v468, %v467
  %v530 = vpack.c.b16 %v470, %v469
  %v531 = vpack.c.b16 %v472, %v471
  %v532 = vpack.c.b16 %v474, %v473
  %v533 = vpack.c.b16 %v476, %v475
  %v534 = vpack.c.b16 %v478, %v477
  %v535 = vpack.c.b16 %v480, %v479
  %v536 = vpack.c.b16 %v482, %v481
  %v537 = vpack.c.b16 %v484, %v483
  %v538 = vpack.c.b16 %v486, %v485
  %v539 = vpack.c.b16 %v488, %v487
  %v540 = vpack.c.b16 %v490, %v489
  %v541 = vpack.c.b16 %v492, %v491
  %v542 = vpack.c.b16 %v494, %v493
  %v543 = vpack.c.b16 %v496, %v495
  %v544 = vpack.c.b16 %v498, %v497
  %v545 = vpack.c.b16 %v500, %v499
  %v546 = vpack.c.b16 %v502, %v501
  %v547 = vpack.c.b16 %v504, %v503
  %v548 = vpack.c.b16 %v506, %v505
  %v549 = vpack.c.b16 %v508, %v507
  %v550 = vpack.c.b16 %v510, %v509
  %591 = vmatprep.subr.bf16.mxu0 0
  %592 = vmatpush1.bf16.msra.mxu0 %v518
  %593 = vmatprep.subr.bf16.mxu0 0
  %594 = vmatpush1.bf16.msra.mxu0 %v517
  %595 = vmatprep.subr.bf16.mxu0 0
  %596 = vmatpush1.bf16.msra.mxu0 %v516
  %597 = vmatprep.subr.bf16.mxu0 0
  %598 = vmatpush1.bf16.msra.mxu0 %v515
  %599 = vmatprep.subr.bf16.mxu0 0
  %600 = vmatpush1.bf16.msra.mxu0 %v514
  %601 = vmatprep.subr.bf16.mxu0 0
  %602 = vmatpush1.bf16.msra.mxu0 %v513
  %603 = vmatprep.subr.bf16.mxu0 0
  %604 = vmatpush1.bf16.msra.mxu0 %v512
  %605 = vmatprep.subr.bf16.mxu0 0
  %606 = vmatpush1.bf16.msra.mxu0 %v511
  %607 = vmatprep.subr.bf16.mxu0 0
  %608 = vmatpush2.bf16.msra.mxu0 %v526
  %609 = vmatprep.subr.bf16.mxu0 0
  %610 = vmatpush2.bf16.msra.mxu0 %v525
  %611 = vmatprep.subr.bf16.mxu0 0
  %612 = vmatpush2.bf16.msra.mxu0 %v524
  %613 = vmatprep.subr.bf16.mxu0 0
  %614 = vmatpush2.bf16.msra.mxu0 %v523
  %615 = vmatprep.subr.bf16.mxu0 0
  %616 = vmatpush2.bf16.msra.mxu0 %v522
  %617 = vmatprep.subr.bf16.mxu0 0
  %618 = vmatpush2.bf16.msra.mxu0 %v521
  %619 = vmatprep.subr.bf16.mxu0 0
  %620 = vmatpush2.bf16.msra.mxu0 %v520
  %621 = vmatprep.subr.bf16.mxu0 0
  %622 = vmatpush2.bf16.msra.mxu0 %v519
  %623 = vmatprep.mubr.bf16.mxu0 %v272
  %624 = vmatmul.mubr.bf16.gmra.mxu0 %v271
  %v625 = vpop.f32.mrf.mxu0
  %v626 = vadd.f32 0.0, %v625
  %v627 = vpop.f32.mrf.mxu0
  %v628 = vpop.f32.mrf.mxu0
  %v629 = vadd.f32 0.0, %v628
  %v630 = vpop.f32.mrf.mxu0
  %631 = vmatprep.mubr.bf16.mxu0 %v277
  %632 = vmatmul.mubr.bf16.gmra.mxu0 %v276
  %v633 = vpop.f32.mrf.mxu0
  %v634 = vadd.f32 0.0, %v633
  %v635 = vpop.f32.mrf.mxu0
  %v636 = vpop.f32.mrf.mxu0
  %v637 = vadd.f32 0.0, %v636
  %v638 = vpop.f32.mrf.mxu0
  %639 = vmatprep.mubr.bf16.mxu0 %v282
  %640 = vmatmul.mubr.bf16.gmra.mxu0 %v281
  %v641 = vpop.f32.mrf.mxu0
  %v642 = vadd.f32 0.0, %v641
  %v643 = vpop.f32.mrf.mxu0
  %v644 = vpop.f32.mrf.mxu0
  %v645 = vadd.f32 0.0, %v644
  %v646 = vpop.f32.mrf.mxu0
  %647 = vmatprep.mubr.bf16.mxu0 %v287
  %648 = vmatmul.mubr.bf16.gmra.mxu0 %v286
  %v649 = vpop.f32.mrf.mxu0
  %v650 = vadd.f32 0.0, %v649
  %v651 = vpop.f32.mrf.mxu0
  %v652 = vpop.f32.mrf.mxu0
  %v653 = vadd.f32 0.0, %v652
  %v654 = vpop.f32.mrf.mxu0
  %655 = vmatprep.mubr.bf16.mxu0 %v292
  %656 = vmatmul.mubr.bf16.gmra.mxu0 %v291
  %v657 = vpop.f32.mrf.mxu0
  %v658 = vadd.f32 0.0, %v657
  %v659 = vpop.f32.mrf.mxu0
  %v660 = vpop.f32.mrf.mxu0
  %v661 = vadd.f32 0.0, %v660
  %v662 = vpop.f32.mrf.mxu0
  %663 = vmatprep.mubr.bf16.mxu0 %v297
  %664 = vmatmul.mubr.bf16.gmra.mxu0 %v296
  %v665 = vpop.f32.mrf.mxu0
  %v666 = vadd.f32 0.0, %v665
  %v667 = vpop.f32.mrf.mxu0
  %v668 = vpop.f32.mrf.mxu0
  %v669 = vadd.f32 0.0, %v668
  %v670 = vpop.f32.mrf.mxu0
  %671 = vmatprep.mubr.bf16.mxu0 %v302
  %672 = vmatmul.mubr.bf16.gmra.mxu0 %v301
  %v673 = vpop.f32.mrf.mxu0
  %v674 = vadd.f32 0.0, %v673
  %v675 = vpop.f32.mrf.mxu0
  %v676 = vpop.f32.mrf.mxu0
  %v677 = vadd.f32 0.0, %v676
  %v678 = vpop.f32.mrf.mxu0
  %679 = vmatprep.mubr.bf16.mxu0 %v307
  %680 = vmatmul.mubr.bf16.gmra.mxu0 %v306
  %v681 = vpop.f32.mrf.mxu0
  %v682 = vadd.f32 0.0, %v681
  %v683 = vpop.f32.mrf.mxu0
  %v684 = vpop.f32.mrf.mxu0
  %v685 = vadd.f32 0.0, %v684
  %v686 = vpop.f32.mrf.mxu0
  %687 = vdwg.mxu0
  %688 = vmatprep.subr.bf16.mxu0 0
  %689 = vmatpush1.bf16.msra.mxu0 %v534
  %690 = vmatprep.subr.bf16.mxu0 0
  %691 = vmatpush1.bf16.msra.mxu0 %v533
  %692 = vmatprep.subr.bf16.mxu0 0
  %693 = vmatpush1.bf16.msra.mxu0 %v532
  %694 = vmatprep.subr.bf16.mxu0 0
  %695 = vmatpush1.bf16.msra.mxu0 %v531
  %696 = vmatprep.subr.bf16.mxu0 0
  %697 = vmatpush1.bf16.msra.mxu0 %v530
  %698 = vmatprep.subr.bf16.mxu0 0
  %699 = vmatpush1.bf16.msra.mxu0 %v529
  %700 = vmatprep.subr.bf16.mxu0 0
  %701 = vmatpush1.bf16.msra.mxu0 %v528
  %702 = vmatprep.subr.bf16.mxu0 0
  %703 = vmatpush1.bf16.msra.mxu0 %v527
  %704 = vmatprep.subr.bf16.mxu0 0
  %705 = vmatpush2.bf16.msra.mxu0 %v542
  %706 = vmatprep.subr.bf16.mxu0 0
  %707 = vmatpush2.bf16.msra.mxu0 %v541
  %708 = vmatprep.subr.bf16.mxu0 0
  %709 = vmatpush2.bf16.msra.mxu0 %v540
  %710 = vmatprep.subr.bf16.mxu0 0
  %711 = vmatpush2.bf16.msra.mxu0 %v539
  %712 = vmatprep.subr.bf16.mxu0 0
  %713 = vmatpush2.bf16.msra.mxu0 %v538
  %714 = vmatprep.subr.bf16.mxu0 0
  %715 = vmatpush2.bf16.msra.mxu0 %v537
  %716 = vmatprep.subr.bf16.mxu0 0
  %717 = vmatpush2.bf16.msra.mxu0 %v536
  %718 = vmatprep.subr.bf16.mxu0 0
  %719 = vmatpush2.bf16.msra.mxu0 %v535
  %720 = vmatprep.mubr.bf16.mxu0 %v274
  %721 = vmatmul.mubr.bf16.gmra.mxu0 %v273
  %v722 = vpop.f32.mrf.mxu0
  %v723 = vadd.f32 %v626, %v722
  %v724 = vpop.f32.mrf.mxu0
  %v725 = vpop.f32.mrf.mxu0
  %v726 = vadd.f32 %v629, %v725
  %v727 = vpop.f32.mrf.mxu0
  %728 = vmatprep.mubr.bf16.mxu0 %v279
  %729 = vmatmul.mubr.bf16.gmra.mxu0 %v278
  %v730 = vpop.f32.mrf.mxu0
  %v731 = vadd.f32 %v634, %v730
  %v732 = vpop.f32.mrf.mxu0
  %v733 = vpop.f32.mrf.mxu0
  %v734 = vadd.f32 %v637, %v733
  %v735 = vpop.f32.mrf.mxu0
  %736 = vmatprep.mubr.bf16.mxu0 %v284
  %737 = vmatmul.mubr.bf16.gmra.mxu0 %v283
  %v738 = vpop.f32.mrf.mxu0
  %v739 = vadd.f32 %v642, %v738
  %v740 = vpop.f32.mrf.mxu0
  %v741 = vpop.f32.mrf.mxu0
  %v742 = vadd.f32 %v645, %v741
  %v743 = vpop.f32.mrf.mxu0
  %744 = vmatprep.mubr.bf16.mxu0 %v289
  %745 = vmatmul.mubr.bf16.gmra.mxu0 %v288
  %v746 = vpop.f32.mrf.mxu0
  %v747 = vadd.f32 %v650, %v746
  %v748 = vpop.f32.mrf.mxu0
  %v749 = vpop.f32.mrf.mxu0
  %v750 = vadd.f32 %v653, %v749
  %v751 = vpop.f32.mrf.mxu0
  %752 = vmatprep.mubr.bf16.mxu0 %v294
  %753 = vmatmul.mubr.bf16.gmra.mxu0 %v293
  %v754 = vpop.f32.mrf.mxu0
  %v755 = vadd.f32 %v658, %v754
  %v756 = vpop.f32.mrf.mxu0
  %v757 = vpop.f32.mrf.mxu0
  %v758 = vadd.f32 %v661, %v757
  %v759 = vpop.f32.mrf.mxu0
  %760 = vmatprep.mubr.bf16.mxu0 %v299
  %761 = vmatmul.mubr.bf16.gmra.mxu0 %v298
  %v762 = vpop.f32.mrf.mxu0
  %v763 = vadd.f32 %v666, %v762
  %v764 = vpop.f32.mrf.mxu0
  %v765 = vpop.f32.mrf.mxu0
  %v766 = vadd.f32 %v669, %v765
  %v767 = vpop.f32.mrf.mxu0
  %768 = vmatprep.mubr.bf16.mxu0 %v304
  %769 = vmatmul.mubr.bf16.gmra.mxu0 %v303
  %v770 = vpop.f32.mrf.mxu0
  %v771 = vadd.f32 %v674, %v770
  %v772 = vpop.f32.mrf.mxu0
  %v773 = vpop.f32.mrf.mxu0
  %v774 = vadd.f32 %v677, %v773
  %v775 = vpop.f32.mrf.mxu0
  %776 = vmatprep.mubr.bf16.mxu0 %v309
  %777 = vmatmul.mubr.bf16.gmra.mxu0 %v308
  %v778 = vpop.f32.mrf.mxu0
  %v779 = vadd.f32 %v682, %v778
  %v780 = vpop.f32.mrf.mxu0
  %v781 = vpop.f32.mrf.mxu0
  %v782 = vadd.f32 %v685, %v781
  %v783 = vpop.f32.mrf.mxu0
  %784 = vdwg.mxu0
  %785 = vmatprep.subr.bf16.mxu0 0
  %786 = vmatpush1.bf16.msra.mxu0 %v550
  %787 = vmatprep.subr.bf16.mxu0 0
  %788 = vmatpush1.bf16.msra.mxu0 %v549
  %789 = vmatprep.subr.bf16.mxu0 0
  %790 = vmatpush1.bf16.msra.mxu0 %v548
  %791 = vmatprep.subr.bf16.mxu0 0
  %792 = vmatpush1.bf16.msra.mxu0 %v547
  %793 = vmatprep.subr.bf16.mxu0 0
  %794 = vmatpush1.bf16.msra.mxu0 %v546
  %795 = vmatprep.subr.bf16.mxu0 0
  %796 = vmatpush1.bf16.msra.mxu0 %v545
  %797 = vmatprep.subr.bf16.mxu0 0
  %798 = vmatpush1.bf16.msra.mxu0 %v544
  %799 = vmatprep.subr.bf16.mxu0 0
  %800 = vmatpush1.bf16.msra.mxu0 %v543
  %801 = vmatprep.subr.bf16.mxu0 0
  %802 = vmatpush2.bf16.msra.mxu0 0
  %803 = vmatprep.subr.bf16.mxu0 0
  %804 = vmatpush2.bf16.msra.mxu0 0
  %805 = vmatprep.subr.bf16.mxu0 0
  %806 = vmatpush2.bf16.msra.mxu0 0
  %807 = vmatprep.subr.bf16.mxu0 0
  %808 = vmatpush2.bf16.msra.mxu0 0
  %809 = vmatprep.subr.bf16.mxu0 0
  %810 = vmatpush2.bf16.msra.mxu0 0
  %811 = vmatprep.subr.bf16.mxu0 0
  %812 = vmatpush2.bf16.msra.mxu0 0
  %813 = vmatprep.subr.bf16.mxu0 0
  %814 = vmatpush2.bf16.msra.mxu0 0
  %815 = vmatprep.subr.bf16.mxu0 0
  %816 = vmatpush2.bf16.msra.mxu0 0
  %817 = vmatprep.mubr.bf16.mxu0 0
  %818 = vmatmul.mubr.bf16.gmra.mxu0 %v275
  %v819 = vpop.f32.mrf.mxu0
  %v820 = vadd.f32 %v723, %v819
  %v821 = vpop.f32.mrf.mxu0
  %v822 = vpop.f32.mrf.mxu0
  %v823 = vadd.f32 %v726, %v822
  %v824 = vpop.f32.mrf.mxu0
  %825 = vmatprep.mubr.bf16.mxu0 0
  %826 = vmatmul.mubr.bf16.gmra.mxu0 %v280
  %v827 = vpop.f32.mrf.mxu0
  %v828 = vadd.f32 %v731, %v827
  %v829 = vpop.f32.mrf.mxu0
  %v830 = vpop.f32.mrf.mxu0
  %v831 = vadd.f32 %v734, %v830
  %v832 = vpop.f32.mrf.mxu0
  %833 = vmatprep.mubr.bf16.mxu0 0
  %834 = vmatmul.mubr.bf16.gmra.mxu0 %v285
  %v835 = vpop.f32.mrf.mxu0
  %v836 = vadd.f32 %v739, %v835
  %v837 = vpop.f32.mrf.mxu0
  %v838 = vpop.f32.mrf.mxu0
  %v839 = vadd.f32 %v742, %v838
  %v840 = vpop.f32.mrf.mxu0
  %841 = vmatprep.mubr.bf16.mxu0 0
  %842 = vmatmul.mubr.bf16.gmra.mxu0 %v290
  %v843 = vpop.f32.mrf.mxu0
  %v844 = vadd.f32 %v747, %v843
  %v845 = vpop.f32.mrf.mxu0
  %v846 = vpop.f32.mrf.mxu0
  %v847 = vadd.f32 %v750, %v846
  %v848 = vpop.f32.mrf.mxu0
  %849 = vmatprep.mubr.bf16.mxu0 0
  %850 = vmatmul.mubr.bf16.gmra.mxu0 %v295
  %v851 = vpop.f32.mrf.mxu0
  %v852 = vadd.f32 %v755, %v851
  %v853 = vpop.f32.mrf.mxu0
  %v854 = vpop.f32.mrf.mxu0
  %v855 = vadd.f32 %v758, %v854
  %v856 = vpop.f32.mrf.mxu0
  %857 = vmatprep.mubr.bf16.mxu0 0
  %858 = vmatmul.mubr.bf16.gmra.mxu0 %v300
  %v859 = vpop.f32.mrf.mxu0
  %v860 = vadd.f32 %v763, %v859
  %v861 = vpop.f32.mrf.mxu0
  %v862 = vpop.f32.mrf.mxu0
  %v863 = vadd.f32 %v766, %v862
  %v864 = vpop.f32.mrf.mxu0
  %865 = vmatprep.mubr.bf16.mxu0 0
  %866 = vmatmul.mubr.bf16.gmra.mxu0 %v305
  %v867 = vpop.f32.mrf.mxu0
  %v868 = vadd.f32 %v771, %v867
  %v869 = vpop.f32.mrf.mxu0
  %v870 = vpop.f32.mrf.mxu0
  %v871 = vadd.f32 %v774, %v870
  %v872 = vpop.f32.mrf.mxu0
  %873 = vmatprep.mubr.bf16.mxu0 0
  %874 = vmatmul.mubr.bf16.gmra.mxu0 %v310
  %v875 = vpop.f32.mrf.mxu0
  %v876 = vadd.f32 %v779, %v875
  %v877 = vpop.f32.mrf.mxu0
  %v878 = vpop.f32.mrf.mxu0
  %v879 = vadd.f32 %v782, %v878
  %v880 = vpop.f32.mrf.mxu0
  %881 = vdwg.mxu0
  %v882 = vld [vmem:[%s2] sm:$0x1]
  %v883 = vlaneseq
  %v884 = vshrl.u32 %v883, 7
  %v885 = vsub.s32 0, %v884
  %v886 = vrot.slane %v882, %v885
  %v887 = vmul.f32 %v820, %v886
  %v888 = vmul.f32 %v823, %v886
  %v889 = vmul.f32 %v828, %v886
  %v890 = vmul.f32 %v831, %v886
  %v891 = vmul.f32 %v836, %v886
  %v892 = vmul.f32 %v839, %v886
  %v893 = vmul.f32 %v844, %v886
  %v894 = vmul.f32 %v847, %v886
  %v895 = vmul.f32 %v852, %v886
  %v896 = vmul.f32 %v855, %v886
  %v897 = vmul.f32 %v860, %v886
  %v898 = vmul.f32 %v863, %v886
  %v899 = vmul.f32 %v868, %v886
  %v900 = vmul.f32 %v871, %v886
  %v901 = vmul.f32 %v876, %v886
  %v902 = vmul.f32 %v879, %v886
  %v903 = vld [vmem:[%s2 + $0x1] sm:$0x1]
  %v904 = vlaneseq
  %v905 = vshrl.u32 %v904, 7
  %v906 = vsub.s32 0, %v905
  %v907 = vrot.slane %v903, %v906
  %v908 = vadd.f32 %v887, %v907
  %v909 = vadd.f32 %v888, %v907
  %v910 = vadd.f32 %v889, %v907
  %v911 = vadd.f32 %v890, %v907
  %v912 = vadd.f32 %v891, %v907
  %v913 = vadd.f32 %v892, %v907
  %v914 = vadd.f32 %v893, %v907
  %v915 = vadd.f32 %v894, %v907
  %v916 = vadd.f32 %v895, %v907
  %v917 = vadd.f32 %v896, %v907
  %v918 = vadd.f32 %v897, %v907
  %v919 = vadd.f32 %v898, %v907
  %v920 = vadd.f32 %v899, %v907
  %v921 = vadd.f32 %v900, %v907
  %v922 = vadd.f32 %v901, %v907
  %v923 = vadd.f32 %v902, %v907
  %v924 = vmax.f32 %v908, 0.0
  %v925 = vmax.f32 %v909, 0.0
  %v926 = vmax.f32 %v910, 0.0
  %v927 = vmax.f32 %v911, 0.0
  %v928 = vmax.f32 %v912, 0.0
  %v929 = vmax.f32 %v913, 0.0
  %v930 = vmax.f32 %v914, 0.0
  %v931 = vmax.f32 %v915, 0.0
  %v932 = vmax.f32 %v916, 0.0
  %v933 = vmax.f32 %v917, 0.0
  %v934 = vmax.f32 %v918, 0.0
  %v935 = vmax.f32 %v919, 0.0
  %v936 = vmax.f32 %v920, 0.0
  %v937 = vmax.f32 %v921, 0.0
  %v938 = vmax.f32 %v922, 0.0
  %v939 = vmax.f32 %v923, 0.0
  %v940 = vpack.c.bf16 %v925, %v924
  %v941 = vpack.c.bf16 %v927, %v926
  %v942 = vpack.c.bf16 %v929, %v928
  %v943 = vpack.c.bf16 %v931, %v930
  %v944 = vpack.c.bf16 %v933, %v932
  %v945 = vpack.c.bf16 %v935, %v934
  %v946 = vpack.c.bf16 %v937, %v936
  %v947 = vpack.c.bf16 %v939, %v938
  %v956 = vunpack.c.l.b16 %v940
  %v957 = vunpack.c.h.b16 %v940
  %v958 = vunpack.c.l.b16 %v941
  %v959 = vunpack.c.h.b16 %v941
  %v960 = vunpack.c.l.b16 %v942
  %v961 = vunpack.c.h.b16 %v942
  %v962 = vunpack.c.l.b16 %v943
  %v963 = vunpack.c.h.b16 %v943
  %v964 = vunpack.c.l.b16 %v944
  %v965 = vunpack.c.h.b16 %v944
  %v966 = vunpack.c.l.b16 %v945
  %v967 = vunpack.c.h.b16 %v945
  %v968 = vunpack.c.l.b16 %v946
  %v969 = vunpack.c.h.b16 %v946
  %v970 = vunpack.c.l.b16 %v947
  %v971 = vunpack.c.h.b16 %v947
  %v972 = vpack.c.b16 %v956, %v956
  %v973 = vpack.c.b16 %v957, %v957
  %v974 = vpack.c.b16 %v958, %v958
  %v975 = vpack.c.b16 %v959, %v959
  %v976 = vpack.c.b16 %v960, %v960
  %v977 = vpack.c.b16 %v961, %v961
  %v978 = vpack.c.b16 %v962, %v962
  %v979 = vpack.c.b16 %v963, %v963
  %v980 = vpack.c.b16 %v964, %v964
  %v981 = vpack.c.b16 %v965, %v965
  %v982 = vpack.c.b16 %v966, %v966
  %v983 = vpack.c.b16 %v967, %v967
  %v984 = vpack.c.b16 %v968, %v968
  %v985 = vpack.c.b16 %v969, %v969
  %v986 = vpack.c.b16 %v970, %v970
  %v987 = vpack.c.b16 %v971, %v971
  %1004 = vst [vmem:[%s3] sm:$0xf] %v972
  %1005 = vst [vmem:[%s3 + $0x4] sm:$0xf] %v973
  %1006 = vst [vmem:[%s3 + $0x8] sm:$0xf] %v974
  %1007 = vst [vmem:[%s3 + $0xc] sm:$0xf] %v975
  %1008 = vst [vmem:[%s3 + $0x10] sm:$0xf] %v976
  %1009 = vst [vmem:[%s3 + $0x14] sm:$0xf] %v977
  %1010 = vst [vmem:[%s3 + $0x18] sm:$0xf] %v978
  %1011 = vst [vmem:[%s3 + $0x1c] sm:$0xf] %v979
  %1012 = vst [vmem:[%s3 + $0x20] sm:$0xf] %v980
  %1013 = vst [vmem:[%s3 + $0x24] sm:$0xf] %v981
  %1014 = vst [vmem:[%s3 + $0x28] sm:$0xf] %v982
  %1015 = vst [vmem:[%s3 + $0x2c] sm:$0xf] %v983
  %1016 = vst [vmem:[%s3 + $0x30] sm:$0xf] %v984
  %1017 = vst [vmem:[%s3 + $0x34] sm:$0xf] %v985
  %1018 = vst [vmem:[%s3 + $0x38] sm:$0xf] %v986
  %1019 = vst [vmem:[%s3 + $0x3c] sm:$0xf] %v987
  // Predicated region
  $region14: #{deeplabv3_forward.15} parent=0 // pred_check
    _
  $region15: #{deeplabv3_forward.15} parent=0 // pred_check_branch
    %1021 = sbr.rel (0) target = $region17
  $region16: #{deeplabv3_forward.15} parent=0 // pred_region
    _
  $region17: #{deeplabv3_forward.15} parent=0 // pred_fallthru
    _
  // Predicated region
  $region18: #{deeplabv3_forward.15} parent=0 // pred_check
    _
  $region19: #{deeplabv3_forward.15} parent=0 // pred_check_branch
    %1023 = sbr.rel (0) target = $region21
  $region20: #{deeplabv3_forward.15} parent=0 // pred_region
    _
  $region21: #{deeplabv3_forward.15} parent=0 // pred_fallthru
    _

// kernel: deeplabv3_forward.12
$region0: #{deeplabv3_forward.12}
  #allocation0 [shape = 'u32[]', space=smem, size = 0x4, offset = 0x4, fixed_abs, tag = 'smem constant byte address 0x4 - core index']
  #allocation1 [shape = 'u32[144,128]{1,0:T(1,128)}', space=vmem, size = 0x12000, scoped, tag = 'internal scratch']
  %s0 = inlined_call_operand.vmem [shape: bf16[512,640], index: 0, kind: input, shape index: {}]
  %s1 = inlined_call_operand.vmem [shape: bf16[640,128], index: 1, kind: input, shape index: {}]
  %s2 = inlined_call_operand.vmem [shape: f32[2,128], index: 2, kind: input, shape index: {}]
  %s3 = inlined_call_operand.vmem [shape: bf16[512,128], index: 3, kind: input, shape index: {}]
  %s4 = inlined_call_operand.vmem [shape: bf16[512,128], index: 4, kind: output, shape index: {}]
  %s5 = sld [smem:[#allocation0]]
  $region26: #{deeplabv3_forward.12} parent=0
    _
  %s7 = ssub.s32 1, %s5
  %s8 = scalar_select 0, %s7, %s5
  // Predicated region
  $region2: #{deeplabv3_forward.12} parent=0 // pred_check
    _
  $region3: #{deeplabv3_forward.12} parent=0 // pred_check_branch
    %10 = sbr.rel (0) target = $region5
  $region4: #{deeplabv3_forward.12} parent=0 // pred_region
    _
  $region5: #{deeplabv3_forward.12} parent=0 // pred_fallthru
    _
  // Predicated region
  $region6: #{deeplabv3_forward.12} parent=0 // pred_check
    _
  $region7: #{deeplabv3_forward.12} parent=0 // pred_check_branch
    %12 = sbr.rel (0) target = $region9
  $region8: #{deeplabv3_forward.12} parent=0 // pred_region
    _
  $region9: #{deeplabv3_forward.12} parent=0 // pred_fallthru
    _
  // Predicated region
  $region10: #{deeplabv3_forward.12} parent=0 // pred_check
    _
  $region11: #{deeplabv3_forward.12} parent=0 // pred_check_branch
    %14 = sbr.rel (0) target = $region13
  $region12: #{deeplabv3_forward.12} parent=0 // pred_region
    _
  $region13: #{deeplabv3_forward.12} parent=0 // pred_fallthru
    _
  // Predicated region
  $region14: #{deeplabv3_forward.12} parent=0 // pred_check
    _
  $region15: #{deeplabv3_forward.12} parent=0 // pred_check_branch
    %16 = sbr.rel (0) target = $region17
  $region16: #{deeplabv3_forward.12} parent=0 // pred_region
    _
  $region17: #{deeplabv3_forward.12} parent=0 // pred_fallthru
    _
  %v18 = vld [vmem:[%s0] sm:$0xff]
  %v19 = vld [vmem:[%s0 + $0x8] sm:$0xff]
  %v20 = vld [vmem:[%s0 + $0x10] sm:$0xf]
  %v21 = vld [vmem:[%s0 + $0x14] sm:$0xff]
  %v22 = vld [vmem:[%s0 + $0x1c] sm:$0xff]
  %v23 = vld [vmem:[%s0 + $0x24] sm:$0xf]
  %v24 = vld [vmem:[%s0 + $0x28] sm:$0xff]
  %v25 = vld [vmem:[%s0 + $0x30] sm:$0xff]
  %v26 = vld [vmem:[%s0 + $0x38] sm:$0xf]
  %v27 = vld [vmem:[%s0 + $0x3c] sm:$0xff]
  %v28 = vld [vmem:[%s0 + $0x44] sm:$0xff]
  %v29 = vld [vmem:[%s0 + $0x4c] sm:$0xf]
  %v30 = vld [vmem:[%s0 + $0x50] sm:$0xff]
  %v31 = vld [vmem:[%s0 + $0x58] sm:$0xff]
  %v32 = vld [vmem:[%s0 + $0x60] sm:$0xf]
  %v33 = vld [vmem:[%s0 + $0x64] sm:$0xff]
  %v34 = vld [vmem:[%s0 + $0x6c] sm:$0xff]
  %v35 = vld [vmem:[%s0 + $0x74] sm:$0xf]
  %v36 = vld [vmem:[%s0 + $0x78] sm:$0xff]
  %v37 = vld [vmem:[%s0 + $0x80] sm:$0xff]
  %v38 = vld [vmem:[%s0 + $0x88] sm:$0xf]
  %v39 = vld [vmem:[%s0 + $0x8c] sm:$0xff]
  %v40 = vld [vmem:[%s0 + $0x94] sm:$0xff]
  %v41 = vld [vmem:[%s0 + $0x9c] sm:$0xf]
  %v42 = vld [vmem:[%s0 + $0xa0] sm:$0xff]
  %v43 = vld [vmem:[%s0 + $0xa8] sm:$0xff]
  %v44 = vld [vmem:[%s0 + $0xb0] sm:$0xf]
  %v45 = vld [vmem:[%s0 + $0xb4] sm:$0xff]
  %v46 = vld [vmem:[%s0 + $0xbc] sm:$0xff]
  %v47 = vld [vmem:[%s0 + $0xc4] sm:$0xf]
  %v48 = vld [vmem:[%s0 + $0xc8] sm:$0xff]
  %v49 = vld [vmem:[%s0 + $0xd0] sm:$0xff]
  %v50 = vld [vmem:[%s0 + $0xd8] sm:$0xf]
  %v51 = vld [vmem:[%s0 + $0xdc] sm:$0xff]
  %v52 = vld [vmem:[%s0 + $0xe4] sm:$0xff]
  %v53 = vld [vmem:[%s0 + $0xec] sm:$0xf]
  %v54 = vld [vmem:[%s0 + $0xf0] sm:$0xff]
  %v55 = vld [vmem:[%s0 + $0xf8] sm:$0xff]
  %v56 = vld [vmem:[%s0 + $0x100] sm:$0xf]
  %v57 = vld [vmem:[%s0 + $0x104] sm:$0xff]
  %v58 = vld [vmem:[%s0 + $0x10c] sm:$0xff]
  %v59 = vld [vmem:[%s0 + $0x114] sm:$0xf]
  %v60 = vld [vmem:[%s0 + $0x118] sm:$0xff]
  %v61 = vld [vmem:[%s0 + $0x120] sm:$0xff]
  %v62 = vld [vmem:[%s0 + $0x128] sm:$0xf]
  %v63 = vld [vmem:[%s0 + $0x12c] sm:$0xff]
  %v64 = vld [vmem:[%s0 + $0x134] sm:$0xff]
  %v65 = vld [vmem:[%s0 + $0x13c] sm:$0xf]
  %v66 = vld [vmem:[%s0 + $0x140] sm:$0xff]
  %v67 = vld [vmem:[%s0 + $0x148] sm:$0xff]
  %v68 = vld [vmem:[%s0 + $0x150] sm:$0xf]
  %v69 = vld [vmem:[%s0 + $0x154] sm:$0xff]
  %v70 = vld [vmem:[%s0 + $0x15c] sm:$0xff]
  %v71 = vld [vmem:[%s0 + $0x164] sm:$0xf]
  %v72 = vld [vmem:[%s0 + $0x168] sm:$0xff]
  %v73 = vld [vmem:[%s0 + $0x170] sm:$0xff]
  %v74 = vld [vmem:[%s0 + $0x178] sm:$0xf]
  %v75 = vld [vmem:[%s0 + $0x17c] sm:$0xff]
  %v76 = vld [vmem:[%s0 + $0x184] sm:$0xff]
  %v77 = vld [vmem:[%s0 + $0x18c] sm:$0xf]
  %v78 = vld [vmem:[%s0 + $0x190] sm:$0xff]
  %v79 = vld [vmem:[%s0 + $0x198] sm:$0xff]
  %v80 = vld [vmem:[%s0 + $0x1a0] sm:$0xf]
  %v81 = vld [vmem:[%s0 + $0x1a4] sm:$0xff]
  %v82 = vld [vmem:[%s0 + $0x1ac] sm:$0xff]
  %v83 = vld [vmem:[%s0 + $0x1b4] sm:$0xf]
  %v84 = vld [vmem:[%s0 + $0x1b8] sm:$0xff]
  %v85 = vld [vmem:[%s0 + $0x1c0] sm:$0xff]
  %v86 = vld [vmem:[%s0 + $0x1c8] sm:$0xf]
  %v87 = vld [vmem:[%s0 + $0x1cc] sm:$0xff]
  %v88 = vld [vmem:[%s0 + $0x1d4] sm:$0xff]
  %v89 = vld [vmem:[%s0 + $0x1dc] sm:$0xf]
  %v90 = vld [vmem:[%s0 + $0x1e0] sm:$0xff]
  %v91 = vld [vmem:[%s0 + $0x1e8] sm:$0xff]
  %v92 = vld [vmem:[%s0 + $0x1f0] sm:$0xf]
  %v93 = vld [vmem:[%s0 + $0x1f4] sm:$0xff]
  %v94 = vld [vmem:[%s0 + $0x1fc] sm:$0xff]
  %v95 = vld [vmem:[%s0 + $0x204] sm:$0xf]
  %v96 = vld [vmem:[%s0 + $0x208] sm:$0xff]
  %v97 = vld [vmem:[%s0 + $0x210] sm:$0xff]
  %v98 = vld [vmem:[%s0 + $0x218] sm:$0xf]
  %v99 = vld [vmem:[%s0 + $0x21c] sm:$0xff]
  %v100 = vld [vmem:[%s0 + $0x224] sm:$0xff]
  %v101 = vld [vmem:[%s0 + $0x22c] sm:$0xf]
  %v102 = vld [vmem:[%s0 + $0x230] sm:$0xff]
  %v103 = vld [vmem:[%s0 + $0x238] sm:$0xff]
  %v104 = vld [vmem:[%s0 + $0x240] sm:$0xf]
  %v105 = vld [vmem:[%s0 + $0x244] sm:$0xff]
  %v106 = vld [vmem:[%s0 + $0x24c] sm:$0xff]
  %v107 = vld [vmem:[%s0 + $0x254] sm:$0xf]
  %v108 = vld [vmem:[%s0 + $0x258] sm:$0xff]
  %v109 = vld [vmem:[%s0 + $0x260] sm:$0xff]
  %v110 = vld [vmem:[%s0 + $0x268] sm:$0xf]
  %v111 = vld [vmem:[%s0 + $0x26c] sm:$0xff]
  %v112 = vld [vmem:[%s0 + $0x274] sm:$0xff]
  %v113 = vld [vmem:[%s0 + $0x27c] sm:$0xf]
  %v114 = vld [vmem:[%s0 + $0x280] sm:$0xff]
  %v115 = vld [vmem:[%s0 + $0x288] sm:$0xff]
  %v116 = vld [vmem:[%s0 + $0x290] sm:$0xf]
  %v117 = vld [vmem:[%s0 + $0x294] sm:$0xff]
  %v118 = vld [vmem:[%s0 + $0x29c] sm:$0xff]
  %v119 = vld [vmem:[%s0 + $0x2a4] sm:$0xf]
  %v120 = vld [vmem:[%s0 + $0x2a8] sm:$0xff]
  %v121 = vld [vmem:[%s0 + $0x2b0] sm:$0xff]
  %v122 = vld [vmem:[%s0 + $0x2b8] sm:$0xf]
  %v123 = vld [vmem:[%s0 + $0x2bc] sm:$0xff]
  %v124 = vld [vmem:[%s0 + $0x2c4] sm:$0xff]
  %v125 = vld [vmem:[%s0 + $0x2cc] sm:$0xf]
  %v126 = vld [vmem:[%s0 + $0x2d0] sm:$0xff]
  %v127 = vld [vmem:[%s0 + $0x2d8] sm:$0xff]
  %v128 = vld [vmem:[%s0 + $0x2e0] sm:$0xf]
  %v129 = vld [vmem:[%s0 + $0x2e4] sm:$0xff]
  %v130 = vld [vmem:[%s0 + $0x2ec] sm:$0xff]
  %v131 = vld [vmem:[%s0 + $0x2f4] sm:$0xf]
  %v132 = vld [vmem:[%s0 + $0x2f8] sm:$0xff]
  %v133 = vld [vmem:[%s0 + $0x300] sm:$0xff]
  %v134 = vld [vmem:[%s0 + $0x308] sm:$0xf]
  %v135 = vld [vmem:[%s0 + $0x30c] sm:$0xff]
  %v136 = vld [vmem:[%s0 + $0x314] sm:$0xff]
  %v137 = vld [vmem:[%s0 + $0x31c] sm:$0xf]
  %v138 = vld [vmem:[%s0 + $0x320] sm:$0xff]
  %v139 = vld [vmem:[%s0 + $0x328] sm:$0xff]
  %v140 = vld [vmem:[%s0 + $0x330] sm:$0xf]
  %v141 = vld [vmem:[%s0 + $0x334] sm:$0xff]
  %v142 = vld [vmem:[%s0 + $0x33c] sm:$0xff]
  %v143 = vld [vmem:[%s0 + $0x344] sm:$0xf]
  %v144 = vld [vmem:[%s0 + $0x348] sm:$0xff]
  %v145 = vld [vmem:[%s0 + $0x350] sm:$0xff]
  %v146 = vld [vmem:[%s0 + $0x358] sm:$0xf]
  %v147 = vld [vmem:[%s0 + $0x35c] sm:$0xff]
  %v148 = vld [vmem:[%s0 + $0x364] sm:$0xff]
  %v149 = vld [vmem:[%s0 + $0x36c] sm:$0xf]
  %v150 = vld [vmem:[%s0 + $0x370] sm:$0xff]
  %v151 = vld [vmem:[%s0 + $0x378] sm:$0xff]
  %v152 = vld [vmem:[%s0 + $0x380] sm:$0xf]
  %v153 = vld [vmem:[%s0 + $0x384] sm:$0xff]
  %v154 = vld [vmem:[%s0 + $0x38c] sm:$0xff]
  %v155 = vld [vmem:[%s0 + $0x394] sm:$0xf]
  %v156 = vld [vmem:[%s0 + $0x398] sm:$0xff]
  %v157 = vld [vmem:[%s0 + $0x3a0] sm:$0xff]
  %v158 = vld [vmem:[%s0 + $0x3a8] sm:$0xf]
  %v159 = vld [vmem:[%s0 + $0x3ac] sm:$0xff]
  %v160 = vld [vmem:[%s0 + $0x3b4] sm:$0xff]
  %v161 = vld [vmem:[%s0 + $0x3bc] sm:$0xf]
  %v162 = vld [vmem:[%s0 + $0x3c0] sm:$0xff]
  %v163 = vld [vmem:[%s0 + $0x3c8] sm:$0xff]
  %v164 = vld [vmem:[%s0 + $0x3d0] sm:$0xf]
  %v165 = vld [vmem:[%s0 + $0x3d4] sm:$0xff]
  %v166 = vld [vmem:[%s0 + $0x3dc] sm:$0xff]
  %v167 = vld [vmem:[%s0 + $0x3e4] sm:$0xf]
  %v168 = vld [vmem:[%s0 + $0x3e8] sm:$0xff]
  %v169 = vld [vmem:[%s0 + $0x3f0] sm:$0xff]
  %v170 = vld [vmem:[%s0 + $0x3f8] sm:$0xf]
  %v171 = vld [vmem:[%s0 + $0x3fc] sm:$0xff]
  %v172 = vld [vmem:[%s0 + $0x404] sm:$0xff]
  %v173 = vld [vmem:[%s0 + $0x40c] sm:$0xf]
  %v174 = vld [vmem:[%s0 + $0x410] sm:$0xff]
  %v175 = vld [vmem:[%s0 + $0x418] sm:$0xff]
  %v176 = vld [vmem:[%s0 + $0x420] sm:$0xf]
  %v177 = vld [vmem:[%s0 + $0x424] sm:$0xff]
  %v178 = vld [vmem:[%s0 + $0x42c] sm:$0xff]
  %v179 = vld [vmem:[%s0 + $0x434] sm:$0xf]
  %v180 = vld [vmem:[%s0 + $0x438] sm:$0xff]
  %v181 = vld [vmem:[%s0 + $0x440] sm:$0xff]
  %v182 = vld [vmem:[%s0 + $0x448] sm:$0xf]
  %v183 = vld [vmem:[%s0 + $0x44c] sm:$0xff]
  %v184 = vld [vmem:[%s0 + $0x454] sm:$0xff]
  %v185 = vld [vmem:[%s0 + $0x45c] sm:$0xf]
  %v186 = vld [vmem:[%s0 + $0x460] sm:$0xff]
  %v187 = vld [vmem:[%s0 + $0x468] sm:$0xff]
  %v188 = vld [vmem:[%s0 + $0x470] sm:$0xf]
  %v189 = vld [vmem:[%s0 + $0x474] sm:$0xff]
  %v190 = vld [vmem:[%s0 + $0x47c] sm:$0xff]
  %v191 = vld [vmem:[%s0 + $0x484] sm:$0xf]
  %v192 = vld [vmem:[%s0 + $0x488] sm:$0xff]
  %v193 = vld [vmem:[%s0 + $0x490] sm:$0xff]
  %v194 = vld [vmem:[%s0 + $0x498] sm:$0xf]
  %v195 = vld [vmem:[%s0 + $0x49c] sm:$0xff]
  %v196 = vld [vmem:[%s0 + $0x4a4] sm:$0xff]
  %v197 = vld [vmem:[%s0 + $0x4ac] sm:$0xf]
  %v198 = vld [vmem:[%s0 + $0x4b0] sm:$0xff]
  %v199 = vld [vmem:[%s0 + $0x4b8] sm:$0xff]
  %v200 = vld [vmem:[%s0 + $0x4c0] sm:$0xf]
  %v201 = vld [vmem:[%s0 + $0x4c4] sm:$0xff]
  %v202 = vld [vmem:[%s0 + $0x4cc] sm:$0xff]
  %v203 = vld [vmem:[%s0 + $0x4d4] sm:$0xf]
  %v204 = vld [vmem:[%s0 + $0x4d8] sm:$0xff]
  %v205 = vld [vmem:[%s0 + $0x4e0] sm:$0xff]
  %v206 = vld [vmem:[%s0 + $0x4e8] sm:$0xf]
  %v207 = vld [vmem:[%s0 + $0x4ec] sm:$0xff]
  %v208 = vld [vmem:[%s0 + $0x4f4] sm:$0xff]
  %v209 = vld [vmem:[%s0 + $0x4fc] sm:$0xf]
  %v210 = vld [vmem:[%s1] sm:$0xf]
  %v211 = vld [vmem:[%s1 + $0x4] sm:$0xf]
  %v212 = vld [vmem:[%s1 + $0x8] sm:$0xf]
  %v213 = vld [vmem:[%s1 + $0xc] sm:$0xf]
  %v214 = vld [vmem:[%s1 + $0x10] sm:$0xf]
  %v215 = vld [vmem:[%s1 + $0x14] sm:$0xf]
  %v216 = vld [vmem:[%s1 + $0x18] sm:$0xf]
  %v217 = vld [vmem:[%s1 + $0x1c] sm:$0xf]
  %v218 = vld [vmem:[%s1 + $0x20] sm:$0xf]
  %v219 = vld [vmem:[%s1 + $0x24] sm:$0xf]
  %v220 = vld [vmem:[%s1 + $0x28] sm:$0xf]
  %v221 = vld [vmem:[%s1 + $0x2c] sm:$0xf]
  %v222 = vld [vmem:[%s1 + $0x30] sm:$0xf]
  %v223 = vld [vmem:[%s1 + $0x34] sm:$0xf]
  %v224 = vld [vmem:[%s1 + $0x38] sm:$0xf]
  %v225 = vld [vmem:[%s1 + $0x3c] sm:$0xf]
  %v226 = vld [vmem:[%s1 + $0x40] sm:$0xf]
  %v227 = vld [vmem:[%s1 + $0x44] sm:$0xf]
  %v228 = vld [vmem:[%s1 + $0x48] sm:$0xf]
  %v229 = vld [vmem:[%s1 + $0x4c] sm:$0xf]
  %v230 = vld [vmem:[%s1 + $0x50] sm:$0xf]
  %v231 = vld [vmem:[%s1 + $0x54] sm:$0xf]
  %v232 = vld [vmem:[%s1 + $0x58] sm:$0xf]
  %v233 = vld [vmem:[%s1 + $0x5c] sm:$0xf]
  %v234 = vld [vmem:[%s1 + $0x60] sm:$0xf]
  %v235 = vld [vmem:[%s1 + $0x64] sm:$0xf]
  %v236 = vld [vmem:[%s1 + $0x68] sm:$0xf]
  %v237 = vld [vmem:[%s1 + $0x6c] sm:$0xf]
  %v238 = vld [vmem:[%s1 + $0x70] sm:$0xf]
  %v239 = vld [vmem:[%s1 + $0x74] sm:$0xf]
  %v240 = vld [vmem:[%s1 + $0x78] sm:$0xf]
  %v241 = vld [vmem:[%s1 + $0x7c] sm:$0xf]
  %v242 = vld [vmem:[%s1 + $0x80] sm:$0xf]
  %v243 = vld [vmem:[%s1 + $0x84] sm:$0xf]
  %v244 = vld [vmem:[%s1 + $0x88] sm:$0xf]
  %v245 = vld [vmem:[%s1 + $0x8c] sm:$0xf]
  %v246 = vld [vmem:[%s1 + $0x90] sm:$0xf]
  %v247 = vld [vmem:[%s1 + $0x94] sm:$0xf]
  %v248 = vld [vmem:[%s1 + $0x98] sm:$0xf]
  %v249 = vld [vmem:[%s1 + $0x9c] sm:$0xf]
  %v250 = vld [vmem:[%s1 + $0xa0] sm:$0xf]
  %v251 = vld [vmem:[%s1 + $0xa4] sm:$0xf]
  %v252 = vld [vmem:[%s1 + $0xa8] sm:$0xf]
  %v253 = vld [vmem:[%s1 + $0xac] sm:$0xf]
  %v254 = vld [vmem:[%s1 + $0xb0] sm:$0xf]
  %v255 = vld [vmem:[%s1 + $0xb4] sm:$0xf]
  %v256 = vld [vmem:[%s1 + $0xb8] sm:$0xf]
  %v257 = vld [vmem:[%s1 + $0xbc] sm:$0xf]
  %v258 = vld [vmem:[%s1 + $0xc0] sm:$0xf]
  %v259 = vld [vmem:[%s1 + $0xc4] sm:$0xf]
  %v260 = vld [vmem:[%s1 + $0xc8] sm:$0xf]
  %v261 = vld [vmem:[%s1 + $0xcc] sm:$0xf]
  %v262 = vld [vmem:[%s1 + $0xd0] sm:$0xf]
  %v263 = vld [vmem:[%s1 + $0xd4] sm:$0xf]
  %v264 = vld [vmem:[%s1 + $0xd8] sm:$0xf]
  %v265 = vld [vmem:[%s1 + $0xdc] sm:$0xf]
  %v266 = vld [vmem:[%s1 + $0xe0] sm:$0xf]
  %v267 = vld [vmem:[%s1 + $0xe4] sm:$0xf]
  %v268 = vld [vmem:[%s1 + $0xe8] sm:$0xf]
  %v269 = vld [vmem:[%s1 + $0xec] sm:$0xf]
  %v270 = vld [vmem:[%s1 + $0xf0] sm:$0xf]
  %v271 = vld [vmem:[%s1 + $0xf4] sm:$0xf]
  %v272 = vld [vmem:[%s1 + $0xf8] sm:$0xf]
  %v273 = vld [vmem:[%s1 + $0xfc] sm:$0xf]
  %v274 = vld [vmem:[%s1 + $0x100] sm:$0xf]
  %v275 = vld [vmem:[%s1 + $0x104] sm:$0xf]
  %v276 = vld [vmem:[%s1 + $0x108] sm:$0xf]
  %v277 = vld [vmem:[%s1 + $0x10c] sm:$0xf]
  %v278 = vld [vmem:[%s1 + $0x110] sm:$0xf]
  %v279 = vld [vmem:[%s1 + $0x114] sm:$0xf]
  %v280 = vld [vmem:[%s1 + $0x118] sm:$0xf]
  %v281 = vld [vmem:[%s1 + $0x11c] sm:$0xf]
  %v282 = vld [vmem:[%s1 + $0x120] sm:$0xf]
  %v283 = vld [vmem:[%s1 + $0x124] sm:$0xf]
  %v284 = vld [vmem:[%s1 + $0x128] sm:$0xf]
  %v285 = vld [vmem:[%s1 + $0x12c] sm:$0xf]
  %v286 = vld [vmem:[%s1 + $0x130] sm:$0xf]
  %v287 = vld [vmem:[%s1 + $0x134] sm:$0xf]
  %v288 = vld [vmem:[%s1 + $0x138] sm:$0xf]
  %v289 = vld [vmem:[%s1 + $0x13c] sm:$0xf]
  %v482 = vunpack.c.l.b16 %v18
  %v483 = vunpack.c.h.b16 %v18
  %v484 = vunpack.c.l.b16 %v19
  %v485 = vunpack.c.h.b16 %v19
  %v486 = vunpack.c.l.b16 %v20
  %v487 = vunpack.c.l.b16 %v21
  %v488 = vunpack.c.h.b16 %v21
  %v489 = vunpack.c.l.b16 %v22
  %v490 = vunpack.c.h.b16 %v22
  %v491 = vunpack.c.l.b16 %v23
  %v492 = vunpack.c.l.b16 %v24
  %v493 = vunpack.c.h.b16 %v24
  %v494 = vunpack.c.l.b16 %v25
  %v495 = vunpack.c.h.b16 %v25
  %v496 = vunpack.c.l.b16 %v26
  %v497 = vunpack.c.l.b16 %v27
  %v498 = vunpack.c.h.b16 %v27
  %v499 = vunpack.c.l.b16 %v28
  %v500 = vunpack.c.h.b16 %v28
  %v501 = vunpack.c.l.b16 %v29
  %v502 = vunpack.c.l.b16 %v30
  %v503 = vunpack.c.h.b16 %v30
  %v504 = vunpack.c.l.b16 %v31
  %v505 = vunpack.c.h.b16 %v31
  %v506 = vunpack.c.l.b16 %v32
  %v507 = vunpack.c.l.b16 %v33
  %v508 = vunpack.c.h.b16 %v33
  %v509 = vunpack.c.l.b16 %v34
  %v510 = vunpack.c.h.b16 %v34
  %v511 = vunpack.c.l.b16 %v35
  %v512 = vunpack.c.l.b16 %v36
  %v513 = vunpack.c.h.b16 %v36
  %v514 = vunpack.c.l.b16 %v37
  %v515 = vunpack.c.h.b16 %v37
  %v516 = vunpack.c.l.b16 %v38
  %v517 = vunpack.c.l.b16 %v39
  %v518 = vunpack.c.h.b16 %v39
  %v519 = vunpack.c.l.b16 %v40
  %v520 = vunpack.c.h.b16 %v40
  %v521 = vunpack.c.l.b16 %v41
  %v522 = vunpack.c.l.b16 %v42
  %v523 = vunpack.c.h.b16 %v42
  %v524 = vunpack.c.l.b16 %v43
  %v525 = vunpack.c.h.b16 %v43
  %v526 = vunpack.c.l.b16 %v44
  %v527 = vunpack.c.l.b16 %v45
  %v528 = vunpack.c.h.b16 %v45
  %v529 = vunpack.c.l.b16 %v46
  %v530 = vunpack.c.h.b16 %v46
  %v531 = vunpack.c.l.b16 %v47
  %v532 = vunpack.c.l.b16 %v48
  %v533 = vunpack.c.h.b16 %v48
  %v534 = vunpack.c.l.b16 %v49
  %v535 = vunpack.c.h.b16 %v49
  %v536 = vunpack.c.l.b16 %v50
  %v537 = vunpack.c.l.b16 %v51
  %v538 = vunpack.c.h.b16 %v51
  %v539 = vunpack.c.l.b16 %v52
  %v540 = vunpack.c.h.b16 %v52
  %v541 = vunpack.c.l.b16 %v53
  %v542 = vunpack.c.l.b16 %v54
  %v543 = vunpack.c.h.b16 %v54
  %v544 = vunpack.c.l.b16 %v55
  %v545 = vunpack.c.h.b16 %v55
  %v546 = vunpack.c.l.b16 %v56
  %v547 = vunpack.c.l.b16 %v57
  %v548 = vunpack.c.h.b16 %v57
  %v549 = vunpack.c.l.b16 %v58
  %v550 = vunpack.c.h.b16 %v58
  %v551 = vunpack.c.l.b16 %v59
  %v552 = vunpack.c.l.b16 %v60
  %v553 = vunpack.c.h.b16 %v60
  %v554 = vunpack.c.l.b16 %v61
  %v555 = vunpack.c.h.b16 %v61
  %v556 = vunpack.c.l.b16 %v62
  %v557 = vunpack.c.l.b16 %v63
  %v558 = vunpack.c.h.b16 %v63
  %v559 = vunpack.c.l.b16 %v64
  %v560 = vunpack.c.h.b16 %v64
  %v561 = vunpack.c.l.b16 %v65
  %v562 = vunpack.c.l.b16 %v66
  %v563 = vunpack.c.h.b16 %v66
  %v564 = vunpack.c.l.b16 %v67
  %v565 = vunpack.c.h.b16 %v67
  %v566 = vunpack.c.l.b16 %v68
  %v567 = vunpack.c.l.b16 %v69
  %v568 = vunpack.c.h.b16 %v69
  %v569 = vunpack.c.l.b16 %v70
  %v570 = vunpack.c.h.b16 %v70
  %v571 = vunpack.c.l.b16 %v71
  %v572 = vunpack.c.l.b16 %v72
  %v573 = vunpack.c.h.b16 %v72
  %v574 = vunpack.c.l.b16 %v73
  %v575 = vunpack.c.h.b16 %v73
  %v576 = vunpack.c.l.b16 %v74
  %v577 = vunpack.c.l.b16 %v75
  %v578 = vunpack.c.h.b16 %v75
  %v579 = vunpack.c.l.b16 %v76
  %v580 = vunpack.c.h.b16 %v76
  %v581 = vunpack.c.l.b16 %v77
  %v582 = vunpack.c.l.b16 %v78
  %v583 = vunpack.c.h.b16 %v78
  %v584 = vunpack.c.l.b16 %v79
  %v585 = vunpack.c.h.b16 %v79
  %v586 = vunpack.c.l.b16 %v80
  %v587 = vunpack.c.l.b16 %v81
  %v588 = vunpack.c.h.b16 %v81
  %v589 = vunpack.c.l.b16 %v82
  %v590 = vunpack.c.h.b16 %v82
  %v591 = vunpack.c.l.b16 %v83
  %v592 = vunpack.c.l.b16 %v84
  %v593 = vunpack.c.h.b16 %v84
  %v594 = vunpack.c.l.b16 %v85
  %v595 = vunpack.c.h.b16 %v85
  %v596 = vunpack.c.l.b16 %v86
  %v597 = vunpack.c.l.b16 %v87
  %v598 = vunpack.c.h.b16 %v87
  %v599 = vunpack.c.l.b16 %v88
  %v600 = vunpack.c.h.b16 %v88
  %v601 = vunpack.c.l.b16 %v89
  %v602 = vunpack.c.l.b16 %v90
  %v603 = vunpack.c.h.b16 %v90
  %v604 = vunpack.c.l.b16 %v91
  %v605 = vunpack.c.h.b16 %v91
  %v606 = vunpack.c.l.b16 %v92
  %v607 = vunpack.c.l.b16 %v93
  %v608 = vunpack.c.h.b16 %v93
  %v609 = vunpack.c.l.b16 %v94
  %v610 = vunpack.c.h.b16 %v94
  %v611 = vunpack.c.l.b16 %v95
  %v612 = vunpack.c.l.b16 %v96
  %v613 = vunpack.c.h.b16 %v96
  %v614 = vunpack.c.l.b16 %v97
  %v615 = vunpack.c.h.b16 %v97
  %v616 = vunpack.c.l.b16 %v98
  %v617 = vunpack.c.l.b16 %v99
  %v618 = vunpack.c.h.b16 %v99
  %v619 = vunpack.c.l.b16 %v100
  %v620 = vunpack.c.h.b16 %v100
  %v621 = vunpack.c.l.b16 %v101
  %v622 = vunpack.c.l.b16 %v102
  %v623 = vunpack.c.h.b16 %v102
  %v624 = vunpack.c.l.b16 %v103
  %v625 = vunpack.c.h.b16 %v103
  %v626 = vunpack.c.l.b16 %v104
  %v627 = vunpack.c.l.b16 %v105
  %v628 = vunpack.c.h.b16 %v105
  %v629 = vunpack.c.l.b16 %v106
  %v630 = vunpack.c.h.b16 %v106
  %v631 = vunpack.c.l.b16 %v107
  %v632 = vunpack.c.l.b16 %v108
  %v633 = vunpack.c.h.b16 %v108
  %v634 = vunpack.c.l.b16 %v109
  %v635 = vunpack.c.h.b16 %v109
  %v636 = vunpack.c.l.b16 %v110
  %v637 = vunpack.c.l.b16 %v111
  %v638 = vunpack.c.h.b16 %v111
  %v639 = vunpack.c.l.b16 %v112
  %v640 = vunpack.c.h.b16 %v112
  %v641 = vunpack.c.l.b16 %v113
  %v642 = vunpack.c.l.b16 %v114
  %v643 = vunpack.c.h.b16 %v114
  %v644 = vunpack.c.l.b16 %v115
  %v645 = vunpack.c.h.b16 %v115
  %v646 = vunpack.c.l.b16 %v116
  %v647 = vunpack.c.l.b16 %v117
  %v648 = vunpack.c.h.b16 %v117
  %v649 = vunpack.c.l.b16 %v118
  %v650 = vunpack.c.h.b16 %v118
  %v651 = vunpack.c.l.b16 %v119
  %v652 = vunpack.c.l.b16 %v120
  %v653 = vunpack.c.h.b16 %v120
  %v654 = vunpack.c.l.b16 %v121
  %v655 = vunpack.c.h.b16 %v121
  %v656 = vunpack.c.l.b16 %v122
  %v657 = vunpack.c.l.b16 %v123
  %v658 = vunpack.c.h.b16 %v123
  %v659 = vunpack.c.l.b16 %v124
  %v660 = vunpack.c.h.b16 %v124
  %v661 = vunpack.c.l.b16 %v125
  %v662 = vunpack.c.l.b16 %v126
  %v663 = vunpack.c.h.b16 %v126
  %v664 = vunpack.c.l.b16 %v127
  %v665 = vunpack.c.h.b16 %v127
  %v666 = vunpack.c.l.b16 %v128
  %v667 = vunpack.c.l.b16 %v129
  %v668 = vunpack.c.h.b16 %v129
  %v669 = vunpack.c.l.b16 %v130
  %v670 = vunpack.c.h.b16 %v130
  %v671 = vunpack.c.l.b16 %v131
  %v672 = vunpack.c.l.b16 %v132
  %v673 = vunpack.c.h.b16 %v132
  %v674 = vunpack.c.l.b16 %v133
  %v675 = vunpack.c.h.b16 %v133
  %v676 = vunpack.c.l.b16 %v134
  %v677 = vunpack.c.l.b16 %v135
  %v678 = vunpack.c.h.b16 %v135
  %v679 = vunpack.c.l.b16 %v136
  %v680 = vunpack.c.h.b16 %v136
  %v681 = vunpack.c.l.b16 %v137
  %v682 = vunpack.c.l.b16 %v138
  %v683 = vunpack.c.h.b16 %v138
  %v684 = vunpack.c.l.b16 %v139
  %v685 = vunpack.c.h.b16 %v139
  %v686 = vunpack.c.l.b16 %v140
  %v687 = vunpack.c.l.b16 %v141
  %v688 = vunpack.c.h.b16 %v141
  %v689 = vunpack.c.l.b16 %v142
  %v690 = vunpack.c.h.b16 %v142
  %v691 = vunpack.c.l.b16 %v143
  %v692 = vunpack.c.l.b16 %v144
  %v693 = vunpack.c.h.b16 %v144
  %v694 = vunpack.c.l.b16 %v145
  %v695 = vunpack.c.h.b16 %v145
  %v696 = vunpack.c.l.b16 %v146
  %v697 = vunpack.c.l.b16 %v147
  %v698 = vunpack.c.h.b16 %v147
  %v699 = vunpack.c.l.b16 %v148
  %v700 = vunpack.c.h.b16 %v148
  %v701 = vunpack.c.l.b16 %v149
  %v702 = vunpack.c.l.b16 %v150
  %v703 = vunpack.c.h.b16 %v150
  %v704 = vunpack.c.l.b16 %v151
  %v705 = vunpack.c.h.b16 %v151
  %v706 = vunpack.c.l.b16 %v152
  %v707 = vunpack.c.l.b16 %v153
  %v708 = vunpack.c.h.b16 %v153
  %v709 = vunpack.c.l.b16 %v154
  %v710 = vunpack.c.h.b16 %v154
  %v711 = vunpack.c.l.b16 %v155
  %v712 = vunpack.c.l.b16 %v156
  %v713 = vunpack.c.h.b16 %v156
  %v714 = vunpack.c.l.b16 %v157
  %v715 = vunpack.c.h.b16 %v157
  %v716 = vunpack.c.l.b16 %v158
  %v717 = vunpack.c.l.b16 %v159
  %v718 = vunpack.c.h.b16 %v159
  %v719 = vunpack.c.l.b16 %v160
  %v720 = vunpack.c.h.b16 %v160
  %v721 = vunpack.c.l.b16 %v161
  %v722 = vunpack.c.l.b16 %v162
  %v723 = vunpack.c.h.b16 %v162
  %v724 = vunpack.c.l.b16 %v163
  %v725 = vunpack.c.h.b16 %v163
  %v726 = vunpack.c.l.b16 %v164
  %v727 = vunpack.c.l.b16 %v165
  %v728 = vunpack.c.h.b16 %v165
  %v729 = vunpack.c.l.b16 %v166
  %v730 = vunpack.c.h.b16 %v166
  %v731 = vunpack.c.l.b16 %v167
  %v732 = vunpack.c.l.b16 %v168
  %v733 = vunpack.c.h.b16 %v168
  %v734 = vunpack.c.l.b16 %v169
  %v735 = vunpack.c.h.b16 %v169
  %v736 = vunpack.c.l.b16 %v170
  %v737 = vunpack.c.l.b16 %v171
  %v738 = vunpack.c.h.b16 %v171
  %v739 = vunpack.c.l.b16 %v172
  %v740 = vunpack.c.h.b16 %v172
  %v741 = vunpack.c.l.b16 %v173
  %v742 = vunpack.c.l.b16 %v174
  %v743 = vunpack.c.h.b16 %v174
  %v744 = vunpack.c.l.b16 %v175
  %v745 = vunpack.c.h.b16 %v175
  %v746 = vunpack.c.l.b16 %v176
  %v747 = vunpack.c.l.b16 %v177
  %v748 = vunpack.c.h.b16 %v177
  %v749 = vunpack.c.l.b16 %v178
  %v750 = vunpack.c.h.b16 %v178
  %v751 = vunpack.c.l.b16 %v179
  %v752 = vunpack.c.l.b16 %v180
  %v753 = vunpack.c.h.b16 %v180
  %v754 = vunpack.c.l.b16 %v181
  %v755 = vunpack.c.h.b16 %v181
  %v756 = vunpack.c.l.b16 %v182
  %v757 = vunpack.c.l.b16 %v183
  %v758 = vunpack.c.h.b16 %v183
  %v759 = vunpack.c.l.b16 %v184
  %v760 = vunpack.c.h.b16 %v184
  %v761 = vunpack.c.l.b16 %v185
  %v762 = vunpack.c.l.b16 %v186
  %v763 = vunpack.c.h.b16 %v186
  %v764 = vunpack.c.l.b16 %v187
  %v765 = vunpack.c.h.b16 %v187
  %v766 = vunpack.c.l.b16 %v188
  %v767 = vunpack.c.l.b16 %v189
  %v768 = vunpack.c.h.b16 %v189
  %v769 = vunpack.c.l.b16 %v190
  %v770 = vunpack.c.h.b16 %v190
  %v771 = vunpack.c.l.b16 %v191
  %v772 = vunpack.c.l.b16 %v192
  %v773 = vunpack.c.h.b16 %v192
  %v774 = vunpack.c.l.b16 %v193
  %v775 = vunpack.c.h.b16 %v193
  %v776 = vunpack.c.l.b16 %v194
  %v777 = vunpack.c.l.b16 %v195
  %v778 = vunpack.c.h.b16 %v195
  %v779 = vunpack.c.l.b16 %v196
  %v780 = vunpack.c.h.b16 %v196
  %v781 = vunpack.c.l.b16 %v197
  %v782 = vunpack.c.l.b16 %v198
  %v783 = vunpack.c.h.b16 %v198
  %v784 = vunpack.c.l.b16 %v199
  %v785 = vunpack.c.h.b16 %v199
  %v786 = vunpack.c.l.b16 %v200
  %v787 = vunpack.c.l.b16 %v201
  %v788 = vunpack.c.h.b16 %v201
  %v789 = vunpack.c.l.b16 %v202
  %v790 = vunpack.c.h.b16 %v202
  %v791 = vunpack.c.l.b16 %v203
  %v792 = vunpack.c.l.b16 %v204
  %v793 = vunpack.c.h.b16 %v204
  %v794 = vunpack.c.l.b16 %v205
  %v795 = vunpack.c.h.b16 %v205
  %v796 = vunpack.c.l.b16 %v206
  %v797 = vunpack.c.l.b16 %v207
  %v798 = vunpack.c.h.b16 %v207
  %v799 = vunpack.c.l.b16 %v208
  %v800 = vunpack.c.h.b16 %v208
  %v801 = vunpack.c.l.b16 %v209
  %v802 = vpack.c.b16 %v487, %v482
  %v803 = vpack.c.b16 %v488, %v483
  %v804 = vpack.c.b16 %v489, %v484
  %v805 = vpack.c.b16 %v490, %v485
  %v806 = vpack.c.b16 %v491, %v486
  %v807 = vpack.c.b16 %v497, %v492
  %v808 = vpack.c.b16 %v498, %v493
  %v809 = vpack.c.b16 %v499, %v494
  %v810 = vpack.c.b16 %v500, %v495
  %v811 = vpack.c.b16 %v501, %v496
  %v812 = vpack.c.b16 %v507, %v502
  %v813 = vpack.c.b16 %v508, %v503
  %v814 = vpack.c.b16 %v509, %v504
  %v815 = vpack.c.b16 %v510, %v505
  %v816 = vpack.c.b16 %v511, %v506
  %v817 = vpack.c.b16 %v517, %v512
  %v818 = vpack.c.b16 %v518, %v513
  %v819 = vpack.c.b16 %v519, %v514
  %v820 = vpack.c.b16 %v520, %v515
  %v821 = vpack.c.b16 %v521, %v516
  %v822 = vpack.c.b16 %v527, %v522
  %v823 = vpack.c.b16 %v528, %v523
  %v824 = vpack.c.b16 %v529, %v524
  %v825 = vpack.c.b16 %v530, %v525
  %v826 = vpack.c.b16 %v531, %v526
  %v827 = vpack.c.b16 %v537, %v532
  %v828 = vpack.c.b16 %v538, %v533
  %v829 = vpack.c.b16 %v539, %v534
  %v830 = vpack.c.b16 %v540, %v535
  %v831 = vpack.c.b16 %v541, %v536
  %v832 = vpack.c.b16 %v547, %v542
  %v833 = vpack.c.b16 %v548, %v543
  %v834 = vpack.c.b16 %v549, %v544
  %v835 = vpack.c.b16 %v550, %v545
  %v836 = vpack.c.b16 %v551, %v546
  %v837 = vpack.c.b16 %v557, %v552
  %v838 = vpack.c.b16 %v558, %v553
  %v839 = vpack.c.b16 %v559, %v554
  %v840 = vpack.c.b16 %v560, %v555
  %v841 = vpack.c.b16 %v561, %v556
  %v842 = vpack.c.b16 %v567, %v562
  %v843 = vpack.c.b16 %v568, %v563
  %v844 = vpack.c.b16 %v569, %v564
  %v845 = vpack.c.b16 %v570, %v565
  %v846 = vpack.c.b16 %v571, %v566
  %v847 = vpack.c.b16 %v577, %v572
  %v848 = vpack.c.b16 %v578, %v573
  %v849 = vpack.c.b16 %v579, %v574
  %v850 = vpack.c.b16 %v580, %v575
  %v851 = vpack.c.b16 %v581, %v576
  %v852 = vpack.c.b16 %v587, %v582
  %v853 = vpack.c.b16 %v588, %v583
  %v854 = vpack.c.b16 %v589, %v584
  %v855 = vpack.c.b16 %v590, %v585
  %v856 = vpack.c.b16 %v591, %v586
  %v857 = vpack.c.b16 %v597, %v592
  %v858 = vpack.c.b16 %v598, %v593
  %v859 = vpack.c.b16 %v599, %v594
  %v860 = vpack.c.b16 %v600, %v595
  %v861 = vpack.c.b16 %v601, %v596
  %v862 = vpack.c.b16 %v607, %v602
  %v863 = vpack.c.b16 %v608, %v603
  %v864 = vpack.c.b16 %v609, %v604
  %v865 = vpack.c.b16 %v610, %v605
  %v866 = vpack.c.b16 %v611, %v606
  %v867 = vpack.c.b16 %v617, %v612
  %v868 = vpack.c.b16 %v618, %v613
  %v869 = vpack.c.b16 %v619, %v614
  %v870 = vpack.c.b16 %v620, %v615
  %v871 = vpack.c.b16 %v621, %v616
  %v872 = vpack.c.b16 %v627, %v622
  %v873 = vpack.c.b16 %v628, %v623
  %v874 = vpack.c.b16 %v629, %v624
  %v875 = vpack.c.b16 %v630, %v625
  %v876 = vpack.c.b16 %v631, %v626
  %v877 = vpack.c.b16 %v637, %v632
  %v878 = vpack.c.b16 %v638, %v633
  %v879 = vpack.c.b16 %v639, %v634
  %v880 = vpack.c.b16 %v640, %v635
  %v881 = vpack.c.b16 %v641, %v636
  %v882 = vpack.c.b16 %v647, %v642
  %v883 = vpack.c.b16 %v648, %v643
  %v884 = vpack.c.b16 %v649, %v644
  %v885 = vpack.c.b16 %v650, %v645
  %v886 = vpack.c.b16 %v651, %v646
  %v887 = vpack.c.b16 %v657, %v652
  %v888 = vpack.c.b16 %v658, %v653
  %v889 = vpack.c.b16 %v659, %v654
  %v890 = vpack.c.b16 %v660, %v655
  %v891 = vpack.c.b16 %v661, %v656
  %v892 = vpack.c.b16 %v667, %v662
  %v893 = vpack.c.b16 %v668, %v663
  %v894 = vpack.c.b16 %v669, %v664
  %v895 = vpack.c.b16 %v670, %v665
  %v896 = vpack.c.b16 %v671, %v666
  %v897 = vpack.c.b16 %v677, %v672
  %v898 = vpack.c.b16 %v678, %v673
  %v899 = vpack.c.b16 %v679, %v674
  %v900 = vpack.c.b16 %v680, %v675
  %v901 = vpack.c.b16 %v681, %v676
  %v902 = vpack.c.b16 %v687, %v682
  %v903 = vpack.c.b16 %v688, %v683
  %v904 = vpack.c.b16 %v689, %v684
  %v905 = vpack.c.b16 %v690, %v685
  %v906 = vpack.c.b16 %v691, %v686
  %v907 = vpack.c.b16 %v697, %v692
  %v908 = vpack.c.b16 %v698, %v693
  %v909 = vpack.c.b16 %v699, %v694
  %v910 = vpack.c.b16 %v700, %v695
  %v911 = vpack.c.b16 %v701, %v696
  %v912 = vpack.c.b16 %v707, %v702
  %v913 = vpack.c.b16 %v708, %v703
  %v914 = vpack.c.b16 %v709, %v704
  %v915 = vpack.c.b16 %v710, %v705
  %v916 = vpack.c.b16 %v711, %v706
  %v917 = vpack.c.b16 %v717, %v712
  %v918 = vpack.c.b16 %v718, %v713
  %v919 = vpack.c.b16 %v719, %v714
  %v920 = vpack.c.b16 %v720, %v715
  %v921 = vpack.c.b16 %v721, %v716
  %v922 = vpack.c.b16 %v727, %v722
  %v923 = vpack.c.b16 %v728, %v723
  %v924 = vpack.c.b16 %v729, %v724
  %v925 = vpack.c.b16 %v730, %v725
  %v926 = vpack.c.b16 %v731, %v726
  %v927 = vpack.c.b16 %v737, %v732
  %v928 = vpack.c.b16 %v738, %v733
  %v929 = vpack.c.b16 %v739, %v734
  %v930 = vpack.c.b16 %v740, %v735
  %v931 = vpack.c.b16 %v741, %v736
  %v932 = vpack.c.b16 %v747, %v742
  %v933 = vpack.c.b16 %v748, %v743
  %v934 = vpack.c.b16 %v749, %v744
  %v935 = vpack.c.b16 %v750, %v745
  %v936 = vpack.c.b16 %v751, %v746
  %v937 = vpack.c.b16 %v757, %v752
  %v938 = vpack.c.b16 %v758, %v753
  %v939 = vpack.c.b16 %v759, %v754
  %v940 = vpack.c.b16 %v760, %v755
  %v941 = vpack.c.b16 %v761, %v756
  %v942 = vpack.c.b16 %v767, %v762
  %v943 = vpack.c.b16 %v768, %v763
  %v944 = vpack.c.b16 %v769, %v764
  %v945 = vpack.c.b16 %v770, %v765
  %v946 = vpack.c.b16 %v771, %v766
  %v947 = vpack.c.b16 %v777, %v772
  %v948 = vpack.c.b16 %v778, %v773
  %v949 = vpack.c.b16 %v779, %v774
  %v950 = vpack.c.b16 %v780, %v775
  %v951 = vpack.c.b16 %v781, %v776
  %v952 = vpack.c.b16 %v787, %v782
  %v953 = vpack.c.b16 %v788, %v783
  %v954 = vpack.c.b16 %v789, %v784
  %v955 = vpack.c.b16 %v790, %v785
  %v956 = vpack.c.b16 %v791, %v786
  %v957 = vpack.c.b16 %v797, %v792
  %v958 = vpack.c.b16 %v798, %v793
  %v959 = vpack.c.b16 %v799, %v794
  %v960 = vpack.c.b16 %v800, %v795
  %v961 = vpack.c.b16 %v801, %v796
  %v1202 = vunpack.c.l.b16 %v210
  %v1203 = vunpack.c.l.b16 %v211
  %v1204 = vunpack.c.l.b16 %v212
  %v1205 = vunpack.c.l.b16 %v213
  %v1206 = vunpack.c.l.b16 %v214
  %v1207 = vunpack.c.l.b16 %v215
  %v1208 = vunpack.c.l.b16 %v216
  %v1209 = vunpack.c.l.b16 %v217
  %v1210 = vunpack.c.l.b16 %v218
  %v1211 = vunpack.c.l.b16 %v219
  %v1212 = vunpack.c.l.b16 %v220
  %v1213 = vunpack.c.l.b16 %v221
  %v1214 = vunpack.c.l.b16 %v222
  %v1215 = vunpack.c.l.b16 %v223
  %v1216 = vunpack.c.l.b16 %v224
  %v1217 = vunpack.c.l.b16 %v225
  %v1218 = vunpack.c.l.b16 %v226
  %v1219 = vunpack.c.l.b16 %v227
  %v1220 = vunpack.c.l.b16 %v228
  %v1221 = vunpack.c.l.b16 %v229
  %v1222 = vunpack.c.l.b16 %v230
  %v1223 = vunpack.c.l.b16 %v231
  %v1224 = vunpack.c.l.b16 %v232
  %v1225 = vunpack.c.l.b16 %v233
  %v1226 = vunpack.c.l.b16 %v234
  %v1227 = vunpack.c.l.b16 %v235
  %v1228 = vunpack.c.l.b16 %v236
  %v1229 = vunpack.c.l.b16 %v237
  %v1230 = vunpack.c.l.b16 %v238
  %v1231 = vunpack.c.l.b16 %v239
  %v1232 = vunpack.c.l.b16 %v240
  %v1233 = vunpack.c.l.b16 %v241
  %v1234 = vunpack.c.l.b16 %v242
  %v1235 = vunpack.c.l.b16 %v243
  %v1236 = vunpack.c.l.b16 %v244
  %v1237 = vunpack.c.l.b16 %v245
  %v1238 = vunpack.c.l.b16 %v246
  %v1239 = vunpack.c.l.b16 %v247
  %v1240 = vunpack.c.l.b16 %v248
  %v1241 = vunpack.c.l.b16 %v249
  %v1242 = vunpack.c.l.b16 %v250
  %v1243 = vunpack.c.l.b16 %v251
  %v1244 = vunpack.c.l.b16 %v252
  %v1245 = vunpack.c.l.b16 %v253
  %v1246 = vunpack.c.l.b16 %v254
  %v1247 = vunpack.c.l.b16 %v255
  %v1248 = vunpack.c.l.b16 %v256
  %v1249 = vunpack.c.l.b16 %v257
  %v1250 = vunpack.c.l.b16 %v258
  %v1251 = vunpack.c.l.b16 %v259
  %v1252 = vunpack.c.l.b16 %v260
  %v1253 = vunpack.c.l.b16 %v261
  %v1254 = vunpack.c.l.b16 %v262
  %v1255 = vunpack.c.l.b16 %v263
  %v1256 = vunpack.c.l.b16 %v264
  %v1257 = vunpack.c.l.b16 %v265
  %v1258 = vunpack.c.l.b16 %v266
  %v1259 = vunpack.c.l.b16 %v267
  %v1260 = vunpack.c.l.b16 %v268
  %v1261 = vunpack.c.l.b16 %v269
  %v1262 = vunpack.c.l.b16 %v270
  %v1263 = vunpack.c.l.b16 %v271
  %v1264 = vunpack.c.l.b16 %v272
  %v1265 = vunpack.c.l.b16 %v273
  %v1266 = vunpack.c.l.b16 %v274
  %v1267 = vunpack.c.l.b16 %v275
  %v1268 = vunpack.c.l.b16 %v276
  %v1269 = vunpack.c.l.b16 %v277
  %v1270 = vunpack.c.l.b16 %v278
  %v1271 = vunpack.c.l.b16 %v279
  %v1272 = vunpack.c.l.b16 %v280
  %v1273 = vunpack.c.l.b16 %v281
  %v1274 = vunpack.c.l.b16 %v282
  %v1275 = vunpack.c.l.b16 %v283
  %v1276 = vunpack.c.l.b16 %v284
  %v1277 = vunpack.c.l.b16 %v285
  %v1278 = vunpack.c.l.b16 %v286
  %v1279 = vunpack.c.l.b16 %v287
  %v1280 = vunpack.c.l.b16 %v288
  %v1281 = vunpack.c.l.b16 %v289
  %v1282 = vpack.c.b16 %v1203, %v1202
  %v1283 = vpack.c.b16 %v1205, %v1204
  %v1284 = vpack.c.b16 %v1207, %v1206
  %v1285 = vpack.c.b16 %v1209, %v1208
  %v1286 = vpack.c.b16 %v1211, %v1210
  %v1287 = vpack.c.b16 %v1213, %v1212
  %v1288 = vpack.c.b16 %v1215, %v1214
  %v1289 = vpack.c.b16 %v1217, %v1216
  %v1290 = vpack.c.b16 %v1219, %v1218
  %v1291 = vpack.c.b16 %v1221, %v1220
  %v1292 = vpack.c.b16 %v1223, %v1222
  %v1293 = vpack.c.b16 %v1225, %v1224
  %v1294 = vpack.c.b16 %v1227, %v1226
  %v1295 = vpack.c.b16 %v1229, %v1228
  %v1296 = vpack.c.b16 %v1231, %v1230
  %v1297 = vpack.c.b16 %v1233, %v1232
  %v1298 = vpack.c.b16 %v1235, %v1234
  %v1299 = vpack.c.b16 %v1237, %v1236
  %v1300 = vpack.c.b16 %v1239, %v1238
  %v1301 = vpack.c.b16 %v1241, %v1240
  %v1302 = vpack.c.b16 %v1243, %v1242
  %v1303 = vpack.c.b16 %v1245, %v1244
  %v1304 = vpack.c.b16 %v1247, %v1246
  %v1305 = vpack.c.b16 %v1249, %v1248
  %v1306 = vpack.c.b16 %v1251, %v1250
  %v1307 = vpack.c.b16 %v1253, %v1252
  %v1308 = vpack.c.b16 %v1255, %v1254
  %v1309 = vpack.c.b16 %v1257, %v1256
  %v1310 = vpack.c.b16 %v1259, %v1258
  %v1311 = vpack.c.b16 %v1261, %v1260
  %v1312 = vpack.c.b16 %v1263, %v1262
  %v1313 = vpack.c.b16 %v1265, %v1264
  %v1314 = vpack.c.b16 %v1267, %v1266
  %v1315 = vpack.c.b16 %v1269, %v1268
  %v1316 = vpack.c.b16 %v1271, %v1270
  %v1317 = vpack.c.b16 %v1273, %v1272
  %v1318 = vpack.c.b16 %v1275, %v1274
  %v1319 = vpack.c.b16 %v1277, %v1276
  %v1320 = vpack.c.b16 %v1279, %v1278
  %v1321 = vpack.c.b16 %v1281, %v1280
  %1362 = vmatprep.subr.bf16.mxu0 0
  %1363 = vmatpush1.bf16.msra.mxu0 %v1289
  %1364 = vmatprep.subr.bf16.mxu0 0
  %1365 = vmatpush1.bf16.msra.mxu0 %v1288
  %1366 = vmatprep.subr.bf16.mxu0 0
  %1367 = vmatpush1.bf16.msra.mxu0 %v1287
  %1368 = vmatprep.subr.bf16.mxu0 0
  %1369 = vmatpush1.bf16.msra.mxu0 %v1286
  %1370 = vmatprep.subr.bf16.mxu0 0
  %1371 = vmatpush1.bf16.msra.mxu0 %v1285
  %1372 = vmatprep.subr.bf16.mxu0 0
  %1373 = vmatpush1.bf16.msra.mxu0 %v1284
  %1374 = vmatprep.subr.bf16.mxu0 0
  %1375 = vmatpush1.bf16.msra.mxu0 %v1283
  %1376 = vmatprep.subr.bf16.mxu0 0
  %1377 = vmatpush1.bf16.msra.mxu0 %v1282
  %1378 = vmatprep.subr.bf16.mxu0 0
  %1379 = vmatpush2.bf16.msra.mxu0 %v1297
  %1380 = vmatprep.subr.bf16.mxu0 0
  %1381 = vmatpush2.bf16.msra.mxu0 %v1296
  %1382 = vmatprep.subr.bf16.mxu0 0
  %1383 = vmatpush2.bf16.msra.mxu0 %v1295
  %1384 = vmatprep.subr.bf16.mxu0 0
  %1385 = vmatpush2.bf16.msra.mxu0 %v1294
  %1386 = vmatprep.subr.bf16.mxu0 0
  %1387 = vmatpush2.bf16.msra.mxu0 %v1293
  %1388 = vmatprep.subr.bf16.mxu0 0
  %1389 = vmatpush2.bf16.msra.mxu0 %v1292
  %1390 = vmatprep.subr.bf16.mxu0 0
  %1391 = vmatpush2.bf16.msra.mxu0 %v1291
  %1392 = vmatprep.subr.bf16.mxu0 0
  %1393 = vmatpush2.bf16.msra.mxu0 %v1290
  %1394 = vmatprep.mubr.bf16.mxu0 %v803
  %1395 = vmatmul.mubr.bf16.gmra.mxu0 %v802
  %v1396 = vpop.f32.mrf.mxu0
  %v1397 = vadd.f32 0.0, %v1396
  %v1398 = vpop.f32.mrf.mxu0
  %v1399 = vpop.f32.mrf.mxu0
  %v1400 = vadd.f32 0.0, %v1399
  %v1401 = vpop.f32.mrf.mxu0
  %1402 = vmatprep.mubr.bf16.mxu0 %v808
  %1403 = vmatmul.mubr.bf16.gmra.mxu0 %v807
  %v1404 = vpop.f32.mrf.mxu0
  %v1405 = vadd.f32 0.0, %v1404
  %v1406 = vpop.f32.mrf.mxu0
  %v1407 = vpop.f32.mrf.mxu0
  %v1408 = vadd.f32 0.0, %v1407
  %v1409 = vpop.f32.mrf.mxu0
  %1410 = vmatprep.mubr.bf16.mxu0 %v813
  %1411 = vmatmul.mubr.bf16.gmra.mxu0 %v812
  %v1412 = vpop.f32.mrf.mxu0
  %v1413 = vadd.f32 0.0, %v1412
  %v1414 = vpop.f32.mrf.mxu0
  %v1415 = vpop.f32.mrf.mxu0
  %v1416 = vadd.f32 0.0, %v1415
  %v1417 = vpop.f32.mrf.mxu0
  %1418 = vmatprep.mubr.bf16.mxu0 %v818
  %1419 = vmatmul.mubr.bf16.gmra.mxu0 %v817
  %v1420 = vpop.f32.mrf.mxu0
  %v1421 = vadd.f32 0.0, %v1420
  %v1422 = vpop.f32.mrf.mxu0
  %v1423 = vpop.f32.mrf.mxu0
  %v1424 = vadd.f32 0.0, %v1423
  %v1425 = vpop.f32.mrf.mxu0
  %1426 = vmatprep.mubr.bf16.mxu0 %v823
  %1427 = vmatmul.mubr.bf16.gmra.mxu0 %v822
  %v1428 = vpop.f32.mrf.mxu0
  %v1429 = vadd.f32 0.0, %v1428
  %v1430 = vpop.f32.mrf.mxu0
  %v1431 = vpop.f32.mrf.mxu0
  %v1432 = vadd.f32 0.0, %v1431
  %v1433 = vpop.f32.mrf.mxu0
  %1434 = vmatprep.mubr.bf16.mxu0 %v828
  %1435 = vmatmul.mubr.bf16.gmra.mxu0 %v827
  %v1436 = vpop.f32.mrf.mxu0
  %v1437 = vadd.f32 0.0, %v1436
  %v1438 = vpop.f32.mrf.mxu0
  %v1439 = vpop.f32.mrf.mxu0
  %v1440 = vadd.f32 0.0, %v1439
  %v1441 = vpop.f32.mrf.mxu0
  %1442 = vmatprep.mubr.bf16.mxu0 %v833
  %1443 = vmatmul.mubr.bf16.gmra.mxu0 %v832
  %v1444 = vpop.f32.mrf.mxu0
  %v1445 = vadd.f32 0.0, %v1444
  %v1446 = vpop.f32.mrf.mxu0
  %v1447 = vpop.f32.mrf.mxu0
  %v1448 = vadd.f32 0.0, %v1447
  %v1449 = vpop.f32.mrf.mxu0
  %1450 = vmatprep.mubr.bf16.mxu0 %v838
  %1451 = vmatmul.mubr.bf16.gmra.mxu0 %v837
  %v1452 = vpop.f32.mrf.mxu0
  %v1453 = vadd.f32 0.0, %v1452
  %v1454 = vpop.f32.mrf.mxu0
  %v1455 = vpop.f32.mrf.mxu0
  %v1456 = vadd.f32 0.0, %v1455
  %v1457 = vpop.f32.mrf.mxu0
  %1458 = vmatprep.mubr.bf16.mxu0 %v843
  %1459 = vmatmul.mubr.bf16.gmra.mxu0 %v842
  %v1460 = vpop.f32.mrf.mxu0
  %v1461 = vadd.f32 0.0, %v1460
  %v1462 = vpop.f32.mrf.mxu0
  %v1463 = vpop.f32.mrf.mxu0
  %v1464 = vadd.f32 0.0, %v1463
  %v1465 = vpop.f32.mrf.mxu0
  %1466 = vmatprep.mubr.bf16.mxu0 %v848
  %1467 = vmatmul.mubr.bf16.gmra.mxu0 %v847
  %v1468 = vpop.f32.mrf.mxu0
  %v1469 = vadd.f32 0.0, %v1468
  %v1470 = vpop.f32.mrf.mxu0
  %v1471 = vpop.f32.mrf.mxu0
  %v1472 = vadd.f32 0.0, %v1471
  %v1473 = vpop.f32.mrf.mxu0
  %1474 = vmatprep.mubr.bf16.mxu0 %v853
  %1475 = vmatmul.mubr.bf16.gmra.mxu0 %v852
  %v1476 = vpop.f32.mrf.mxu0
  %v1477 = vadd.f32 0.0, %v1476
  %v1478 = vpop.f32.mrf.mxu0
  %v1479 = vpop.f32.mrf.mxu0
  %v1480 = vadd.f32 0.0, %v1479
  %v1481 = vpop.f32.mrf.mxu0
  %1482 = vmatprep.mubr.bf16.mxu0 %v858
  %1483 = vmatmul.mubr.bf16.gmra.mxu0 %v857
  %v1484 = vpop.f32.mrf.mxu0
  %v1485 = vadd.f32 0.0, %v1484
  %v1486 = vpop.f32.mrf.mxu0
  %v1487 = vpop.f32.mrf.mxu0
  %v1488 = vadd.f32 0.0, %v1487
  %v1489 = vpop.f32.mrf.mxu0
  %1490 = vmatprep.mubr.bf16.mxu0 %v863
  %1491 = vmatmul.mubr.bf16.gmra.mxu0 %v862
  %v1492 = vpop.f32.mrf.mxu0
  %v1493 = vadd.f32 0.0, %v1492
  %v1494 = vpop.f32.mrf.mxu0
  %v1495 = vpop.f32.mrf.mxu0
  %v1496 = vadd.f32 0.0, %v1495
  %v1497 = vpop.f32.mrf.mxu0
  %1498 = vmatprep.mubr.bf16.mxu0 %v868
  %1499 = vmatmul.mubr.bf16.gmra.mxu0 %v867
  %v1500 = vpop.f32.mrf.mxu0
  %v1501 = vadd.f32 0.0, %v1500
  %v1502 = vpop.f32.mrf.mxu0
  %v1503 = vpop.f32.mrf.mxu0
  %v1504 = vadd.f32 0.0, %v1503
  %v1505 = vpop.f32.mrf.mxu0
  %1506 = vmatprep.mubr.bf16.mxu0 %v873
  %1507 = vmatmul.mubr.bf16.gmra.mxu0 %v872
  %v1508 = vpop.f32.mrf.mxu0
  %v1509 = vadd.f32 0.0, %v1508
  %v1510 = vpop.f32.mrf.mxu0
  %v1511 = vpop.f32.mrf.mxu0
  %v1512 = vadd.f32 0.0, %v1511
  %v1513 = vpop.f32.mrf.mxu0
  %1514 = vmatprep.mubr.bf16.mxu0 %v878
  %1515 = vmatmul.mubr.bf16.gmra.mxu0 %v877
  %v1516 = vpop.f32.mrf.mxu0
  %v1517 = vadd.f32 0.0, %v1516
  %v1518 = vpop.f32.mrf.mxu0
  %v1519 = vpop.f32.mrf.mxu0
  %v1520 = vadd.f32 0.0, %v1519
  %v1521 = vpop.f32.mrf.mxu0
  %1522 = vmatprep.mubr.bf16.mxu0 %v883
  %1523 = vmatmul.mubr.bf16.gmra.mxu0 %v882
  %v1524 = vpop.f32.mrf.mxu0
  %v1525 = vadd.f32 0.0, %v1524
  %v1526 = vpop.f32.mrf.mxu0
  %v1527 = vpop.f32.mrf.mxu0
  %v1528 = vadd.f32 0.0, %v1527
  %v1529 = vpop.f32.mrf.mxu0
  %1530 = vmatprep.mubr.bf16.mxu0 %v888
  %1531 = vmatmul.mubr.bf16.gmra.mxu0 %v887
  %v1532 = vpop.f32.mrf.mxu0
  %v1533 = vadd.f32 0.0, %v1532
  %v1534 = vpop.f32.mrf.mxu0
  %v1535 = vpop.f32.mrf.mxu0
  %v1536 = vadd.f32 0.0, %v1535
  %v1537 = vpop.f32.mrf.mxu0
  %1538 = vmatprep.mubr.bf16.mxu0 %v893
  %1539 = vmatmul.mubr.bf16.gmra.mxu0 %v892
  %v1540 = vpop.f32.mrf.mxu0
  %v1541 = vadd.f32 0.0, %v1540
  %v1542 = vpop.f32.mrf.mxu0
  %v1543 = vpop.f32.mrf.mxu0
  %v1544 = vadd.f32 0.0, %v1543
  %v1545 = vpop.f32.mrf.mxu0
  %1546 = vmatprep.mubr.bf16.mxu0 %v898
  %1547 = vmatmul.mubr.bf16.gmra.mxu0 %v897
  %v1548 = vpop.f32.mrf.mxu0
  %v1549 = vadd.f32 0.0, %v1548
  %v1550 = vpop.f32.mrf.mxu0
  %v1551 = vpop.f32.mrf.mxu0
  %v1552 = vadd.f32 0.0, %v1551
  %v1553 = vpop.f32.mrf.mxu0
  %1554 = vmatprep.mubr.bf16.mxu0 %v903
  %1555 = vmatmul.mubr.bf16.gmra.mxu0 %v902
  %v1556 = vpop.f32.mrf.mxu0
  %v1557 = vadd.f32 0.0, %v1556
  %v1558 = vpop.f32.mrf.mxu0
  %v1559 = vpop.f32.mrf.mxu0
  %v1560 = vadd.f32 0.0, %v1559
  %v1561 = vpop.f32.mrf.mxu0
  %1562 = vmatprep.mubr.bf16.mxu0 %v908
  %1563 = vmatmul.mubr.bf16.gmra.mxu0 %v907
  %v1564 = vpop.f32.mrf.mxu0
  %v1565 = vadd.f32 0.0, %v1564
  %v1566 = vpop.f32.mrf.mxu0
  %v1567 = vpop.f32.mrf.mxu0
  %v1568 = vadd.f32 0.0, %v1567
  %v1569 = vpop.f32.mrf.mxu0
  %1570 = vmatprep.mubr.bf16.mxu0 %v913
  %1571 = vmatmul.mubr.bf16.gmra.mxu0 %v912
  %v1572 = vpop.f32.mrf.mxu0
  %v1573 = vadd.f32 0.0, %v1572
  %v1574 = vpop.f32.mrf.mxu0
  %v1575 = vpop.f32.mrf.mxu0
  %v1576 = vadd.f32 0.0, %v1575
  %v1577 = vpop.f32.mrf.mxu0
  %1578 = vmatprep.mubr.bf16.mxu0 %v918
  %1579 = vmatmul.mubr.bf16.gmra.mxu0 %v917
  %v1580 = vpop.f32.mrf.mxu0
  %v1581 = vadd.f32 0.0, %v1580
  %v1582 = vpop.f32.mrf.mxu0
  %v1583 = vpop.f32.mrf.mxu0
  %v1584 = vadd.f32 0.0, %v1583
  %v1585 = vpop.f32.mrf.mxu0
  %1586 = vmatprep.mubr.bf16.mxu0 %v923
  %1587 = vmatmul.mubr.bf16.gmra.mxu0 %v922
  %v1588 = vpop.f32.mrf.mxu0
  %v1589 = vadd.f32 0.0, %v1588
  %v1590 = vpop.f32.mrf.mxu0
  %v1591 = vpop.f32.mrf.mxu0
  %v1592 = vadd.f32 0.0, %v1591
  %v1593 = vpop.f32.mrf.mxu0
  %1594 = vmatprep.mubr.bf16.mxu0 %v928
  %1595 = vmatmul.mubr.bf16.gmra.mxu0 %v927
  %v1596 = vpop.f32.mrf.mxu0
  %v1597 = vadd.f32 0.0, %v1596
  %v1598 = vpop.f32.mrf.mxu0
  %v1599 = vpop.f32.mrf.mxu0
  %v1600 = vadd.f32 0.0, %v1599
  %v1601 = vpop.f32.mrf.mxu0
  %1602 = vmatprep.mubr.bf16.mxu0 %v933
  %1603 = vmatmul.mubr.bf16.gmra.mxu0 %v932
  %v1604 = vpop.f32.mrf.mxu0
  %v1605 = vadd.f32 0.0, %v1604
  %v1606 = vpop.f32.mrf.mxu0
  %v1607 = vpop.f32.mrf.mxu0
  %v1608 = vadd.f32 0.0, %v1607
  %v1609 = vpop.f32.mrf.mxu0
  %1610 = vmatprep.mubr.bf16.mxu0 %v938
  %1611 = vmatmul.mubr.bf16.gmra.mxu0 %v937
  %v1612 = vpop.f32.mrf.mxu0
  %v1613 = vadd.f32 0.0, %v1612
  %v1614 = vpop.f32.mrf.mxu0
  %v1615 = vpop.f32.mrf.mxu0
  %v1616 = vadd.f32 0.0, %v1615
  %v1617 = vpop.f32.mrf.mxu0
  %1618 = vmatprep.mubr.bf16.mxu0 %v943
  %1619 = vmatmul.mubr.bf16.gmra.mxu0 %v942
  %v1620 = vpop.f32.mrf.mxu0
  %v1621 = vadd.f32 0.0, %v1620
  %v1622 = vpop.f32.mrf.mxu0
  %v1623 = vpop.f32.mrf.mxu0
  %v1624 = vadd.f32 0.0, %v1623
  %v1625 = vpop.f32.mrf.mxu0
  %1626 = vmatprep.mubr.bf16.mxu0 %v948
  %1627 = vmatmul.mubr.bf16.gmra.mxu0 %v947
  %v1628 = vpop.f32.mrf.mxu0
  %v1629 = vadd.f32 0.0, %v1628
  %v1630 = vpop.f32.mrf.mxu0
  %v1631 = vpop.f32.mrf.mxu0
  %v1632 = vadd.f32 0.0, %v1631
  %v1633 = vpop.f32.mrf.mxu0
  %1634 = vmatprep.mubr.bf16.mxu0 %v953
  %1635 = vmatmul.mubr.bf16.gmra.mxu0 %v952
  %v1636 = vpop.f32.mrf.mxu0
  %v1637 = vadd.f32 0.0, %v1636
  %v1638 = vpop.f32.mrf.mxu0
  %v1639 = vpop.f32.mrf.mxu0
  %v1640 = vadd.f32 0.0, %v1639
  %v1641 = vpop.f32.mrf.mxu0
  %1642 = vmatprep.mubr.bf16.mxu0 %v958
  %1643 = vmatmul.mubr.bf16.gmra.mxu0 %v957
  %v1644 = vpop.f32.mrf.mxu0
  %v1645 = vadd.f32 0.0, %v1644
  %v1646 = vpop.f32.mrf.mxu0
  %v1647 = vpop.f32.mrf.mxu0
  %v1648 = vadd.f32 0.0, %v1647
  %v1649 = vpop.f32.mrf.mxu0
  %1650 = vdwg.mxu0
  %1651 = vmatprep.subr.bf16.mxu0 0
  %1652 = vmatpush1.bf16.msra.mxu0 %v1305
  %1653 = vmatprep.subr.bf16.mxu0 0
  %1654 = vmatpush1.bf16.msra.mxu0 %v1304
  %1655 = vmatprep.subr.bf16.mxu0 0
  %1656 = vmatpush1.bf16.msra.mxu0 %v1303
  %1657 = vmatprep.subr.bf16.mxu0 0
  %1658 = vmatpush1.bf16.msra.mxu0 %v1302
  %1659 = vmatprep.subr.bf16.mxu0 0
  %1660 = vmatpush1.bf16.msra.mxu0 %v1301
  %1661 = vmatprep.subr.bf16.mxu0 0
  %1662 = vmatpush1.bf16.msra.mxu0 %v1300
  %1663 = vmatprep.subr.bf16.mxu0 0
  %1664 = vmatpush1.bf16.msra.mxu0 %v1299
  %1665 = vmatprep.subr.bf16.mxu0 0
  %1666 = vmatpush1.bf16.msra.mxu0 %v1298
  %1667 = vmatprep.subr.bf16.mxu0 0
  %1668 = vmatpush2.bf16.msra.mxu0 %v1313
  %1669 = vmatprep.subr.bf16.mxu0 0
  %1670 = vmatpush2.bf16.msra.mxu0 %v1312
  %1671 = vmatprep.subr.bf16.mxu0 0
  %1672 = vmatpush2.bf16.msra.mxu0 %v1311
  %1673 = vmatprep.subr.bf16.mxu0 0
  %1674 = vmatpush2.bf16.msra.mxu0 %v1310
  %1675 = vmatprep.subr.bf16.mxu0 0
  %1676 = vmatpush2.bf16.msra.mxu0 %v1309
  %1677 = vmatprep.subr.bf16.mxu0 0
  %1678 = vmatpush2.bf16.msra.mxu0 %v1308
  %1679 = vmatprep.subr.bf16.mxu0 0
  %1680 = vmatpush2.bf16.msra.mxu0 %v1307
  %1681 = vmatprep.subr.bf16.mxu0 0
  %1682 = vmatpush2.bf16.msra.mxu0 %v1306
  %1683 = vmatprep.mubr.bf16.mxu0 %v805
  %1684 = vmatmul.mubr.bf16.gmra.mxu0 %v804
  %v1685 = vpop.f32.mrf.mxu0
  %v1686 = vadd.f32 %v1397, %v1685
  %v1687 = vpop.f32.mrf.mxu0
  %v1688 = vpop.f32.mrf.mxu0
  %v1689 = vadd.f32 %v1400, %v1688
  %v1690 = vpop.f32.mrf.mxu0
  %1691 = vmatprep.mubr.bf16.mxu0 %v810
  %1692 = vmatmul.mubr.bf16.gmra.mxu0 %v809
  %v1693 = vpop.f32.mrf.mxu0
  %v1694 = vadd.f32 %v1405, %v1693
  %v1695 = vpop.f32.mrf.mxu0
  %v1696 = vpop.f32.mrf.mxu0
  %v1697 = vadd.f32 %v1408, %v1696
  %v1698 = vpop.f32.mrf.mxu0
  %1699 = vmatprep.mubr.bf16.mxu0 %v815
  %1700 = vmatmul.mubr.bf16.gmra.mxu0 %v814
  %v1701 = vpop.f32.mrf.mxu0
  %v1702 = vadd.f32 %v1413, %v1701
  %v1703 = vpop.f32.mrf.mxu0
  %v1704 = vpop.f32.mrf.mxu0
  %v1705 = vadd.f32 %v1416, %v1704
  %v1706 = vpop.f32.mrf.mxu0
  %1707 = vmatprep.mubr.bf16.mxu0 %v820
  %1708 = vmatmul.mubr.bf16.gmra.mxu0 %v819
  %v1709 = vpop.f32.mrf.mxu0
  %v1710 = vadd.f32 %v1421, %v1709
  %v1711 = vpop.f32.mrf.mxu0
  %v1712 = vpop.f32.mrf.mxu0
  %v1713 = vadd.f32 %v1424, %v1712
  %v1714 = vpop.f32.mrf.mxu0
  %1715 = vmatprep.mubr.bf16.mxu0 %v825
  %1716 = vmatmul.mubr.bf16.gmra.mxu0 %v824
  %v1717 = vpop.f32.mrf.mxu0
  %v1718 = vadd.f32 %v1429, %v1717
  %v1719 = vpop.f32.mrf.mxu0
  %v1720 = vpop.f32.mrf.mxu0
  %v1721 = vadd.f32 %v1432, %v1720
  %v1722 = vpop.f32.mrf.mxu0
  %1723 = vmatprep.mubr.bf16.mxu0 %v830
  %1724 = vmatmul.mubr.bf16.gmra.mxu0 %v829
  %v1725 = vpop.f32.mrf.mxu0
  %v1726 = vadd.f32 %v1437, %v1725
  %v1727 = vpop.f32.mrf.mxu0
  %v1728 = vpop.f32.mrf.mxu0
  %v1729 = vadd.f32 %v1440, %v1728
  %v1730 = vpop.f32.mrf.mxu0
  %1731 = vmatprep.mubr.bf16.mxu0 %v835
  %1732 = vmatmul.mubr.bf16.gmra.mxu0 %v834
  %v1733 = vpop.f32.mrf.mxu0
  %v1734 = vadd.f32 %v1445, %v1733
  %v1735 = vpop.f32.mrf.mxu0
  %v1736 = vpop.f32.mrf.mxu0
  %v1737 = vadd.f32 %v1448, %v1736
  %v1738 = vpop.f32.mrf.mxu0
  %1739 = vmatprep.mubr.bf16.mxu0 %v840
  %1740 = vmatmul.mubr.bf16.gmra.mxu0 %v839
  %v1741 = vpop.f32.mrf.mxu0
  %v1742 = vadd.f32 %v1453, %v1741
  %v1743 = vpop.f32.mrf.mxu0
  %v1744 = vpop.f32.mrf.mxu0
  %v1745 = vadd.f32 %v1456, %v1744
  %v1746 = vpop.f32.mrf.mxu0
  %1747 = vmatprep.mubr.bf16.mxu0 %v845
  %1748 = vmatmul.mubr.bf16.gmra.mxu0 %v844
  %v1749 = vpop.f32.mrf.mxu0
  %v1750 = vadd.f32 %v1461, %v1749
  %v1751 = vpop.f32.mrf.mxu0
  %v1752 = vpop.f32.mrf.mxu0
  %v1753 = vadd.f32 %v1464, %v1752
  %v1754 = vpop.f32.mrf.mxu0
  %1755 = vmatprep.mubr.bf16.mxu0 %v850
  %1756 = vmatmul.mubr.bf16.gmra.mxu0 %v849
  %v1757 = vpop.f32.mrf.mxu0
  %v1758 = vadd.f32 %v1469, %v1757
  %v1759 = vpop.f32.mrf.mxu0
  %v1760 = vpop.f32.mrf.mxu0
  %v1761 = vadd.f32 %v1472, %v1760
  %v1762 = vpop.f32.mrf.mxu0
  %1763 = vmatprep.mubr.bf16.mxu0 %v855
  %1764 = vmatmul.mubr.bf16.gmra.mxu0 %v854
  %v1765 = vpop.f32.mrf.mxu0
  %v1766 = vadd.f32 %v1477, %v1765
  %v1767 = vpop.f32.mrf.mxu0
  %v1768 = vpop.f32.mrf.mxu0
  %v1769 = vadd.f32 %v1480, %v1768
  %v1770 = vpop.f32.mrf.mxu0
  %1771 = vmatprep.mubr.bf16.mxu0 %v860
  %1772 = vmatmul.mubr.bf16.gmra.mxu0 %v859
  %v1773 = vpop.f32.mrf.mxu0
  %v1774 = vadd.f32 %v1485, %v1773
  %v1775 = vpop.f32.mrf.mxu0
  %v1776 = vpop.f32.mrf.mxu0
  %v1777 = vadd.f32 %v1488, %v1776
  %v1778 = vpop.f32.mrf.mxu0
  %1779 = vmatprep.mubr.bf16.mxu0 %v865
  %1780 = vmatmul.mubr.bf16.gmra.mxu0 %v864
  %v1781 = vpop.f32.mrf.mxu0
  %v1782 = vadd.f32 %v1493, %v1781
  %v1783 = vpop.f32.mrf.mxu0
  %v1784 = vpop.f32.mrf.mxu0
  %v1785 = vadd.f32 %v1496, %v1784
  %v1786 = vpop.f32.mrf.mxu0
  %1787 = vmatprep.mubr.bf16.mxu0 %v870
  %1788 = vmatmul.mubr.bf16.gmra.mxu0 %v869
  %v1789 = vpop.f32.mrf.mxu0
  %v1790 = vadd.f32 %v1501, %v1789
  %v1791 = vpop.f32.mrf.mxu0
  %v1792 = vpop.f32.mrf.mxu0
  %v1793 = vadd.f32 %v1504, %v1792
  %v1794 = vpop.f32.mrf.mxu0
  %1795 = vmatprep.mubr.bf16.mxu0 %v875
  %1796 = vmatmul.mubr.bf16.gmra.mxu0 %v874
  %v1797 = vpop.f32.mrf.mxu0
  %v1798 = vadd.f32 %v1509, %v1797
  %v1799 = vpop.f32.mrf.mxu0
  %v1800 = vpop.f32.mrf.mxu0
  %v1801 = vadd.f32 %v1512, %v1800
  %v1802 = vpop.f32.mrf.mxu0
  %1803 = vmatprep.mubr.bf16.mxu0 %v880
  %1804 = vmatmul.mubr.bf16.gmra.mxu0 %v879
  %v1805 = vpop.f32.mrf.mxu0
  %v1806 = vadd.f32 %v1517, %v1805
  %v1807 = vpop.f32.mrf.mxu0
  %v1808 = vpop.f32.mrf.mxu0
  %v1809 = vadd.f32 %v1520, %v1808
  %v1810 = vpop.f32.mrf.mxu0
  %1811 = vmatprep.mubr.bf16.mxu0 %v885
  %1812 = vmatmul.mubr.bf16.gmra.mxu0 %v884
  %v1813 = vpop.f32.mrf.mxu0
  %v1814 = vadd.f32 %v1525, %v1813
  %v1815 = vpop.f32.mrf.mxu0
  %v1816 = vpop.f32.mrf.mxu0
  %v1817 = vadd.f32 %v1528, %v1816
  %v1818 = vpop.f32.mrf.mxu0
  %1819 = vmatprep.mubr.bf16.mxu0 %v890
  %1820 = vmatmul.mubr.bf16.gmra.mxu0 %v889
  %v1821 = vpop.f32.mrf.mxu0
  %v1822 = vadd.f32 %v1533, %v1821
  %v1823 = vpop.f32.mrf.mxu0
  %v1824 = vpop.f32.mrf.mxu0
  %v1825 = vadd.f32 %v1536, %v1824
  %v1826 = vpop.f32.mrf.mxu0
  %1827 = vmatprep.mubr.bf16.mxu0 %v895
  %1828 = vmatmul.mubr.bf16.gmra.mxu0 %v894
  %v1829 = vpop.f32.mrf.mxu0
  %v1830 = vadd.f32 %v1541, %v1829
  %v1831 = vpop.f32.mrf.mxu0
  %v1832 = vpop.f32.mrf.mxu0
  %v1833 = vadd.f32 %v1544, %v1832
  %v1834 = vpop.f32.mrf.mxu0
  %1835 = vmatprep.mubr.bf16.mxu0 %v900
  %1836 = vmatmul.mubr.bf16.gmra.mxu0 %v899
  %v1837 = vpop.f32.mrf.mxu0
  %v1838 = vadd.f32 %v1549, %v1837
  %v1839 = vpop.f32.mrf.mxu0
  %v1840 = vpop.f32.mrf.mxu0
  %v1841 = vadd.f32 %v1552, %v1840
  %v1842 = vpop.f32.mrf.mxu0
  %1843 = vmatprep.mubr.bf16.mxu0 %v905
  %1844 = vmatmul.mubr.bf16.gmra.mxu0 %v904
  %v1845 = vpop.f32.mrf.mxu0
  %v1846 = vadd.f32 %v1557, %v1845
  %v1847 = vpop.f32.mrf.mxu0
  %v1848 = vpop.f32.mrf.mxu0
  %v1849 = vadd.f32 %v1560, %v1848
  %v1850 = vpop.f32.mrf.mxu0
  %1851 = vmatprep.mubr.bf16.mxu0 %v910
  %1852 = vmatmul.mubr.bf16.gmra.mxu0 %v909
  %v1853 = vpop.f32.mrf.mxu0
  %v1854 = vadd.f32 %v1565, %v1853
  %v1855 = vpop.f32.mrf.mxu0
  %v1856 = vpop.f32.mrf.mxu0
  %v1857 = vadd.f32 %v1568, %v1856
  %v1858 = vpop.f32.mrf.mxu0
  %1859 = vmatprep.mubr.bf16.mxu0 %v915
  %1860 = vmatmul.mubr.bf16.gmra.mxu0 %v914
  %v1861 = vpop.f32.mrf.mxu0
  %v1862 = vadd.f32 %v1573, %v1861
  %v1863 = vpop.f32.mrf.mxu0
  %v1864 = vpop.f32.mrf.mxu0
  %v1865 = vadd.f32 %v1576, %v1864
  %v1866 = vpop.f32.mrf.mxu0
  %1867 = vmatprep.mubr.bf16.mxu0 %v920
  %1868 = vmatmul.mubr.bf16.gmra.mxu0 %v919
  %v1869 = vpop.f32.mrf.mxu0
  %v1870 = vadd.f32 %v1581, %v1869
  %v1871 = vpop.f32.mrf.mxu0
  %v1872 = vpop.f32.mrf.mxu0
  %v1873 = vadd.f32 %v1584, %v1872
  %v1874 = vpop.f32.mrf.mxu0
  %1875 = vmatprep.mubr.bf16.mxu0 %v925
  %1876 = vmatmul.mubr.bf16.gmra.mxu0 %v924
  %v1877 = vpop.f32.mrf.mxu0
  %v1878 = vadd.f32 %v1589, %v1877
  %v1879 = vpop.f32.mrf.mxu0
  %v1880 = vpop.f32.mrf.mxu0
  %v1881 = vadd.f32 %v1592, %v1880
  %v1882 = vpop.f32.mrf.mxu0
  %1883 = vmatprep.mubr.bf16.mxu0 %v930
  %1884 = vmatmul.mubr.bf16.gmra.mxu0 %v929
  %v1885 = vpop.f32.mrf.mxu0
  %v1886 = vadd.f32 %v1597, %v1885
  %v1887 = vpop.f32.mrf.mxu0
  %v1888 = vpop.f32.mrf.mxu0
  %v1889 = vadd.f32 %v1600, %v1888
  %v1890 = vpop.f32.mrf.mxu0
  %1891 = vmatprep.mubr.bf16.mxu0 %v935
  %1892 = vmatmul.mubr.bf16.gmra.mxu0 %v934
  %v1893 = vpop.f32.mrf.mxu0
  %v1894 = vadd.f32 %v1605, %v1893
  %v1895 = vpop.f32.mrf.mxu0
  %v1896 = vpop.f32.mrf.mxu0
  %v1897 = vadd.f32 %v1608, %v1896
  %v1898 = vpop.f32.mrf.mxu0
  %1899 = vmatprep.mubr.bf16.mxu0 %v940
  %1900 = vmatmul.mubr.bf16.gmra.mxu0 %v939
  %v1901 = vpop.f32.mrf.mxu0
  %v1902 = vadd.f32 %v1613, %v1901
  %v1903 = vpop.f32.mrf.mxu0
  %v1904 = vpop.f32.mrf.mxu0
  %v1905 = vadd.f32 %v1616, %v1904
  %v1906 = vpop.f32.mrf.mxu0
  %1907 = vmatprep.mubr.bf16.mxu0 %v945
  %1908 = vmatmul.mubr.bf16.gmra.mxu0 %v944
  %v1909 = vpop.f32.mrf.mxu0
  %v1910 = vadd.f32 %v1621, %v1909
  %v1911 = vpop.f32.mrf.mxu0
  %v1912 = vpop.f32.mrf.mxu0
  %v1913 = vadd.f32 %v1624, %v1912
  %v1914 = vpop.f32.mrf.mxu0
  %1915 = vmatprep.mubr.bf16.mxu0 %v950
  %1916 = vmatmul.mubr.bf16.gmra.mxu0 %v949
  %v1917 = vpop.f32.mrf.mxu0
  %v1918 = vadd.f32 %v1629, %v1917
  %v1919 = vpop.f32.mrf.mxu0
  %v1920 = vpop.f32.mrf.mxu0
  %v1921 = vadd.f32 %v1632, %v1920
  %v1922 = vpop.f32.mrf.mxu0
  %1923 = vmatprep.mubr.bf16.mxu0 %v955
  %1924 = vmatmul.mubr.bf16.gmra.mxu0 %v954
  %v1925 = vpop.f32.mrf.mxu0
  %v1926 = vadd.f32 %v1637, %v1925
  %v1927 = vpop.f32.mrf.mxu0
  %v1928 = vpop.f32.mrf.mxu0
  %v1929 = vadd.f32 %v1640, %v1928
  %v1930 = vpop.f32.mrf.mxu0
  %1931 = vmatprep.mubr.bf16.mxu0 %v960
  %1932 = vmatmul.mubr.bf16.gmra.mxu0 %v959
  %v1933 = vpop.f32.mrf.mxu0
  %v1934 = vadd.f32 %v1645, %v1933
  %v1935 = vpop.f32.mrf.mxu0
  %v1936 = vpop.f32.mrf.mxu0
  %v1937 = vadd.f32 %v1648, %v1936
  %v1938 = vpop.f32.mrf.mxu0
  %1939 = vdwg.mxu0
  %1940 = vmatprep.subr.bf16.mxu0 0
  %1941 = vmatpush1.bf16.msra.mxu0 %v1321
  %1942 = vmatprep.subr.bf16.mxu0 0
  %1943 = vmatpush1.bf16.msra.mxu0 %v1320
  %1944 = vmatprep.subr.bf16.mxu0 0
  %1945 = vmatpush1.bf16.msra.mxu0 %v1319
  %1946 = vmatprep.subr.bf16.mxu0 0
  %1947 = vmatpush1.bf16.msra.mxu0 %v1318
  %1948 = vmatprep.subr.bf16.mxu0 0
  %1949 = vmatpush1.bf16.msra.mxu0 %v1317
  %1950 = vmatprep.subr.bf16.mxu0 0
  %1951 = vmatpush1.bf16.msra.mxu0 %v1316
  %1952 = vmatprep.subr.bf16.mxu0 0
  %1953 = vmatpush1.bf16.msra.mxu0 %v1315
  %1954 = vmatprep.subr.bf16.mxu0 0
  %1955 = vmatpush1.bf16.msra.mxu0 %v1314
  %1956 = vmatprep.subr.bf16.mxu0 0
  %1957 = vmatpush2.bf16.msra.mxu0 0
  %1958 = vmatprep.subr.bf16.mxu0 0
  %1959 = vmatpush2.bf16.msra.mxu0 0
  %1960 = vmatprep.subr.bf16.mxu0 0
  %1961 = vmatpush2.bf16.msra.mxu0 0
  %1962 = vmatprep.subr.bf16.mxu0 0
  %1963 = vmatpush2.bf16.msra.mxu0 0
  %1964 = vmatprep.subr.bf16.mxu0 0
  %1965 = vmatpush2.bf16.msra.mxu0 0
  %1966 = vmatprep.subr.bf16.mxu0 0
  %1967 = vmatpush2.bf16.msra.mxu0 0
  %1968 = vmatprep.subr.bf16.mxu0 0
  %1969 = vmatpush2.bf16.msra.mxu0 0
  %1970 = vmatprep.subr.bf16.mxu0 0
  %1971 = vmatpush2.bf16.msra.mxu0 0
  %1972 = vmatprep.mubr.bf16.mxu0 0
  %1973 = vmatmul.mubr.bf16.gmra.mxu0 %v806
  %v1974 = vpop.f32.mrf.mxu0
  %v1975 = vadd.f32 %v1686, %v1974
  %v1976 = vpop.f32.mrf.mxu0
  %v1977 = vpop.f32.mrf.mxu0
  %v1978 = vadd.f32 %v1689, %v1977
  %v1979 = vpop.f32.mrf.mxu0
  %1980 = vmatprep.mubr.bf16.mxu0 0
  %1981 = vmatmul.mubr.bf16.gmra.mxu0 %v811
  %v1982 = vpop.f32.mrf.mxu0
  %v1983 = vadd.f32 %v1694, %v1982
  %v1984 = vpop.f32.mrf.mxu0
  %v1985 = vpop.f32.mrf.mxu0
  %v1986 = vadd.f32 %v1697, %v1985
  %v1987 = vpop.f32.mrf.mxu0
  %1988 = vmatprep.mubr.bf16.mxu0 0
  %1989 = vmatmul.mubr.bf16.gmra.mxu0 %v816
  %v1990 = vpop.f32.mrf.mxu0
  %v1991 = vadd.f32 %v1702, %v1990
  %v1992 = vpop.f32.mrf.mxu0
  %v1993 = vpop.f32.mrf.mxu0
  %v1994 = vadd.f32 %v1705, %v1993
  %v1995 = vpop.f32.mrf.mxu0
  %1996 = vmatprep.mubr.bf16.mxu0 0
  %1997 = vmatmul.mubr.bf16.gmra.mxu0 %v821
  %v1998 = vpop.f32.mrf.mxu0
  %v1999 = vadd.f32 %v1710, %v1998
  %v2000 = vpop.f32.mrf.mxu0
  %v2001 = vpop.f32.mrf.mxu0
  %v2002 = vadd.f32 %v1713, %v2001
  %v2003 = vpop.f32.mrf.mxu0
  %2004 = vmatprep.mubr.bf16.mxu0 0
  %2005 = vmatmul.mubr.bf16.gmra.mxu0 %v826
  %v2006 = vpop.f32.mrf.mxu0
  %v2007 = vadd.f32 %v1718, %v2006
  %v2008 = vpop.f32.mrf.mxu0
  %v2009 = vpop.f32.mrf.mxu0
  %v2010 = vadd.f32 %v1721, %v2009
  %v2011 = vpop.f32.mrf.mxu0
  %2012 = vmatprep.mubr.bf16.mxu0 0
  %2013 = vmatmul.mubr.bf16.gmra.mxu0 %v831
  %v2014 = vpop.f32.mrf.mxu0
  %v2015 = vadd.f32 %v1726, %v2014
  %v2016 = vpop.f32.mrf.mxu0
  %v2017 = vpop.f32.mrf.mxu0
  %v2018 = vadd.f32 %v1729, %v2017
  %v2019 = vpop.f32.mrf.mxu0
  %2020 = vmatprep.mubr.bf16.mxu0 0
  %2021 = vmatmul.mubr.bf16.gmra.mxu0 %v836
  %v2022 = vpop.f32.mrf.mxu0
  %v2023 = vadd.f32 %v1734, %v2022
  %v2024 = vpop.f32.mrf.mxu0
  %v2025 = vpop.f32.mrf.mxu0
  %v2026 = vadd.f32 %v1737, %v2025
  %v2027 = vpop.f32.mrf.mxu0
  %2028 = vmatprep.mubr.bf16.mxu0 0
  %2029 = vmatmul.mubr.bf16.gmra.mxu0 %v841
  %v2030 = vpop.f32.mrf.mxu0
  %v2031 = vadd.f32 %v1742, %v2030
  %v2032 = vpop.f32.mrf.mxu0
  %v2033 = vpop.f32.mrf.mxu0
  %v2034 = vadd.f32 %v1745, %v2033
  %v2035 = vpop.f32.mrf.mxu0
  %2036 = vmatprep.mubr.bf16.mxu0 0
  %2037 = vmatmul.mubr.bf16.gmra.mxu0 %v846
  %v2038 = vpop.f32.mrf.mxu0
  %v2039 = vadd.f32 %v1750, %v2038
  %v2040 = vpop.f32.mrf.mxu0
  %v2041 = vpop.f32.mrf.mxu0
  %v2042 = vadd.f32 %v1753, %v2041
  %v2043 = vpop.f32.mrf.mxu0
  %2044 = vmatprep.mubr.bf16.mxu0 0
  %2045 = vmatmul.mubr.bf16.gmra.mxu0 %v851
  %v2046 = vpop.f32.mrf.mxu0
  %v2047 = vadd.f32 %v1758, %v2046
  %v2048 = vpop.f32.mrf.mxu0
  %v2049 = vpop.f32.mrf.mxu0
  %v2050 = vadd.f32 %v1761, %v2049
  %v2051 = vpop.f32.mrf.mxu0
  %2052 = vmatprep.mubr.bf16.mxu0 0
  %2053 = vmatmul.mubr.bf16.gmra.mxu0 %v856
  %v2054 = vpop.f32.mrf.mxu0
  %v2055 = vadd.f32 %v1766, %v2054
  %v2056 = vpop.f32.mrf.mxu0
  %v2057 = vpop.f32.mrf.mxu0
  %v2058 = vadd.f32 %v1769, %v2057
  %v2059 = vpop.f32.mrf.mxu0
  %2060 = vmatprep.mubr.bf16.mxu0 0
  %2061 = vmatmul.mubr.bf16.gmra.mxu0 %v861
  %v2062 = vpop.f32.mrf.mxu0
  %v2063 = vadd.f32 %v1774, %v2062
  %v2064 = vpop.f32.mrf.mxu0
  %v2065 = vpop.f32.mrf.mxu0
  %v2066 = vadd.f32 %v1777, %v2065
  %v2067 = vpop.f32.mrf.mxu0
  %2068 = vmatprep.mubr.bf16.mxu0 0
  %2069 = vmatmul.mubr.bf16.gmra.mxu0 %v866
  %v2070 = vpop.f32.mrf.mxu0
  %v2071 = vadd.f32 %v1782, %v2070
  %v2072 = vpop.f32.mrf.mxu0
  %v2073 = vpop.f32.mrf.mxu0
  %v2074 = vadd.f32 %v1785, %v2073
  %v2075 = vpop.f32.mrf.mxu0
  %2076 = vmatprep.mubr.bf16.mxu0 0
  %2077 = vmatmul.mubr.bf16.gmra.mxu0 %v871
  %v2078 = vpop.f32.mrf.mxu0
  %v2079 = vadd.f32 %v1790, %v2078
  %v2080 = vpop.f32.mrf.mxu0
  %v2081 = vpop.f32.mrf.mxu0
  %v2082 = vadd.f32 %v1793, %v2081
  %v2083 = vpop.f32.mrf.mxu0
  %2084 = vmatprep.mubr.bf16.mxu0 0
  %2085 = vmatmul.mubr.bf16.gmra.mxu0 %v876
  %v2086 = vpop.f32.mrf.mxu0
  %v2087 = vadd.f32 %v1798, %v2086
  %v2088 = vpop.f32.mrf.mxu0
  %v2089 = vpop.f32.mrf.mxu0
  %v2090 = vadd.f32 %v1801, %v2089
  %v2091 = vpop.f32.mrf.mxu0
  %2092 = vmatprep.mubr.bf16.mxu0 0
  %2093 = vmatmul.mubr.bf16.gmra.mxu0 %v881
  %v2094 = vpop.f32.mrf.mxu0
  %v2095 = vadd.f32 %v1806, %v2094
  %v2096 = vpop.f32.mrf.mxu0
  %v2097 = vpop.f32.mrf.mxu0
  %v2098 = vadd.f32 %v1809, %v2097
  %v2099 = vpop.f32.mrf.mxu0
  %2100 = vmatprep.mubr.bf16.mxu0 0
  %2101 = vmatmul.mubr.bf16.gmra.mxu0 %v886
  %v2102 = vpop.f32.mrf.mxu0
  %v2103 = vadd.f32 %v1814, %v2102
  %v2104 = vpop.f32.mrf.mxu0
  %v2105 = vpop.f32.mrf.mxu0
  %v2106 = vadd.f32 %v1817, %v2105
  %v2107 = vpop.f32.mrf.mxu0
  %2108 = vmatprep.mubr.bf16.mxu0 0
  %2109 = vmatmul.mubr.bf16.gmra.mxu0 %v891
  %v2110 = vpop.f32.mrf.mxu0
  %v2111 = vadd.f32 %v1822, %v2110
  %v2112 = vpop.f32.mrf.mxu0
  %v2113 = vpop.f32.mrf.mxu0
  %v2114 = vadd.f32 %v1825, %v2113
  %v2115 = vpop.f32.mrf.mxu0
  %2116 = vmatprep.mubr.bf16.mxu0 0
  %2117 = vmatmul.mubr.bf16.gmra.mxu0 %v896
  %v2118 = vpop.f32.mrf.mxu0
  %v2119 = vadd.f32 %v1830, %v2118
  %v2120 = vpop.f32.mrf.mxu0
  %v2121 = vpop.f32.mrf.mxu0
  %v2122 = vadd.f32 %v1833, %v2121
  %v2123 = vpop.f32.mrf.mxu0
  %2124 = vmatprep.mubr.bf16.mxu0 0
  %2125 = vmatmul.mubr.bf16.gmra.mxu0 %v901
  %v2126 = vpop.f32.mrf.mxu0
  %v2127 = vadd.f32 %v1838, %v2126
  %v2128 = vpop.f32.mrf.mxu0
  %v2129 = vpop.f32.mrf.mxu0
  %v2130 = vadd.f32 %v1841, %v2129
  %v2131 = vpop.f32.mrf.mxu0
  %2132 = vmatprep.mubr.bf16.mxu0 0
  %2133 = vmatmul.mubr.bf16.gmra.mxu0 %v906
  %v2134 = vpop.f32.mrf.mxu0
  %v2135 = vadd.f32 %v1846, %v2134
  %v2136 = vpop.f32.mrf.mxu0
  %v2137 = vpop.f32.mrf.mxu0
  %v2138 = vadd.f32 %v1849, %v2137
  %v2139 = vpop.f32.mrf.mxu0
  %2140 = vmatprep.mubr.bf16.mxu0 0
  %2141 = vmatmul.mubr.bf16.gmra.mxu0 %v911
  %v2142 = vpop.f32.mrf.mxu0
  %v2143 = vadd.f32 %v1854, %v2142
  %v2144 = vpop.f32.mrf.mxu0
  %v2145 = vpop.f32.mrf.mxu0
  %v2146 = vadd.f32 %v1857, %v2145
  %v2147 = vpop.f32.mrf.mxu0
  %2148 = vmatprep.mubr.bf16.mxu0 0
  %2149 = vmatmul.mubr.bf16.gmra.mxu0 %v916
  %v2150 = vpop.f32.mrf.mxu0
  %v2151 = vadd.f32 %v1862, %v2150
  %v2152 = vpop.f32.mrf.mxu0
  %v2153 = vpop.f32.mrf.mxu0
  %v2154 = vadd.f32 %v1865, %v2153
  %v2155 = vpop.f32.mrf.mxu0
  %2156 = vmatprep.mubr.bf16.mxu0 0
  %2157 = vmatmul.mubr.bf16.gmra.mxu0 %v921
  %v2158 = vpop.f32.mrf.mxu0
  %v2159 = vadd.f32 %v1870, %v2158
  %v2160 = vpop.f32.mrf.mxu0
  %v2161 = vpop.f32.mrf.mxu0
  %v2162 = vadd.f32 %v1873, %v2161
  %v2163 = vpop.f32.mrf.mxu0
  %2164 = vmatprep.mubr.bf16.mxu0 0
  %2165 = vmatmul.mubr.bf16.gmra.mxu0 %v926
  %v2166 = vpop.f32.mrf.mxu0
  %v2167 = vadd.f32 %v1878, %v2166
  %v2168 = vpop.f32.mrf.mxu0
  %v2169 = vpop.f32.mrf.mxu0
  %v2170 = vadd.f32 %v1881, %v2169
  %v2171 = vpop.f32.mrf.mxu0
  %2172 = vmatprep.mubr.bf16.mxu0 0
  %2173 = vmatmul.mubr.bf16.gmra.mxu0 %v931
  %v2174 = vpop.f32.mrf.mxu0
  %v2175 = vadd.f32 %v1886, %v2174
  %v2176 = vpop.f32.mrf.mxu0
  %v2177 = vpop.f32.mrf.mxu0
  %v2178 = vadd.f32 %v1889, %v2177
  %v2179 = vpop.f32.mrf.mxu0
  %2180 = vmatprep.mubr.bf16.mxu0 0
  %2181 = vmatmul.mubr.bf16.gmra.mxu0 %v936
  %v2182 = vpop.f32.mrf.mxu0
  %v2183 = vadd.f32 %v1894, %v2182
  %v2184 = vpop.f32.mrf.mxu0
  %v2185 = vpop.f32.mrf.mxu0
  %v2186 = vadd.f32 %v1897, %v2185
  %v2187 = vpop.f32.mrf.mxu0
  %2188 = vmatprep.mubr.bf16.mxu0 0
  %2189 = vmatmul.mubr.bf16.gmra.mxu0 %v941
  %v2190 = vpop.f32.mrf.mxu0
  %v2191 = vadd.f32 %v1902, %v2190
  %v2192 = vpop.f32.mrf.mxu0
  %v2193 = vpop.f32.mrf.mxu0
  %v2194 = vadd.f32 %v1905, %v2193
  %v2195 = vpop.f32.mrf.mxu0
  %2196 = vmatprep.mubr.bf16.mxu0 0
  %2197 = vmatmul.mubr.bf16.gmra.mxu0 %v946
  %v2198 = vpop.f32.mrf.mxu0
  %v2199 = vadd.f32 %v1910, %v2198
  %v2200 = vpop.f32.mrf.mxu0
  %v2201 = vpop.f32.mrf.mxu0
  %v2202 = vadd.f32 %v1913, %v2201
  %v2203 = vpop.f32.mrf.mxu0
  %2204 = vmatprep.mubr.bf16.mxu0 0
  %2205 = vmatmul.mubr.bf16.gmra.mxu0 %v951
  %v2206 = vpop.f32.mrf.mxu0
  %v2207 = vadd.f32 %v1918, %v2206
  %v2208 = vpop.f32.mrf.mxu0
  %v2209 = vpop.f32.mrf.mxu0
  %v2210 = vadd.f32 %v1921, %v2209
  %v2211 = vpop.f32.mrf.mxu0
  %2212 = vmatprep.mubr.bf16.mxu0 0
  %2213 = vmatmul.mubr.bf16.gmra.mxu0 %v956
  %v2214 = vpop.f32.mrf.mxu0
  %v2215 = vadd.f32 %v1926, %v2214
  %v2216 = vpop.f32.mrf.mxu0
  %v2217 = vpop.f32.mrf.mxu0
  %v2218 = vadd.f32 %v1929, %v2217
  %v2219 = vpop.f32.mrf.mxu0
  %2220 = vmatprep.mubr.bf16.mxu0 0
  %2221 = vmatmul.mubr.bf16.gmra.mxu0 %v961
  %v2222 = vpop.f32.mrf.mxu0
  %v2223 = vadd.f32 %v1934, %v2222
  %v2224 = vpop.f32.mrf.mxu0
  %v2225 = vpop.f32.mrf.mxu0
  %v2226 = vadd.f32 %v1937, %v2225
  %v2227 = vpop.f32.mrf.mxu0
  %2228 = vdwg.mxu0
  %v2229 = vld [vmem:[%s2] sm:$0x1]
  %v2230 = vlaneseq
  %v2231 = vshrl.u32 %v2230, 7
  %v2232 = vsub.s32 0, %v2231
  %v2233 = vrot.slane %v2229, %v2232
  %v2234 = vmul.f32 %v1975, %v2233
  %v2235 = vmul.f32 %v1978, %v2233
  %v2236 = vmul.f32 %v1983, %v2233
  %v2237 = vmul.f32 %v1986, %v2233
  %v2238 = vmul.f32 %v1991, %v2233
  %v2239 = vmul.f32 %v1994, %v2233
  %v2240 = vmul.f32 %v1999, %v2233
  %v2241 = vmul.f32 %v2002, %v2233
  %v2242 = vmul.f32 %v2007, %v2233
  %v2243 = vmul.f32 %v2010, %v2233
  %v2244 = vmul.f32 %v2015, %v2233
  %v2245 = vmul.f32 %v2018, %v2233
  %v2246 = vmul.f32 %v2023, %v2233
  %v2247 = vmul.f32 %v2026, %v2233
  %v2248 = vmul.f32 %v2031, %v2233
  %v2249 = vmul.f32 %v2034, %v2233
  %v2250 = vmul.f32 %v2039, %v2233
  %v2251 = vmul.f32 %v2042, %v2233
  %v2252 = vmul.f32 %v2047, %v2233
  %v2253 = vmul.f32 %v2050, %v2233
  %v2254 = vmul.f32 %v2055, %v2233
  %v2255 = vmul.f32 %v2058, %v2233
  %v2256 = vmul.f32 %v2063, %v2233
  %v2257 = vmul.f32 %v2066, %v2233
  %v2258 = vmul.f32 %v2071, %v2233
  %v2259 = vmul.f32 %v2074, %v2233
  %v2260 = vmul.f32 %v2079, %v2233
  %v2261 = vmul.f32 %v2082, %v2233
  %v2262 = vmul.f32 %v2087, %v2233
  %v2263 = vmul.f32 %v2090, %v2233
  %v2264 = vmul.f32 %v2095, %v2233
  %v2265 = vmul.f32 %v2098, %v2233
  %v2266 = vmul.f32 %v2103, %v2233
  %v2267 = vmul.f32 %v2106, %v2233
  %v2268 = vmul.f32 %v2111, %v2233
  %v2269 = vmul.f32 %v2114, %v2233
  %v2270 = vmul.f32 %v2119, %v2233
  %v2271 = vmul.f32 %v2122, %v2233
  %v2272 = vmul.f32 %v2127, %v2233
  %v2273 = vmul.f32 %v2130, %v2233
  %v2274 = vmul.f32 %v2135, %v2233
  %v2275 = vmul.f32 %v2138, %v2233
  %v2276 = vmul.f32 %v2143, %v2233
  %v2277 = vmul.f32 %v2146, %v2233
  %v2278 = vmul.f32 %v2151, %v2233
  %v2279 = vmul.f32 %v2154, %v2233
  %v2280 = vmul.f32 %v2159, %v2233
  %v2281 = vmul.f32 %v2162, %v2233
  %v2282 = vmul.f32 %v2167, %v2233
  %v2283 = vmul.f32 %v2170, %v2233
  %v2284 = vmul.f32 %v2175, %v2233
  %v2285 = vmul.f32 %v2178, %v2233
  %v2286 = vmul.f32 %v2183, %v2233
  %v2287 = vmul.f32 %v2186, %v2233
  %v2288 = vmul.f32 %v2191, %v2233
  %v2289 = vmul.f32 %v2194, %v2233
  %v2290 = vmul.f32 %v2199, %v2233
  %v2291 = vmul.f32 %v2202, %v2233
  %v2292 = vmul.f32 %v2207, %v2233
  %v2293 = vmul.f32 %v2210, %v2233
  %v2294 = vmul.f32 %v2215, %v2233
  %v2295 = vmul.f32 %v2218, %v2233
  %v2296 = vmul.f32 %v2223, %v2233
  %v2297 = vmul.f32 %v2226, %v2233
  %v2298 = vld [vmem:[%s2 + $0x1] sm:$0x1]
  %v2299 = vlaneseq
  %v2300 = vshrl.u32 %v2299, 7
  %v2301 = vsub.s32 0, %v2300
  %v2302 = vrot.slane %v2298, %v2301
  %v2303 = vadd.f32 %v2234, %v2302
  %v2304 = vadd.f32 %v2235, %v2302
  %v2305 = vadd.f32 %v2236, %v2302
  %v2306 = vadd.f32 %v2237, %v2302
  %v2307 = vadd.f32 %v2238, %v2302
  %v2308 = vadd.f32 %v2239, %v2302
  %v2309 = vadd.f32 %v2240, %v2302
  %v2310 = vadd.f32 %v2241, %v2302
  %v2311 = vadd.f32 %v2242, %v2302
  %v2312 = vadd.f32 %v2243, %v2302
  %v2313 = vadd.f32 %v2244, %v2302
  %v2314 = vadd.f32 %v2245, %v2302
  %v2315 = vadd.f32 %v2246, %v2302
  %v2316 = vadd.f32 %v2247, %v2302
  %v2317 = vadd.f32 %v2248, %v2302
  %v2318 = vadd.f32 %v2249, %v2302
  %v2319 = vadd.f32 %v2250, %v2302
  %v2320 = vadd.f32 %v2251, %v2302
  %v2321 = vadd.f32 %v2252, %v2302
  %v2322 = vadd.f32 %v2253, %v2302
  %v2323 = vadd.f32 %v2254, %v2302
  %v2324 = vadd.f32 %v2255, %v2302
  %v2325 = vadd.f32 %v2256, %v2302
  %v2326 = vadd.f32 %v2257, %v2302
  %v2327 = vadd.f32 %v2258, %v2302
  %v2328 = vadd.f32 %v2259, %v2302
  %v2329 = vadd.f32 %v2260, %v2302
  %v2330 = vadd.f32 %v2261, %v2302
  %v2331 = vadd.f32 %v2262, %v2302
  %v2332 = vadd.f32 %v2263, %v2302
  %v2333 = vadd.f32 %v2264, %v2302
  %v2334 = vadd.f32 %v2265, %v2302
  %v2335 = vadd.f32 %v2266, %v2302
  %v2336 = vadd.f32 %v2267, %v2302
  %v2337 = vadd.f32 %v2268, %v2302
  %v2338 = vadd.f32 %v2269, %v2302
  %v2339 = vadd.f32 %v2270, %v2302
  %v2340 = vadd.f32 %v2271, %v2302
  %v2341 = vadd.f32 %v2272, %v2302
  %v2342 = vadd.f32 %v2273, %v2302
  %v2343 = vadd.f32 %v2274, %v2302
  %v2344 = vadd.f32 %v2275, %v2302
  %v2345 = vadd.f32 %v2276, %v2302
  %v2346 = vadd.f32 %v2277, %v2302
  %v2347 = vadd.f32 %v2278, %v2302
  %v2348 = vadd.f32 %v2279, %v2302
  %v2349 = vadd.f32 %v2280, %v2302
  %v2350 = vadd.f32 %v2281, %v2302
  %v2351 = vadd.f32 %v2282, %v2302
  %v2352 = vadd.f32 %v2283, %v2302
  %v2353 = vadd.f32 %v2284, %v2302
  %v2354 = vadd.f32 %v2285, %v2302
  %v2355 = vadd.f32 %v2286, %v2302
  %v2356 = vadd.f32 %v2287, %v2302
  %v2357 = vadd.f32 %v2288, %v2302
  %v2358 = vadd.f32 %v2289, %v2302
  %v2359 = vadd.f32 %v2290, %v2302
  %v2360 = vadd.f32 %v2291, %v2302
  %v2361 = vadd.f32 %v2292, %v2302
  %v2362 = vadd.f32 %v2293, %v2302
  %v2363 = vadd.f32 %v2294, %v2302
  %v2364 = vadd.f32 %v2295, %v2302
  %v2365 = vadd.f32 %v2296, %v2302
  %v2366 = vadd.f32 %v2297, %v2302
  %v2367 = vld [vmem:[%s3] sm:$0xf]
  %v2368 = vld [vmem:[%s3 + $0x4] sm:$0xf]
  %v2369 = vld [vmem:[%s3 + $0x8] sm:$0xf]
  %v2370 = vld [vmem:[%s3 + $0xc] sm:$0xf]
  %v2371 = vld [vmem:[%s3 + $0x10] sm:$0xf]
  %v2372 = vld [vmem:[%s3 + $0x14] sm:$0xf]
  %v2373 = vld [vmem:[%s3 + $0x18] sm:$0xf]
  %v2374 = vld [vmem:[%s3 + $0x1c] sm:$0xf]
  %v2375 = vld [vmem:[%s3 + $0x20] sm:$0xf]
  %v2376 = vld [vmem:[%s3 + $0x24] sm:$0xf]
  %v2377 = vld [vmem:[%s3 + $0x28] sm:$0xf]
  %v2378 = vld [vmem:[%s3 + $0x2c] sm:$0xf]
  %v2379 = vld [vmem:[%s3 + $0x30] sm:$0xf]
  %v2380 = vld [vmem:[%s3 + $0x34] sm:$0xf]
  %v2381 = vld [vmem:[%s3 + $0x38] sm:$0xf]
  %v2382 = vld [vmem:[%s3 + $0x3c] sm:$0xf]
  %v2383 = vld [vmem:[%s3 + $0x40] sm:$0xf]
  %v2384 = vld [vmem:[%s3 + $0x44] sm:$0xf]
  %v2385 = vld [vmem:[%s3 + $0x48] sm:$0xf]
  %v2386 = vld [vmem:[%s3 + $0x4c] sm:$0xf]
  %v2387 = vld [vmem:[%s3 + $0x50] sm:$0xf]
  %v2388 = vld [vmem:[%s3 + $0x54] sm:$0xf]
  %v2389 = vld [vmem:[%s3 + $0x58] sm:$0xf]
  %v2390 = vld [vmem:[%s3 + $0x5c] sm:$0xf]
  %v2391 = vld [vmem:[%s3 + $0x60] sm:$0xf]
  %v2392 = vld [vmem:[%s3 + $0x64] sm:$0xf]
  %v2393 = vld [vmem:[%s3 + $0x68] sm:$0xf]
  %v2394 = vld [vmem:[%s3 + $0x6c] sm:$0xf]
  %v2395 = vld [vmem:[%s3 + $0x70] sm:$0xf]
  %v2396 = vld [vmem:[%s3 + $0x74] sm:$0xf]
  %v2397 = vld [vmem:[%s3 + $0x78] sm:$0xf]
  %v2398 = vld [vmem:[%s3 + $0x7c] sm:$0xf]
  %v2399 = vld [vmem:[%s3 + $0x80] sm:$0xf]
  %v2400 = vld [vmem:[%s3 + $0x84] sm:$0xf]
  %v2401 = vld [vmem:[%s3 + $0x88] sm:$0xf]
  %v2402 = vld [vmem:[%s3 + $0x8c] sm:$0xf]
  %v2403 = vld [vmem:[%s3 + $0x90] sm:$0xf]
  %v2404 = vld [vmem:[%s3 + $0x94] sm:$0xf]
  %v2405 = vld [vmem:[%s3 + $0x98] sm:$0xf]
  %v2406 = vld [vmem:[%s3 + $0x9c] sm:$0xf]
  %v2407 = vld [vmem:[%s3 + $0xa0] sm:$0xf]
  %v2408 = vld [vmem:[%s3 + $0xa4] sm:$0xf]
  %v2409 = vld [vmem:[%s3 + $0xa8] sm:$0xf]
  %v2410 = vld [vmem:[%s3 + $0xac] sm:$0xf]
  %v2411 = vld [vmem:[%s3 + $0xb0] sm:$0xf]
  %v2412 = vld [vmem:[%s3 + $0xb4] sm:$0xf]
  %v2413 = vld [vmem:[%s3 + $0xb8] sm:$0xf]
  %v2414 = vld [vmem:[%s3 + $0xbc] sm:$0xf]
  %v2415 = vld [vmem:[%s3 + $0xc0] sm:$0xf]
  %v2416 = vld [vmem:[%s3 + $0xc4] sm:$0xf]
  %v2417 = vld [vmem:[%s3 + $0xc8] sm:$0xf]
  %v2418 = vld [vmem:[%s3 + $0xcc] sm:$0xf]
  %v2419 = vld [vmem:[%s3 + $0xd0] sm:$0xf]
  %v2420 = vld [vmem:[%s3 + $0xd4] sm:$0xf]
  %v2421 = vld [vmem:[%s3 + $0xd8] sm:$0xf]
  %v2422 = vld [vmem:[%s3 + $0xdc] sm:$0xf]
  %v2423 = vld [vmem:[%s3 + $0xe0] sm:$0xf]
  %v2424 = vld [vmem:[%s3 + $0xe4] sm:$0xf]
  %v2425 = vld [vmem:[%s3 + $0xe8] sm:$0xf]
  %v2426 = vld [vmem:[%s3 + $0xec] sm:$0xf]
  %v2427 = vld [vmem:[%s3 + $0xf0] sm:$0xf]
  %v2428 = vld [vmem:[%s3 + $0xf4] sm:$0xf]
  %v2429 = vld [vmem:[%s3 + $0xf8] sm:$0xf]
  %v2430 = vld [vmem:[%s3 + $0xfc] sm:$0xf]
  %v2431 = vunpack.c.l.bf16 %v2367
  %v2432 = vunpack.c.l.bf16 %v2368
  %v2433 = vunpack.c.l.bf16 %v2369
  %v2434 = vunpack.c.l.bf16 %v2370
  %v2435 = vunpack.c.l.bf16 %v2371
  %v2436 = vunpack.c.l.bf16 %v2372
  %v2437 = vunpack.c.l.bf16 %v2373
  %v2438 = vunpack.c.l.bf16 %v2374
  %v2439 = vunpack.c.l.bf16 %v2375
  %v2440 = vunpack.c.l.bf16 %v2376
  %v2441 = vunpack.c.l.bf16 %v2377
  %v2442 = vunpack.c.l.bf16 %v2378
  %v2443 = vunpack.c.l.bf16 %v2379
  %v2444 = vunpack.c.l.bf16 %v2380
  %v2445 = vunpack.c.l.bf16 %v2381
  %v2446 = vunpack.c.l.bf16 %v2382
  %v2447 = vunpack.c.l.bf16 %v2383
  %v2448 = vunpack.c.l.bf16 %v2384
  %v2449 = vunpack.c.l.bf16 %v2385
  %v2450 = vunpack.c.l.bf16 %v2386
  %v2451 = vunpack.c.l.bf16 %v2387
  %v2452 = vunpack.c.l.bf16 %v2388
  %v2453 = vunpack.c.l.bf16 %v2389
  %v2454 = vunpack.c.l.bf16 %v2390
  %v2455 = vunpack.c.l.bf16 %v2391
  %v2456 = vunpack.c.l.bf16 %v2392
  %v2457 = vunpack.c.l.bf16 %v2393
  %v2458 = vunpack.c.l.bf16 %v2394
  %v2459 = vunpack.c.l.bf16 %v2395
  %v2460 = vunpack.c.l.bf16 %v2396
  %v2461 = vunpack.c.l.bf16 %v2397
  %v2462 = vunpack.c.l.bf16 %v2398
  %v2463 = vunpack.c.l.bf16 %v2399
  %v2464 = vunpack.c.l.bf16 %v2400
  %v2465 = vunpack.c.l.bf16 %v2401
  %v2466 = vunpack.c.l.bf16 %v2402
  %v2467 = vunpack.c.l.bf16 %v2403
  %v2468 = vunpack.c.l.bf16 %v2404
  %v2469 = vunpack.c.l.bf16 %v2405
  %v2470 = vunpack.c.l.bf16 %v2406
  %v2471 = vunpack.c.l.bf16 %v2407
  %v2472 = vunpack.c.l.bf16 %v2408
  %v2473 = vunpack.c.l.bf16 %v2409
  %v2474 = vunpack.c.l.bf16 %v2410
  %v2475 = vunpack.c.l.bf16 %v2411
  %v2476 = vunpack.c.l.bf16 %v2412
  %v2477 = vunpack.c.l.bf16 %v2413
  %v2478 = vunpack.c.l.bf16 %v2414
  %v2479 = vunpack.c.l.bf16 %v2415
  %v2480 = vunpack.c.l.bf16 %v2416
  %v2481 = vunpack.c.l.bf16 %v2417
  %v2482 = vunpack.c.l.bf16 %v2418
  %v2483 = vunpack.c.l.bf16 %v2419
  %v2484 = vunpack.c.l.bf16 %v2420
  %v2485 = vunpack.c.l.bf16 %v2421
  %v2486 = vunpack.c.l.bf16 %v2422
  %v2487 = vunpack.c.l.bf16 %v2423
  %v2488 = vunpack.c.l.bf16 %v2424
  %v2489 = vunpack.c.l.bf16 %v2425
  %v2490 = vunpack.c.l.bf16 %v2426
  %v2491 = vunpack.c.l.bf16 %v2427
  %v2492 = vunpack.c.l.bf16 %v2428
  %v2493 = vunpack.c.l.bf16 %v2429
  %v2494 = vunpack.c.l.bf16 %v2430
  %v2495 = vadd.f32 %v2303, %v2431
  %v2496 = vadd.f32 %v2304, %v2432
  %v2497 = vadd.f32 %v2305, %v2433
  %v2498 = vadd.f32 %v2306, %v2434
  %v2499 = vadd.f32 %v2307, %v2435
  %v2500 = vadd.f32 %v2308, %v2436
  %v2501 = vadd.f32 %v2309, %v2437
  %v2502 = vadd.f32 %v2310, %v2438
  %v2503 = vadd.f32 %v2311, %v2439
  %v2504 = vadd.f32 %v2312, %v2440
  %v2505 = vadd.f32 %v2313, %v2441
  %v2506 = vadd.f32 %v2314, %v2442
  %v2507 = vadd.f32 %v2315, %v2443
  %v2508 = vadd.f32 %v2316, %v2444
  %v2509 = vadd.f32 %v2317, %v2445
  %v2510 = vadd.f32 %v2318, %v2446
  %v2511 = vadd.f32 %v2319, %v2447
  %v2512 = vadd.f32 %v2320, %v2448
  %v2513 = vadd.f32 %v2321, %v2449
  %v2514 = vadd.f32 %v2322, %v2450
  %v2515 = vadd.f32 %v2323, %v2451
  %v2516 = vadd.f32 %v2324, %v2452
  %v2517 = vadd.f32 %v2325, %v2453
  %v2518 = vadd.f32 %v2326, %v2454
  %v2519 = vadd.f32 %v2327, %v2455
  %v2520 = vadd.f32 %v2328, %v2456
  %v2521 = vadd.f32 %v2329, %v2457
  %v2522 = vadd.f32 %v2330, %v2458
  %v2523 = vadd.f32 %v2331, %v2459
  %v2524 = vadd.f32 %v2332, %v2460
  %v2525 = vadd.f32 %v2333, %v2461
  %v2526 = vadd.f32 %v2334, %v2462
  %v2527 = vadd.f32 %v2335, %v2463
  %v2528 = vadd.f32 %v2336, %v2464
  %v2529 = vadd.f32 %v2337, %v2465
  %v2530 = vadd.f32 %v2338, %v2466
  %v2531 = vadd.f32 %v2339, %v2467
  %v2532 = vadd.f32 %v2340, %v2468
  %v2533 = vadd.f32 %v2341, %v2469
  %v2534 = vadd.f32 %v2342, %v2470
  %v2535 = vadd.f32 %v2343, %v2471
  %v2536 = vadd.f32 %v2344, %v2472
  %v2537 = vadd.f32 %v2345, %v2473
  %v2538 = vadd.f32 %v2346, %v2474
  %v2539 = vadd.f32 %v2347, %v2475
  %v2540 = vadd.f32 %v2348, %v2476
  %v2541 = vadd.f32 %v2349, %v2477
  %v2542 = vadd.f32 %v2350, %v2478
  %v2543 = vadd.f32 %v2351, %v2479
  %v2544 = vadd.f32 %v2352, %v2480
  %v2545 = vadd.f32 %v2353, %v2481
  %v2546 = vadd.f32 %v2354, %v2482
  %v2547 = vadd.f32 %v2355, %v2483
  %v2548 = vadd.f32 %v2356, %v2484
  %v2549 = vadd.f32 %v2357, %v2485
  %v2550 = vadd.f32 %v2358, %v2486
  %v2551 = vadd.f32 %v2359, %v2487
  %v2552 = vadd.f32 %v2360, %v2488
  %v2553 = vadd.f32 %v2361, %v2489
  %v2554 = vadd.f32 %v2362, %v2490
  %v2555 = vadd.f32 %v2363, %v2491
  %v2556 = vadd.f32 %v2364, %v2492
  %v2557 = vadd.f32 %v2365, %v2493
  %v2558 = vadd.f32 %v2366, %v2494
  %v2559 = vmax.f32 %v2495, 0.0
  %v2560 = vmax.f32 %v2496, 0.0
  %v2561 = vmax.f32 %v2497, 0.0
  %v2562 = vmax.f32 %v2498, 0.0
  %v2563 = vmax.f32 %v2499, 0.0
  %v2564 = vmax.f32 %v2500, 0.0
  %v2565 = vmax.f32 %v2501, 0.0
  %v2566 = vmax.f32 %v2502, 0.0
  %v2567 = vmax.f32 %v2503, 0.0
  %v2568 = vmax.f32 %v2504, 0.0
  %v2569 = vmax.f32 %v2505, 0.0
  %v2570 = vmax.f32 %v2506, 0.0
  %v2571 = vmax.f32 %v2507, 0.0
  %v2572 = vmax.f32 %v2508, 0.0
  %v2573 = vmax.f32 %v2509, 0.0
  %v2574 = vmax.f32 %v2510, 0.0
  %v2575 = vmax.f32 %v2511, 0.0
  %v2576 = vmax.f32 %v2512, 0.0
  %v2577 = vmax.f32 %v2513, 0.0
  %v2578 = vmax.f32 %v2514, 0.0
  %v2579 = vmax.f32 %v2515, 0.0
  %v2580 = vmax.f32 %v2516, 0.0
  %v2581 = vmax.f32 %v2517, 0.0
  %v2582 = vmax.f32 %v2518, 0.0
  %v2583 = vmax.f32 %v2519, 0.0
  %v2584 = vmax.f32 %v2520, 0.0
  %v2585 = vmax.f32 %v2521, 0.0
  %v2586 = vmax.f32 %v2522, 0.0
  %v2587 = vmax.f32 %v2523, 0.0
  %v2588 = vmax.f32 %v2524, 0.0
  %v2589 = vmax.f32 %v2525, 0.0
  %v2590 = vmax.f32 %v2526, 0.0
  %v2591 = vmax.f32 %v2527, 0.0
  %v2592 = vmax.f32 %v2528, 0.0
  %v2593 = vmax.f32 %v2529, 0.0
  %v2594 = vmax.f32 %v2530, 0.0
  %v2595 = vmax.f32 %v2531, 0.0
  %v2596 = vmax.f32 %v2532, 0.0
  %v2597 = vmax.f32 %v2533, 0.0
  %v2598 = vmax.f32 %v2534, 0.0
  %v2599 = vmax.f32 %v2535, 0.0
  %v2600 = vmax.f32 %v2536, 0.0
  %v2601 = vmax.f32 %v2537, 0.0
  %v2602 = vmax.f32 %v2538, 0.0
  %v2603 = vmax.f32 %v2539, 0.0
  %v2604 = vmax.f32 %v2540, 0.0
  %v2605 = vmax.f32 %v2541, 0.0
  %v2606 = vmax.f32 %v2542, 0.0
  %v2607 = vmax.f32 %v2543, 0.0
  %v2608 = vmax.f32 %v2544, 0.0
  %v2609 = vmax.f32 %v2545, 0.0
  %v2610 = vmax.f32 %v2546, 0.0
  %v2611 = vmax.f32 %v2547, 0.0
  %v2612 = vmax.f32 %v2548, 0.0
  %v2613 = vmax.f32 %v2549, 0.0
  %v2614 = vmax.f32 %v2550, 0.0
  %v2615 = vmax.f32 %v2551, 0.0
  %v2616 = vmax.f32 %v2552, 0.0
  %v2617 = vmax.f32 %v2553, 0.0
  %v2618 = vmax.f32 %v2554, 0.0
  %v2619 = vmax.f32 %v2555, 0.0
  %v2620 = vmax.f32 %v2556, 0.0
  %v2621 = vmax.f32 %v2557, 0.0
  %v2622 = vmax.f32 %v2558, 0.0
  %v2623 = vpack.c.bf16 %v2560, %v2559
  %v2624 = vpack.c.bf16 %v2562, %v2561
  %v2625 = vpack.c.bf16 %v2564, %v2563
  %v2626 = vpack.c.bf16 %v2566, %v2565
  %v2627 = vpack.c.bf16 %v2568, %v2567
  %v2628 = vpack.c.bf16 %v2570, %v2569
  %v2629 = vpack.c.bf16 %v2572, %v2571
  %v2630 = vpack.c.bf16 %v2574, %v2573
  %v2631 = vpack.c.bf16 %v2576, %v2575
  %v2632 = vpack.c.bf16 %v2578, %v2577
  %v2633 = vpack.c.bf16 %v2580, %v2579
  %v2634 = vpack.c.bf16 %v2582, %v2581
  %v2635 = vpack.c.bf16 %v2584, %v2583
  %v2636 = vpack.c.bf16 %v2586, %v2585
  %v2637 = vpack.c.bf16 %v2588, %v2587
  %v2638 = vpack.c.bf16 %v2590, %v2589
  %v2639 = vpack.c.bf16 %v2592, %v2591
  %v2640 = vpack.c.bf16 %v2594, %v2593
  %v2641 = vpack.c.bf16 %v2596, %v2595
  %v2642 = vpack.c.bf16 %v2598, %v2597
  %v2643 = vpack.c.bf16 %v2600, %v2599
  %v2644 = vpack.c.bf16 %v2602, %v2601
  %v2645 = vpack.c.bf16 %v2604, %v2603
  %v2646 = vpack.c.bf16 %v2606, %v2605
  %v2647 = vpack.c.bf16 %v2608, %v2607
  %v2648 = vpack.c.bf16 %v2610, %v2609
  %v2649 = vpack.c.bf16 %v2612, %v2611
  %v2650 = vpack.c.bf16 %v2614, %v2613
  %v2651 = vpack.c.bf16 %v2616, %v2615
  %v2652 = vpack.c.bf16 %v2618, %v2617
  %v2653 = vpack.c.bf16 %v2620, %v2619
  %v2654 = vpack.c.bf16 %v2622, %v2621
  %v2687 = vunpack.c.l.b16 %v2623
  %v2688 = vunpack.c.h.b16 %v2623
  %v2689 = vunpack.c.l.b16 %v2624
  %v2690 = vunpack.c.h.b16 %v2624
  %v2691 = vunpack.c.l.b16 %v2625
  %v2692 = vunpack.c.h.b16 %v2625
  %v2693 = vunpack.c.l.b16 %v2626
  %v2694 = vunpack.c.h.b16 %v2626
  %v2695 = vunpack.c.l.b16 %v2627
  %v2696 = vunpack.c.h.b16 %v2627
  %v2697 = vunpack.c.l.b16 %v2628
  %v2698 = vunpack.c.h.b16 %v2628
  %v2699 = vunpack.c.l.b16 %v2629
  %v2700 = vunpack.c.h.b16 %v2629
  %v2701 = vunpack.c.l.b16 %v2630
  %v2702 = vunpack.c.h.b16 %v2630
  %v2703 = vunpack.c.l.b16 %v2631
  %v2704 = vunpack.c.h.b16 %v2631
  %v2705 = vunpack.c.l.b16 %v2632
  %v2706 = vunpack.c.h.b16 %v2632
  %v2707 = vunpack.c.l.b16 %v2633
  %v2708 = vunpack.c.h.b16 %v2633
  %v2709 = vunpack.c.l.b16 %v2634
  %v2710 = vunpack.c.h.b16 %v2634
  %v2711 = vunpack.c.l.b16 %v2635
  %v2712 = vunpack.c.h.b16 %v2635
  %v2713 = vunpack.c.l.b16 %v2636
  %v2714 = vunpack.c.h.b16 %v2636
  %v2715 = vunpack.c.l.b16 %v2637
  %v2716 = vunpack.c.h.b16 %v2637
  %v2717 = vunpack.c.l.b16 %v2638
  %v2718 = vunpack.c.h.b16 %v2638
  %v2719 = vunpack.c.l.b16 %v2639
  %v2720 = vunpack.c.h.b16 %v2639
  %v2721 = vunpack.c.l.b16 %v2640
  %v2722 = vunpack.c.h.b16 %v2640
  %v2723 = vunpack.c.l.b16 %v2641
  %v2724 = vunpack.c.h.b16 %v2641
  %v2725 = vunpack.c.l.b16 %v2642
  %v2726 = vunpack.c.h.b16 %v2642
  %v2727 = vunpack.c.l.b16 %v2643
  %v2728 = vunpack.c.h.b16 %v2643
  %v2729 = vunpack.c.l.b16 %v2644
  %v2730 = vunpack.c.h.b16 %v2644
  %v2731 = vunpack.c.l.b16 %v2645
  %v2732 = vunpack.c.h.b16 %v2645
  %v2733 = vunpack.c.l.b16 %v2646
  %v2734 = vunpack.c.h.b16 %v2646
  %v2735 = vunpack.c.l.b16 %v2647
  %v2736 = vunpack.c.h.b16 %v2647
  %v2737 = vunpack.c.l.b16 %v2648
  %v2738 = vunpack.c.h.b16 %v2648
  %v2739 = vunpack.c.l.b16 %v2649
  %v2740 = vunpack.c.h.b16 %v2649
  %v2741 = vunpack.c.l.b16 %v2650
  %v2742 = vunpack.c.h.b16 %v2650
  %v2743 = vunpack.c.l.b16 %v2651
  %v2744 = vunpack.c.h.b16 %v2651
  %v2745 = vunpack.c.l.b16 %v2652
  %v2746 = vunpack.c.h.b16 %v2652
  %v2747 = vunpack.c.l.b16 %v2653
  %v2748 = vunpack.c.h.b16 %v2653
  %v2749 = vunpack.c.l.b16 %v2654
  %v2750 = vunpack.c.h.b16 %v2654
  %v2751 = vpack.c.b16 %v2687, %v2687
  %v2752 = vpack.c.b16 %v2688, %v2688
  %v2753 = vpack.c.b16 %v2689, %v2689
  %v2754 = vpack.c.b16 %v2690, %v2690
  %v2755 = vpack.c.b16 %v2691, %v2691
  %v2756 = vpack.c.b16 %v2692, %v2692
  %v2757 = vpack.c.b16 %v2693, %v2693
  %v2758 = vpack.c.b16 %v2694, %v2694
  %v2759 = vpack.c.b16 %v2695, %v2695
  %v2760 = vpack.c.b16 %v2696, %v2696
  %v2761 = vpack.c.b16 %v2697, %v2697
  %v2762 = vpack.c.b16 %v2698, %v2698
  %v2763 = vpack.c.b16 %v2699, %v2699
  %v2764 = vpack.c.b16 %v2700, %v2700
  %v2765 = vpack.c.b16 %v2701, %v2701
  %v2766 = vpack.c.b16 %v2702, %v2702
  %v2767 = vpack.c.b16 %v2703, %v2703
  %v2768 = vpack.c.b16 %v2704, %v2704
  %v2769 = vpack.c.b16 %v2705, %v2705
  %v2770 = vpack.c.b16 %v2706, %v2706
  %v2771 = vpack.c.b16 %v2707, %v2707
  %v2772 = vpack.c.b16 %v2708, %v2708
  %v2773 = vpack.c.b16 %v2709, %v2709
  %v2774 = vpack.c.b16 %v2710, %v2710
  %v2775 = vpack.c.b16 %v2711, %v2711
  %v2776 = vpack.c.b16 %v2712, %v2712
  %v2777 = vpack.c.b16 %v2713, %v2713
  %v2778 = vpack.c.b16 %v2714, %v2714
  %v2779 = vpack.c.b16 %v2715, %v2715
  %v2780 = vpack.c.b16 %v2716, %v2716
  %v2781 = vpack.c.b16 %v2717, %v2717
  %v2782 = vpack.c.b16 %v2718, %v2718
  %v2783 = vpack.c.b16 %v2719, %v2719
  %v2784 = vpack.c.b16 %v2720, %v2720
  %v2785 = vpack.c.b16 %v2721, %v2721
  %v2786 = vpack.c.b16 %v2722, %v2722
  %v2787 = vpack.c.b16 %v2723, %v2723
  %v2788 = vpack.c.b16 %v2724, %v2724
  %v2789 = vpack.c.b16 %v2725, %v2725
  %v2790 = vpack.c.b16 %v2726, %v2726
  %v2791 = vpack.c.b16 %v2727, %v2727
  %v2792 = vpack.c.b16 %v2728, %v2728
  %v2793 = vpack.c.b16 %v2729, %v2729
  %v2794 = vpack.c.b16 %v2730, %v2730
  %v2795 = vpack.c.b16 %v2731, %v2731
  %v2796 = vpack.c.b16 %v2732, %v2732
  %v2797 = vpack.c.b16 %v2733, %v2733
  %v2798 = vpack.c.b16 %v2734, %v2734
  %v2799 = vpack.c.b16 %v2735, %v2735
  %v2800 = vpack.c.b16 %v2736, %v2736
  %v2801 = vpack.c.b16 %v2737, %v2737
  %v2802 = vpack.c.b16 %v2738, %v2738
  %v2803 = vpack.c.b16 %v2739, %v2739
  %v2804 = vpack.c.b16 %v2740, %v2740
  %v2805 = vpack.c.b16 %v2741, %v2741
  %v2806 = vpack.c.b16 %v2742, %v2742
  %v2807 = vpack.c.b16 %v2743, %v2743
  %v2808 = vpack.c.b16 %v2744, %v2744
  %v2809 = vpack.c.b16 %v2745, %v2745
  %v2810 = vpack.c.b16 %v2746, %v2746
  %v2811 = vpack.c.b16 %v2747, %v2747
  %v2812 = vpack.c.b16 %v2748, %v2748
  %v2813 = vpack.c.b16 %v2749, %v2749
  %v2814 = vpack.c.b16 %v2750, %v2750
  %2879 = vst [vmem:[%s4] sm:$0xf] %v2751
  %2880 = vst [vmem:[%s4 + $0x4] sm:$0xf] %v2752
  %2881 = vst [vmem:[%s4 + $0x8] sm:$0xf] %v2753
  %2882 = vst [vmem:[%s4 + $0xc] sm:$0xf] %v2754
  %2883 = vst [vmem:[%s4 + $0x10] sm:$0xf] %v2755
  %2884 = vst [vmem:[%s4 + $0x14] sm:$0xf] %v2756
  %2885 = vst [vmem:[%s4 + $0x18] sm:$0xf] %v2757
  %2886 = vst [vmem:[%s4 + $0x1c] sm:$0xf] %v2758
  %2887 = vst [vmem:[%s4 + $0x20] sm:$0xf] %v2759
  %2888 = vst [vmem:[%s4 + $0x24] sm:$0xf] %v2760
  %2889 = vst [vmem:[%s4 + $0x28] sm:$0xf] %v2761
  %2890 = vst [vmem:[%s4 + $0x2c] sm:$0xf] %v2762
  %2891 = vst [vmem:[%s4 + $0x30] sm:$0xf] %v2763
  %2892 = vst [vmem:[%s4 + $0x34] sm:$0xf] %v2764
  %2893 = vst [vmem:[%s4 + $0x38] sm:$0xf] %v2765
  %2894 = vst [vmem:[%s4 + $0x3c] sm:$0xf] %v2766
  %2895 = vst [vmem:[%s4 + $0x40] sm:$0xf] %v2767
  %2896 = vst [vmem:[%s4 + $0x44] sm:$0xf] %v2768
  %2897 = vst [vmem:[%s4 + $0x48] sm:$0xf] %v2769
  %2898 = vst [vmem:[%s4 + $0x4c] sm:$0xf] %v2770
  %2899 = vst [vmem:[%s4 + $0x50] sm:$0xf] %v2771
  %2900 = vst [vmem:[%s4 + $0x54] sm:$0xf] %v2772
  %2901 = vst [vmem:[%s4 + $0x58] sm:$0xf] %v2773
  %2902 = vst [vmem:[%s4 + $0x5c] sm:$0xf] %v2774
  %2903 = vst [vmem:[%s4 + $0x60] sm:$0xf] %v2775
  %2904 = vst [vmem:[%s4 + $0x64] sm:$0xf] %v2776
  %2905 = vst [vmem:[%s4 + $0x68] sm:$0xf] %v2777
  %2906 = vst [vmem:[%s4 + $0x6c] sm:$0xf] %v2778
  %2907 = vst [vmem:[%s4 + $0x70] sm:$0xf] %v2779
  %2908 = vst [vmem:[%s4 + $0x74] sm:$0xf] %v2780
  %2909 = vst [vmem:[%s4 + $0x78] sm:$0xf] %v2781
  %2910 = vst [vmem:[%s4 + $0x7c] sm:$0xf] %v2782
  %2911 = vst [vmem:[%s4 + $0x80] sm:$0xf] %v2783
  %2912 = vst [vmem:[%s4 + $0x84] sm:$0xf] %v2784
  %2913 = vst [vmem:[%s4 + $0x88] sm:$0xf] %v2785
  %2914 = vst [vmem:[%s4 + $0x8c] sm:$0xf] %v2786
  %2915 = vst [vmem:[%s4 + $0x90] sm:$0xf] %v2787
  %2916 = vst [vmem:[%s4 + $0x94] sm:$0xf] %v2788
  %2917 = vst [vmem:[%s4 + $0x98] sm:$0xf] %v2789
  %2918 = vst [vmem:[%s4 + $0x9c] sm:$0xf] %v2790
  %2919 = vst [vmem:[%s4 + $0xa0] sm:$0xf] %v2791
  %2920 = vst [vmem:[%s4 + $0xa4] sm:$0xf] %v2792
  %2921 = vst [vmem:[%s4 + $0xa8] sm:$0xf] %v2793
  %2922 = vst [vmem:[%s4 + $0xac] sm:$0xf] %v2794
  %2923 = vst [vmem:[%s4 + $0xb0] sm:$0xf] %v2795
  %2924 = vst [vmem:[%s4 + $0xb4] sm:$0xf] %v2796
  %2925 = vst [vmem:[%s4 + $0xb8] sm:$0xf] %v2797
  %2926 = vst [vmem:[%s4 + $0xbc] sm:$0xf] %v2798
  %2927 = vst [vmem:[%s4 + $0xc0] sm:$0xf] %v2799
  %2928 = vst [vmem:[%s4 + $0xc4] sm:$0xf] %v2800
  %2929 = vst [vmem:[%s4 + $0xc8] sm:$0xf] %v2801
  %2930 = vst [vmem:[%s4 + $0xcc] sm:$0xf] %v2802
  %2931 = vst [vmem:[%s4 + $0xd0] sm:$0xf] %v2803
  %2932 = vst [vmem:[%s4 + $0xd4] sm:$0xf] %v2804
  %2933 = vst [vmem:[%s4 + $0xd8] sm:$0xf] %v2805
  %2934 = vst [vmem:[%s4 + $0xdc] sm:$0xf] %v2806
  %2935 = vst [vmem:[%s4 + $0xe0] sm:$0xf] %v2807
  %2936 = vst [vmem:[%s4 + $0xe4] sm:$0xf] %v2808
  %2937 = vst [vmem:[%s4 + $0xe8] sm:$0xf] %v2809
  %2938 = vst [vmem:[%s4 + $0xec] sm:$0xf] %v2810
  %2939 = vst [vmem:[%s4 + $0xf0] sm:$0xf] %v2811
  %2940 = vst [vmem:[%s4 + $0xf4] sm:$0xf] %v2812
  %2941 = vst [vmem:[%s4 + $0xf8] sm:$0xf] %v2813
  %2942 = vst [vmem:[%s4 + $0xfc] sm:$0xf] %v2814
  // Predicated region
  $region18: #{deeplabv3_forward.12} parent=0 // pred_check
    _
  $region19: #{deeplabv3_forward.12} parent=0 // pred_check_branch
    %2944 = sbr.rel (0) target = $region21
  $region20: #{deeplabv3_forward.12} parent=0 // pred_region
    _
  $region21: #{deeplabv3_forward.12} parent=0 // pred_fallthru
    _
  // Predicated region
  $region22: #{deeplabv3_forward.12} parent=0 // pred_check
    _
  $region23: #{deeplabv3_forward.12} parent=0 // pred_check_branch
    %2946 = sbr.rel (0) target = $region25
  $region24: #{deeplabv3_forward.12} parent=0 // pred_region
    _
  $region25: #{deeplabv3_forward.12} parent=0 // pred_fallthru
    _

// kernel: deeplabv3_forward.16
$region0: #{deeplabv3_forward.16}
  #allocation0 [shape = 'u32[]', space=smem, size = 0x4, offset = 0x4, fixed_abs, tag = 'smem constant byte address 0x4 - core index']
  #allocation1 [shape = 'u32[144,128]{1,0:T(1,128)}', space=vmem, size = 0x12000, scoped, tag = 'internal scratch']
  %s0 = inlined_call_operand.vmem [shape: bf16[128,128], index: 0, kind: input, shape index: {}]
  %s1 = inlined_call_operand.vmem [shape: bf16[128,128], index: 1, kind: input, shape index: {}]
  %s2 = inlined_call_operand.vmem [shape: f32[2,128], index: 2, kind: input, shape index: {}]
  %s3 = inlined_call_operand.vmem [shape: bf16[128,128], index: 3, kind: output, shape index: {}]
  %s4 = sld [smem:[#allocation0]]
  $region22: #{deeplabv3_forward.16} parent=0
    _
  %s6 = ssub.s32 1, %s4
  %s7 = scalar_select 0, %s6, %s4
  // Predicated region
  $region2: #{deeplabv3_forward.16} parent=0 // pred_check
    _
  $region3: #{deeplabv3_forward.16} parent=0 // pred_check_branch
    %9 = sbr.rel (0) target = $region5
  $region4: #{deeplabv3_forward.16} parent=0 // pred_region
    _
  $region5: #{deeplabv3_forward.16} parent=0 // pred_fallthru
    _
  // Predicated region
  $region6: #{deeplabv3_forward.16} parent=0 // pred_check
    _
  $region7: #{deeplabv3_forward.16} parent=0 // pred_check_branch
    %11 = sbr.rel (0) target = $region9
  $region8: #{deeplabv3_forward.16} parent=0 // pred_region
    _
  $region9: #{deeplabv3_forward.16} parent=0 // pred_fallthru
    _
  // Predicated region
  $region10: #{deeplabv3_forward.16} parent=0 // pred_check
    _
  $region11: #{deeplabv3_forward.16} parent=0 // pred_check_branch
    %13 = sbr.rel (0) target = $region13
  $region12: #{deeplabv3_forward.16} parent=0 // pred_region
    _
  $region13: #{deeplabv3_forward.16} parent=0 // pred_fallthru
    _
  %v15 = vld [vmem:[%s0] sm:$0xf]
  %v16 = vld [vmem:[%s0 + $0x4] sm:$0xf]
  %v17 = vld [vmem:[%s0 + $0x8] sm:$0xf]
  %v18 = vld [vmem:[%s0 + $0xc] sm:$0xf]
  %v19 = vld [vmem:[%s0 + $0x10] sm:$0xf]
  %v20 = vld [vmem:[%s0 + $0x14] sm:$0xf]
  %v21 = vld [vmem:[%s0 + $0x18] sm:$0xf]
  %v22 = vld [vmem:[%s0 + $0x1c] sm:$0xf]
  %v23 = vld [vmem:[%s0 + $0x20] sm:$0xf]
  %v24 = vld [vmem:[%s0 + $0x24] sm:$0xf]
  %v25 = vld [vmem:[%s0 + $0x28] sm:$0xf]
  %v26 = vld [vmem:[%s0 + $0x2c] sm:$0xf]
  %v27 = vld [vmem:[%s0 + $0x30] sm:$0xf]
  %v28 = vld [vmem:[%s0 + $0x34] sm:$0xf]
  %v29 = vld [vmem:[%s0 + $0x38] sm:$0xf]
  %v30 = vld [vmem:[%s0 + $0x3c] sm:$0xf]
  %v31 = vld [vmem:[%s1] sm:$0xf]
  %v32 = vld [vmem:[%s1 + $0x4] sm:$0xf]
  %v33 = vld [vmem:[%s1 + $0x8] sm:$0xf]
  %v34 = vld [vmem:[%s1 + $0xc] sm:$0xf]
  %v35 = vld [vmem:[%s1 + $0x10] sm:$0xf]
  %v36 = vld [vmem:[%s1 + $0x14] sm:$0xf]
  %v37 = vld [vmem:[%s1 + $0x18] sm:$0xf]
  %v38 = vld [vmem:[%s1 + $0x1c] sm:$0xf]
  %v39 = vld [vmem:[%s1 + $0x20] sm:$0xf]
  %v40 = vld [vmem:[%s1 + $0x24] sm:$0xf]
  %v41 = vld [vmem:[%s1 + $0x28] sm:$0xf]
  %v42 = vld [vmem:[%s1 + $0x2c] sm:$0xf]
  %v43 = vld [vmem:[%s1 + $0x30] sm:$0xf]
  %v44 = vld [vmem:[%s1 + $0x34] sm:$0xf]
  %v45 = vld [vmem:[%s1 + $0x38] sm:$0xf]
  %v46 = vld [vmem:[%s1 + $0x3c] sm:$0xf]
  %v63 = vunpack.c.l.b16 %v15
  %v64 = vunpack.c.l.b16 %v16
  %v65 = vunpack.c.l.b16 %v17
  %v66 = vunpack.c.l.b16 %v18
  %v67 = vunpack.c.l.b16 %v19
  %v68 = vunpack.c.l.b16 %v20
  %v69 = vunpack.c.l.b16 %v21
  %v70 = vunpack.c.l.b16 %v22
  %v71 = vunpack.c.l.b16 %v23
  %v72 = vunpack.c.l.b16 %v24
  %v73 = vunpack.c.l.b16 %v25
  %v74 = vunpack.c.l.b16 %v26
  %v75 = vunpack.c.l.b16 %v27
  %v76 = vunpack.c.l.b16 %v28
  %v77 = vunpack.c.l.b16 %v29
  %v78 = vunpack.c.l.b16 %v30
  %v79 = vpack.c.b16 %v64, %v63
  %v80 = vpack.c.b16 %v66, %v65
  %v81 = vpack.c.b16 %v68, %v67
  %v82 = vpack.c.b16 %v70, %v69
  %v83 = vpack.c.b16 %v72, %v71
  %v84 = vpack.c.b16 %v74, %v73
  %v85 = vpack.c.b16 %v76, %v75
  %v86 = vpack.c.b16 %v78, %v77
  %v111 = vunpack.c.l.b16 %v31
  %v112 = vunpack.c.l.b16 %v32
  %v113 = vunpack.c.l.b16 %v33
  %v114 = vunpack.c.l.b16 %v34
  %v115 = vunpack.c.l.b16 %v35
  %v116 = vunpack.c.l.b16 %v36
  %v117 = vunpack.c.l.b16 %v37
  %v118 = vunpack.c.l.b16 %v38
  %v119 = vunpack.c.l.b16 %v39
  %v120 = vunpack.c.l.b16 %v40
  %v121 = vunpack.c.l.b16 %v41
  %v122 = vunpack.c.l.b16 %v42
  %v123 = vunpack.c.l.b16 %v43
  %v124 = vunpack.c.l.b16 %v44
  %v125 = vunpack.c.l.b16 %v45
  %v126 = vunpack.c.l.b16 %v46
  %v127 = vpack.c.b16 %v112, %v111
  %v128 = vpack.c.b16 %v114, %v113
  %v129 = vpack.c.b16 %v116, %v115
  %v130 = vpack.c.b16 %v118, %v117
  %v131 = vpack.c.b16 %v120, %v119
  %v132 = vpack.c.b16 %v122, %v121
  %v133 = vpack.c.b16 %v124, %v123
  %v134 = vpack.c.b16 %v126, %v125
  %143 = vmatprep.subr.bf16.mxu0 0
  %144 = vmatpush1.bf16.msra.mxu0 %v134
  %145 = vmatprep.subr.bf16.mxu0 0
  %146 = vmatpush1.bf16.msra.mxu0 %v133
  %147 = vmatprep.subr.bf16.mxu0 0
  %148 = vmatpush1.bf16.msra.mxu0 %v132
  %149 = vmatprep.subr.bf16.mxu0 0
  %150 = vmatpush1.bf16.msra.mxu0 %v131
  %151 = vmatprep.subr.bf16.mxu0 0
  %152 = vmatpush1.bf16.msra.mxu0 %v130
  %153 = vmatprep.subr.bf16.mxu0 0
  %154 = vmatpush1.bf16.msra.mxu0 %v129
  %155 = vmatprep.subr.bf16.mxu0 0
  %156 = vmatpush1.bf16.msra.mxu0 %v128
  %157 = vmatprep.subr.bf16.mxu0 0
  %158 = vmatpush1.bf16.msra.mxu0 %v127
  %159 = vmatprep.subr.bf16.mxu0 0
  %160 = vmatpush2.bf16.msra.mxu0 0
  %161 = vmatprep.subr.bf16.mxu0 0
  %162 = vmatpush2.bf16.msra.mxu0 0
  %163 = vmatprep.subr.bf16.mxu0 0
  %164 = vmatpush2.bf16.msra.mxu0 0
  %165 = vmatprep.subr.bf16.mxu0 0
  %166 = vmatpush2.bf16.msra.mxu0 0
  %167 = vmatprep.subr.bf16.mxu0 0
  %168 = vmatpush2.bf16.msra.mxu0 0
  %169 = vmatprep.subr.bf16.mxu0 0
  %170 = vmatpush2.bf16.msra.mxu0 0
  %171 = vmatprep.subr.bf16.mxu0 0
  %172 = vmatpush2.bf16.msra.mxu0 0
  %173 = vmatprep.subr.bf16.mxu0 0
  %174 = vmatpush2.bf16.msra.mxu0 0
  %175 = vmatprep.mubr.bf16.mxu0 0
  %176 = vmatmul.mubr.bf16.gmra.mxu0 %v79
  %v177 = vpop.f32.mrf.mxu0
  %v178 = vadd.f32 0.0, %v177
  %v179 = vpop.f32.mrf.mxu0
  %v180 = vpop.f32.mrf.mxu0
  %v181 = vadd.f32 0.0, %v180
  %v182 = vpop.f32.mrf.mxu0
  %183 = vmatprep.mubr.bf16.mxu0 0
  %184 = vmatmul.mubr.bf16.gmra.mxu0 %v80
  %v185 = vpop.f32.mrf.mxu0
  %v186 = vadd.f32 0.0, %v185
  %v187 = vpop.f32.mrf.mxu0
  %v188 = vpop.f32.mrf.mxu0
  %v189 = vadd.f32 0.0, %v188
  %v190 = vpop.f32.mrf.mxu0
  %191 = vmatprep.mubr.bf16.mxu0 0
  %192 = vmatmul.mubr.bf16.gmra.mxu0 %v81
  %v193 = vpop.f32.mrf.mxu0
  %v194 = vadd.f32 0.0, %v193
  %v195 = vpop.f32.mrf.mxu0
  %v196 = vpop.f32.mrf.mxu0
  %v197 = vadd.f32 0.0, %v196
  %v198 = vpop.f32.mrf.mxu0
  %199 = vmatprep.mubr.bf16.mxu0 0
  %200 = vmatmul.mubr.bf16.gmra.mxu0 %v82
  %v201 = vpop.f32.mrf.mxu0
  %v202 = vadd.f32 0.0, %v201
  %v203 = vpop.f32.mrf.mxu0
  %v204 = vpop.f32.mrf.mxu0
  %v205 = vadd.f32 0.0, %v204
  %v206 = vpop.f32.mrf.mxu0
  %207 = vmatprep.mubr.bf16.mxu0 0
  %208 = vmatmul.mubr.bf16.gmra.mxu0 %v83
  %v209 = vpop.f32.mrf.mxu0
  %v210 = vadd.f32 0.0, %v209
  %v211 = vpop.f32.mrf.mxu0
  %v212 = vpop.f32.mrf.mxu0
  %v213 = vadd.f32 0.0, %v212
  %v214 = vpop.f32.mrf.mxu0
  %215 = vmatprep.mubr.bf16.mxu0 0
  %216 = vmatmul.mubr.bf16.gmra.mxu0 %v84
  %v217 = vpop.f32.mrf.mxu0
  %v218 = vadd.f32 0.0, %v217
  %v219 = vpop.f32.mrf.mxu0
  %v220 = vpop.f32.mrf.mxu0
  %v221 = vadd.f32 0.0, %v220
  %v222 = vpop.f32.mrf.mxu0
  %223 = vmatprep.mubr.bf16.mxu0 0
  %224 = vmatmul.mubr.bf16.gmra.mxu0 %v85
  %v225 = vpop.f32.mrf.mxu0
  %v226 = vadd.f32 0.0, %v225
  %v227 = vpop.f32.mrf.mxu0
  %v228 = vpop.f32.mrf.mxu0
  %v229 = vadd.f32 0.0, %v228
  %v230 = vpop.f32.mrf.mxu0
  %231 = vmatprep.mubr.bf16.mxu0 0
  %232 = vmatmul.mubr.bf16.gmra.mxu0 %v86
  %v233 = vpop.f32.mrf.mxu0
  %v234 = vadd.f32 0.0, %v233
  %v235 = vpop.f32.mrf.mxu0
  %v236 = vpop.f32.mrf.mxu0
  %v237 = vadd.f32 0.0, %v236
  %v238 = vpop.f32.mrf.mxu0
  %239 = vdwg.mxu0
  %v240 = vld [vmem:[%s2] sm:$0x1]
  %v241 = vlaneseq
  %v242 = vshrl.u32 %v241, 7
  %v243 = vsub.s32 0, %v242
  %v244 = vrot.slane %v240, %v243
  %v245 = vmul.f32 %v178, %v244
  %v246 = vmul.f32 %v181, %v244
  %v247 = vmul.f32 %v186, %v244
  %v248 = vmul.f32 %v189, %v244
  %v249 = vmul.f32 %v194, %v244
  %v250 = vmul.f32 %v197, %v244
  %v251 = vmul.f32 %v202, %v244
  %v252 = vmul.f32 %v205, %v244
  %v253 = vmul.f32 %v210, %v244
  %v254 = vmul.f32 %v213, %v244
  %v255 = vmul.f32 %v218, %v244
  %v256 = vmul.f32 %v221, %v244
  %v257 = vmul.f32 %v226, %v244
  %v258 = vmul.f32 %v229, %v244
  %v259 = vmul.f32 %v234, %v244
  %v260 = vmul.f32 %v237, %v244
  %v261 = vld [vmem:[%s2 + $0x1] sm:$0x1]
  %v262 = vlaneseq
  %v263 = vshrl.u32 %v262, 7
  %v264 = vsub.s32 0, %v263
  %v265 = vrot.slane %v261, %v264
  %v266 = vadd.f32 %v245, %v265
  %v267 = vadd.f32 %v246, %v265
  %v268 = vadd.f32 %v247, %v265
  %v269 = vadd.f32 %v248, %v265
  %v270 = vadd.f32 %v249, %v265
  %v271 = vadd.f32 %v250, %v265
  %v272 = vadd.f32 %v251, %v265
  %v273 = vadd.f32 %v252, %v265
  %v274 = vadd.f32 %v253, %v265
  %v275 = vadd.f32 %v254, %v265
  %v276 = vadd.f32 %v255, %v265
  %v277 = vadd.f32 %v256, %v265
  %v278 = vadd.f32 %v257, %v265
  %v279 = vadd.f32 %v258, %v265
  %v280 = vadd.f32 %v259, %v265
  %v281 = vadd.f32 %v260, %v265
  %v282 = vpack.c.bf16 %v267, %v266
  %v283 = vpack.c.bf16 %v269, %v268
  %v284 = vpack.c.bf16 %v271, %v270
  %v285 = vpack.c.bf16 %v273, %v272
  %v286 = vpack.c.bf16 %v275, %v274
  %v287 = vpack.c.bf16 %v277, %v276
  %v288 = vpack.c.bf16 %v279, %v278
  %v289 = vpack.c.bf16 %v281, %v280
  %v298 = vunpack.c.l.b16 %v282
  %v299 = vunpack.c.h.b16 %v282
  %v300 = vunpack.c.l.b16 %v283
  %v301 = vunpack.c.h.b16 %v283
  %v302 = vunpack.c.l.b16 %v284
  %v303 = vunpack.c.h.b16 %v284
  %v304 = vunpack.c.l.b16 %v285
  %v305 = vunpack.c.h.b16 %v285
  %v306 = vunpack.c.l.b16 %v286
  %v307 = vunpack.c.h.b16 %v286
  %v308 = vunpack.c.l.b16 %v287
  %v309 = vunpack.c.h.b16 %v287
  %v310 = vunpack.c.l.b16 %v288
  %v311 = vunpack.c.h.b16 %v288
  %v312 = vunpack.c.l.b16 %v289
  %v313 = vunpack.c.h.b16 %v289
  %v314 = vpack.c.b16 %v298, %v298
  %v315 = vpack.c.b16 %v299, %v299
  %v316 = vpack.c.b16 %v300, %v300
  %v317 = vpack.c.b16 %v301, %v301
  %v318 = vpack.c.b16 %v302, %v302
  %v319 = vpack.c.b16 %v303, %v303
  %v320 = vpack.c.b16 %v304, %v304
  %v321 = vpack.c.b16 %v305, %v305
  %v322 = vpack.c.b16 %v306, %v306
  %v323 = vpack.c.b16 %v307, %v307
  %v324 = vpack.c.b16 %v308, %v308
  %v325 = vpack.c.b16 %v309, %v309
  %v326 = vpack.c.b16 %v310, %v310
  %v327 = vpack.c.b16 %v311, %v311
  %v328 = vpack.c.b16 %v312, %v312
  %v329 = vpack.c.b16 %v313, %v313
  %346 = vst [vmem:[%s3] sm:$0xf] %v314
  %347 = vst [vmem:[%s3 + $0x4] sm:$0xf] %v315
  %348 = vst [vmem:[%s3 + $0x8] sm:$0xf] %v316
  %349 = vst [vmem:[%s3 + $0xc] sm:$0xf] %v317
  %350 = vst [vmem:[%s3 + $0x10] sm:$0xf] %v318
  %351 = vst [vmem:[%s3 + $0x14] sm:$0xf] %v319
  %352 = vst [vmem:[%s3 + $0x18] sm:$0xf] %v320
  %353 = vst [vmem:[%s3 + $0x1c] sm:$0xf] %v321
  %354 = vst [vmem:[%s3 + $0x20] sm:$0xf] %v322
  %355 = vst [vmem:[%s3 + $0x24] sm:$0xf] %v323
  %356 = vst [vmem:[%s3 + $0x28] sm:$0xf] %v324
  %357 = vst [vmem:[%s3 + $0x2c] sm:$0xf] %v325
  %358 = vst [vmem:[%s3 + $0x30] sm:$0xf] %v326
  %359 = vst [vmem:[%s3 + $0x34] sm:$0xf] %v327
  %360 = vst [vmem:[%s3 + $0x38] sm:$0xf] %v328
  %361 = vst [vmem:[%s3 + $0x3c] sm:$0xf] %v329
  // Predicated region
  $region14: #{deeplabv3_forward.16} parent=0 // pred_check
    _
  $region15: #{deeplabv3_forward.16} parent=0 // pred_check_branch
    %363 = sbr.rel (0) target = $region17
  $region16: #{deeplabv3_forward.16} parent=0 // pred_region
    _
  $region17: #{deeplabv3_forward.16} parent=0 // pred_fallthru
    _
  // Predicated region
  $region18: #{deeplabv3_forward.16} parent=0 // pred_check
    _
  $region19: #{deeplabv3_forward.16} parent=0 // pred_check_branch
    %365 = sbr.rel (0) target = $region21
  $region20: #{deeplabv3_forward.16} parent=0 // pred_region
    _
  $region21: #{deeplabv3_forward.16} parent=0 // pred_fallthru
    _

// kernel: deeplabv3_forward.18
$region0: #{deeplabv3_forward.18}
  #allocation0 [shape = 'u32[]', space=smem, size = 0x4, offset = 0x4, fixed_abs, tag = 'smem constant byte address 0x4 - core index']
  #allocation1 [shape = 'u32[144,128]{1,0:T(1,128)}', space=vmem, size = 0x12000, scoped, tag = 'internal scratch']
  %s0 = inlined_call_operand.vmem [shape: bf16[128,1152], index: 0, kind: input, shape index: {}]
  %s1 = inlined_call_operand.vmem [shape: bf16[1152,128], index: 1, kind: input, shape index: {}]
  %s2 = inlined_call_operand.vmem [shape: f32[2,128], index: 2, kind: input, shape index: {}]
  %s3 = inlined_call_operand.vmem [shape: bf16[128,128], index: 3, kind: output, shape index: {}]
  %s4 = sld [smem:[#allocation0]]
  $region22: #{deeplabv3_forward.18} parent=0
    _
  %s6 = ssub.s32 1, %s4
  %s7 = scalar_select 0, %s6, %s4
  // Predicated region
  $region2: #{deeplabv3_forward.18} parent=0 // pred_check
    _
  $region3: #{deeplabv3_forward.18} parent=0 // pred_check_branch
    %9 = sbr.rel (0) target = $region5
  $region4: #{deeplabv3_forward.18} parent=0 // pred_region
    _
  $region5: #{deeplabv3_forward.18} parent=0 // pred_fallthru
    _
  // Predicated region
  $region6: #{deeplabv3_forward.18} parent=0 // pred_check
    _
  $region7: #{deeplabv3_forward.18} parent=0 // pred_check_branch
    %11 = sbr.rel (0) target = $region9
  $region8: #{deeplabv3_forward.18} parent=0 // pred_region
    _
  $region9: #{deeplabv3_forward.18} parent=0 // pred_fallthru
    _
  // Predicated region
  $region10: #{deeplabv3_forward.18} parent=0 // pred_check
    _
  $region11: #{deeplabv3_forward.18} parent=0 // pred_check_branch
    %13 = sbr.rel (0) target = $region13
  $region12: #{deeplabv3_forward.18} parent=0 // pred_region
    _
  $region13: #{deeplabv3_forward.18} parent=0 // pred_fallthru
    _
  %v15 = vld [vmem:[%s0] sm:$0xff]
  %v16 = vld [vmem:[%s0 + $0x8] sm:$0xff]
  %v17 = vld [vmem:[%s0 + $0x10] sm:$0xff]
  %v18 = vld [vmem:[%s0 + $0x18] sm:$0xff]
  %v19 = vld [vmem:[%s0 + $0x20] sm:$0xf]
  %v20 = vld [vmem:[%s0 + $0x24] sm:$0xff]
  %v21 = vld [vmem:[%s0 + $0x2c] sm:$0xff]
  %v22 = vld [vmem:[%s0 + $0x34] sm:$0xff]
  %v23 = vld [vmem:[%s0 + $0x3c] sm:$0xff]
  %v24 = vld [vmem:[%s0 + $0x44] sm:$0xf]
  %v25 = vld [vmem:[%s0 + $0x48] sm:$0xff]
  %v26 = vld [vmem:[%s0 + $0x50] sm:$0xff]
  %v27 = vld [vmem:[%s0 + $0x58] sm:$0xff]
  %v28 = vld [vmem:[%s0 + $0x60] sm:$0xff]
  %v29 = vld [vmem:[%s0 + $0x68] sm:$0xf]
  %v30 = vld [vmem:[%s0 + $0x6c] sm:$0xff]
  %v31 = vld [vmem:[%s0 + $0x74] sm:$0xff]
  %v32 = vld [vmem:[%s0 + $0x7c] sm:$0xff]
  %v33 = vld [vmem:[%s0 + $0x84] sm:$0xff]
  %v34 = vld [vmem:[%s0 + $0x8c] sm:$0xf]
  %v35 = vld [vmem:[%s0 + $0x90] sm:$0xff]
  %v36 = vld [vmem:[%s0 + $0x98] sm:$0xff]
  %v37 = vld [vmem:[%s0 + $0xa0] sm:$0xff]
  %v38 = vld [vmem:[%s0 + $0xa8] sm:$0xff]
  %v39 = vld [vmem:[%s0 + $0xb0] sm:$0xf]
  %v40 = vld [vmem:[%s0 + $0xb4] sm:$0xff]
  %v41 = vld [vmem:[%s0 + $0xbc] sm:$0xff]
  %v42 = vld [vmem:[%s0 + $0xc4] sm:$0xff]
  %v43 = vld [vmem:[%s0 + $0xcc] sm:$0xff]
  %v44 = vld [vmem:[%s0 + $0xd4] sm:$0xf]
  %v45 = vld [vmem:[%s0 + $0xd8] sm:$0xff]
  %v46 = vld [vmem:[%s0 + $0xe0] sm:$0xff]
  %v47 = vld [vmem:[%s0 + $0xe8] sm:$0xff]
  %v48 = vld [vmem:[%s0 + $0xf0] sm:$0xff]
  %v49 = vld [vmem:[%s0 + $0xf8] sm:$0xf]
  %v50 = vld [vmem:[%s0 + $0xfc] sm:$0xff]
  %v51 = vld [vmem:[%s0 + $0x104] sm:$0xff]
  %v52 = vld [vmem:[%s0 + $0x10c] sm:$0xff]
  %v53 = vld [vmem:[%s0 + $0x114] sm:$0xff]
  %v54 = vld [vmem:[%s0 + $0x11c] sm:$0xf]
  %v55 = vld [vmem:[%s0 + $0x120] sm:$0xff]
  %v56 = vld [vmem:[%s0 + $0x128] sm:$0xff]
  %v57 = vld [vmem:[%s0 + $0x130] sm:$0xff]
  %v58 = vld [vmem:[%s0 + $0x138] sm:$0xff]
  %v59 = vld [vmem:[%s0 + $0x140] sm:$0xf]
  %v60 = vld [vmem:[%s0 + $0x144] sm:$0xff]
  %v61 = vld [vmem:[%s0 + $0x14c] sm:$0xff]
  %v62 = vld [vmem:[%s0 + $0x154] sm:$0xff]
  %v63 = vld [vmem:[%s0 + $0x15c] sm:$0xff]
  %v64 = vld [vmem:[%s0 + $0x164] sm:$0xf]
  %v65 = vld [vmem:[%s0 + $0x168] sm:$0xff]
  %v66 = vld [vmem:[%s0 + $0x170] sm:$0xff]
  %v67 = vld [vmem:[%s0 + $0x178] sm:$0xff]
  %v68 = vld [vmem:[%s0 + $0x180] sm:$0xff]
  %v69 = vld [vmem:[%s0 + $0x188] sm:$0xf]
  %v70 = vld [vmem:[%s0 + $0x18c] sm:$0xff]
  %v71 = vld [vmem:[%s0 + $0x194] sm:$0xff]
  %v72 = vld [vmem:[%s0 + $0x19c] sm:$0xff]
  %v73 = vld [vmem:[%s0 + $0x1a4] sm:$0xff]
  %v74 = vld [vmem:[%s0 + $0x1ac] sm:$0xf]
  %v75 = vld [vmem:[%s0 + $0x1b0] sm:$0xff]
  %v76 = vld [vmem:[%s0 + $0x1b8] sm:$0xff]
  %v77 = vld [vmem:[%s0 + $0x1c0] sm:$0xff]
  %v78 = vld [vmem:[%s0 + $0x1c8] sm:$0xff]
  %v79 = vld [vmem:[%s0 + $0x1d0] sm:$0xf]
  %v80 = vld [vmem:[%s0 + $0x1d4] sm:$0xff]
  %v81 = vld [vmem:[%s0 + $0x1dc] sm:$0xff]
  %v82 = vld [vmem:[%s0 + $0x1e4] sm:$0xff]
  %v83 = vld [vmem:[%s0 + $0x1ec] sm:$0xff]
  %v84 = vld [vmem:[%s0 + $0x1f4] sm:$0xf]
  %v85 = vld [vmem:[%s0 + $0x1f8] sm:$0xff]
  %v86 = vld [vmem:[%s0 + $0x200] sm:$0xff]
  %v87 = vld [vmem:[%s0 + $0x208] sm:$0xff]
  %v88 = vld [vmem:[%s0 + $0x210] sm:$0xff]
  %v89 = vld [vmem:[%s0 + $0x218] sm:$0xf]
  %v90 = vld [vmem:[%s0 + $0x21c] sm:$0xff]
  %v91 = vld [vmem:[%s0 + $0x224] sm:$0xff]
  %v92 = vld [vmem:[%s0 + $0x22c] sm:$0xff]
  %v93 = vld [vmem:[%s0 + $0x234] sm:$0xff]
  %v94 = vld [vmem:[%s0 + $0x23c] sm:$0xf]
  %v95 = vld [vmem:[%s1] sm:$0xf]
  %v96 = vld [vmem:[%s1 + $0x4] sm:$0xf]
  %v97 = vld [vmem:[%s1 + $0x8] sm:$0xf]
  %v98 = vld [vmem:[%s1 + $0xc] sm:$0xf]
  %v99 = vld [vmem:[%s1 + $0x10] sm:$0xf]
  %v100 = vld [vmem:[%s1 + $0x14] sm:$0xf]
  %v101 = vld [vmem:[%s1 + $0x18] sm:$0xf]
  %v102 = vld [vmem:[%s1 + $0x1c] sm:$0xf]
  %v103 = vld [vmem:[%s1 + $0x20] sm:$0xf]
  %v104 = vld [vmem:[%s1 + $0x24] sm:$0xf]
  %v105 = vld [vmem:[%s1 + $0x28] sm:$0xf]
  %v106 = vld [vmem:[%s1 + $0x2c] sm:$0xf]
  %v107 = vld [vmem:[%s1 + $0x30] sm:$0xf]
  %v108 = vld [vmem:[%s1 + $0x34] sm:$0xf]
  %v109 = vld [vmem:[%s1 + $0x38] sm:$0xf]
  %v110 = vld [vmem:[%s1 + $0x3c] sm:$0xf]
  %v111 = vld [vmem:[%s1 + $0x40] sm:$0xf]
  %v112 = vld [vmem:[%s1 + $0x44] sm:$0xf]
  %v113 = vld [vmem:[%s1 + $0x48] sm:$0xf]
  %v114 = vld [vmem:[%s1 + $0x4c] sm:$0xf]
  %v115 = vld [vmem:[%s1 + $0x50] sm:$0xf]
  %v116 = vld [vmem:[%s1 + $0x54] sm:$0xf]
  %v117 = vld [vmem:[%s1 + $0x58] sm:$0xf]
  %v118 = vld [vmem:[%s1 + $0x5c] sm:$0xf]
  %v119 = vld [vmem:[%s1 + $0x60] sm:$0xf]
  %v120 = vld [vmem:[%s1 + $0x64] sm:$0xf]
  %v121 = vld [vmem:[%s1 + $0x68] sm:$0xf]
  %v122 = vld [vmem:[%s1 + $0x6c] sm:$0xf]
  %v123 = vld [vmem:[%s1 + $0x70] sm:$0xf]
  %v124 = vld [vmem:[%s1 + $0x74] sm:$0xf]
  %v125 = vld [vmem:[%s1 + $0x78] sm:$0xf]
  %v126 = vld [vmem:[%s1 + $0x7c] sm:$0xf]
  %v127 = vld [vmem:[%s1 + $0x80] sm:$0xf]
  %v128 = vld [vmem:[%s1 + $0x84] sm:$0xf]
  %v129 = vld [vmem:[%s1 + $0x88] sm:$0xf]
  %v130 = vld [vmem:[%s1 + $0x8c] sm:$0xf]
  %v131 = vld [vmem:[%s1 + $0x90] sm:$0xf]
  %v132 = vld [vmem:[%s1 + $0x94] sm:$0xf]
  %v133 = vld [vmem:[%s1 + $0x98] sm:$0xf]
  %v134 = vld [vmem:[%s1 + $0x9c] sm:$0xf]
  %v135 = vld [vmem:[%s1 + $0xa0] sm:$0xf]
  %v136 = vld [vmem:[%s1 + $0xa4] sm:$0xf]
  %v137 = vld [vmem:[%s1 + $0xa8] sm:$0xf]
  %v138 = vld [vmem:[%s1 + $0xac] sm:$0xf]
  %v139 = vld [vmem:[%s1 + $0xb0] sm:$0xf]
  %v140 = vld [vmem:[%s1 + $0xb4] sm:$0xf]
  %v141 = vld [vmem:[%s1 + $0xb8] sm:$0xf]
  %v142 = vld [vmem:[%s1 + $0xbc] sm:$0xf]
  %v143 = vld [vmem:[%s1 + $0xc0] sm:$0xf]
  %v144 = vld [vmem:[%s1 + $0xc4] sm:$0xf]
  %v145 = vld [vmem:[%s1 + $0xc8] sm:$0xf]
  %v146 = vld [vmem:[%s1 + $0xcc] sm:$0xf]
  %v147 = vld [vmem:[%s1 + $0xd0] sm:$0xf]
  %v148 = vld [vmem:[%s1 + $0xd4] sm:$0xf]
  %v149 = vld [vmem:[%s1 + $0xd8] sm:$0xf]
  %v150 = vld [vmem:[%s1 + $0xdc] sm:$0xf]
  %v151 = vld [vmem:[%s1 + $0xe0] sm:$0xf]
  %v152 = vld [vmem:[%s1 + $0xe4] sm:$0xf]
  %v153 = vld [vmem:[%s1 + $0xe8] sm:$0xf]
  %v154 = vld [vmem:[%s1 + $0xec] sm:$0xf]
  %v155 = vld [vmem:[%s1 + $0xf0] sm:$0xf]
  %v156 = vld [vmem:[%s1 + $0xf4] sm:$0xf]
  %v157 = vld [vmem:[%s1 + $0xf8] sm:$0xf]
  %v158 = vld [vmem:[%s1 + $0xfc] sm:$0xf]
  %v159 = vld [vmem:[%s1 + $0x100] sm:$0xf]
  %v160 = vld [vmem:[%s1 + $0x104] sm:$0xf]
  %v161 = vld [vmem:[%s1 + $0x108] sm:$0xf]
  %v162 = vld [vmem:[%s1 + $0x10c] sm:$0xf]
  %v163 = vld [vmem:[%s1 + $0x110] sm:$0xf]
  %v164 = vld [vmem:[%s1 + $0x114] sm:$0xf]
  %v165 = vld [vmem:[%s1 + $0x118] sm:$0xf]
  %v166 = vld [vmem:[%s1 + $0x11c] sm:$0xf]
  %v167 = vld [vmem:[%s1 + $0x120] sm:$0xf]
  %v168 = vld [vmem:[%s1 + $0x124] sm:$0xf]
  %v169 = vld [vmem:[%s1 + $0x128] sm:$0xf]
  %v170 = vld [vmem:[%s1 + $0x12c] sm:$0xf]
  %v171 = vld [vmem:[%s1 + $0x130] sm:$0xf]
  %v172 = vld [vmem:[%s1 + $0x134] sm:$0xf]
  %v173 = vld [vmem:[%s1 + $0x138] sm:$0xf]
  %v174 = vld [vmem:[%s1 + $0x13c] sm:$0xf]
  %v175 = vld [vmem:[%s1 + $0x140] sm:$0xf]
  %v176 = vld [vmem:[%s1 + $0x144] sm:$0xf]
  %v177 = vld [vmem:[%s1 + $0x148] sm:$0xf]
  %v178 = vld [vmem:[%s1 + $0x14c] sm:$0xf]
  %v179 = vld [vmem:[%s1 + $0x150] sm:$0xf]
  %v180 = vld [vmem:[%s1 + $0x154] sm:$0xf]
  %v181 = vld [vmem:[%s1 + $0x158] sm:$0xf]
  %v182 = vld [vmem:[%s1 + $0x15c] sm:$0xf]
  %v183 = vld [vmem:[%s1 + $0x160] sm:$0xf]
  %v184 = vld [vmem:[%s1 + $0x164] sm:$0xf]
  %v185 = vld [vmem:[%s1 + $0x168] sm:$0xf]
  %v186 = vld [vmem:[%s1 + $0x16c] sm:$0xf]
  %v187 = vld [vmem:[%s1 + $0x170] sm:$0xf]
  %v188 = vld [vmem:[%s1 + $0x174] sm:$0xf]
  %v189 = vld [vmem:[%s1 + $0x178] sm:$0xf]
  %v190 = vld [vmem:[%s1 + $0x17c] sm:$0xf]
  %v191 = vld [vmem:[%s1 + $0x180] sm:$0xf]
  %v192 = vld [vmem:[%s1 + $0x184] sm:$0xf]
  %v193 = vld [vmem:[%s1 + $0x188] sm:$0xf]
  %v194 = vld [vmem:[%s1 + $0x18c] sm:$0xf]
  %v195 = vld [vmem:[%s1 + $0x190] sm:$0xf]
  %v196 = vld [vmem:[%s1 + $0x194] sm:$0xf]
  %v197 = vld [vmem:[%s1 + $0x198] sm:$0xf]
  %v198 = vld [vmem:[%s1 + $0x19c] sm:$0xf]
  %v199 = vld [vmem:[%s1 + $0x1a0] sm:$0xf]
  %v200 = vld [vmem:[%s1 + $0x1a4] sm:$0xf]
  %v201 = vld [vmem:[%s1 + $0x1a8] sm:$0xf]
  %v202 = vld [vmem:[%s1 + $0x1ac] sm:$0xf]
  %v203 = vld [vmem:[%s1 + $0x1b0] sm:$0xf]
  %v204 = vld [vmem:[%s1 + $0x1b4] sm:$0xf]
  %v205 = vld [vmem:[%s1 + $0x1b8] sm:$0xf]
  %v206 = vld [vmem:[%s1 + $0x1bc] sm:$0xf]
  %v207 = vld [vmem:[%s1 + $0x1c0] sm:$0xf]
  %v208 = vld [vmem:[%s1 + $0x1c4] sm:$0xf]
  %v209 = vld [vmem:[%s1 + $0x1c8] sm:$0xf]
  %v210 = vld [vmem:[%s1 + $0x1cc] sm:$0xf]
  %v211 = vld [vmem:[%s1 + $0x1d0] sm:$0xf]
  %v212 = vld [vmem:[%s1 + $0x1d4] sm:$0xf]
  %v213 = vld [vmem:[%s1 + $0x1d8] sm:$0xf]
  %v214 = vld [vmem:[%s1 + $0x1dc] sm:$0xf]
  %v215 = vld [vmem:[%s1 + $0x1e0] sm:$0xf]
  %v216 = vld [vmem:[%s1 + $0x1e4] sm:$0xf]
  %v217 = vld [vmem:[%s1 + $0x1e8] sm:$0xf]
  %v218 = vld [vmem:[%s1 + $0x1ec] sm:$0xf]
  %v219 = vld [vmem:[%s1 + $0x1f0] sm:$0xf]
  %v220 = vld [vmem:[%s1 + $0x1f4] sm:$0xf]
  %v221 = vld [vmem:[%s1 + $0x1f8] sm:$0xf]
  %v222 = vld [vmem:[%s1 + $0x1fc] sm:$0xf]
  %v223 = vld [vmem:[%s1 + $0x200] sm:$0xf]
  %v224 = vld [vmem:[%s1 + $0x204] sm:$0xf]
  %v225 = vld [vmem:[%s1 + $0x208] sm:$0xf]
  %v226 = vld [vmem:[%s1 + $0x20c] sm:$0xf]
  %v227 = vld [vmem:[%s1 + $0x210] sm:$0xf]
  %v228 = vld [vmem:[%s1 + $0x214] sm:$0xf]
  %v229 = vld [vmem:[%s1 + $0x218] sm:$0xf]
  %v230 = vld [vmem:[%s1 + $0x21c] sm:$0xf]
  %v231 = vld [vmem:[%s1 + $0x220] sm:$0xf]
  %v232 = vld [vmem:[%s1 + $0x224] sm:$0xf]
  %v233 = vld [vmem:[%s1 + $0x228] sm:$0xf]
  %v234 = vld [vmem:[%s1 + $0x22c] sm:$0xf]
  %v235 = vld [vmem:[%s1 + $0x230] sm:$0xf]
  %v236 = vld [vmem:[%s1 + $0x234] sm:$0xf]
  %v237 = vld [vmem:[%s1 + $0x238] sm:$0xf]
  %v238 = vld [vmem:[%s1 + $0x23c] sm:$0xf]
  %v319 = vunpack.c.l.b16 %v15
  %v320 = vunpack.c.h.b16 %v15
  %v321 = vunpack.c.l.b16 %v16
  %v322 = vunpack.c.h.b16 %v16
  %v323 = vunpack.c.l.b16 %v17
  %v324 = vunpack.c.h.b16 %v17
  %v325 = vunpack.c.l.b16 %v18
  %v326 = vunpack.c.h.b16 %v18
  %v327 = vunpack.c.l.b16 %v19
  %v328 = vunpack.c.l.b16 %v20
  %v329 = vunpack.c.h.b16 %v20
  %v330 = vunpack.c.l.b16 %v21
  %v331 = vunpack.c.h.b16 %v21
  %v332 = vunpack.c.l.b16 %v22
  %v333 = vunpack.c.h.b16 %v22
  %v334 = vunpack.c.l.b16 %v23
  %v335 = vunpack.c.h.b16 %v23
  %v336 = vunpack.c.l.b16 %v24
  %v337 = vunpack.c.l.b16 %v25
  %v338 = vunpack.c.h.b16 %v25
  %v339 = vunpack.c.l.b16 %v26
  %v340 = vunpack.c.h.b16 %v26
  %v341 = vunpack.c.l.b16 %v27
  %v342 = vunpack.c.h.b16 %v27
  %v343 = vunpack.c.l.b16 %v28
  %v344 = vunpack.c.h.b16 %v28
  %v345 = vunpack.c.l.b16 %v29
  %v346 = vunpack.c.l.b16 %v30
  %v347 = vunpack.c.h.b16 %v30
  %v348 = vunpack.c.l.b16 %v31
  %v349 = vunpack.c.h.b16 %v31
  %v350 = vunpack.c.l.b16 %v32
  %v351 = vunpack.c.h.b16 %v32
  %v352 = vunpack.c.l.b16 %v33
  %v353 = vunpack.c.h.b16 %v33
  %v354 = vunpack.c.l.b16 %v34
  %v355 = vunpack.c.l.b16 %v35
  %v356 = vunpack.c.h.b16 %v35
  %v357 = vunpack.c.l.b16 %v36
  %v358 = vunpack.c.h.b16 %v36
  %v359 = vunpack.c.l.b16 %v37
  %v360 = vunpack.c.h.b16 %v37
  %v361 = vunpack.c.l.b16 %v38
  %v362 = vunpack.c.h.b16 %v38
  %v363 = vunpack.c.l.b16 %v39
  %v364 = vunpack.c.l.b16 %v40
  %v365 = vunpack.c.h.b16 %v40
  %v366 = vunpack.c.l.b16 %v41
  %v367 = vunpack.c.h.b16 %v41
  %v368 = vunpack.c.l.b16 %v42
  %v369 = vunpack.c.h.b16 %v42
  %v370 = vunpack.c.l.b16 %v43
  %v371 = vunpack.c.h.b16 %v43
  %v372 = vunpack.c.l.b16 %v44
  %v373 = vunpack.c.l.b16 %v45
  %v374 = vunpack.c.h.b16 %v45
  %v375 = vunpack.c.l.b16 %v46
  %v376 = vunpack.c.h.b16 %v46
  %v377 = vunpack.c.l.b16 %v47
  %v378 = vunpack.c.h.b16 %v47
  %v379 = vunpack.c.l.b16 %v48
  %v380 = vunpack.c.h.b16 %v48
  %v381 = vunpack.c.l.b16 %v49
  %v382 = vunpack.c.l.b16 %v50
  %v383 = vunpack.c.h.b16 %v50
  %v384 = vunpack.c.l.b16 %v51
  %v385 = vunpack.c.h.b16 %v51
  %v386 = vunpack.c.l.b16 %v52
  %v387 = vunpack.c.h.b16 %v52
  %v388 = vunpack.c.l.b16 %v53
  %v389 = vunpack.c.h.b16 %v53
  %v390 = vunpack.c.l.b16 %v54
  %v391 = vunpack.c.l.b16 %v55
  %v392 = vunpack.c.h.b16 %v55
  %v393 = vunpack.c.l.b16 %v56
  %v394 = vunpack.c.h.b16 %v56
  %v395 = vunpack.c.l.b16 %v57
  %v396 = vunpack.c.h.b16 %v57
  %v397 = vunpack.c.l.b16 %v58
  %v398 = vunpack.c.h.b16 %v58
  %v399 = vunpack.c.l.b16 %v59
  %v400 = vunpack.c.l.b16 %v60
  %v401 = vunpack.c.h.b16 %v60
  %v402 = vunpack.c.l.b16 %v61
  %v403 = vunpack.c.h.b16 %v61
  %v404 = vunpack.c.l.b16 %v62
  %v405 = vunpack.c.h.b16 %v62
  %v406 = vunpack.c.l.b16 %v63
  %v407 = vunpack.c.h.b16 %v63
  %v408 = vunpack.c.l.b16 %v64
  %v409 = vunpack.c.l.b16 %v65
  %v410 = vunpack.c.h.b16 %v65
  %v411 = vunpack.c.l.b16 %v66
  %v412 = vunpack.c.h.b16 %v66
  %v413 = vunpack.c.l.b16 %v67
  %v414 = vunpack.c.h.b16 %v67
  %v415 = vunpack.c.l.b16 %v68
  %v416 = vunpack.c.h.b16 %v68
  %v417 = vunpack.c.l.b16 %v69
  %v418 = vunpack.c.l.b16 %v70
  %v419 = vunpack.c.h.b16 %v70
  %v420 = vunpack.c.l.b16 %v71
  %v421 = vunpack.c.h.b16 %v71
  %v422 = vunpack.c.l.b16 %v72
  %v423 = vunpack.c.h.b16 %v72
  %v424 = vunpack.c.l.b16 %v73
  %v425 = vunpack.c.h.b16 %v73
  %v426 = vunpack.c.l.b16 %v74
  %v427 = vunpack.c.l.b16 %v75
  %v428 = vunpack.c.h.b16 %v75
  %v429 = vunpack.c.l.b16 %v76
  %v430 = vunpack.c.h.b16 %v76
  %v431 = vunpack.c.l.b16 %v77
  %v432 = vunpack.c.h.b16 %v77
  %v433 = vunpack.c.l.b16 %v78
  %v434 = vunpack.c.h.b16 %v78
  %v435 = vunpack.c.l.b16 %v79
  %v436 = vunpack.c.l.b16 %v80
  %v437 = vunpack.c.h.b16 %v80
  %v438 = vunpack.c.l.b16 %v81
  %v439 = vunpack.c.h.b16 %v81
  %v440 = vunpack.c.l.b16 %v82
  %v441 = vunpack.c.h.b16 %v82
  %v442 = vunpack.c.l.b16 %v83
  %v443 = vunpack.c.h.b16 %v83
  %v444 = vunpack.c.l.b16 %v84
  %v445 = vunpack.c.l.b16 %v85
  %v446 = vunpack.c.h.b16 %v85
  %v447 = vunpack.c.l.b16 %v86
  %v448 = vunpack.c.h.b16 %v86
  %v449 = vunpack.c.l.b16 %v87
  %v450 = vunpack.c.h.b16 %v87
  %v451 = vunpack.c.l.b16 %v88
  %v452 = vunpack.c.h.b16 %v88
  %v453 = vunpack.c.l.b16 %v89
  %v454 = vunpack.c.l.b16 %v90
  %v455 = vunpack.c.h.b16 %v90
  %v456 = vunpack.c.l.b16 %v91
  %v457 = vunpack.c.h.b16 %v91
  %v458 = vunpack.c.l.b16 %v92
  %v459 = vunpack.c.h.b16 %v92
  %v460 = vunpack.c.l.b16 %v93
  %v461 = vunpack.c.h.b16 %v93
  %v462 = vunpack.c.l.b16 %v94
  %v463 = vpack.c.b16 %v328, %v319
  %v464 = vpack.c.b16 %v329, %v320
  %v465 = vpack.c.b16 %v330, %v321
  %v466 = vpack.c.b16 %v331, %v322
  %v467 = vpack.c.b16 %v332, %v323
  %v468 = vpack.c.b16 %v333, %v324
  %v469 = vpack.c.b16 %v334, %v325
  %v470 = vpack.c.b16 %v335, %v326
  %v471 = vpack.c.b16 %v336, %v327
  %v472 = vpack.c.b16 %v346, %v337
  %v473 = vpack.c.b16 %v347, %v338
  %v474 = vpack.c.b16 %v348, %v339
  %v475 = vpack.c.b16 %v349, %v340
  %v476 = vpack.c.b16 %v350, %v341
  %v477 = vpack.c.b16 %v351, %v342
  %v478 = vpack.c.b16 %v352, %v343
  %v479 = vpack.c.b16 %v353, %v344
  %v480 = vpack.c.b16 %v354, %v345
  %v481 = vpack.c.b16 %v364, %v355
  %v482 = vpack.c.b16 %v365, %v356
  %v483 = vpack.c.b16 %v366, %v357
  %v484 = vpack.c.b16 %v367, %v358
  %v485 = vpack.c.b16 %v368, %v359
  %v486 = vpack.c.b16 %v369, %v360
  %v487 = vpack.c.b16 %v370, %v361
  %v488 = vpack.c.b16 %v371, %v362
  %v489 = vpack.c.b16 %v372, %v363
  %v490 = vpack.c.b16 %v382, %v373
  %v491 = vpack.c.b16 %v383, %v374
  %v492 = vpack.c.b16 %v384, %v375
  %v493 = vpack.c.b16 %v385, %v376
  %v494 = vpack.c.b16 %v386, %v377
  %v495 = vpack.c.b16 %v387, %v378
  %v496 = vpack.c.b16 %v388, %v379
  %v497 = vpack.c.b16 %v389, %v380
  %v498 = vpack.c.b16 %v390, %v381
  %v499 = vpack.c.b16 %v400, %v391
  %v500 = vpack.c.b16 %v401, %v392
  %v501 = vpack.c.b16 %v402, %v393
  %v502 = vpack.c.b16 %v403, %v394
  %v503 = vpack.c.b16 %v404, %v395
  %v504 = vpack.c.b16 %v405, %v396
  %v505 = vpack.c.b16 %v406, %v397
  %v506 = vpack.c.b16 %v407, %v398
  %v507 = vpack.c.b16 %v408, %v399
  %v508 = vpack.c.b16 %v418, %v409
  %v509 = vpack.c.b16 %v419, %v410
  %v510 = vpack.c.b16 %v420, %v411
  %v511 = vpack.c.b16 %v421, %v412
  %v512 = vpack.c.b16 %v422, %v413
  %v513 = vpack.c.b16 %v423, %v414
  %v514 = vpack.c.b16 %v424, %v415
  %v515 = vpack.c.b16 %v425, %v416
  %v516 = vpack.c.b16 %v426, %v417
  %v517 = vpack.c.b16 %v436, %v427
  %v518 = vpack.c.b16 %v437, %v428
  %v519 = vpack.c.b16 %v438, %v429
  %v520 = vpack.c.b16 %v439, %v430
  %v521 = vpack.c.b16 %v440, %v431
  %v522 = vpack.c.b16 %v441, %v432
  %v523 = vpack.c.b16 %v442, %v433
  %v524 = vpack.c.b16 %v443, %v434
  %v525 = vpack.c.b16 %v444, %v435
  %v526 = vpack.c.b16 %v454, %v445
  %v527 = vpack.c.b16 %v455, %v446
  %v528 = vpack.c.b16 %v456, %v447
  %v529 = vpack.c.b16 %v457, %v448
  %v530 = vpack.c.b16 %v458, %v449
  %v531 = vpack.c.b16 %v459, %v450
  %v532 = vpack.c.b16 %v460, %v451
  %v533 = vpack.c.b16 %v461, %v452
  %v534 = vpack.c.b16 %v462, %v453
  %v751 = vunpack.c.l.b16 %v95
  %v752 = vunpack.c.l.b16 %v96
  %v753 = vunpack.c.l.b16 %v97
  %v754 = vunpack.c.l.b16 %v98
  %v755 = vunpack.c.l.b16 %v99
  %v756 = vunpack.c.l.b16 %v100
  %v757 = vunpack.c.l.b16 %v101
  %v758 = vunpack.c.l.b16 %v102
  %v759 = vunpack.c.l.b16 %v103
  %v760 = vunpack.c.l.b16 %v104
  %v761 = vunpack.c.l.b16 %v105
  %v762 = vunpack.c.l.b16 %v106
  %v763 = vunpack.c.l.b16 %v107
  %v764 = vunpack.c.l.b16 %v108
  %v765 = vunpack.c.l.b16 %v109
  %v766 = vunpack.c.l.b16 %v110
  %v767 = vunpack.c.l.b16 %v111
  %v768 = vunpack.c.l.b16 %v112
  %v769 = vunpack.c.l.b16 %v113
  %v770 = vunpack.c.l.b16 %v114
  %v771 = vunpack.c.l.b16 %v115
  %v772 = vunpack.c.l.b16 %v116
  %v773 = vunpack.c.l.b16 %v117
  %v774 = vunpack.c.l.b16 %v118
  %v775 = vunpack.c.l.b16 %v119
  %v776 = vunpack.c.l.b16 %v120
  %v777 = vunpack.c.l.b16 %v121
  %v778 = vunpack.c.l.b16 %v122
  %v779 = vunpack.c.l.b16 %v123
  %v780 = vunpack.c.l.b16 %v124
  %v781 = vunpack.c.l.b16 %v125
  %v782 = vunpack.c.l.b16 %v126
  %v783 = vunpack.c.l.b16 %v127
  %v784 = vunpack.c.l.b16 %v128
  %v785 = vunpack.c.l.b16 %v129
  %v786 = vunpack.c.l.b16 %v130
  %v787 = vunpack.c.l.b16 %v131
  %v788 = vunpack.c.l.b16 %v132
  %v789 = vunpack.c.l.b16 %v133
  %v790 = vunpack.c.l.b16 %v134
  %v791 = vunpack.c.l.b16 %v135
  %v792 = vunpack.c.l.b16 %v136
  %v793 = vunpack.c.l.b16 %v137
  %v794 = vunpack.c.l.b16 %v138
  %v795 = vunpack.c.l.b16 %v139
  %v796 = vunpack.c.l.b16 %v140
  %v797 = vunpack.c.l.b16 %v141
  %v798 = vunpack.c.l.b16 %v142
  %v799 = vunpack.c.l.b16 %v143
  %v800 = vunpack.c.l.b16 %v144
  %v801 = vunpack.c.l.b16 %v145
  %v802 = vunpack.c.l.b16 %v146
  %v803 = vunpack.c.l.b16 %v147
  %v804 = vunpack.c.l.b16 %v148
  %v805 = vunpack.c.l.b16 %v149
  %v806 = vunpack.c.l.b16 %v150
  %v807 = vunpack.c.l.b16 %v151
  %v808 = vunpack.c.l.b16 %v152
  %v809 = vunpack.c.l.b16 %v153
  %v810 = vunpack.c.l.b16 %v154
  %v811 = vunpack.c.l.b16 %v155
  %v812 = vunpack.c.l.b16 %v156
  %v813 = vunpack.c.l.b16 %v157
  %v814 = vunpack.c.l.b16 %v158
  %v815 = vunpack.c.l.b16 %v159
  %v816 = vunpack.c.l.b16 %v160
  %v817 = vunpack.c.l.b16 %v161
  %v818 = vunpack.c.l.b16 %v162
  %v819 = vunpack.c.l.b16 %v163
  %v820 = vunpack.c.l.b16 %v164
  %v821 = vunpack.c.l.b16 %v165
  %v822 = vunpack.c.l.b16 %v166
  %v823 = vunpack.c.l.b16 %v167
  %v824 = vunpack.c.l.b16 %v168
  %v825 = vunpack.c.l.b16 %v169
  %v826 = vunpack.c.l.b16 %v170
  %v827 = vunpack.c.l.b16 %v171
  %v828 = vunpack.c.l.b16 %v172
  %v829 = vunpack.c.l.b16 %v173
  %v830 = vunpack.c.l.b16 %v174
  %v831 = vunpack.c.l.b16 %v175
  %v832 = vunpack.c.l.b16 %v176
  %v833 = vunpack.c.l.b16 %v177
  %v834 = vunpack.c.l.b16 %v178
  %v835 = vunpack.c.l.b16 %v179
  %v836 = vunpack.c.l.b16 %v180
  %v837 = vunpack.c.l.b16 %v181
  %v838 = vunpack.c.l.b16 %v182
  %v839 = vunpack.c.l.b16 %v183
  %v840 = vunpack.c.l.b16 %v184
  %v841 = vunpack.c.l.b16 %v185
  %v842 = vunpack.c.l.b16 %v186
  %v843 = vunpack.c.l.b16 %v187
  %v844 = vunpack.c.l.b16 %v188
  %v845 = vunpack.c.l.b16 %v189
  %v846 = vunpack.c.l.b16 %v190
  %v847 = vunpack.c.l.b16 %v191
  %v848 = vunpack.c.l.b16 %v192
  %v849 = vunpack.c.l.b16 %v193
  %v850 = vunpack.c.l.b16 %v194
  %v851 = vunpack.c.l.b16 %v195
  %v852 = vunpack.c.l.b16 %v196
  %v853 = vunpack.c.l.b16 %v197
  %v854 = vunpack.c.l.b16 %v198
  %v855 = vunpack.c.l.b16 %v199
  %v856 = vunpack.c.l.b16 %v200
  %v857 = vunpack.c.l.b16 %v201
  %v858 = vunpack.c.l.b16 %v202
  %v859 = vunpack.c.l.b16 %v203
  %v860 = vunpack.c.l.b16 %v204
  %v861 = vunpack.c.l.b16 %v205
  %v862 = vunpack.c.l.b16 %v206
  %v863 = vunpack.c.l.b16 %v207
  %v864 = vunpack.c.l.b16 %v208
  %v865 = vunpack.c.l.b16 %v209
  %v866 = vunpack.c.l.b16 %v210
  %v867 = vunpack.c.l.b16 %v211
  %v868 = vunpack.c.l.b16 %v212
  %v869 = vunpack.c.l.b16 %v213
  %v870 = vunpack.c.l.b16 %v214
  %v871 = vunpack.c.l.b16 %v215
  %v872 = vunpack.c.l.b16 %v216
  %v873 = vunpack.c.l.b16 %v217
  %v874 = vunpack.c.l.b16 %v218
  %v875 = vunpack.c.l.b16 %v219
  %v876 = vunpack.c.l.b16 %v220
  %v877 = vunpack.c.l.b16 %v221
  %v878 = vunpack.c.l.b16 %v222
  %v879 = vunpack.c.l.b16 %v223
  %v880 = vunpack.c.l.b16 %v224
  %v881 = vunpack.c.l.b16 %v225
  %v882 = vunpack.c.l.b16 %v226
  %v883 = vunpack.c.l.b16 %v227
  %v884 = vunpack.c.l.b16 %v228
  %v885 = vunpack.c.l.b16 %v229
  %v886 = vunpack.c.l.b16 %v230
  %v887 = vunpack.c.l.b16 %v231
  %v888 = vunpack.c.l.b16 %v232
  %v889 = vunpack.c.l.b16 %v233
  %v890 = vunpack.c.l.b16 %v234
  %v891 = vunpack.c.l.b16 %v235
  %v892 = vunpack.c.l.b16 %v236
  %v893 = vunpack.c.l.b16 %v237
  %v894 = vunpack.c.l.b16 %v238
  %v895 = vpack.c.b16 %v752, %v751
  %v896 = vpack.c.b16 %v754, %v753
  %v897 = vpack.c.b16 %v756, %v755
  %v898 = vpack.c.b16 %v758, %v757
  %v899 = vpack.c.b16 %v760, %v759
  %v900 = vpack.c.b16 %v762, %v761
  %v901 = vpack.c.b16 %v764, %v763
  %v902 = vpack.c.b16 %v766, %v765
  %v903 = vpack.c.b16 %v768, %v767
  %v904 = vpack.c.b16 %v770, %v769
  %v905 = vpack.c.b16 %v772, %v771
  %v906 = vpack.c.b16 %v774, %v773
  %v907 = vpack.c.b16 %v776, %v775
  %v908 = vpack.c.b16 %v778, %v777
  %v909 = vpack.c.b16 %v780, %v779
  %v910 = vpack.c.b16 %v782, %v781
  %v911 = vpack.c.b16 %v784, %v783
  %v912 = vpack.c.b16 %v786, %v785
  %v913 = vpack.c.b16 %v788, %v787
  %v914 = vpack.c.b16 %v790, %v789
  %v915 = vpack.c.b16 %v792, %v791
  %v916 = vpack.c.b16 %v794, %v793
  %v917 = vpack.c.b16 %v796, %v795
  %v918 = vpack.c.b16 %v798, %v797
  %v919 = vpack.c.b16 %v800, %v799
  %v920 = vpack.c.b16 %v802, %v801
  %v921 = vpack.c.b16 %v804, %v803
  %v922 = vpack.c.b16 %v806, %v805
  %v923 = vpack.c.b16 %v808, %v807
  %v924 = vpack.c.b16 %v810, %v809
  %v925 = vpack.c.b16 %v812, %v811
  %v926 = vpack.c.b16 %v814, %v813
  %v927 = vpack.c.b16 %v816, %v815
  %v928 = vpack.c.b16 %v818, %v817
  %v929 = vpack.c.b16 %v820, %v819
  %v930 = vpack.c.b16 %v822, %v821
  %v931 = vpack.c.b16 %v824, %v823
  %v932 = vpack.c.b16 %v826, %v825
  %v933 = vpack.c.b16 %v828, %v827
  %v934 = vpack.c.b16 %v830, %v829
  %v935 = vpack.c.b16 %v832, %v831
  %v936 = vpack.c.b16 %v834, %v833
  %v937 = vpack.c.b16 %v836, %v835
  %v938 = vpack.c.b16 %v838, %v837
  %v939 = vpack.c.b16 %v840, %v839
  %v940 = vpack.c.b16 %v842, %v841
  %v941 = vpack.c.b16 %v844, %v843
  %v942 = vpack.c.b16 %v846, %v845
  %v943 = vpack.c.b16 %v848, %v847
  %v944 = vpack.c.b16 %v850, %v849
  %v945 = vpack.c.b16 %v852, %v851
  %v946 = vpack.c.b16 %v854, %v853
  %v947 = vpack.c.b16 %v856, %v855
  %v948 = vpack.c.b16 %v858, %v857
  %v949 = vpack.c.b16 %v860, %v859
  %v950 = vpack.c.b16 %v862, %v861
  %v951 = vpack.c.b16 %v864, %v863
  %v952 = vpack.c.b16 %v866, %v865
  %v953 = vpack.c.b16 %v868, %v867
  %v954 = vpack.c.b16 %v870, %v869
  %v955 = vpack.c.b16 %v872, %v871
  %v956 = vpack.c.b16 %v874, %v873
  %v957 = vpack.c.b16 %v876, %v875
  %v958 = vpack.c.b16 %v878, %v877
  %v959 = vpack.c.b16 %v880, %v879
  %v960 = vpack.c.b16 %v882, %v881
  %v961 = vpack.c.b16 %v884, %v883
  %v962 = vpack.c.b16 %v886, %v885
  %v963 = vpack.c.b16 %v888, %v887
  %v964 = vpack.c.b16 %v890, %v889
  %v965 = vpack.c.b16 %v892, %v891
  %v966 = vpack.c.b16 %v894, %v893
  %1039 = vmatprep.subr.bf16.mxu0 0
  %1040 = vmatpush1.bf16.msra.mxu0 %v902
  %1041 = vmatprep.subr.bf16.mxu0 0
  %1042 = vmatpush1.bf16.msra.mxu0 %v901
  %1043 = vmatprep.subr.bf16.mxu0 0
  %1044 = vmatpush1.bf16.msra.mxu0 %v900
  %1045 = vmatprep.subr.bf16.mxu0 0
  %1046 = vmatpush1.bf16.msra.mxu0 %v899
  %1047 = vmatprep.subr.bf16.mxu0 0
  %1048 = vmatpush1.bf16.msra.mxu0 %v898
  %1049 = vmatprep.subr.bf16.mxu0 0
  %1050 = vmatpush1.bf16.msra.mxu0 %v897
  %1051 = vmatprep.subr.bf16.mxu0 0
  %1052 = vmatpush1.bf16.msra.mxu0 %v896
  %1053 = vmatprep.subr.bf16.mxu0 0
  %1054 = vmatpush1.bf16.msra.mxu0 %v895
  %1055 = vmatprep.subr.bf16.mxu0 0
  %1056 = vmatpush2.bf16.msra.mxu0 %v910
  %1057 = vmatprep.subr.bf16.mxu0 0
  %1058 = vmatpush2.bf16.msra.mxu0 %v909
  %1059 = vmatprep.subr.bf16.mxu0 0
  %1060 = vmatpush2.bf16.msra.mxu0 %v908
  %1061 = vmatprep.subr.bf16.mxu0 0
  %1062 = vmatpush2.bf16.msra.mxu0 %v907
  %1063 = vmatprep.subr.bf16.mxu0 0
  %1064 = vmatpush2.bf16.msra.mxu0 %v906
  %1065 = vmatprep.subr.bf16.mxu0 0
  %1066 = vmatpush2.bf16.msra.mxu0 %v905
  %1067 = vmatprep.subr.bf16.mxu0 0
  %1068 = vmatpush2.bf16.msra.mxu0 %v904
  %1069 = vmatprep.subr.bf16.mxu0 0
  %1070 = vmatpush2.bf16.msra.mxu0 %v903
  %1071 = vmatprep.mubr.bf16.mxu0 %v464
  %1072 = vmatmul.mubr.bf16.gmra.mxu0 %v463
  %v1073 = vpop.f32.mrf.mxu0
  %v1074 = vadd.f32 0.0, %v1073
  %v1075 = vpop.f32.mrf.mxu0
  %v1076 = vpop.f32.mrf.mxu0
  %v1077 = vadd.f32 0.0, %v1076
  %v1078 = vpop.f32.mrf.mxu0
  %1079 = vmatprep.mubr.bf16.mxu0 %v473
  %1080 = vmatmul.mubr.bf16.gmra.mxu0 %v472
  %v1081 = vpop.f32.mrf.mxu0
  %v1082 = vadd.f32 0.0, %v1081
  %v1083 = vpop.f32.mrf.mxu0
  %v1084 = vpop.f32.mrf.mxu0
  %v1085 = vadd.f32 0.0, %v1084
  %v1086 = vpop.f32.mrf.mxu0
  %1087 = vmatprep.mubr.bf16.mxu0 %v482
  %1088 = vmatmul.mubr.bf16.gmra.mxu0 %v481
  %v1089 = vpop.f32.mrf.mxu0
  %v1090 = vadd.f32 0.0, %v1089
  %v1091 = vpop.f32.mrf.mxu0
  %v1092 = vpop.f32.mrf.mxu0
  %v1093 = vadd.f32 0.0, %v1092
  %v1094 = vpop.f32.mrf.mxu0
  %1095 = vmatprep.mubr.bf16.mxu0 %v491
  %1096 = vmatmul.mubr.bf16.gmra.mxu0 %v490
  %v1097 = vpop.f32.mrf.mxu0
  %v1098 = vadd.f32 0.0, %v1097
  %v1099 = vpop.f32.mrf.mxu0
  %v1100 = vpop.f32.mrf.mxu0
  %v1101 = vadd.f32 0.0, %v1100
  %v1102 = vpop.f32.mrf.mxu0
  %1103 = vmatprep.mubr.bf16.mxu0 %v500
  %1104 = vmatmul.mubr.bf16.gmra.mxu0 %v499
  %v1105 = vpop.f32.mrf.mxu0
  %v1106 = vadd.f32 0.0, %v1105
  %v1107 = vpop.f32.mrf.mxu0
  %v1108 = vpop.f32.mrf.mxu0
  %v1109 = vadd.f32 0.0, %v1108
  %v1110 = vpop.f32.mrf.mxu0
  %1111 = vmatprep.mubr.bf16.mxu0 %v509
  %1112 = vmatmul.mubr.bf16.gmra.mxu0 %v508
  %v1113 = vpop.f32.mrf.mxu0
  %v1114 = vadd.f32 0.0, %v1113
  %v1115 = vpop.f32.mrf.mxu0
  %v1116 = vpop.f32.mrf.mxu0
  %v1117 = vadd.f32 0.0, %v1116
  %v1118 = vpop.f32.mrf.mxu0
  %1119 = vmatprep.mubr.bf16.mxu0 %v518
  %1120 = vmatmul.mubr.bf16.gmra.mxu0 %v517
  %v1121 = vpop.f32.mrf.mxu0
  %v1122 = vadd.f32 0.0, %v1121
  %v1123 = vpop.f32.mrf.mxu0
  %v1124 = vpop.f32.mrf.mxu0
  %v1125 = vadd.f32 0.0, %v1124
  %v1126 = vpop.f32.mrf.mxu0
  %1127 = vmatprep.mubr.bf16.mxu0 %v527
  %1128 = vmatmul.mubr.bf16.gmra.mxu0 %v526
  %v1129 = vpop.f32.mrf.mxu0
  %v1130 = vadd.f32 0.0, %v1129
  %v1131 = vpop.f32.mrf.mxu0
  %v1132 = vpop.f32.mrf.mxu0
  %v1133 = vadd.f32 0.0, %v1132
  %v1134 = vpop.f32.mrf.mxu0
  %1135 = vdwg.mxu0
  %1136 = vmatprep.subr.bf16.mxu0 0
  %1137 = vmatpush1.bf16.msra.mxu0 %v918
  %1138 = vmatprep.subr.bf16.mxu0 0
  %1139 = vmatpush1.bf16.msra.mxu0 %v917
  %1140 = vmatprep.subr.bf16.mxu0 0
  %1141 = vmatpush1.bf16.msra.mxu0 %v916
  %1142 = vmatprep.subr.bf16.mxu0 0
  %1143 = vmatpush1.bf16.msra.mxu0 %v915
  %1144 = vmatprep.subr.bf16.mxu0 0
  %1145 = vmatpush1.bf16.msra.mxu0 %v914
  %1146 = vmatprep.subr.bf16.mxu0 0
  %1147 = vmatpush1.bf16.msra.mxu0 %v913
  %1148 = vmatprep.subr.bf16.mxu0 0
  %1149 = vmatpush1.bf16.msra.mxu0 %v912
  %1150 = vmatprep.subr.bf16.mxu0 0
  %1151 = vmatpush1.bf16.msra.mxu0 %v911
  %1152 = vmatprep.subr.bf16.mxu0 0
  %1153 = vmatpush2.bf16.msra.mxu0 %v926
  %1154 = vmatprep.subr.bf16.mxu0 0
  %1155 = vmatpush2.bf16.msra.mxu0 %v925
  %1156 = vmatprep.subr.bf16.mxu0 0
  %1157 = vmatpush2.bf16.msra.mxu0 %v924
  %1158 = vmatprep.subr.bf16.mxu0 0
  %1159 = vmatpush2.bf16.msra.mxu0 %v923
  %1160 = vmatprep.subr.bf16.mxu0 0
  %1161 = vmatpush2.bf16.msra.mxu0 %v922
  %1162 = vmatprep.subr.bf16.mxu0 0
  %1163 = vmatpush2.bf16.msra.mxu0 %v921
  %1164 = vmatprep.subr.bf16.mxu0 0
  %1165 = vmatpush2.bf16.msra.mxu0 %v920
  %1166 = vmatprep.subr.bf16.mxu0 0
  %1167 = vmatpush2.bf16.msra.mxu0 %v919
  %1168 = vmatprep.mubr.bf16.mxu0 %v466
  %1169 = vmatmul.mubr.bf16.gmra.mxu0 %v465
  %v1170 = vpop.f32.mrf.mxu0
  %v1171 = vadd.f32 %v1074, %v1170
  %v1172 = vpop.f32.mrf.mxu0
  %v1173 = vpop.f32.mrf.mxu0
  %v1174 = vadd.f32 %v1077, %v1173
  %v1175 = vpop.f32.mrf.mxu0
  %1176 = vmatprep.mubr.bf16.mxu0 %v475
  %1177 = vmatmul.mubr.bf16.gmra.mxu0 %v474
  %v1178 = vpop.f32.mrf.mxu0
  %v1179 = vadd.f32 %v1082, %v1178
  %v1180 = vpop.f32.mrf.mxu0
  %v1181 = vpop.f32.mrf.mxu0
  %v1182 = vadd.f32 %v1085, %v1181
  %v1183 = vpop.f32.mrf.mxu0
  %1184 = vmatprep.mubr.bf16.mxu0 %v484
  %1185 = vmatmul.mubr.bf16.gmra.mxu0 %v483
  %v1186 = vpop.f32.mrf.mxu0
  %v1187 = vadd.f32 %v1090, %v1186
  %v1188 = vpop.f32.mrf.mxu0
  %v1189 = vpop.f32.mrf.mxu0
  %v1190 = vadd.f32 %v1093, %v1189
  %v1191 = vpop.f32.mrf.mxu0
  %1192 = vmatprep.mubr.bf16.mxu0 %v493
  %1193 = vmatmul.mubr.bf16.gmra.mxu0 %v492
  %v1194 = vpop.f32.mrf.mxu0
  %v1195 = vadd.f32 %v1098, %v1194
  %v1196 = vpop.f32.mrf.mxu0
  %v1197 = vpop.f32.mrf.mxu0
  %v1198 = vadd.f32 %v1101, %v1197
  %v1199 = vpop.f32.mrf.mxu0
  %1200 = vmatprep.mubr.bf16.mxu0 %v502
  %1201 = vmatmul.mubr.bf16.gmra.mxu0 %v501
  %v1202 = vpop.f32.mrf.mxu0
  %v1203 = vadd.f32 %v1106, %v1202
  %v1204 = vpop.f32.mrf.mxu0
  %v1205 = vpop.f32.mrf.mxu0
  %v1206 = vadd.f32 %v1109, %v1205
  %v1207 = vpop.f32.mrf.mxu0
  %1208 = vmatprep.mubr.bf16.mxu0 %v511
  %1209 = vmatmul.mubr.bf16.gmra.mxu0 %v510
  %v1210 = vpop.f32.mrf.mxu0
  %v1211 = vadd.f32 %v1114, %v1210
  %v1212 = vpop.f32.mrf.mxu0
  %v1213 = vpop.f32.mrf.mxu0
  %v1214 = vadd.f32 %v1117, %v1213
  %v1215 = vpop.f32.mrf.mxu0
  %1216 = vmatprep.mubr.bf16.mxu0 %v520
  %1217 = vmatmul.mubr.bf16.gmra.mxu0 %v519
  %v1218 = vpop.f32.mrf.mxu0
  %v1219 = vadd.f32 %v1122, %v1218
  %v1220 = vpop.f32.mrf.mxu0
  %v1221 = vpop.f32.mrf.mxu0
  %v1222 = vadd.f32 %v1125, %v1221
  %v1223 = vpop.f32.mrf.mxu0
  %1224 = vmatprep.mubr.bf16.mxu0 %v529
  %1225 = vmatmul.mubr.bf16.gmra.mxu0 %v528
  %v1226 = vpop.f32.mrf.mxu0
  %v1227 = vadd.f32 %v1130, %v1226
  %v1228 = vpop.f32.mrf.mxu0
  %v1229 = vpop.f32.mrf.mxu0
  %v1230 = vadd.f32 %v1133, %v1229
  %v1231 = vpop.f32.mrf.mxu0
  %1232 = vdwg.mxu0
  %1233 = vmatprep.subr.bf16.mxu0 0
  %1234 = vmatpush1.bf16.msra.mxu0 %v934
  %1235 = vmatprep.subr.bf16.mxu0 0
  %1236 = vmatpush1.bf16.msra.mxu0 %v933
  %1237 = vmatprep.subr.bf16.mxu0 0
  %1238 = vmatpush1.bf16.msra.mxu0 %v932
  %1239 = vmatprep.subr.bf16.mxu0 0
  %1240 = vmatpush1.bf16.msra.mxu0 %v931
  %1241 = vmatprep.subr.bf16.mxu0 0
  %1242 = vmatpush1.bf16.msra.mxu0 %v930
  %1243 = vmatprep.subr.bf16.mxu0 0
  %1244 = vmatpush1.bf16.msra.mxu0 %v929
  %1245 = vmatprep.subr.bf16.mxu0 0
  %1246 = vmatpush1.bf16.msra.mxu0 %v928
  %1247 = vmatprep.subr.bf16.mxu0 0
  %1248 = vmatpush1.bf16.msra.mxu0 %v927
  %1249 = vmatprep.subr.bf16.mxu0 0
  %1250 = vmatpush2.bf16.msra.mxu0 %v942
  %1251 = vmatprep.subr.bf16.mxu0 0
  %1252 = vmatpush2.bf16.msra.mxu0 %v941
  %1253 = vmatprep.subr.bf16.mxu0 0
  %1254 = vmatpush2.bf16.msra.mxu0 %v940
  %1255 = vmatprep.subr.bf16.mxu0 0
  %1256 = vmatpush2.bf16.msra.mxu0 %v939
  %1257 = vmatprep.subr.bf16.mxu0 0
  %1258 = vmatpush2.bf16.msra.mxu0 %v938
  %1259 = vmatprep.subr.bf16.mxu0 0
  %1260 = vmatpush2.bf16.msra.mxu0 %v937
  %1261 = vmatprep.subr.bf16.mxu0 0
  %1262 = vmatpush2.bf16.msra.mxu0 %v936
  %1263 = vmatprep.subr.bf16.mxu0 0
  %1264 = vmatpush2.bf16.msra.mxu0 %v935
  %1265 = vmatprep.mubr.bf16.mxu0 %v468
  %1266 = vmatmul.mubr.bf16.gmra.mxu0 %v467
  %v1267 = vpop.f32.mrf.mxu0
  %v1268 = vadd.f32 %v1171, %v1267
  %v1269 = vpop.f32.mrf.mxu0
  %v1270 = vpop.f32.mrf.mxu0
  %v1271 = vadd.f32 %v1174, %v1270
  %v1272 = vpop.f32.mrf.mxu0
  %1273 = vmatprep.mubr.bf16.mxu0 %v477
  %1274 = vmatmul.mubr.bf16.gmra.mxu0 %v476
  %v1275 = vpop.f32.mrf.mxu0
  %v1276 = vadd.f32 %v1179, %v1275
  %v1277 = vpop.f32.mrf.mxu0
  %v1278 = vpop.f32.mrf.mxu0
  %v1279 = vadd.f32 %v1182, %v1278
  %v1280 = vpop.f32.mrf.mxu0
  %1281 = vmatprep.mubr.bf16.mxu0 %v486
  %1282 = vmatmul.mubr.bf16.gmra.mxu0 %v485
  %v1283 = vpop.f32.mrf.mxu0
  %v1284 = vadd.f32 %v1187, %v1283
  %v1285 = vpop.f32.mrf.mxu0
  %v1286 = vpop.f32.mrf.mxu0
  %v1287 = vadd.f32 %v1190, %v1286
  %v1288 = vpop.f32.mrf.mxu0
  %1289 = vmatprep.mubr.bf16.mxu0 %v495
  %1290 = vmatmul.mubr.bf16.gmra.mxu0 %v494
  %v1291 = vpop.f32.mrf.mxu0
  %v1292 = vadd.f32 %v1195, %v1291
  %v1293 = vpop.f32.mrf.mxu0
  %v1294 = vpop.f32.mrf.mxu0
  %v1295 = vadd.f32 %v1198, %v1294
  %v1296 = vpop.f32.mrf.mxu0
  %1297 = vmatprep.mubr.bf16.mxu0 %v504
  %1298 = vmatmul.mubr.bf16.gmra.mxu0 %v503
  %v1299 = vpop.f32.mrf.mxu0
  %v1300 = vadd.f32 %v1203, %v1299
  %v1301 = vpop.f32.mrf.mxu0
  %v1302 = vpop.f32.mrf.mxu0
  %v1303 = vadd.f32 %v1206, %v1302
  %v1304 = vpop.f32.mrf.mxu0
  %1305 = vmatprep.mubr.bf16.mxu0 %v513
  %1306 = vmatmul.mubr.bf16.gmra.mxu0 %v512
  %v1307 = vpop.f32.mrf.mxu0
  %v1308 = vadd.f32 %v1211, %v1307
  %v1309 = vpop.f32.mrf.mxu0
  %v1310 = vpop.f32.mrf.mxu0
  %v1311 = vadd.f32 %v1214, %v1310
  %v1312 = vpop.f32.mrf.mxu0
  %1313 = vmatprep.mubr.bf16.mxu0 %v522
  %1314 = vmatmul.mubr.bf16.gmra.mxu0 %v521
  %v1315 = vpop.f32.mrf.mxu0
  %v1316 = vadd.f32 %v1219, %v1315
  %v1317 = vpop.f32.mrf.mxu0
  %v1318 = vpop.f32.mrf.mxu0
  %v1319 = vadd.f32 %v1222, %v1318
  %v1320 = vpop.f32.mrf.mxu0
  %1321 = vmatprep.mubr.bf16.mxu0 %v531
  %1322 = vmatmul.mubr.bf16.gmra.mxu0 %v530
  %v1323 = vpop.f32.mrf.mxu0
  %v1324 = vadd.f32 %v1227, %v1323
  %v1325 = vpop.f32.mrf.mxu0
  %v1326 = vpop.f32.mrf.mxu0
  %v1327 = vadd.f32 %v1230, %v1326
  %v1328 = vpop.f32.mrf.mxu0
  %1329 = vdwg.mxu0
  %1330 = vmatprep.subr.bf16.mxu0 0
  %1331 = vmatpush1.bf16.msra.mxu0 %v950
  %1332 = vmatprep.subr.bf16.mxu0 0
  %1333 = vmatpush1.bf16.msra.mxu0 %v949
  %1334 = vmatprep.subr.bf16.mxu0 0
  %1335 = vmatpush1.bf16.msra.mxu0 %v948
  %1336 = vmatprep.subr.bf16.mxu0 0
  %1337 = vmatpush1.bf16.msra.mxu0 %v947
  %1338 = vmatprep.subr.bf16.mxu0 0
  %1339 = vmatpush1.bf16.msra.mxu0 %v946
  %1340 = vmatprep.subr.bf16.mxu0 0
  %1341 = vmatpush1.bf16.msra.mxu0 %v945
  %1342 = vmatprep.subr.bf16.mxu0 0
  %1343 = vmatpush1.bf16.msra.mxu0 %v944
  %1344 = vmatprep.subr.bf16.mxu0 0
  %1345 = vmatpush1.bf16.msra.mxu0 %v943
  %1346 = vmatprep.subr.bf16.mxu0 0
  %1347 = vmatpush2.bf16.msra.mxu0 %v958
  %1348 = vmatprep.subr.bf16.mxu0 0
  %1349 = vmatpush2.bf16.msra.mxu0 %v957
  %1350 = vmatprep.subr.bf16.mxu0 0
  %1351 = vmatpush2.bf16.msra.mxu0 %v956
  %1352 = vmatprep.subr.bf16.mxu0 0
  %1353 = vmatpush2.bf16.msra.mxu0 %v955
  %1354 = vmatprep.subr.bf16.mxu0 0
  %1355 = vmatpush2.bf16.msra.mxu0 %v954
  %1356 = vmatprep.subr.bf16.mxu0 0
  %1357 = vmatpush2.bf16.msra.mxu0 %v953
  %1358 = vmatprep.subr.bf16.mxu0 0
  %1359 = vmatpush2.bf16.msra.mxu0 %v952
  %1360 = vmatprep.subr.bf16.mxu0 0
  %1361 = vmatpush2.bf16.msra.mxu0 %v951
  %1362 = vmatprep.mubr.bf16.mxu0 %v470
  %1363 = vmatmul.mubr.bf16.gmra.mxu0 %v469
  %v1364 = vpop.f32.mrf.mxu0
  %v1365 = vadd.f32 %v1268, %v1364
  %v1366 = vpop.f32.mrf.mxu0
  %v1367 = vpop.f32.mrf.mxu0
  %v1368 = vadd.f32 %v1271, %v1367
  %v1369 = vpop.f32.mrf.mxu0
  %1370 = vmatprep.mubr.bf16.mxu0 %v479
  %1371 = vmatmul.mubr.bf16.gmra.mxu0 %v478
  %v1372 = vpop.f32.mrf.mxu0
  %v1373 = vadd.f32 %v1276, %v1372
  %v1374 = vpop.f32.mrf.mxu0
  %v1375 = vpop.f32.mrf.mxu0
  %v1376 = vadd.f32 %v1279, %v1375
  %v1377 = vpop.f32.mrf.mxu0
  %1378 = vmatprep.mubr.bf16.mxu0 %v488
  %1379 = vmatmul.mubr.bf16.gmra.mxu0 %v487
  %v1380 = vpop.f32.mrf.mxu0
  %v1381 = vadd.f32 %v1284, %v1380
  %v1382 = vpop.f32.mrf.mxu0
  %v1383 = vpop.f32.mrf.mxu0
  %v1384 = vadd.f32 %v1287, %v1383
  %v1385 = vpop.f32.mrf.mxu0
  %1386 = vmatprep.mubr.bf16.mxu0 %v497
  %1387 = vmatmul.mubr.bf16.gmra.mxu0 %v496
  %v1388 = vpop.f32.mrf.mxu0
  %v1389 = vadd.f32 %v1292, %v1388
  %v1390 = vpop.f32.mrf.mxu0
  %v1391 = vpop.f32.mrf.mxu0
  %v1392 = vadd.f32 %v1295, %v1391
  %v1393 = vpop.f32.mrf.mxu0
  %1394 = vmatprep.mubr.bf16.mxu0 %v506
  %1395 = vmatmul.mubr.bf16.gmra.mxu0 %v505
  %v1396 = vpop.f32.mrf.mxu0
  %v1397 = vadd.f32 %v1300, %v1396
  %v1398 = vpop.f32.mrf.mxu0
  %v1399 = vpop.f32.mrf.mxu0
  %v1400 = vadd.f32 %v1303, %v1399
  %v1401 = vpop.f32.mrf.mxu0
  %1402 = vmatprep.mubr.bf16.mxu0 %v515
  %1403 = vmatmul.mubr.bf16.gmra.mxu0 %v514
  %v1404 = vpop.f32.mrf.mxu0
  %v1405 = vadd.f32 %v1308, %v1404
  %v1406 = vpop.f32.mrf.mxu0
  %v1407 = vpop.f32.mrf.mxu0
  %v1408 = vadd.f32 %v1311, %v1407
  %v1409 = vpop.f32.mrf.mxu0
  %1410 = vmatprep.mubr.bf16.mxu0 %v524
  %1411 = vmatmul.mubr.bf16.gmra.mxu0 %v523
  %v1412 = vpop.f32.mrf.mxu0
  %v1413 = vadd.f32 %v1316, %v1412
  %v1414 = vpop.f32.mrf.mxu0
  %v1415 = vpop.f32.mrf.mxu0
  %v1416 = vadd.f32 %v1319, %v1415
  %v1417 = vpop.f32.mrf.mxu0
  %1418 = vmatprep.mubr.bf16.mxu0 %v533
  %1419 = vmatmul.mubr.bf16.gmra.mxu0 %v532
  %v1420 = vpop.f32.mrf.mxu0
  %v1421 = vadd.f32 %v1324, %v1420
  %v1422 = vpop.f32.mrf.mxu0
  %v1423 = vpop.f32.mrf.mxu0
  %v1424 = vadd.f32 %v1327, %v1423
  %v1425 = vpop.f32.mrf.mxu0
  %1426 = vdwg.mxu0
  %1427 = vmatprep.subr.bf16.mxu0 0
  %1428 = vmatpush1.bf16.msra.mxu0 %v966
  %1429 = vmatprep.subr.bf16.mxu0 0
  %1430 = vmatpush1.bf16.msra.mxu0 %v965
  %1431 = vmatprep.subr.bf16.mxu0 0
  %1432 = vmatpush1.bf16.msra.mxu0 %v964
  %1433 = vmatprep.subr.bf16.mxu0 0
  %1434 = vmatpush1.bf16.msra.mxu0 %v963
  %1435 = vmatprep.subr.bf16.mxu0 0
  %1436 = vmatpush1.bf16.msra.mxu0 %v962
  %1437 = vmatprep.subr.bf16.mxu0 0
  %1438 = vmatpush1.bf16.msra.mxu0 %v961
  %1439 = vmatprep.subr.bf16.mxu0 0
  %1440 = vmatpush1.bf16.msra.mxu0 %v960
  %1441 = vmatprep.subr.bf16.mxu0 0
  %1442 = vmatpush1.bf16.msra.mxu0 %v959
  %1443 = vmatprep.subr.bf16.mxu0 0
  %1444 = vmatpush2.bf16.msra.mxu0 0
  %1445 = vmatprep.subr.bf16.mxu0 0
  %1446 = vmatpush2.bf16.msra.mxu0 0
  %1447 = vmatprep.subr.bf16.mxu0 0
  %1448 = vmatpush2.bf16.msra.mxu0 0
  %1449 = vmatprep.subr.bf16.mxu0 0
  %1450 = vmatpush2.bf16.msra.mxu0 0
  %1451 = vmatprep.subr.bf16.mxu0 0
  %1452 = vmatpush2.bf16.msra.mxu0 0
  %1453 = vmatprep.subr.bf16.mxu0 0
  %1454 = vmatpush2.bf16.msra.mxu0 0
  %1455 = vmatprep.subr.bf16.mxu0 0
  %1456 = vmatpush2.bf16.msra.mxu0 0
  %1457 = vmatprep.subr.bf16.mxu0 0
  %1458 = vmatpush2.bf16.msra.mxu0 0
  %1459 = vmatprep.mubr.bf16.mxu0 0
  %1460 = vmatmul.mubr.bf16.gmra.mxu0 %v471
  %v1461 = vpop.f32.mrf.mxu0
  %v1462 = vadd.f32 %v1365, %v1461
  %v1463 = vpop.f32.mrf.mxu0
  %v1464 = vpop.f32.mrf.mxu0
  %v1465 = vadd.f32 %v1368, %v1464
  %v1466 = vpop.f32.mrf.mxu0
  %1467 = vmatprep.mubr.bf16.mxu0 0
  %1468 = vmatmul.mubr.bf16.gmra.mxu0 %v480
  %v1469 = vpop.f32.mrf.mxu0
  %v1470 = vadd.f32 %v1373, %v1469
  %v1471 = vpop.f32.mrf.mxu0
  %v1472 = vpop.f32.mrf.mxu0
  %v1473 = vadd.f32 %v1376, %v1472
  %v1474 = vpop.f32.mrf.mxu0
  %1475 = vmatprep.mubr.bf16.mxu0 0
  %1476 = vmatmul.mubr.bf16.gmra.mxu0 %v489
  %v1477 = vpop.f32.mrf.mxu0
  %v1478 = vadd.f32 %v1381, %v1477
  %v1479 = vpop.f32.mrf.mxu0
  %v1480 = vpop.f32.mrf.mxu0
  %v1481 = vadd.f32 %v1384, %v1480
  %v1482 = vpop.f32.mrf.mxu0
  %1483 = vmatprep.mubr.bf16.mxu0 0
  %1484 = vmatmul.mubr.bf16.gmra.mxu0 %v498
  %v1485 = vpop.f32.mrf.mxu0
  %v1486 = vadd.f32 %v1389, %v1485
  %v1487 = vpop.f32.mrf.mxu0
  %v1488 = vpop.f32.mrf.mxu0
  %v1489 = vadd.f32 %v1392, %v1488
  %v1490 = vpop.f32.mrf.mxu0
  %1491 = vmatprep.mubr.bf16.mxu0 0
  %1492 = vmatmul.mubr.bf16.gmra.mxu0 %v507
  %v1493 = vpop.f32.mrf.mxu0
  %v1494 = vadd.f32 %v1397, %v1493
  %v1495 = vpop.f32.mrf.mxu0
  %v1496 = vpop.f32.mrf.mxu0
  %v1497 = vadd.f32 %v1400, %v1496
  %v1498 = vpop.f32.mrf.mxu0
  %1499 = vmatprep.mubr.bf16.mxu0 0
  %1500 = vmatmul.mubr.bf16.gmra.mxu0 %v516
  %v1501 = vpop.f32.mrf.mxu0
  %v1502 = vadd.f32 %v1405, %v1501
  %v1503 = vpop.f32.mrf.mxu0
  %v1504 = vpop.f32.mrf.mxu0
  %v1505 = vadd.f32 %v1408, %v1504
  %v1506 = vpop.f32.mrf.mxu0
  %1507 = vmatprep.mubr.bf16.mxu0 0
  %1508 = vmatmul.mubr.bf16.gmra.mxu0 %v525
  %v1509 = vpop.f32.mrf.mxu0
  %v1510 = vadd.f32 %v1413, %v1509
  %v1511 = vpop.f32.mrf.mxu0
  %v1512 = vpop.f32.mrf.mxu0
  %v1513 = vadd.f32 %v1416, %v1512
  %v1514 = vpop.f32.mrf.mxu0
  %1515 = vmatprep.mubr.bf16.mxu0 0
  %1516 = vmatmul.mubr.bf16.gmra.mxu0 %v534
  %v1517 = vpop.f32.mrf.mxu0
  %v1518 = vadd.f32 %v1421, %v1517
  %v1519 = vpop.f32.mrf.mxu0
  %v1520 = vpop.f32.mrf.mxu0
  %v1521 = vadd.f32 %v1424, %v1520
  %v1522 = vpop.f32.mrf.mxu0
  %1523 = vdwg.mxu0
  %v1524 = vld [vmem:[%s2] sm:$0x1]
  %v1525 = vlaneseq
  %v1526 = vshrl.u32 %v1525, 7
  %v1527 = vsub.s32 0, %v1526
  %v1528 = vrot.slane %v1524, %v1527
  %v1529 = vmul.f32 %v1462, %v1528
  %v1530 = vmul.f32 %v1465, %v1528
  %v1531 = vmul.f32 %v1470, %v1528
  %v1532 = vmul.f32 %v1473, %v1528
  %v1533 = vmul.f32 %v1478, %v1528
  %v1534 = vmul.f32 %v1481, %v1528
  %v1535 = vmul.f32 %v1486, %v1528
  %v1536 = vmul.f32 %v1489, %v1528
  %v1537 = vmul.f32 %v1494, %v1528
  %v1538 = vmul.f32 %v1497, %v1528
  %v1539 = vmul.f32 %v1502, %v1528
  %v1540 = vmul.f32 %v1505, %v1528
  %v1541 = vmul.f32 %v1510, %v1528
  %v1542 = vmul.f32 %v1513, %v1528
  %v1543 = vmul.f32 %v1518, %v1528
  %v1544 = vmul.f32 %v1521, %v1528
  %v1545 = vld [vmem:[%s2 + $0x1] sm:$0x1]
  %v1546 = vlaneseq
  %v1547 = vshrl.u32 %v1546, 7
  %v1548 = vsub.s32 0, %v1547
  %v1549 = vrot.slane %v1545, %v1548
  %v1550 = vadd.f32 %v1529, %v1549
  %v1551 = vadd.f32 %v1530, %v1549
  %v1552 = vadd.f32 %v1531, %v1549
  %v1553 = vadd.f32 %v1532, %v1549
  %v1554 = vadd.f32 %v1533, %v1549
  %v1555 = vadd.f32 %v1534, %v1549
  %v1556 = vadd.f32 %v1535, %v1549
  %v1557 = vadd.f32 %v1536, %v1549
  %v1558 = vadd.f32 %v1537, %v1549
  %v1559 = vadd.f32 %v1538, %v1549
  %v1560 = vadd.f32 %v1539, %v1549
  %v1561 = vadd.f32 %v1540, %v1549
  %v1562 = vadd.f32 %v1541, %v1549
  %v1563 = vadd.f32 %v1542, %v1549
  %v1564 = vadd.f32 %v1543, %v1549
  %v1565 = vadd.f32 %v1544, %v1549
  %v1566 = vmax.f32 %v1550, 0.0
  %v1567 = vmax.f32 %v1551, 0.0
  %v1568 = vmax.f32 %v1552, 0.0
  %v1569 = vmax.f32 %v1553, 0.0
  %v1570 = vmax.f32 %v1554, 0.0
  %v1571 = vmax.f32 %v1555, 0.0
  %v1572 = vmax.f32 %v1556, 0.0
  %v1573 = vmax.f32 %v1557, 0.0
  %v1574 = vmax.f32 %v1558, 0.0
  %v1575 = vmax.f32 %v1559, 0.0
  %v1576 = vmax.f32 %v1560, 0.0
  %v1577 = vmax.f32 %v1561, 0.0
  %v1578 = vmax.f32 %v1562, 0.0
  %v1579 = vmax.f32 %v1563, 0.0
  %v1580 = vmax.f32 %v1564, 0.0
  %v1581 = vmax.f32 %v1565, 0.0
  %v1582 = vpack.c.bf16 %v1567, %v1566
  %v1583 = vpack.c.bf16 %v1569, %v1568
  %v1584 = vpack.c.bf16 %v1571, %v1570
  %v1585 = vpack.c.bf16 %v1573, %v1572
  %v1586 = vpack.c.bf16 %v1575, %v1574
  %v1587 = vpack.c.bf16 %v1577, %v1576
  %v1588 = vpack.c.bf16 %v1579, %v1578
  %v1589 = vpack.c.bf16 %v1581, %v1580
  %v1598 = vunpack.c.l.b16 %v1582
  %v1599 = vunpack.c.h.b16 %v1582
  %v1600 = vunpack.c.l.b16 %v1583
  %v1601 = vunpack.c.h.b16 %v1583
  %v1602 = vunpack.c.l.b16 %v1584
  %v1603 = vunpack.c.h.b16 %v1584
  %v1604 = vunpack.c.l.b16 %v1585
  %v1605 = vunpack.c.h.b16 %v1585
  %v1606 = vunpack.c.l.b16 %v1586
  %v1607 = vunpack.c.h.b16 %v1586
  %v1608 = vunpack.c.l.b16 %v1587
  %v1609 = vunpack.c.h.b16 %v1587
  %v1610 = vunpack.c.l.b16 %v1588
  %v1611 = vunpack.c.h.b16 %v1588
  %v1612 = vunpack.c.l.b16 %v1589
  %v1613 = vunpack.c.h.b16 %v1589
  %v1614 = vpack.c.b16 %v1598, %v1598
  %v1615 = vpack.c.b16 %v1599, %v1599
  %v1616 = vpack.c.b16 %v1600, %v1600
  %v1617 = vpack.c.b16 %v1601, %v1601
  %v1618 = vpack.c.b16 %v1602, %v1602
  %v1619 = vpack.c.b16 %v1603, %v1603
  %v1620 = vpack.c.b16 %v1604, %v1604
  %v1621 = vpack.c.b16 %v1605, %v1605
  %v1622 = vpack.c.b16 %v1606, %v1606
  %v1623 = vpack.c.b16 %v1607, %v1607
  %v1624 = vpack.c.b16 %v1608, %v1608
  %v1625 = vpack.c.b16 %v1609, %v1609
  %v1626 = vpack.c.b16 %v1610, %v1610
  %v1627 = vpack.c.b16 %v1611, %v1611
  %v1628 = vpack.c.b16 %v1612, %v1612
  %v1629 = vpack.c.b16 %v1613, %v1613
  %1646 = vst [vmem:[%s3] sm:$0xf] %v1614
  %1647 = vst [vmem:[%s3 + $0x4] sm:$0xf] %v1615
  %1648 = vst [vmem:[%s3 + $0x8] sm:$0xf] %v1616
  %1649 = vst [vmem:[%s3 + $0xc] sm:$0xf] %v1617
  %1650 = vst [vmem:[%s3 + $0x10] sm:$0xf] %v1618
  %1651 = vst [vmem:[%s3 + $0x14] sm:$0xf] %v1619
  %1652 = vst [vmem:[%s3 + $0x18] sm:$0xf] %v1620
  %1653 = vst [vmem:[%s3 + $0x1c] sm:$0xf] %v1621
  %1654 = vst [vmem:[%s3 + $0x20] sm:$0xf] %v1622
  %1655 = vst [vmem:[%s3 + $0x24] sm:$0xf] %v1623
  %1656 = vst [vmem:[%s3 + $0x28] sm:$0xf] %v1624
  %1657 = vst [vmem:[%s3 + $0x2c] sm:$0xf] %v1625
  %1658 = vst [vmem:[%s3 + $0x30] sm:$0xf] %v1626
  %1659 = vst [vmem:[%s3 + $0x34] sm:$0xf] %v1627
  %1660 = vst [vmem:[%s3 + $0x38] sm:$0xf] %v1628
  %1661 = vst [vmem:[%s3 + $0x3c] sm:$0xf] %v1629
  // Predicated region
  $region14: #{deeplabv3_forward.18} parent=0 // pred_check
    _
  $region15: #{deeplabv3_forward.18} parent=0 // pred_check_branch
    %1663 = sbr.rel (0) target = $region17
  $region16: #{deeplabv3_forward.18} parent=0 // pred_region
    _
  $region17: #{deeplabv3_forward.18} parent=0 // pred_fallthru
    _
  // Predicated region
  $region18: #{deeplabv3_forward.18} parent=0 // pred_check
    _
  $region19: #{deeplabv3_forward.18} parent=0 // pred_check_branch
    %1665 = sbr.rel (0) target = $region21
  $region20: #{deeplabv3_forward.18} parent=0 // pred_region
    _
  $region21: #{deeplabv3_forward.18} parent=0 // pred_fallthru
    _

// kernel: deeplabv3_forward.17
$region0: #{deeplabv3_forward.17}
  #allocation0 [shape = 'u32[]', space=smem, size = 0x4, offset = 0x4, fixed_abs, tag = 'smem constant byte address 0x4 - core index']
  #allocation1 [shape = 'u32[144,128]{1,0:T(1,128)}', space=vmem, size = 0x12000, scoped, tag = 'internal scratch']
  %s0 = inlined_call_operand.vmem [shape: bf16[128,1152], index: 0, kind: input, shape index: {}]
  %s1 = inlined_call_operand.vmem [shape: bf16[1152,128], index: 1, kind: input, shape index: {}]
  %s2 = inlined_call_operand.vmem [shape: f32[2,128], index: 2, kind: input, shape index: {}]
  %s3 = inlined_call_operand.vmem [shape: bf16[128,128], index: 3, kind: input, shape index: {}]
  %s4 = inlined_call_operand.vmem [shape: bf16[128,128], index: 4, kind: output, shape index: {}]
  %s5 = sld [smem:[#allocation0]]
  $region26: #{deeplabv3_forward.17} parent=0
    _
  %s7 = ssub.s32 1, %s5
  %s8 = scalar_select 0, %s7, %s5
  // Predicated region
  $region2: #{deeplabv3_forward.17} parent=0 // pred_check
    _
  $region3: #{deeplabv3_forward.17} parent=0 // pred_check_branch
    %10 = sbr.rel (0) target = $region5
  $region4: #{deeplabv3_forward.17} parent=0 // pred_region
    _
  $region5: #{deeplabv3_forward.17} parent=0 // pred_fallthru
    _
  // Predicated region
  $region6: #{deeplabv3_forward.17} parent=0 // pred_check
    _
  $region7: #{deeplabv3_forward.17} parent=0 // pred_check_branch
    %12 = sbr.rel (0) target = $region9
  $region8: #{deeplabv3_forward.17} parent=0 // pred_region
    _
  $region9: #{deeplabv3_forward.17} parent=0 // pred_fallthru
    _
  // Predicated region
  $region10: #{deeplabv3_forward.17} parent=0 // pred_check
    _
  $region11: #{deeplabv3_forward.17} parent=0 // pred_check_branch
    %14 = sbr.rel (0) target = $region13
  $region12: #{deeplabv3_forward.17} parent=0 // pred_region
    _
  $region13: #{deeplabv3_forward.17} parent=0 // pred_fallthru
    _
  // Predicated region
  $region14: #{deeplabv3_forward.17} parent=0 // pred_check
    _
  $region15: #{deeplabv3_forward.17} parent=0 // pred_check_branch
    %16 = sbr.rel (0) target = $region17
  $region16: #{deeplabv3_forward.17} parent=0 // pred_region
    _
  $region17: #{deeplabv3_forward.17} parent=0 // pred_fallthru
    _
  %v18 = vld [vmem:[%s0] sm:$0xff]
  %v19 = vld [vmem:[%s0 + $0x8] sm:$0xff]
  %v20 = vld [vmem:[%s0 + $0x10] sm:$0xff]
  %v21 = vld [vmem:[%s0 + $0x18] sm:$0xff]
  %v22 = vld [vmem:[%s0 + $0x20] sm:$0xf]
  %v23 = vld [vmem:[%s0 + $0x24] sm:$0xff]
  %v24 = vld [vmem:[%s0 + $0x2c] sm:$0xff]
  %v25 = vld [vmem:[%s0 + $0x34] sm:$0xff]
  %v26 = vld [vmem:[%s0 + $0x3c] sm:$0xff]
  %v27 = vld [vmem:[%s0 + $0x44] sm:$0xf]
  %v28 = vld [vmem:[%s0 + $0x48] sm:$0xff]
  %v29 = vld [vmem:[%s0 + $0x50] sm:$0xff]
  %v30 = vld [vmem:[%s0 + $0x58] sm:$0xff]
  %v31 = vld [vmem:[%s0 + $0x60] sm:$0xff]
  %v32 = vld [vmem:[%s0 + $0x68] sm:$0xf]
  %v33 = vld [vmem:[%s0 + $0x6c] sm:$0xff]
  %v34 = vld [vmem:[%s0 + $0x74] sm:$0xff]
  %v35 = vld [vmem:[%s0 + $0x7c] sm:$0xff]
  %v36 = vld [vmem:[%s0 + $0x84] sm:$0xff]
  %v37 = vld [vmem:[%s0 + $0x8c] sm:$0xf]
  %v38 = vld [vmem:[%s0 + $0x90] sm:$0xff]
  %v39 = vld [vmem:[%s0 + $0x98] sm:$0xff]
  %v40 = vld [vmem:[%s0 + $0xa0] sm:$0xff]
  %v41 = vld [vmem:[%s0 + $0xa8] sm:$0xff]
  %v42 = vld [vmem:[%s0 + $0xb0] sm:$0xf]
  %v43 = vld [vmem:[%s0 + $0xb4] sm:$0xff]
  %v44 = vld [vmem:[%s0 + $0xbc] sm:$0xff]
  %v45 = vld [vmem:[%s0 + $0xc4] sm:$0xff]
  %v46 = vld [vmem:[%s0 + $0xcc] sm:$0xff]
  %v47 = vld [vmem:[%s0 + $0xd4] sm:$0xf]
  %v48 = vld [vmem:[%s0 + $0xd8] sm:$0xff]
  %v49 = vld [vmem:[%s0 + $0xe0] sm:$0xff]
  %v50 = vld [vmem:[%s0 + $0xe8] sm:$0xff]
  %v51 = vld [vmem:[%s0 + $0xf0] sm:$0xff]
  %v52 = vld [vmem:[%s0 + $0xf8] sm:$0xf]
  %v53 = vld [vmem:[%s0 + $0xfc] sm:$0xff]
  %v54 = vld [vmem:[%s0 + $0x104] sm:$0xff]
  %v55 = vld [vmem:[%s0 + $0x10c] sm:$0xff]
  %v56 = vld [vmem:[%s0 + $0x114] sm:$0xff]
  %v57 = vld [vmem:[%s0 + $0x11c] sm:$0xf]
  %v58 = vld [vmem:[%s0 + $0x120] sm:$0xff]
  %v59 = vld [vmem:[%s0 + $0x128] sm:$0xff]
  %v60 = vld [vmem:[%s0 + $0x130] sm:$0xff]
  %v61 = vld [vmem:[%s0 + $0x138] sm:$0xff]
  %v62 = vld [vmem:[%s0 + $0x140] sm:$0xf]
  %v63 = vld [vmem:[%s0 + $0x144] sm:$0xff]
  %v64 = vld [vmem:[%s0 + $0x14c] sm:$0xff]
  %v65 = vld [vmem:[%s0 + $0x154] sm:$0xff]
  %v66 = vld [vmem:[%s0 + $0x15c] sm:$0xff]
  %v67 = vld [vmem:[%s0 + $0x164] sm:$0xf]
  %v68 = vld [vmem:[%s0 + $0x168] sm:$0xff]
  %v69 = vld [vmem:[%s0 + $0x170] sm:$0xff]
  %v70 = vld [vmem:[%s0 + $0x178] sm:$0xff]
  %v71 = vld [vmem:[%s0 + $0x180] sm:$0xff]
  %v72 = vld [vmem:[%s0 + $0x188] sm:$0xf]
  %v73 = vld [vmem:[%s0 + $0x18c] sm:$0xff]
  %v74 = vld [vmem:[%s0 + $0x194] sm:$0xff]
  %v75 = vld [vmem:[%s0 + $0x19c] sm:$0xff]
  %v76 = vld [vmem:[%s0 + $0x1a4] sm:$0xff]
  %v77 = vld [vmem:[%s0 + $0x1ac] sm:$0xf]
  %v78 = vld [vmem:[%s0 + $0x1b0] sm:$0xff]
  %v79 = vld [vmem:[%s0 + $0x1b8] sm:$0xff]
  %v80 = vld [vmem:[%s0 + $0x1c0] sm:$0xff]
  %v81 = vld [vmem:[%s0 + $0x1c8] sm:$0xff]
  %v82 = vld [vmem:[%s0 + $0x1d0] sm:$0xf]
  %v83 = vld [vmem:[%s0 + $0x1d4] sm:$0xff]
  %v84 = vld [vmem:[%s0 + $0x1dc] sm:$0xff]
  %v85 = vld [vmem:[%s0 + $0x1e4] sm:$0xff]
  %v86 = vld [vmem:[%s0 + $0x1ec] sm:$0xff]
  %v87 = vld [vmem:[%s0 + $0x1f4] sm:$0xf]
  %v88 = vld [vmem:[%s0 + $0x1f8] sm:$0xff]
  %v89 = vld [vmem:[%s0 + $0x200] sm:$0xff]
  %v90 = vld [vmem:[%s0 + $0x208] sm:$0xff]
  %v91 = vld [vmem:[%s0 + $0x210] sm:$0xff]
  %v92 = vld [vmem:[%s0 + $0x218] sm:$0xf]
  %v93 = vld [vmem:[%s0 + $0x21c] sm:$0xff]
  %v94 = vld [vmem:[%s0 + $0x224] sm:$0xff]
  %v95 = vld [vmem:[%s0 + $0x22c] sm:$0xff]
  %v96 = vld [vmem:[%s0 + $0x234] sm:$0xff]
  %v97 = vld [vmem:[%s0 + $0x23c] sm:$0xf]
  %v98 = vld [vmem:[%s1] sm:$0xf]
  %v99 = vld [vmem:[%s1 + $0x4] sm:$0xf]
  %v100 = vld [vmem:[%s1 + $0x8] sm:$0xf]
  %v101 = vld [vmem:[%s1 + $0xc] sm:$0xf]
  %v102 = vld [vmem:[%s1 + $0x10] sm:$0xf]
  %v103 = vld [vmem:[%s1 + $0x14] sm:$0xf]
  %v104 = vld [vmem:[%s1 + $0x18] sm:$0xf]
  %v105 = vld [vmem:[%s1 + $0x1c] sm:$0xf]
  %v106 = vld [vmem:[%s1 + $0x20] sm:$0xf]
  %v107 = vld [vmem:[%s1 + $0x24] sm:$0xf]
  %v108 = vld [vmem:[%s1 + $0x28] sm:$0xf]
  %v109 = vld [vmem:[%s1 + $0x2c] sm:$0xf]
  %v110 = vld [vmem:[%s1 + $0x30] sm:$0xf]
  %v111 = vld [vmem:[%s1 + $0x34] sm:$0xf]
  %v112 = vld [vmem:[%s1 + $0x38] sm:$0xf]
  %v113 = vld [vmem:[%s1 + $0x3c] sm:$0xf]
  %v114 = vld [vmem:[%s1 + $0x40] sm:$0xf]
  %v115 = vld [vmem:[%s1 + $0x44] sm:$0xf]
  %v116 = vld [vmem:[%s1 + $0x48] sm:$0xf]
  %v117 = vld [vmem:[%s1 + $0x4c] sm:$0xf]
  %v118 = vld [vmem:[%s1 + $0x50] sm:$0xf]
  %v119 = vld [vmem:[%s1 + $0x54] sm:$0xf]
  %v120 = vld [vmem:[%s1 + $0x58] sm:$0xf]
  %v121 = vld [vmem:[%s1 + $0x5c] sm:$0xf]
  %v122 = vld [vmem:[%s1 + $0x60] sm:$0xf]
  %v123 = vld [vmem:[%s1 + $0x64] sm:$0xf]
  %v124 = vld [vmem:[%s1 + $0x68] sm:$0xf]
  %v125 = vld [vmem:[%s1 + $0x6c] sm:$0xf]
  %v126 = vld [vmem:[%s1 + $0x70] sm:$0xf]
  %v127 = vld [vmem:[%s1 + $0x74] sm:$0xf]
  %v128 = vld [vmem:[%s1 + $0x78] sm:$0xf]
  %v129 = vld [vmem:[%s1 + $0x7c] sm:$0xf]
  %v130 = vld [vmem:[%s1 + $0x80] sm:$0xf]
  %v131 = vld [vmem:[%s1 + $0x84] sm:$0xf]
  %v132 = vld [vmem:[%s1 + $0x88] sm:$0xf]
  %v133 = vld [vmem:[%s1 + $0x8c] sm:$0xf]
  %v134 = vld [vmem:[%s1 + $0x90] sm:$0xf]
  %v135 = vld [vmem:[%s1 + $0x94] sm:$0xf]
  %v136 = vld [vmem:[%s1 + $0x98] sm:$0xf]
  %v137 = vld [vmem:[%s1 + $0x9c] sm:$0xf]
  %v138 = vld [vmem:[%s1 + $0xa0] sm:$0xf]
  %v139 = vld [vmem:[%s1 + $0xa4] sm:$0xf]
  %v140 = vld [vmem:[%s1 + $0xa8] sm:$0xf]
  %v141 = vld [vmem:[%s1 + $0xac] sm:$0xf]
  %v142 = vld [vmem:[%s1 + $0xb0] sm:$0xf]
  %v143 = vld [vmem:[%s1 + $0xb4] sm:$0xf]
  %v144 = vld [vmem:[%s1 + $0xb8] sm:$0xf]
  %v145 = vld [vmem:[%s1 + $0xbc] sm:$0xf]
  %v146 = vld [vmem:[%s1 + $0xc0] sm:$0xf]
  %v147 = vld [vmem:[%s1 + $0xc4] sm:$0xf]
  %v148 = vld [vmem:[%s1 + $0xc8] sm:$0xf]
  %v149 = vld [vmem:[%s1 + $0xcc] sm:$0xf]
  %v150 = vld [vmem:[%s1 + $0xd0] sm:$0xf]
  %v151 = vld [vmem:[%s1 + $0xd4] sm:$0xf]
  %v152 = vld [vmem:[%s1 + $0xd8] sm:$0xf]
  %v153 = vld [vmem:[%s1 + $0xdc] sm:$0xf]
  %v154 = vld [vmem:[%s1 + $0xe0] sm:$0xf]
  %v155 = vld [vmem:[%s1 + $0xe4] sm:$0xf]
  %v156 = vld [vmem:[%s1 + $0xe8] sm:$0xf]
  %v157 = vld [vmem:[%s1 + $0xec] sm:$0xf]
  %v158 = vld [vmem:[%s1 + $0xf0] sm:$0xf]
  %v159 = vld [vmem:[%s1 + $0xf4] sm:$0xf]
  %v160 = vld [vmem:[%s1 + $0xf8] sm:$0xf]
  %v161 = vld [vmem:[%s1 + $0xfc] sm:$0xf]
  %v162 = vld [vmem:[%s1 + $0x100] sm:$0xf]
  %v163 = vld [vmem:[%s1 + $0x104] sm:$0xf]
  %v164 = vld [vmem:[%s1 + $0x108] sm:$0xf]
  %v165 = vld [vmem:[%s1 + $0x10c] sm:$0xf]
  %v166 = vld [vmem:[%s1 + $0x110] sm:$0xf]
  %v167 = vld [vmem:[%s1 + $0x114] sm:$0xf]
  %v168 = vld [vmem:[%s1 + $0x118] sm:$0xf]
  %v169 = vld [vmem:[%s1 + $0x11c] sm:$0xf]
  %v170 = vld [vmem:[%s1 + $0x120] sm:$0xf]
  %v171 = vld [vmem:[%s1 + $0x124] sm:$0xf]
  %v172 = vld [vmem:[%s1 + $0x128] sm:$0xf]
  %v173 = vld [vmem:[%s1 + $0x12c] sm:$0xf]
  %v174 = vld [vmem:[%s1 + $0x130] sm:$0xf]
  %v175 = vld [vmem:[%s1 + $0x134] sm:$0xf]
  %v176 = vld [vmem:[%s1 + $0x138] sm:$0xf]
  %v177 = vld [vmem:[%s1 + $0x13c] sm:$0xf]
  %v178 = vld [vmem:[%s1 + $0x140] sm:$0xf]
  %v179 = vld [vmem:[%s1 + $0x144] sm:$0xf]
  %v180 = vld [vmem:[%s1 + $0x148] sm:$0xf]
  %v181 = vld [vmem:[%s1 + $0x14c] sm:$0xf]
  %v182 = vld [vmem:[%s1 + $0x150] sm:$0xf]
  %v183 = vld [vmem:[%s1 + $0x154] sm:$0xf]
  %v184 = vld [vmem:[%s1 + $0x158] sm:$0xf]
  %v185 = vld [vmem:[%s1 + $0x15c] sm:$0xf]
  %v186 = vld [vmem:[%s1 + $0x160] sm:$0xf]
  %v187 = vld [vmem:[%s1 + $0x164] sm:$0xf]
  %v188 = vld [vmem:[%s1 + $0x168] sm:$0xf]
  %v189 = vld [vmem:[%s1 + $0x16c] sm:$0xf]
  %v190 = vld [vmem:[%s1 + $0x170] sm:$0xf]
  %v191 = vld [vmem:[%s1 + $0x174] sm:$0xf]
  %v192 = vld [vmem:[%s1 + $0x178] sm:$0xf]
  %v193 = vld [vmem:[%s1 + $0x17c] sm:$0xf]
  %v194 = vld [vmem:[%s1 + $0x180] sm:$0xf]
  %v195 = vld [vmem:[%s1 + $0x184] sm:$0xf]
  %v196 = vld [vmem:[%s1 + $0x188] sm:$0xf]
  %v197 = vld [vmem:[%s1 + $0x18c] sm:$0xf]
  %v198 = vld [vmem:[%s1 + $0x190] sm:$0xf]
  %v199 = vld [vmem:[%s1 + $0x194] sm:$0xf]
  %v200 = vld [vmem:[%s1 + $0x198] sm:$0xf]
  %v201 = vld [vmem:[%s1 + $0x19c] sm:$0xf]
  %v202 = vld [vmem:[%s1 + $0x1a0] sm:$0xf]
  %v203 = vld [vmem:[%s1 + $0x1a4] sm:$0xf]
  %v204 = vld [vmem:[%s1 + $0x1a8] sm:$0xf]
  %v205 = vld [vmem:[%s1 + $0x1ac] sm:$0xf]
  %v206 = vld [vmem:[%s1 + $0x1b0] sm:$0xf]
  %v207 = vld [vmem:[%s1 + $0x1b4] sm:$0xf]
  %v208 = vld [vmem:[%s1 + $0x1b8] sm:$0xf]
  %v209 = vld [vmem:[%s1 + $0x1bc] sm:$0xf]
  %v210 = vld [vmem:[%s1 + $0x1c0] sm:$0xf]
  %v211 = vld [vmem:[%s1 + $0x1c4] sm:$0xf]
  %v212 = vld [vmem:[%s1 + $0x1c8] sm:$0xf]
  %v213 = vld [vmem:[%s1 + $0x1cc] sm:$0xf]
  %v214 = vld [vmem:[%s1 + $0x1d0] sm:$0xf]
  %v215 = vld [vmem:[%s1 + $0x1d4] sm:$0xf]
  %v216 = vld [vmem:[%s1 + $0x1d8] sm:$0xf]
  %v217 = vld [vmem:[%s1 + $0x1dc] sm:$0xf]
  %v218 = vld [vmem:[%s1 + $0x1e0] sm:$0xf]
  %v219 = vld [vmem:[%s1 + $0x1e4] sm:$0xf]
  %v220 = vld [vmem:[%s1 + $0x1e8] sm:$0xf]
  %v221 = vld [vmem:[%s1 + $0x1ec] sm:$0xf]
  %v222 = vld [vmem:[%s1 + $0x1f0] sm:$0xf]
  %v223 = vld [vmem:[%s1 + $0x1f4] sm:$0xf]
  %v224 = vld [vmem:[%s1 + $0x1f8] sm:$0xf]
  %v225 = vld [vmem:[%s1 + $0x1fc] sm:$0xf]
  %v226 = vld [vmem:[%s1 + $0x200] sm:$0xf]
  %v227 = vld [vmem:[%s1 + $0x204] sm:$0xf]
  %v228 = vld [vmem:[%s1 + $0x208] sm:$0xf]
  %v229 = vld [vmem:[%s1 + $0x20c] sm:$0xf]
  %v230 = vld [vmem:[%s1 + $0x210] sm:$0xf]
  %v231 = vld [vmem:[%s1 + $0x214] sm:$0xf]
  %v232 = vld [vmem:[%s1 + $0x218] sm:$0xf]
  %v233 = vld [vmem:[%s1 + $0x21c] sm:$0xf]
  %v234 = vld [vmem:[%s1 + $0x220] sm:$0xf]
  %v235 = vld [vmem:[%s1 + $0x224] sm:$0xf]
  %v236 = vld [vmem:[%s1 + $0x228] sm:$0xf]
  %v237 = vld [vmem:[%s1 + $0x22c] sm:$0xf]
  %v238 = vld [vmem:[%s1 + $0x230] sm:$0xf]
  %v239 = vld [vmem:[%s1 + $0x234] sm:$0xf]
  %v240 = vld [vmem:[%s1 + $0x238] sm:$0xf]
  %v241 = vld [vmem:[%s1 + $0x23c] sm:$0xf]
  %v322 = vunpack.c.l.b16 %v18
  %v323 = vunpack.c.h.b16 %v18
  %v324 = vunpack.c.l.b16 %v19
  %v325 = vunpack.c.h.b16 %v19
  %v326 = vunpack.c.l.b16 %v20
  %v327 = vunpack.c.h.b16 %v20
  %v328 = vunpack.c.l.b16 %v21
  %v329 = vunpack.c.h.b16 %v21
  %v330 = vunpack.c.l.b16 %v22
  %v331 = vunpack.c.l.b16 %v23
  %v332 = vunpack.c.h.b16 %v23
  %v333 = vunpack.c.l.b16 %v24
  %v334 = vunpack.c.h.b16 %v24
  %v335 = vunpack.c.l.b16 %v25
  %v336 = vunpack.c.h.b16 %v25
  %v337 = vunpack.c.l.b16 %v26
  %v338 = vunpack.c.h.b16 %v26
  %v339 = vunpack.c.l.b16 %v27
  %v340 = vunpack.c.l.b16 %v28
  %v341 = vunpack.c.h.b16 %v28
  %v342 = vunpack.c.l.b16 %v29
  %v343 = vunpack.c.h.b16 %v29
  %v344 = vunpack.c.l.b16 %v30
  %v345 = vunpack.c.h.b16 %v30
  %v346 = vunpack.c.l.b16 %v31
  %v347 = vunpack.c.h.b16 %v31
  %v348 = vunpack.c.l.b16 %v32
  %v349 = vunpack.c.l.b16 %v33
  %v350 = vunpack.c.h.b16 %v33
  %v351 = vunpack.c.l.b16 %v34
  %v352 = vunpack.c.h.b16 %v34
  %v353 = vunpack.c.l.b16 %v35
  %v354 = vunpack.c.h.b16 %v35
  %v355 = vunpack.c.l.b16 %v36
  %v356 = vunpack.c.h.b16 %v36
  %v357 = vunpack.c.l.b16 %v37
  %v358 = vunpack.c.l.b16 %v38
  %v359 = vunpack.c.h.b16 %v38
  %v360 = vunpack.c.l.b16 %v39
  %v361 = vunpack.c.h.b16 %v39
  %v362 = vunpack.c.l.b16 %v40
  %v363 = vunpack.c.h.b16 %v40
  %v364 = vunpack.c.l.b16 %v41
  %v365 = vunpack.c.h.b16 %v41
  %v366 = vunpack.c.l.b16 %v42
  %v367 = vunpack.c.l.b16 %v43
  %v368 = vunpack.c.h.b16 %v43
  %v369 = vunpack.c.l.b16 %v44
  %v370 = vunpack.c.h.b16 %v44
  %v371 = vunpack.c.l.b16 %v45
  %v372 = vunpack.c.h.b16 %v45
  %v373 = vunpack.c.l.b16 %v46
  %v374 = vunpack.c.h.b16 %v46
  %v375 = vunpack.c.l.b16 %v47
  %v376 = vunpack.c.l.b16 %v48
  %v377 = vunpack.c.h.b16 %v48
  %v378 = vunpack.c.l.b16 %v49
  %v379 = vunpack.c.h.b16 %v49
  %v380 = vunpack.c.l.b16 %v50
  %v381 = vunpack.c.h.b16 %v50
  %v382 = vunpack.c.l.b16 %v51
  %v383 = vunpack.c.h.b16 %v51
  %v384 = vunpack.c.l.b16 %v52
  %v385 = vunpack.c.l.b16 %v53
  %v386 = vunpack.c.h.b16 %v53
  %v387 = vunpack.c.l.b16 %v54
  %v388 = vunpack.c.h.b16 %v54
  %v389 = vunpack.c.l.b16 %v55
  %v390 = vunpack.c.h.b16 %v55
  %v391 = vunpack.c.l.b16 %v56
  %v392 = vunpack.c.h.b16 %v56
  %v393 = vunpack.c.l.b16 %v57
  %v394 = vunpack.c.l.b16 %v58
  %v395 = vunpack.c.h.b16 %v58
  %v396 = vunpack.c.l.b16 %v59
  %v397 = vunpack.c.h.b16 %v59
  %v398 = vunpack.c.l.b16 %v60
  %v399 = vunpack.c.h.b16 %v60
  %v400 = vunpack.c.l.b16 %v61
  %v401 = vunpack.c.h.b16 %v61
  %v402 = vunpack.c.l.b16 %v62
  %v403 = vunpack.c.l.b16 %v63
  %v404 = vunpack.c.h.b16 %v63
  %v405 = vunpack.c.l.b16 %v64
  %v406 = vunpack.c.h.b16 %v64
  %v407 = vunpack.c.l.b16 %v65
  %v408 = vunpack.c.h.b16 %v65
  %v409 = vunpack.c.l.b16 %v66
  %v410 = vunpack.c.h.b16 %v66
  %v411 = vunpack.c.l.b16 %v67
  %v412 = vunpack.c.l.b16 %v68
  %v413 = vunpack.c.h.b16 %v68
  %v414 = vunpack.c.l.b16 %v69
  %v415 = vunpack.c.h.b16 %v69
  %v416 = vunpack.c.l.b16 %v70
  %v417 = vunpack.c.h.b16 %v70
  %v418 = vunpack.c.l.b16 %v71
  %v419 = vunpack.c.h.b16 %v71
  %v420 = vunpack.c.l.b16 %v72
  %v421 = vunpack.c.l.b16 %v73
  %v422 = vunpack.c.h.b16 %v73
  %v423 = vunpack.c.l.b16 %v74
  %v424 = vunpack.c.h.b16 %v74
  %v425 = vunpack.c.l.b16 %v75
  %v426 = vunpack.c.h.b16 %v75
  %v427 = vunpack.c.l.b16 %v76
  %v428 = vunpack.c.h.b16 %v76
  %v429 = vunpack.c.l.b16 %v77
  %v430 = vunpack.c.l.b16 %v78
  %v431 = vunpack.c.h.b16 %v78
  %v432 = vunpack.c.l.b16 %v79
  %v433 = vunpack.c.h.b16 %v79
  %v434 = vunpack.c.l.b16 %v80
  %v435 = vunpack.c.h.b16 %v80
  %v436 = vunpack.c.l.b16 %v81
  %v437 = vunpack.c.h.b16 %v81
  %v438 = vunpack.c.l.b16 %v82
  %v439 = vunpack.c.l.b16 %v83
  %v440 = vunpack.c.h.b16 %v83
  %v441 = vunpack.c.l.b16 %v84
  %v442 = vunpack.c.h.b16 %v84
  %v443 = vunpack.c.l.b16 %v85
  %v444 = vunpack.c.h.b16 %v85
  %v445 = vunpack.c.l.b16 %v86
  %v446 = vunpack.c.h.b16 %v86
  %v447 = vunpack.c.l.b16 %v87
  %v448 = vunpack.c.l.b16 %v88
  %v449 = vunpack.c.h.b16 %v88
  %v450 = vunpack.c.l.b16 %v89
  %v451 = vunpack.c.h.b16 %v89
  %v452 = vunpack.c.l.b16 %v90
  %v453 = vunpack.c.h.b16 %v90
  %v454 = vunpack.c.l.b16 %v91
  %v455 = vunpack.c.h.b16 %v91
  %v456 = vunpack.c.l.b16 %v92
  %v457 = vunpack.c.l.b16 %v93
  %v458 = vunpack.c.h.b16 %v93
  %v459 = vunpack.c.l.b16 %v94
  %v460 = vunpack.c.h.b16 %v94
  %v461 = vunpack.c.l.b16 %v95
  %v462 = vunpack.c.h.b16 %v95
  %v463 = vunpack.c.l.b16 %v96
  %v464 = vunpack.c.h.b16 %v96
  %v465 = vunpack.c.l.b16 %v97
  %v466 = vpack.c.b16 %v331, %v322
  %v467 = vpack.c.b16 %v332, %v323
  %v468 = vpack.c.b16 %v333, %v324
  %v469 = vpack.c.b16 %v334, %v325
  %v470 = vpack.c.b16 %v335, %v326
  %v471 = vpack.c.b16 %v336, %v327
  %v472 = vpack.c.b16 %v337, %v328
  %v473 = vpack.c.b16 %v338, %v329
  %v474 = vpack.c.b16 %v339, %v330
  %v475 = vpack.c.b16 %v349, %v340
  %v476 = vpack.c.b16 %v350, %v341
  %v477 = vpack.c.b16 %v351, %v342
  %v478 = vpack.c.b16 %v352, %v343
  %v479 = vpack.c.b16 %v353, %v344
  %v480 = vpack.c.b16 %v354, %v345
  %v481 = vpack.c.b16 %v355, %v346
  %v482 = vpack.c.b16 %v356, %v347
  %v483 = vpack.c.b16 %v357, %v348
  %v484 = vpack.c.b16 %v367, %v358
  %v485 = vpack.c.b16 %v368, %v359
  %v486 = vpack.c.b16 %v369, %v360
  %v487 = vpack.c.b16 %v370, %v361
  %v488 = vpack.c.b16 %v371, %v362
  %v489 = vpack.c.b16 %v372, %v363
  %v490 = vpack.c.b16 %v373, %v364
  %v491 = vpack.c.b16 %v374, %v365
  %v492 = vpack.c.b16 %v375, %v366
  %v493 = vpack.c.b16 %v385, %v376
  %v494 = vpack.c.b16 %v386, %v377
  %v495 = vpack.c.b16 %v387, %v378
  %v496 = vpack.c.b16 %v388, %v379
  %v497 = vpack.c.b16 %v389, %v380
  %v498 = vpack.c.b16 %v390, %v381
  %v499 = vpack.c.b16 %v391, %v382
  %v500 = vpack.c.b16 %v392, %v383
  %v501 = vpack.c.b16 %v393, %v384
  %v502 = vpack.c.b16 %v403, %v394
  %v503 = vpack.c.b16 %v404, %v395
  %v504 = vpack.c.b16 %v405, %v396
  %v505 = vpack.c.b16 %v406, %v397
  %v506 = vpack.c.b16 %v407, %v398
  %v507 = vpack.c.b16 %v408, %v399
  %v508 = vpack.c.b16 %v409, %v400
  %v509 = vpack.c.b16 %v410, %v401
  %v510 = vpack.c.b16 %v411, %v402
  %v511 = vpack.c.b16 %v421, %v412
  %v512 = vpack.c.b16 %v422, %v413
  %v513 = vpack.c.b16 %v423, %v414
  %v514 = vpack.c.b16 %v424, %v415
  %v515 = vpack.c.b16 %v425, %v416
  %v516 = vpack.c.b16 %v426, %v417
  %v517 = vpack.c.b16 %v427, %v418
  %v518 = vpack.c.b16 %v428, %v419
  %v519 = vpack.c.b16 %v429, %v420
  %v520 = vpack.c.b16 %v439, %v430
  %v521 = vpack.c.b16 %v440, %v431
  %v522 = vpack.c.b16 %v441, %v432
  %v523 = vpack.c.b16 %v442, %v433
  %v524 = vpack.c.b16 %v443, %v434
  %v525 = vpack.c.b16 %v444, %v435
  %v526 = vpack.c.b16 %v445, %v436
  %v527 = vpack.c.b16 %v446, %v437
  %v528 = vpack.c.b16 %v447, %v438
  %v529 = vpack.c.b16 %v457, %v448
  %v530 = vpack.c.b16 %v458, %v449
  %v531 = vpack.c.b16 %v459, %v450
  %v532 = vpack.c.b16 %v460, %v451
  %v533 = vpack.c.b16 %v461, %v452
  %v534 = vpack.c.b16 %v462, %v453
  %v535 = vpack.c.b16 %v463, %v454
  %v536 = vpack.c.b16 %v464, %v455
  %v537 = vpack.c.b16 %v465, %v456
  %v754 = vunpack.c.l.b16 %v98
  %v755 = vunpack.c.l.b16 %v99
  %v756 = vunpack.c.l.b16 %v100
  %v757 = vunpack.c.l.b16 %v101
  %v758 = vunpack.c.l.b16 %v102
  %v759 = vunpack.c.l.b16 %v103
  %v760 = vunpack.c.l.b16 %v104
  %v761 = vunpack.c.l.b16 %v105
  %v762 = vunpack.c.l.b16 %v106
  %v763 = vunpack.c.l.b16 %v107
  %v764 = vunpack.c.l.b16 %v108
  %v765 = vunpack.c.l.b16 %v109
  %v766 = vunpack.c.l.b16 %v110
  %v767 = vunpack.c.l.b16 %v111
  %v768 = vunpack.c.l.b16 %v112
  %v769 = vunpack.c.l.b16 %v113
  %v770 = vunpack.c.l.b16 %v114
  %v771 = vunpack.c.l.b16 %v115
  %v772 = vunpack.c.l.b16 %v116
  %v773 = vunpack.c.l.b16 %v117
  %v774 = vunpack.c.l.b16 %v118
  %v775 = vunpack.c.l.b16 %v119
  %v776 = vunpack.c.l.b16 %v120
  %v777 = vunpack.c.l.b16 %v121
  %v778 = vunpack.c.l.b16 %v122
  %v779 = vunpack.c.l.b16 %v123
  %v780 = vunpack.c.l.b16 %v124
  %v781 = vunpack.c.l.b16 %v125
  %v782 = vunpack.c.l.b16 %v126
  %v783 = vunpack.c.l.b16 %v127
  %v784 = vunpack.c.l.b16 %v128
  %v785 = vunpack.c.l.b16 %v129
  %v786 = vunpack.c.l.b16 %v130
  %v787 = vunpack.c.l.b16 %v131
  %v788 = vunpack.c.l.b16 %v132
  %v789 = vunpack.c.l.b16 %v133
  %v790 = vunpack.c.l.b16 %v134
  %v791 = vunpack.c.l.b16 %v135
  %v792 = vunpack.c.l.b16 %v136
  %v793 = vunpack.c.l.b16 %v137
  %v794 = vunpack.c.l.b16 %v138
  %v795 = vunpack.c.l.b16 %v139
  %v796 = vunpack.c.l.b16 %v140
  %v797 = vunpack.c.l.b16 %v141
  %v798 = vunpack.c.l.b16 %v142
  %v799 = vunpack.c.l.b16 %v143
  %v800 = vunpack.c.l.b16 %v144
  %v801 = vunpack.c.l.b16 %v145
  %v802 = vunpack.c.l.b16 %v146
  %v803 = vunpack.c.l.b16 %v147
  %v804 = vunpack.c.l.b16 %v148
  %v805 = vunpack.c.l.b16 %v149
  %v806 = vunpack.c.l.b16 %v150
  %v807 = vunpack.c.l.b16 %v151
  %v808 = vunpack.c.l.b16 %v152
  %v809 = vunpack.c.l.b16 %v153
  %v810 = vunpack.c.l.b16 %v154
  %v811 = vunpack.c.l.b16 %v155
  %v812 = vunpack.c.l.b16 %v156
  %v813 = vunpack.c.l.b16 %v157
  %v814 = vunpack.c.l.b16 %v158
  %v815 = vunpack.c.l.b16 %v159
  %v816 = vunpack.c.l.b16 %v160
  %v817 = vunpack.c.l.b16 %v161
  %v818 = vunpack.c.l.b16 %v162
  %v819 = vunpack.c.l.b16 %v163
  %v820 = vunpack.c.l.b16 %v164
  %v821 = vunpack.c.l.b16 %v165
  %v822 = vunpack.c.l.b16 %v166
  %v823 = vunpack.c.l.b16 %v167
  %v824 = vunpack.c.l.b16 %v168
  %v825 = vunpack.c.l.b16 %v169
  %v826 = vunpack.c.l.b16 %v170
  %v827 = vunpack.c.l.b16 %v171
  %v828 = vunpack.c.l.b16 %v172
  %v829 = vunpack.c.l.b16 %v173
  %v830 = vunpack.c.l.b16 %v174
  %v831 = vunpack.c.l.b16 %v175
  %v832 = vunpack.c.l.b16 %v176
  %v833 = vunpack.c.l.b16 %v177
  %v834 = vunpack.c.l.b16 %v178
  %v835 = vunpack.c.l.b16 %v179
  %v836 = vunpack.c.l.b16 %v180
  %v837 = vunpack.c.l.b16 %v181
  %v838 = vunpack.c.l.b16 %v182
  %v839 = vunpack.c.l.b16 %v183
  %v840 = vunpack.c.l.b16 %v184
  %v841 = vunpack.c.l.b16 %v185
  %v842 = vunpack.c.l.b16 %v186
  %v843 = vunpack.c.l.b16 %v187
  %v844 = vunpack.c.l.b16 %v188
  %v845 = vunpack.c.l.b16 %v189
  %v846 = vunpack.c.l.b16 %v190
  %v847 = vunpack.c.l.b16 %v191
  %v848 = vunpack.c.l.b16 %v192
  %v849 = vunpack.c.l.b16 %v193
  %v850 = vunpack.c.l.b16 %v194
  %v851 = vunpack.c.l.b16 %v195
  %v852 = vunpack.c.l.b16 %v196
  %v853 = vunpack.c.l.b16 %v197
  %v854 = vunpack.c.l.b16 %v198
  %v855 = vunpack.c.l.b16 %v199
  %v856 = vunpack.c.l.b16 %v200
  %v857 = vunpack.c.l.b16 %v201
  %v858 = vunpack.c.l.b16 %v202
  %v859 = vunpack.c.l.b16 %v203
  %v860 = vunpack.c.l.b16 %v204
  %v861 = vunpack.c.l.b16 %v205
  %v862 = vunpack.c.l.b16 %v206
  %v863 = vunpack.c.l.b16 %v207
  %v864 = vunpack.c.l.b16 %v208
  %v865 = vunpack.c.l.b16 %v209
  %v866 = vunpack.c.l.b16 %v210
  %v867 = vunpack.c.l.b16 %v211
  %v868 = vunpack.c.l.b16 %v212
  %v869 = vunpack.c.l.b16 %v213
  %v870 = vunpack.c.l.b16 %v214
  %v871 = vunpack.c.l.b16 %v215
  %v872 = vunpack.c.l.b16 %v216
  %v873 = vunpack.c.l.b16 %v217
  %v874 = vunpack.c.l.b16 %v218
  %v875 = vunpack.c.l.b16 %v219
  %v876 = vunpack.c.l.b16 %v220
  %v877 = vunpack.c.l.b16 %v221
  %v878 = vunpack.c.l.b16 %v222
  %v879 = vunpack.c.l.b16 %v223
  %v880 = vunpack.c.l.b16 %v224
  %v881 = vunpack.c.l.b16 %v225
  %v882 = vunpack.c.l.b16 %v226
  %v883 = vunpack.c.l.b16 %v227
  %v884 = vunpack.c.l.b16 %v228
  %v885 = vunpack.c.l.b16 %v229
  %v886 = vunpack.c.l.b16 %v230
  %v887 = vunpack.c.l.b16 %v231
  %v888 = vunpack.c.l.b16 %v232
  %v889 = vunpack.c.l.b16 %v233
  %v890 = vunpack.c.l.b16 %v234
  %v891 = vunpack.c.l.b16 %v235
  %v892 = vunpack.c.l.b16 %v236
  %v893 = vunpack.c.l.b16 %v237
  %v894 = vunpack.c.l.b16 %v238
  %v895 = vunpack.c.l.b16 %v239
  %v896 = vunpack.c.l.b16 %v240
  %v897 = vunpack.c.l.b16 %v241
  %v898 = vpack.c.b16 %v755, %v754
  %v899 = vpack.c.b16 %v757, %v756
  %v900 = vpack.c.b16 %v759, %v758
  %v901 = vpack.c.b16 %v761, %v760
  %v902 = vpack.c.b16 %v763, %v762
  %v903 = vpack.c.b16 %v765, %v764
  %v904 = vpack.c.b16 %v767, %v766
  %v905 = vpack.c.b16 %v769, %v768
  %v906 = vpack.c.b16 %v771, %v770
  %v907 = vpack.c.b16 %v773, %v772
  %v908 = vpack.c.b16 %v775, %v774
  %v909 = vpack.c.b16 %v777, %v776
  %v910 = vpack.c.b16 %v779, %v778
  %v911 = vpack.c.b16 %v781, %v780
  %v912 = vpack.c.b16 %v783, %v782
  %v913 = vpack.c.b16 %v785, %v784
  %v914 = vpack.c.b16 %v787, %v786
  %v915 = vpack.c.b16 %v789, %v788
  %v916 = vpack.c.b16 %v791, %v790
  %v917 = vpack.c.b16 %v793, %v792
  %v918 = vpack.c.b16 %v795, %v794
  %v919 = vpack.c.b16 %v797, %v796
  %v920 = vpack.c.b16 %v799, %v798
  %v921 = vpack.c.b16 %v801, %v800
  %v922 = vpack.c.b16 %v803, %v802
  %v923 = vpack.c.b16 %v805, %v804
  %v924 = vpack.c.b16 %v807, %v806
  %v925 = vpack.c.b16 %v809, %v808
  %v926 = vpack.c.b16 %v811, %v810
  %v927 = vpack.c.b16 %v813, %v812
  %v928 = vpack.c.b16 %v815, %v814
  %v929 = vpack.c.b16 %v817, %v816
  %v930 = vpack.c.b16 %v819, %v818
  %v931 = vpack.c.b16 %v821, %v820
  %v932 = vpack.c.b16 %v823, %v822
  %v933 = vpack.c.b16 %v825, %v824
  %v934 = vpack.c.b16 %v827, %v826
  %v935 = vpack.c.b16 %v829, %v828
  %v936 = vpack.c.b16 %v831, %v830
  %v937 = vpack.c.b16 %v833, %v832
  %v938 = vpack.c.b16 %v835, %v834
  %v939 = vpack.c.b16 %v837, %v836
  %v940 = vpack.c.b16 %v839, %v838
  %v941 = vpack.c.b16 %v841, %v840
  %v942 = vpack.c.b16 %v843, %v842
  %v943 = vpack.c.b16 %v845, %v844
  %v944 = vpack.c.b16 %v847, %v846
  %v945 = vpack.c.b16 %v849, %v848
  %v946 = vpack.c.b16 %v851, %v850
  %v947 = vpack.c.b16 %v853, %v852
  %v948 = vpack.c.b16 %v855, %v854
  %v949 = vpack.c.b16 %v857, %v856
  %v950 = vpack.c.b16 %v859, %v858
  %v951 = vpack.c.b16 %v861, %v860
  %v952 = vpack.c.b16 %v863, %v862
  %v953 = vpack.c.b16 %v865, %v864
  %v954 = vpack.c.b16 %v867, %v866
  %v955 = vpack.c.b16 %v869, %v868
  %v956 = vpack.c.b16 %v871, %v870
  %v957 = vpack.c.b16 %v873, %v872
  %v958 = vpack.c.b16 %v875, %v874
  %v959 = vpack.c.b16 %v877, %v876
  %v960 = vpack.c.b16 %v879, %v878
  %v961 = vpack.c.b16 %v881, %v880
  %v962 = vpack.c.b16 %v883, %v882
  %v963 = vpack.c.b16 %v885, %v884
  %v964 = vpack.c.b16 %v887, %v886
  %v965 = vpack.c.b16 %v889, %v888
  %v966 = vpack.c.b16 %v891, %v890
  %v967 = vpack.c.b16 %v893, %v892
  %v968 = vpack.c.b16 %v895, %v894
  %v969 = vpack.c.b16 %v897, %v896
  %1042 = vmatprep.subr.bf16.mxu0 0
  %1043 = vmatpush1.bf16.msra.mxu0 %v905
  %1044 = vmatprep.subr.bf16.mxu0 0
  %1045 = vmatpush1.bf16.msra.mxu0 %v904
  %1046 = vmatprep.subr.bf16.mxu0 0
  %1047 = vmatpush1.bf16.msra.mxu0 %v903
  %1048 = vmatprep.subr.bf16.mxu0 0
  %1049 = vmatpush1.bf16.msra.mxu0 %v902
  %1050 = vmatprep.subr.bf16.mxu0 0
  %1051 = vmatpush1.bf16.msra.mxu0 %v901
  %1052 = vmatprep.subr.bf16.mxu0 0
  %1053 = vmatpush1.bf16.msra.mxu0 %v900
  %1054 = vmatprep.subr.bf16.mxu0 0
  %1055 = vmatpush1.bf16.msra.mxu0 %v899
  %1056 = vmatprep.subr.bf16.mxu0 0
  %1057 = vmatpush1.bf16.msra.mxu0 %v898
  %1058 = vmatprep.subr.bf16.mxu0 0
  %1059 = vmatpush2.bf16.msra.mxu0 %v913
  %1060 = vmatprep.subr.bf16.mxu0 0
  %1061 = vmatpush2.bf16.msra.mxu0 %v912
  %1062 = vmatprep.subr.bf16.mxu0 0
  %1063 = vmatpush2.bf16.msra.mxu0 %v911
  %1064 = vmatprep.subr.bf16.mxu0 0
  %1065 = vmatpush2.bf16.msra.mxu0 %v910
  %1066 = vmatprep.subr.bf16.mxu0 0
  %1067 = vmatpush2.bf16.msra.mxu0 %v909
  %1068 = vmatprep.subr.bf16.mxu0 0
  %1069 = vmatpush2.bf16.msra.mxu0 %v908
  %1070 = vmatprep.subr.bf16.mxu0 0
  %1071 = vmatpush2.bf16.msra.mxu0 %v907
  %1072 = vmatprep.subr.bf16.mxu0 0
  %1073 = vmatpush2.bf16.msra.mxu0 %v906
  %1074 = vmatprep.mubr.bf16.mxu0 %v467
  %1075 = vmatmul.mubr.bf16.gmra.mxu0 %v466
  %v1076 = vpop.f32.mrf.mxu0
  %v1077 = vadd.f32 0.0, %v1076
  %v1078 = vpop.f32.mrf.mxu0
  %v1079 = vpop.f32.mrf.mxu0
  %v1080 = vadd.f32 0.0, %v1079
  %v1081 = vpop.f32.mrf.mxu0
  %1082 = vmatprep.mubr.bf16.mxu0 %v476
  %1083 = vmatmul.mubr.bf16.gmra.mxu0 %v475
  %v1084 = vpop.f32.mrf.mxu0
  %v1085 = vadd.f32 0.0, %v1084
  %v1086 = vpop.f32.mrf.mxu0
  %v1087 = vpop.f32.mrf.mxu0
  %v1088 = vadd.f32 0.0, %v1087
  %v1089 = vpop.f32.mrf.mxu0
  %1090 = vmatprep.mubr.bf16.mxu0 %v485
  %1091 = vmatmul.mubr.bf16.gmra.mxu0 %v484
  %v1092 = vpop.f32.mrf.mxu0
  %v1093 = vadd.f32 0.0, %v1092
  %v1094 = vpop.f32.mrf.mxu0
  %v1095 = vpop.f32.mrf.mxu0
  %v1096 = vadd.f32 0.0, %v1095
  %v1097 = vpop.f32.mrf.mxu0
  %1098 = vmatprep.mubr.bf16.mxu0 %v494
  %1099 = vmatmul.mubr.bf16.gmra.mxu0 %v493
  %v1100 = vpop.f32.mrf.mxu0
  %v1101 = vadd.f32 0.0, %v1100
  %v1102 = vpop.f32.mrf.mxu0
  %v1103 = vpop.f32.mrf.mxu0
  %v1104 = vadd.f32 0.0, %v1103
  %v1105 = vpop.f32.mrf.mxu0
  %1106 = vmatprep.mubr.bf16.mxu0 %v503
  %1107 = vmatmul.mubr.bf16.gmra.mxu0 %v502
  %v1108 = vpop.f32.mrf.mxu0
  %v1109 = vadd.f32 0.0, %v1108
  %v1110 = vpop.f32.mrf.mxu0
  %v1111 = vpop.f32.mrf.mxu0
  %v1112 = vadd.f32 0.0, %v1111
  %v1113 = vpop.f32.mrf.mxu0
  %1114 = vmatprep.mubr.bf16.mxu0 %v512
  %1115 = vmatmul.mubr.bf16.gmra.mxu0 %v511
  %v1116 = vpop.f32.mrf.mxu0
  %v1117 = vadd.f32 0.0, %v1116
  %v1118 = vpop.f32.mrf.mxu0
  %v1119 = vpop.f32.mrf.mxu0
  %v1120 = vadd.f32 0.0, %v1119
  %v1121 = vpop.f32.mrf.mxu0
  %1122 = vmatprep.mubr.bf16.mxu0 %v521
  %1123 = vmatmul.mubr.bf16.gmra.mxu0 %v520
  %v1124 = vpop.f32.mrf.mxu0
  %v1125 = vadd.f32 0.0, %v1124
  %v1126 = vpop.f32.mrf.mxu0
  %v1127 = vpop.f32.mrf.mxu0
  %v1128 = vadd.f32 0.0, %v1127
  %v1129 = vpop.f32.mrf.mxu0
  %1130 = vmatprep.mubr.bf16.mxu0 %v530
  %1131 = vmatmul.mubr.bf16.gmra.mxu0 %v529
  %v1132 = vpop.f32.mrf.mxu0
  %v1133 = vadd.f32 0.0, %v1132
  %v1134 = vpop.f32.mrf.mxu0
  %v1135 = vpop.f32.mrf.mxu0
  %v1136 = vadd.f32 0.0, %v1135
  %v1137 = vpop.f32.mrf.mxu0
  %1138 = vdwg.mxu0
  %1139 = vmatprep.subr.bf16.mxu0 0
  %1140 = vmatpush1.bf16.msra.mxu0 %v921
  %1141 = vmatprep.subr.bf16.mxu0 0
  %1142 = vmatpush1.bf16.msra.mxu0 %v920
  %1143 = vmatprep.subr.bf16.mxu0 0
  %1144 = vmatpush1.bf16.msra.mxu0 %v919
  %1145 = vmatprep.subr.bf16.mxu0 0
  %1146 = vmatpush1.bf16.msra.mxu0 %v918
  %1147 = vmatprep.subr.bf16.mxu0 0
  %1148 = vmatpush1.bf16.msra.mxu0 %v917
  %1149 = vmatprep.subr.bf16.mxu0 0
  %1150 = vmatpush1.bf16.msra.mxu0 %v916
  %1151 = vmatprep.subr.bf16.mxu0 0
  %1152 = vmatpush1.bf16.msra.mxu0 %v915
  %1153 = vmatprep.subr.bf16.mxu0 0
  %1154 = vmatpush1.bf16.msra.mxu0 %v914
  %1155 = vmatprep.subr.bf16.mxu0 0
  %1156 = vmatpush2.bf16.msra.mxu0 %v929
  %1157 = vmatprep.subr.bf16.mxu0 0
  %1158 = vmatpush2.bf16.msra.mxu0 %v928
  %1159 = vmatprep.subr.bf16.mxu0 0
  %1160 = vmatpush2.bf16.msra.mxu0 %v927
  %1161 = vmatprep.subr.bf16.mxu0 0
  %1162 = vmatpush2.bf16.msra.mxu0 %v926
  %1163 = vmatprep.subr.bf16.mxu0 0
  %1164 = vmatpush2.bf16.msra.mxu0 %v925
  %1165 = vmatprep.subr.bf16.mxu0 0
  %1166 = vmatpush2.bf16.msra.mxu0 %v924
  %1167 = vmatprep.subr.bf16.mxu0 0
  %1168 = vmatpush2.bf16.msra.mxu0 %v923
  %1169 = vmatprep.subr.bf16.mxu0 0
  %1170 = vmatpush2.bf16.msra.mxu0 %v922
  %1171 = vmatprep.mubr.bf16.mxu0 %v469
  %1172 = vmatmul.mubr.bf16.gmra.mxu0 %v468
  %v1173 = vpop.f32.mrf.mxu0
  %v1174 = vadd.f32 %v1077, %v1173
  %v1175 = vpop.f32.mrf.mxu0
  %v1176 = vpop.f32.mrf.mxu0
  %v1177 = vadd.f32 %v1080, %v1176
  %v1178 = vpop.f32.mrf.mxu0
  %1179 = vmatprep.mubr.bf16.mxu0 %v478
  %1180 = vmatmul.mubr.bf16.gmra.mxu0 %v477
  %v1181 = vpop.f32.mrf.mxu0
  %v1182 = vadd.f32 %v1085, %v1181
  %v1183 = vpop.f32.mrf.mxu0
  %v1184 = vpop.f32.mrf.mxu0
  %v1185 = vadd.f32 %v1088, %v1184
  %v1186 = vpop.f32.mrf.mxu0
  %1187 = vmatprep.mubr.bf16.mxu0 %v487
  %1188 = vmatmul.mubr.bf16.gmra.mxu0 %v486
  %v1189 = vpop.f32.mrf.mxu0
  %v1190 = vadd.f32 %v1093, %v1189
  %v1191 = vpop.f32.mrf.mxu0
  %v1192 = vpop.f32.mrf.mxu0
  %v1193 = vadd.f32 %v1096, %v1192
  %v1194 = vpop.f32.mrf.mxu0
  %1195 = vmatprep.mubr.bf16.mxu0 %v496
  %1196 = vmatmul.mubr.bf16.gmra.mxu0 %v495
  %v1197 = vpop.f32.mrf.mxu0
  %v1198 = vadd.f32 %v1101, %v1197
  %v1199 = vpop.f32.mrf.mxu0
  %v1200 = vpop.f32.mrf.mxu0
  %v1201 = vadd.f32 %v1104, %v1200
  %v1202 = vpop.f32.mrf.mxu0
  %1203 = vmatprep.mubr.bf16.mxu0 %v505
  %1204 = vmatmul.mubr.bf16.gmra.mxu0 %v504
  %v1205 = vpop.f32.mrf.mxu0
  %v1206 = vadd.f32 %v1109, %v1205
  %v1207 = vpop.f32.mrf.mxu0
  %v1208 = vpop.f32.mrf.mxu0
  %v1209 = vadd.f32 %v1112, %v1208
  %v1210 = vpop.f32.mrf.mxu0
  %1211 = vmatprep.mubr.bf16.mxu0 %v514
  %1212 = vmatmul.mubr.bf16.gmra.mxu0 %v513
  %v1213 = vpop.f32.mrf.mxu0
  %v1214 = vadd.f32 %v1117, %v1213
  %v1215 = vpop.f32.mrf.mxu0
  %v1216 = vpop.f32.mrf.mxu0
  %v1217 = vadd.f32 %v1120, %v1216
  %v1218 = vpop.f32.mrf.mxu0
  %1219 = vmatprep.mubr.bf16.mxu0 %v523
  %1220 = vmatmul.mubr.bf16.gmra.mxu0 %v522
  %v1221 = vpop.f32.mrf.mxu0
  %v1222 = vadd.f32 %v1125, %v1221
  %v1223 = vpop.f32.mrf.mxu0
  %v1224 = vpop.f32.mrf.mxu0
  %v1225 = vadd.f32 %v1128, %v1224
  %v1226 = vpop.f32.mrf.mxu0
  %1227 = vmatprep.mubr.bf16.mxu0 %v532
  %1228 = vmatmul.mubr.bf16.gmra.mxu0 %v531
  %v1229 = vpop.f32.mrf.mxu0
  %v1230 = vadd.f32 %v1133, %v1229
  %v1231 = vpop.f32.mrf.mxu0
  %v1232 = vpop.f32.mrf.mxu0
  %v1233 = vadd.f32 %v1136, %v1232
  %v1234 = vpop.f32.mrf.mxu0
  %1235 = vdwg.mxu0
  %1236 = vmatprep.subr.bf16.mxu0 0
  %1237 = vmatpush1.bf16.msra.mxu0 %v937
  %1238 = vmatprep.subr.bf16.mxu0 0
  %1239 = vmatpush1.bf16.msra.mxu0 %v936
  %1240 = vmatprep.subr.bf16.mxu0 0
  %1241 = vmatpush1.bf16.msra.mxu0 %v935
  %1242 = vmatprep.subr.bf16.mxu0 0
  %1243 = vmatpush1.bf16.msra.mxu0 %v934
  %1244 = vmatprep.subr.bf16.mxu0 0
  %1245 = vmatpush1.bf16.msra.mxu0 %v933
  %1246 = vmatprep.subr.bf16.mxu0 0
  %1247 = vmatpush1.bf16.msra.mxu0 %v932
  %1248 = vmatprep.subr.bf16.mxu0 0
  %1249 = vmatpush1.bf16.msra.mxu0 %v931
  %1250 = vmatprep.subr.bf16.mxu0 0
  %1251 = vmatpush1.bf16.msra.mxu0 %v930
  %1252 = vmatprep.subr.bf16.mxu0 0
  %1253 = vmatpush2.bf16.msra.mxu0 %v945
  %1254 = vmatprep.subr.bf16.mxu0 0
  %1255 = vmatpush2.bf16.msra.mxu0 %v944
  %1256 = vmatprep.subr.bf16.mxu0 0
  %1257 = vmatpush2.bf16.msra.mxu0 %v943
  %1258 = vmatprep.subr.bf16.mxu0 0
  %1259 = vmatpush2.bf16.msra.mxu0 %v942
  %1260 = vmatprep.subr.bf16.mxu0 0
  %1261 = vmatpush2.bf16.msra.mxu0 %v941
  %1262 = vmatprep.subr.bf16.mxu0 0
  %1263 = vmatpush2.bf16.msra.mxu0 %v940
  %1264 = vmatprep.subr.bf16.mxu0 0
  %1265 = vmatpush2.bf16.msra.mxu0 %v939
  %1266 = vmatprep.subr.bf16.mxu0 0
  %1267 = vmatpush2.bf16.msra.mxu0 %v938
  %1268 = vmatprep.mubr.bf16.mxu0 %v471
  %1269 = vmatmul.mubr.bf16.gmra.mxu0 %v470
  %v1270 = vpop.f32.mrf.mxu0
  %v1271 = vadd.f32 %v1174, %v1270
  %v1272 = vpop.f32.mrf.mxu0
  %v1273 = vpop.f32.mrf.mxu0
  %v1274 = vadd.f32 %v1177, %v1273
  %v1275 = vpop.f32.mrf.mxu0
  %1276 = vmatprep.mubr.bf16.mxu0 %v480
  %1277 = vmatmul.mubr.bf16.gmra.mxu0 %v479
  %v1278 = vpop.f32.mrf.mxu0
  %v1279 = vadd.f32 %v1182, %v1278
  %v1280 = vpop.f32.mrf.mxu0
  %v1281 = vpop.f32.mrf.mxu0
  %v1282 = vadd.f32 %v1185, %v1281
  %v1283 = vpop.f32.mrf.mxu0
  %1284 = vmatprep.mubr.bf16.mxu0 %v489
  %1285 = vmatmul.mubr.bf16.gmra.mxu0 %v488
  %v1286 = vpop.f32.mrf.mxu0
  %v1287 = vadd.f32 %v1190, %v1286
  %v1288 = vpop.f32.mrf.mxu0
  %v1289 = vpop.f32.mrf.mxu0
  %v1290 = vadd.f32 %v1193, %v1289
  %v1291 = vpop.f32.mrf.mxu0
  %1292 = vmatprep.mubr.bf16.mxu0 %v498
  %1293 = vmatmul.mubr.bf16.gmra.mxu0 %v497
  %v1294 = vpop.f32.mrf.mxu0
  %v1295 = vadd.f32 %v1198, %v1294
  %v1296 = vpop.f32.mrf.mxu0
  %v1297 = vpop.f32.mrf.mxu0
  %v1298 = vadd.f32 %v1201, %v1297
  %v1299 = vpop.f32.mrf.mxu0
  %1300 = vmatprep.mubr.bf16.mxu0 %v507
  %1301 = vmatmul.mubr.bf16.gmra.mxu0 %v506
  %v1302 = vpop.f32.mrf.mxu0
  %v1303 = vadd.f32 %v1206, %v1302
  %v1304 = vpop.f32.mrf.mxu0
  %v1305 = vpop.f32.mrf.mxu0
  %v1306 = vadd.f32 %v1209, %v1305
  %v1307 = vpop.f32.mrf.mxu0
  %1308 = vmatprep.mubr.bf16.mxu0 %v516
  %1309 = vmatmul.mubr.bf16.gmra.mxu0 %v515
  %v1310 = vpop.f32.mrf.mxu0
  %v1311 = vadd.f32 %v1214, %v1310
  %v1312 = vpop.f32.mrf.mxu0
  %v1313 = vpop.f32.mrf.mxu0
  %v1314 = vadd.f32 %v1217, %v1313
  %v1315 = vpop.f32.mrf.mxu0
  %1316 = vmatprep.mubr.bf16.mxu0 %v525
  %1317 = vmatmul.mubr.bf16.gmra.mxu0 %v524
  %v1318 = vpop.f32.mrf.mxu0
  %v1319 = vadd.f32 %v1222, %v1318
  %v1320 = vpop.f32.mrf.mxu0
  %v1321 = vpop.f32.mrf.mxu0
  %v1322 = vadd.f32 %v1225, %v1321
  %v1323 = vpop.f32.mrf.mxu0
  %1324 = vmatprep.mubr.bf16.mxu0 %v534
  %1325 = vmatmul.mubr.bf16.gmra.mxu0 %v533
  %v1326 = vpop.f32.mrf.mxu0
  %v1327 = vadd.f32 %v1230, %v1326
  %v1328 = vpop.f32.mrf.mxu0
  %v1329 = vpop.f32.mrf.mxu0
  %v1330 = vadd.f32 %v1233, %v1329
  %v1331 = vpop.f32.mrf.mxu0
  %1332 = vdwg.mxu0
  %1333 = vmatprep.subr.bf16.mxu0 0
  %1334 = vmatpush1.bf16.msra.mxu0 %v953
  %1335 = vmatprep.subr.bf16.mxu0 0
  %1336 = vmatpush1.bf16.msra.mxu0 %v952
  %1337 = vmatprep.subr.bf16.mxu0 0
  %1338 = vmatpush1.bf16.msra.mxu0 %v951
  %1339 = vmatprep.subr.bf16.mxu0 0
  %1340 = vmatpush1.bf16.msra.mxu0 %v950
  %1341 = vmatprep.subr.bf16.mxu0 0
  %1342 = vmatpush1.bf16.msra.mxu0 %v949
  %1343 = vmatprep.subr.bf16.mxu0 0
  %1344 = vmatpush1.bf16.msra.mxu0 %v948
  %1345 = vmatprep.subr.bf16.mxu0 0
  %1346 = vmatpush1.bf16.msra.mxu0 %v947
  %1347 = vmatprep.subr.bf16.mxu0 0
  %1348 = vmatpush1.bf16.msra.mxu0 %v946
  %1349 = vmatprep.subr.bf16.mxu0 0
  %1350 = vmatpush2.bf16.msra.mxu0 %v961
  %1351 = vmatprep.subr.bf16.mxu0 0
  %1352 = vmatpush2.bf16.msra.mxu0 %v960
  %1353 = vmatprep.subr.bf16.mxu0 0
  %1354 = vmatpush2.bf16.msra.mxu0 %v959
  %1355 = vmatprep.subr.bf16.mxu0 0
  %1356 = vmatpush2.bf16.msra.mxu0 %v958
  %1357 = vmatprep.subr.bf16.mxu0 0
  %1358 = vmatpush2.bf16.msra.mxu0 %v957
  %1359 = vmatprep.subr.bf16.mxu0 0
  %1360 = vmatpush2.bf16.msra.mxu0 %v956
  %1361 = vmatprep.subr.bf16.mxu0 0
  %1362 = vmatpush2.bf16.msra.mxu0 %v955
  %1363 = vmatprep.subr.bf16.mxu0 0
  %1364 = vmatpush2.bf16.msra.mxu0 %v954
  %1365 = vmatprep.mubr.bf16.mxu0 %v473
  %1366 = vmatmul.mubr.bf16.gmra.mxu0 %v472
  %v1367 = vpop.f32.mrf.mxu0
  %v1368 = vadd.f32 %v1271, %v1367
  %v1369 = vpop.f32.mrf.mxu0
  %v1370 = vpop.f32.mrf.mxu0
  %v1371 = vadd.f32 %v1274, %v1370
  %v1372 = vpop.f32.mrf.mxu0
  %1373 = vmatprep.mubr.bf16.mxu0 %v482
  %1374 = vmatmul.mubr.bf16.gmra.mxu0 %v481
  %v1375 = vpop.f32.mrf.mxu0
  %v1376 = vadd.f32 %v1279, %v1375
  %v1377 = vpop.f32.mrf.mxu0
  %v1378 = vpop.f32.mrf.mxu0
  %v1379 = vadd.f32 %v1282, %v1378
  %v1380 = vpop.f32.mrf.mxu0
  %1381 = vmatprep.mubr.bf16.mxu0 %v491
  %1382 = vmatmul.mubr.bf16.gmra.mxu0 %v490
  %v1383 = vpop.f32.mrf.mxu0
  %v1384 = vadd.f32 %v1287, %v1383
  %v1385 = vpop.f32.mrf.mxu0
  %v1386 = vpop.f32.mrf.mxu0
  %v1387 = vadd.f32 %v1290, %v1386
  %v1388 = vpop.f32.mrf.mxu0
  %1389 = vmatprep.mubr.bf16.mxu0 %v500
  %1390 = vmatmul.mubr.bf16.gmra.mxu0 %v499
  %v1391 = vpop.f32.mrf.mxu0
  %v1392 = vadd.f32 %v1295, %v1391
  %v1393 = vpop.f32.mrf.mxu0
  %v1394 = vpop.f32.mrf.mxu0
  %v1395 = vadd.f32 %v1298, %v1394
  %v1396 = vpop.f32.mrf.mxu0
  %1397 = vmatprep.mubr.bf16.mxu0 %v509
  %1398 = vmatmul.mubr.bf16.gmra.mxu0 %v508
  %v1399 = vpop.f32.mrf.mxu0
  %v1400 = vadd.f32 %v1303, %v1399
  %v1401 = vpop.f32.mrf.mxu0
  %v1402 = vpop.f32.mrf.mxu0
  %v1403 = vadd.f32 %v1306, %v1402
  %v1404 = vpop.f32.mrf.mxu0
  %1405 = vmatprep.mubr.bf16.mxu0 %v518
  %1406 = vmatmul.mubr.bf16.gmra.mxu0 %v517
  %v1407 = vpop.f32.mrf.mxu0
  %v1408 = vadd.f32 %v1311, %v1407
  %v1409 = vpop.f32.mrf.mxu0
  %v1410 = vpop.f32.mrf.mxu0
  %v1411 = vadd.f32 %v1314, %v1410
  %v1412 = vpop.f32.mrf.mxu0
  %1413 = vmatprep.mubr.bf16.mxu0 %v527
  %1414 = vmatmul.mubr.bf16.gmra.mxu0 %v526
  %v1415 = vpop.f32.mrf.mxu0
  %v1416 = vadd.f32 %v1319, %v1415
  %v1417 = vpop.f32.mrf.mxu0
  %v1418 = vpop.f32.mrf.mxu0
  %v1419 = vadd.f32 %v1322, %v1418
  %v1420 = vpop.f32.mrf.mxu0
  %1421 = vmatprep.mubr.bf16.mxu0 %v536
  %1422 = vmatmul.mubr.bf16.gmra.mxu0 %v535
  %v1423 = vpop.f32.mrf.mxu0
  %v1424 = vadd.f32 %v1327, %v1423
  %v1425 = vpop.f32.mrf.mxu0
  %v1426 = vpop.f32.mrf.mxu0
  %v1427 = vadd.f32 %v1330, %v1426
  %v1428 = vpop.f32.mrf.mxu0
  %1429 = vdwg.mxu0
  %1430 = vmatprep.subr.bf16.mxu0 0
  %1431 = vmatpush1.bf16.msra.mxu0 %v969
  %1432 = vmatprep.subr.bf16.mxu0 0
  %1433 = vmatpush1.bf16.msra.mxu0 %v968
  %1434 = vmatprep.subr.bf16.mxu0 0
  %1435 = vmatpush1.bf16.msra.mxu0 %v967
  %1436 = vmatprep.subr.bf16.mxu0 0
  %1437 = vmatpush1.bf16.msra.mxu0 %v966
  %1438 = vmatprep.subr.bf16.mxu0 0
  %1439 = vmatpush1.bf16.msra.mxu0 %v965
  %1440 = vmatprep.subr.bf16.mxu0 0
  %1441 = vmatpush1.bf16.msra.mxu0 %v964
  %1442 = vmatprep.subr.bf16.mxu0 0
  %1443 = vmatpush1.bf16.msra.mxu0 %v963
  %1444 = vmatprep.subr.bf16.mxu0 0
  %1445 = vmatpush1.bf16.msra.mxu0 %v962
  %1446 = vmatprep.subr.bf16.mxu0 0
  %1447 = vmatpush2.bf16.msra.mxu0 0
  %1448 = vmatprep.subr.bf16.mxu0 0
  %1449 = vmatpush2.bf16.msra.mxu0 0
  %1450 = vmatprep.subr.bf16.mxu0 0
  %1451 = vmatpush2.bf16.msra.mxu0 0
  %1452 = vmatprep.subr.bf16.mxu0 0
  %1453 = vmatpush2.bf16.msra.mxu0 0
  %1454 = vmatprep.subr.bf16.mxu0 0
  %1455 = vmatpush2.bf16.msra.mxu0 0
  %1456 = vmatprep.subr.bf16.mxu0 0
  %1457 = vmatpush2.bf16.msra.mxu0 0
  %1458 = vmatprep.subr.bf16.mxu0 0
  %1459 = vmatpush2.bf16.msra.mxu0 0
  %1460 = vmatprep.subr.bf16.mxu0 0
  %1461 = vmatpush2.bf16.msra.mxu0 0
  %1462 = vmatprep.mubr.bf16.mxu0 0
  %1463 = vmatmul.mubr.bf16.gmra.mxu0 %v474
  %v1464 = vpop.f32.mrf.mxu0
  %v1465 = vadd.f32 %v1368, %v1464
  %v1466 = vpop.f32.mrf.mxu0
  %v1467 = vpop.f32.mrf.mxu0
  %v1468 = vadd.f32 %v1371, %v1467
  %v1469 = vpop.f32.mrf.mxu0
  %1470 = vmatprep.mubr.bf16.mxu0 0
  %1471 = vmatmul.mubr.bf16.gmra.mxu0 %v483
  %v1472 = vpop.f32.mrf.mxu0
  %v1473 = vadd.f32 %v1376, %v1472
  %v1474 = vpop.f32.mrf.mxu0
  %v1475 = vpop.f32.mrf.mxu0
  %v1476 = vadd.f32 %v1379, %v1475
  %v1477 = vpop.f32.mrf.mxu0
  %1478 = vmatprep.mubr.bf16.mxu0 0
  %1479 = vmatmul.mubr.bf16.gmra.mxu0 %v492
  %v1480 = vpop.f32.mrf.mxu0
  %v1481 = vadd.f32 %v1384, %v1480
  %v1482 = vpop.f32.mrf.mxu0
  %v1483 = vpop.f32.mrf.mxu0
  %v1484 = vadd.f32 %v1387, %v1483
  %v1485 = vpop.f32.mrf.mxu0
  %1486 = vmatprep.mubr.bf16.mxu0 0
  %1487 = vmatmul.mubr.bf16.gmra.mxu0 %v501
  %v1488 = vpop.f32.mrf.mxu0
  %v1489 = vadd.f32 %v1392, %v1488
  %v1490 = vpop.f32.mrf.mxu0
  %v1491 = vpop.f32.mrf.mxu0
  %v1492 = vadd.f32 %v1395, %v1491
  %v1493 = vpop.f32.mrf.mxu0
  %1494 = vmatprep.mubr.bf16.mxu0 0
  %1495 = vmatmul.mubr.bf16.gmra.mxu0 %v510
  %v1496 = vpop.f32.mrf.mxu0
  %v1497 = vadd.f32 %v1400, %v1496
  %v1498 = vpop.f32.mrf.mxu0
  %v1499 = vpop.f32.mrf.mxu0
  %v1500 = vadd.f32 %v1403, %v1499
  %v1501 = vpop.f32.mrf.mxu0
  %1502 = vmatprep.mubr.bf16.mxu0 0
  %1503 = vmatmul.mubr.bf16.gmra.mxu0 %v519
  %v1504 = vpop.f32.mrf.mxu0
  %v1505 = vadd.f32 %v1408, %v1504
  %v1506 = vpop.f32.mrf.mxu0
  %v1507 = vpop.f32.mrf.mxu0
  %v1508 = vadd.f32 %v1411, %v1507
  %v1509 = vpop.f32.mrf.mxu0
  %1510 = vmatprep.mubr.bf16.mxu0 0
  %1511 = vmatmul.mubr.bf16.gmra.mxu0 %v528
  %v1512 = vpop.f32.mrf.mxu0
  %v1513 = vadd.f32 %v1416, %v1512
  %v1514 = vpop.f32.mrf.mxu0
  %v1515 = vpop.f32.mrf.mxu0
  %v1516 = vadd.f32 %v1419, %v1515
  %v1517 = vpop.f32.mrf.mxu0
  %1518 = vmatprep.mubr.bf16.mxu0 0
  %1519 = vmatmul.mubr.bf16.gmra.mxu0 %v537
  %v1520 = vpop.f32.mrf.mxu0
  %v1521 = vadd.f32 %v1424, %v1520
  %v1522 = vpop.f32.mrf.mxu0
  %v1523 = vpop.f32.mrf.mxu0
  %v1524 = vadd.f32 %v1427, %v1523
  %v1525 = vpop.f32.mrf.mxu0
  %1526 = vdwg.mxu0
  %v1527 = vld [vmem:[%s2] sm:$0x1]
  %v1528 = vlaneseq
  %v1529 = vshrl.u32 %v1528, 7
  %v1530 = vsub.s32 0, %v1529
  %v1531 = vrot.slane %v1527, %v1530
  %v1532 = vmul.f32 %v1465, %v1531
  %v1533 = vmul.f32 %v1468, %v1531
  %v1534 = vmul.f32 %v1473, %v1531
  %v1535 = vmul.f32 %v1476, %v1531
  %v1536 = vmul.f32 %v1481, %v1531
  %v1537 = vmul.f32 %v1484, %v1531
  %v1538 = vmul.f32 %v1489, %v1531
  %v1539 = vmul.f32 %v1492, %v1531
  %v1540 = vmul.f32 %v1497, %v1531
  %v1541 = vmul.f32 %v1500, %v1531
  %v1542 = vmul.f32 %v1505, %v1531
  %v1543 = vmul.f32 %v1508, %v1531
  %v1544 = vmul.f32 %v1513, %v1531
  %v1545 = vmul.f32 %v1516, %v1531
  %v1546 = vmul.f32 %v1521, %v1531
  %v1547 = vmul.f32 %v1524, %v1531
  %v1548 = vld [vmem:[%s2 + $0x1] sm:$0x1]
  %v1549 = vlaneseq
  %v1550 = vshrl.u32 %v1549, 7
  %v1551 = vsub.s32 0, %v1550
  %v1552 = vrot.slane %v1548, %v1551
  %v1553 = vadd.f32 %v1532, %v1552
  %v1554 = vadd.f32 %v1533, %v1552
  %v1555 = vadd.f32 %v1534, %v1552
  %v1556 = vadd.f32 %v1535, %v1552
  %v1557 = vadd.f32 %v1536, %v1552
  %v1558 = vadd.f32 %v1537, %v1552
  %v1559 = vadd.f32 %v1538, %v1552
  %v1560 = vadd.f32 %v1539, %v1552
  %v1561 = vadd.f32 %v1540, %v1552
  %v1562 = vadd.f32 %v1541, %v1552
  %v1563 = vadd.f32 %v1542, %v1552
  %v1564 = vadd.f32 %v1543, %v1552
  %v1565 = vadd.f32 %v1544, %v1552
  %v1566 = vadd.f32 %v1545, %v1552
  %v1567 = vadd.f32 %v1546, %v1552
  %v1568 = vadd.f32 %v1547, %v1552
  %v1569 = vld [vmem:[%s3] sm:$0xf]
  %v1570 = vld [vmem:[%s3 + $0x4] sm:$0xf]
  %v1571 = vld [vmem:[%s3 + $0x8] sm:$0xf]
  %v1572 = vld [vmem:[%s3 + $0xc] sm:$0xf]
  %v1573 = vld [vmem:[%s3 + $0x10] sm:$0xf]
  %v1574 = vld [vmem:[%s3 + $0x14] sm:$0xf]
  %v1575 = vld [vmem:[%s3 + $0x18] sm:$0xf]
  %v1576 = vld [vmem:[%s3 + $0x1c] sm:$0xf]
  %v1577 = vld [vmem:[%s3 + $0x20] sm:$0xf]
  %v1578 = vld [vmem:[%s3 + $0x24] sm:$0xf]
  %v1579 = vld [vmem:[%s3 + $0x28] sm:$0xf]
  %v1580 = vld [vmem:[%s3 + $0x2c] sm:$0xf]
  %v1581 = vld [vmem:[%s3 + $0x30] sm:$0xf]
  %v1582 = vld [vmem:[%s3 + $0x34] sm:$0xf]
  %v1583 = vld [vmem:[%s3 + $0x38] sm:$0xf]
  %v1584 = vld [vmem:[%s3 + $0x3c] sm:$0xf]
  %v1585 = vunpack.c.l.bf16 %v1569
  %v1586 = vunpack.c.l.bf16 %v1570
  %v1587 = vunpack.c.l.bf16 %v1571
  %v1588 = vunpack.c.l.bf16 %v1572
  %v1589 = vunpack.c.l.bf16 %v1573
  %v1590 = vunpack.c.l.bf16 %v1574
  %v1591 = vunpack.c.l.bf16 %v1575
  %v1592 = vunpack.c.l.bf16 %v1576
  %v1593 = vunpack.c.l.bf16 %v1577
  %v1594 = vunpack.c.l.bf16 %v1578
  %v1595 = vunpack.c.l.bf16 %v1579
  %v1596 = vunpack.c.l.bf16 %v1580
  %v1597 = vunpack.c.l.bf16 %v1581
  %v1598 = vunpack.c.l.bf16 %v1582
  %v1599 = vunpack.c.l.bf16 %v1583
  %v1600 = vunpack.c.l.bf16 %v1584
  %v1601 = vadd.f32 %v1553, %v1585
  %v1602 = vadd.f32 %v1554, %v1586
  %v1603 = vadd.f32 %v1555, %v1587
  %v1604 = vadd.f32 %v1556, %v1588
  %v1605 = vadd.f32 %v1557, %v1589
  %v1606 = vadd.f32 %v1558, %v1590
  %v1607 = vadd.f32 %v1559, %v1591
  %v1608 = vadd.f32 %v1560, %v1592
  %v1609 = vadd.f32 %v1561, %v1593
  %v1610 = vadd.f32 %v1562, %v1594
  %v1611 = vadd.f32 %v1563, %v1595
  %v1612 = vadd.f32 %v1564, %v1596
  %v1613 = vadd.f32 %v1565, %v1597
  %v1614 = vadd.f32 %v1566, %v1598
  %v1615 = vadd.f32 %v1567, %v1599
  %v1616 = vadd.f32 %v1568, %v1600
  %v1617 = vmax.f32 %v1601, 0.0
  %v1618 = vmax.f32 %v1602, 0.0
  %v1619 = vmax.f32 %v1603, 0.0
  %v1620 = vmax.f32 %v1604, 0.0
  %v1621 = vmax.f32 %v1605, 0.0
  %v1622 = vmax.f32 %v1606, 0.0
  %v1623 = vmax.f32 %v1607, 0.0
  %v1624 = vmax.f32 %v1608, 0.0
  %v1625 = vmax.f32 %v1609, 0.0
  %v1626 = vmax.f32 %v1610, 0.0
  %v1627 = vmax.f32 %v1611, 0.0
  %v1628 = vmax.f32 %v1612, 0.0
  %v1629 = vmax.f32 %v1613, 0.0
  %v1630 = vmax.f32 %v1614, 0.0
  %v1631 = vmax.f32 %v1615, 0.0
  %v1632 = vmax.f32 %v1616, 0.0
  %v1633 = vpack.c.bf16 %v1618, %v1617
  %v1634 = vpack.c.bf16 %v1620, %v1619
  %v1635 = vpack.c.bf16 %v1622, %v1621
  %v1636 = vpack.c.bf16 %v1624, %v1623
  %v1637 = vpack.c.bf16 %v1626, %v1625
  %v1638 = vpack.c.bf16 %v1628, %v1627
  %v1639 = vpack.c.bf16 %v1630, %v1629
  %v1640 = vpack.c.bf16 %v1632, %v1631
  %v1649 = vunpack.c.l.b16 %v1633
  %v1650 = vunpack.c.h.b16 %v1633
  %v1651 = vunpack.c.l.b16 %v1634
  %v1652 = vunpack.c.h.b16 %v1634
  %v1653 = vunpack.c.l.b16 %v1635
  %v1654 = vunpack.c.h.b16 %v1635
  %v1655 = vunpack.c.l.b16 %v1636
  %v1656 = vunpack.c.h.b16 %v1636
  %v1657 = vunpack.c.l.b16 %v1637
  %v1658 = vunpack.c.h.b16 %v1637
  %v1659 = vunpack.c.l.b16 %v1638
  %v1660 = vunpack.c.h.b16 %v1638
  %v1661 = vunpack.c.l.b16 %v1639
  %v1662 = vunpack.c.h.b16 %v1639
  %v1663 = vunpack.c.l.b16 %v1640
  %v1664 = vunpack.c.h.b16 %v1640
  %v1665 = vpack.c.b16 %v1649, %v1649
  %v1666 = vpack.c.b16 %v1650, %v1650
  %v1667 = vpack.c.b16 %v1651, %v1651
  %v1668 = vpack.c.b16 %v1652, %v1652
  %v1669 = vpack.c.b16 %v1653, %v1653
  %v1670 = vpack.c.b16 %v1654, %v1654
  %v1671 = vpack.c.b16 %v1655, %v1655
  %v1672 = vpack.c.b16 %v1656, %v1656
  %v1673 = vpack.c.b16 %v1657, %v1657
  %v1674 = vpack.c.b16 %v1658, %v1658
  %v1675 = vpack.c.b16 %v1659, %v1659
  %v1676 = vpack.c.b16 %v1660, %v1660
  %v1677 = vpack.c.b16 %v1661, %v1661
  %v1678 = vpack.c.b16 %v1662, %v1662
  %v1679 = vpack.c.b16 %v1663, %v1663
  %v1680 = vpack.c.b16 %v1664, %v1664
  %1697 = vst [vmem:[%s4] sm:$0xf] %v1665
  %1698 = vst [vmem:[%s4 + $0x4] sm:$0xf] %v1666
  %1699 = vst [vmem:[%s4 + $0x8] sm:$0xf] %v1667
  %1700 = vst [vmem:[%s4 + $0xc] sm:$0xf] %v1668
  %1701 = vst [vmem:[%s4 + $0x10] sm:$0xf] %v1669
  %1702 = vst [vmem:[%s4 + $0x14] sm:$0xf] %v1670
  %1703 = vst [vmem:[%s4 + $0x18] sm:$0xf] %v1671
  %1704 = vst [vmem:[%s4 + $0x1c] sm:$0xf] %v1672
  %1705 = vst [vmem:[%s4 + $0x20] sm:$0xf] %v1673
  %1706 = vst [vmem:[%s4 + $0x24] sm:$0xf] %v1674
  %1707 = vst [vmem:[%s4 + $0x28] sm:$0xf] %v1675
  %1708 = vst [vmem:[%s4 + $0x2c] sm:$0xf] %v1676
  %1709 = vst [vmem:[%s4 + $0x30] sm:$0xf] %v1677
  %1710 = vst [vmem:[%s4 + $0x34] sm:$0xf] %v1678
  %1711 = vst [vmem:[%s4 + $0x38] sm:$0xf] %v1679
  %1712 = vst [vmem:[%s4 + $0x3c] sm:$0xf] %v1680
  // Predicated region
  $region18: #{deeplabv3_forward.17} parent=0 // pred_check
    _
  $region19: #{deeplabv3_forward.17} parent=0 // pred_check_branch
    %1714 = sbr.rel (0) target = $region21
  $region20: #{deeplabv3_forward.17} parent=0 // pred_region
    _
  $region21: #{deeplabv3_forward.17} parent=0 // pred_fallthru
    _
  // Predicated region
  $region22: #{deeplabv3_forward.17} parent=0 // pred_check
    _
  $region23: #{deeplabv3_forward.17} parent=0 // pred_check_branch
    %1716 = sbr.rel (0) target = $region25
  $region24: #{deeplabv3_forward.17} parent=0 // pred_region
    _
  $region25: #{deeplabv3_forward.17} parent=0 // pred_fallthru
    _

</llo_original>
